<compile_context>
chip_gen: v5e
topology: v5e:2x2
jax: 0.10.0
libtpu: 0.0.40
codegen_flags: <defaults>
</compile_context>

<pallas_src>
import functools

import jax
import jax.numpy as jnp
from jax.experimental import pallas as pl
from jax.experimental.pallas import tpu as pltpu

LANE = 128


# ------------------------------ small helpers ------------------------------

def _round_up(n, m):
    return ((n + m - 1) // m) * m


def _pick_tile(m, cap):
    """Largest row-tile <= cap that divides m (multiple of 8); else ragged cap."""
    if m <= cap:
        return m
    for t in range(cap, 7, -8):
        if m % t == 0:
            return t
    return cap  # ragged last block: Pallas masks out-of-bounds writes


def _apply_act(x, act):
    if act == "relu":
        return jnp.maximum(x, 0.0)
    if act == "sigmoid":
        return jax.nn.sigmoid(x)
    return x


# ----------------------------- Pallas kernels ------------------------------

def _matmul_bias_act_kernel(x_ref, w_ref, b_ref, o_ref, *, act):
    acc = jnp.dot(x_ref[...], w_ref[...], preferred_element_type=jnp.float32)
    acc = acc + b_ref[...]                       # (1, Np) broadcast over rows
    o_ref[...] = _apply_act(acc, act).astype(o_ref.dtype)


def matmul_bias_act(x, w, b, act="none", tm_cap=512):
    """(M,K) @ (K,N) + b with fused activation.

    bf16 operands into the MXU, f32 accumulation.  Output columns are
    zero-padded up to a multiple of 128 (lane-dense stores); returns the
    padded (M, Np) f32 slab -- callers slice [:, :N] only when needed.
    """
    M, K = x.shape
    N = w.shape[1]
    Np = _round_up(max(N, LANE), LANE)
    wp = jnp.pad(w.astype(jnp.bfloat16), ((0, 0), (0, Np - N)))
    bp = jnp.pad(b.astype(jnp.float32), (0, Np - N)).reshape(1, Np)
    tm = _pick_tile(M, tm_cap)
    return pl.pallas_call(
        functools.partial(_matmul_bias_act_kernel, act=act),
        out_shape=jax.ShapeDtypeStruct((M, Np), jnp.float32),
        grid=(pl.cdiv(M, tm),),
        in_specs=[
            pl.BlockSpec((tm, K), lambda i: (i, 0)),
            pl.BlockSpec((K, Np), lambda i: (0, 0)),
            pl.BlockSpec((1, Np), lambda i: (0, 0)),
        ],
        out_specs=pl.BlockSpec((tm, Np), lambda i: (i, 0)),
        compiler_params=pltpu.CompilerParams(dimension_semantics=("parallel",)),
    )(x.astype(jnp.bfloat16), wp, bp)


def _mlp2_kernel(x_ref, w1_ref, b1_ref, w2_ref, b2_ref, o_ref, *, act1, act2):
    h = jnp.dot(x_ref[...], w1_ref[...], preferred_element_type=jnp.float32)
    h = _apply_act(h + b1_ref[...], act1)
    o = jnp.dot(h.astype(jnp.bfloat16), w2_ref[...],
                preferred_element_type=jnp.float32)
    o_ref[...] = _apply_act(o + b2_ref[...], act2).astype(o_ref.dtype)


def mlp2(x, w1, b1, w2, b2, act1, act2, tm_cap=512):
    """Fused two-layer FC: act2(act1(x@w1+b1)@w2+b2) in one Pallas call.

    Both small weight matrices stay resident in VMEM; the hidden activation
    never round-trips through HBM.  Hidden/output widths are zero-padded to
    multiples of 128 (zero hidden columns contribute exactly zero).
    """
    M, K = x.shape
    H = w1.shape[1]
    N = w2.shape[1]
    Hp = _round_up(max(H, LANE), LANE)
    Np = _round_up(max(N, LANE), LANE)
    w1p = jnp.pad(w1.astype(jnp.bfloat16), ((0, 0), (0, Hp - H)))
    b1p = jnp.pad(b1.astype(jnp.float32), (0, Hp - H)).reshape(1, Hp)
    w2p = jnp.pad(w2.astype(jnp.bfloat16), ((0, Hp - H), (0, Np - N)))
    b2p = jnp.pad(b2.astype(jnp.float32), (0, Np - N)).reshape(1, Np)
    tm = _pick_tile(M, tm_cap)
    return pl.pallas_call(
        functools.partial(_mlp2_kernel, act1=act1, act2=act2),
        out_shape=jax.ShapeDtypeStruct((M, Np), jnp.float32),
        grid=(pl.cdiv(M, tm),),
        in_specs=[
            pl.BlockSpec((tm, K), lambda i: (i, 0)),
            pl.BlockSpec((K, Hp), lambda i: (0, 0)),
            pl.BlockSpec((1, Hp), lambda i: (0, 0)),
            pl.BlockSpec((Hp, Np), lambda i: (0, 0)),
            pl.BlockSpec((1, Np), lambda i: (0, 0)),
        ],
        out_specs=pl.BlockSpec((tm, Np), lambda i: (i, 0)),
        compiler_params=pltpu.CompilerParams(dimension_semantics=("parallel",)),
    )(x.astype(jnp.bfloat16), w1p, b1p, w2p, b2p)


def _maxpool_kernel(x_ref, o_ref, *, cp):
    # x block: (TR, 2, Wo, 2*Cp): [row-pair, row-parity, wo, (col-parity, chan)]
    top = jnp.maximum(x_ref[:, 0, :, :], x_ref[:, 1, :, :])        # max over rows
    pooled = jnp.maximum(top[:, :, :cp], top[:, :, cp:])           # max over col pairs
    o_ref[...] = pooled[:, :, : o_ref.shape[-1]]                   # drop pad channels


def maxpool2x2(x, c_out, tr_cap=256):
    """MaxPool2d(2,2) on NHWC (channel dim may be lane-padded).

    Single contiguous read of the conv output (no strided HBM taps); only the
    first `c_out` real channels are written back.
    """
    B, H, W, Cp = x.shape
    Ho, Wo = H // 2, W // 2
    R = B * Ho
    xr = x.reshape(R, 2, Wo, 2 * Cp)                # contiguous, no copy
    tr = _pick_tile(R, tr_cap)
    out = pl.pallas_call(
        functools.partial(_maxpool_kernel, cp=Cp),
        out_shape=jax.ShapeDtypeStruct((R, Wo, c_out), jnp.float32),
        grid=(pl.cdiv(R, tr),),
        in_specs=[pl.BlockSpec((tr, 2, Wo, 2 * Cp), lambda i: (i, 0, 0, 0))],
        out_specs=pl.BlockSpec((tr, Wo, c_out), lambda i: (i, 0, 0)),
        compiler_params=pltpu.CompilerParams(dimension_semantics=("parallel",)),
    )(xr)
    return out.reshape(B, Ho, Wo, c_out)


# ------------------------------ JAX glue ops -------------------------------

def _im2col(x, kh, kw):
    # x: (B,H,W,C) -> (B,Ho,Wo,kh*kw*C); patch ordering (kh, kw, c_in).
    B, H, W, C = x.shape
    Ho, Wo = H - kh + 1, W - kw + 1
    cols = [x[:, i:i + Ho, j:j + Wo, :] for i in range(kh) for j in range(kw)]
    return jnp.concatenate(cols, axis=-1)


# TODO(synk): fold the kh*kw tap loop into the matmul kernel (extra "arbitrary"
# grid axis + pl.when-gated accumulator) so the encoder convs stop
# materializing im2col patches in HBM.
def conv2d(x, w_oihw, b, act):
    """stride-1 valid conv, NHWC activations, PyTorch (Co,Ci,KH,KW) weights.

    Returns (B, Ho, Wo, Co_padded_to_128) f32 (padding removed by the pool).
    """
    Co, Ci, KH, KW = w_oihw.shape
    patches = _im2col(x.astype(jnp.bfloat16), KH, KW)    # bf16 halves patch traffic
    B, Ho, Wo, P = patches.shape
    wmat = jnp.transpose(w_oihw, (2, 3, 1, 0)).reshape(P, Co)   # rows = (kh,kw,ci)
    out = matmul_bias_act(patches.reshape(B * Ho * Wo, P), wmat, b, act)
    return out.reshape(B, Ho, Wo, -1)


def unpool_deconv(y, w_t, b, act):
    """MaxUnpool2d(2) (module's synthetic top-left indices) + ConvTranspose2d(K,1),
    computed as 4 polyphase sub-convolutions of the pre-unpool tensor.

    out[2i+pr, 2j+pc] only sees kernel taps with matching parity, so each
    output-parity class is a small valid conv of `y` with a sub-sampled kernel;
    this skips the 75%-zero rows / zero-padded im2col of the naive lowering.

    y: (B,h,w,Ci) NHWC; w_t: PyTorch ConvTranspose weight (Ci,Co,KH,KW).
    Returns (B, 2h+KH-1, 2w+KW-1, Co) f32.
    """
    B, h, w, Ci = y.shape
    _, Co, KH, KW = w_t.shape
    assert KH % 2 == 1 and KW % 2 == 1
    OH, OW = 2 * h + KH - 1, 2 * w + KW - 1
    Hp, Wp = OH // 2, OW // 2                      # per-phase output size (K odd)
    yb = y.astype(jnp.bfloat16)

    phase = [[None, None], [None, None]]
    for pr in (0, 1):
        for pc in (0, 1):
            kh_idx = list(range(KH - 1 - pr, -1, -2))   # weight rows hit by phase
            kw_idx = list(range(KW - 1 - pc, -1, -2))
            nH, nW = len(kh_idx), len(kw_idx)
            offH, offW = kh_idx[0] // 2, kw_idx[0] // 2
            padH = (offH, (Hp - 1) - offH + (nH - 1) - (h - 1))
            padW = (offW, (Wp - 1) - offW + (nW - 1) - (w - 1))
            yp = jnp.pad(yb, ((0, 0), padH, padW, (0, 0)))
            patches = _im2col(yp, nH, nW)                      # (B,Hp,Wp,nH*nW*Ci)
            wph = w_t[:, :, kh_idx, :][:, :, :, kw_idx]        # (Ci,Co,nH,nW)
            wmat = jnp.transpose(wph, (2, 3, 0, 1)).reshape(nH * nW * Ci, Co)
            out = matmul_bias_act(patches.reshape(B * Hp * Wp, nH * nW * Ci),
                                  wmat, b, act)
            phase[pr][pc] = out[:, :Co].reshape(B, Hp, Wp, Co)

    top = jnp.stack(phase[0], axis=3)              # (B,Hp,Wp,2,Co): col parity
    bot = jnp.stack(phase[1], axis=3)
    full = jnp.stack([top, bot], axis=2)           # (B,Hp,2,Wp,2,Co)
    return full.reshape(B, OH, OW, Co)


# ------------------------------- parameters --------------------------------

def init_params(key, channel_size=1, dim=32):
    outer, inner, hidden = 26, 36, 250

    def w_b(k, w_shape, b_size, fan_in):
        kw, kb = jax.random.split(k)
        bound = 1.0 / (fan_in ** 0.5)
        w = jax.random.uniform(kw, w_shape, jnp.float32, -bound, bound)
        b = jax.random.uniform(kb, (b_size,), jnp.float32, -bound, bound)
        return w, b

    ks = jax.random.split(key, 8)
    p = {}
    p["conv1_w"], p["conv1_b"] = w_b(ks[0], (outer, channel_size, 5, 5), outer, channel_size * 25)
    p["conv2_w"], p["conv2_b"] = w_b(ks[1], (inner, outer, 5, 5), inner, outer * 25)
    p["fcEnc1_w"], p["fcEnc1_b"] = w_b(ks[2], (hidden, 576), hidden, 576)
    p["fcEnc2_w"], p["fcEnc2_b"] = w_b(ks[3], (dim, hidden), dim, hidden)
    p["fcDec_w"], p["fcDec_b"] = w_b(ks[4], (hidden, dim), hidden, dim)
    p["deconv2_w"], p["deconv2_b"] = w_b(ks[5], (hidden, inner, 4, 4), inner, inner * 16)
    p["deconv1_w"], p["deconv1_b"] = w_b(ks[6], (inner, outer, 5, 5), outer, outer * 25)
    p["deconv0_w"], p["deconv0_b"] = w_b(ks[7], (outer, channel_size, 5, 5), channel_size, channel_size * 25)
    return p


# -------------------------------- forward ----------------------------------

def ae_cnn_mnist_forward(x_nchw, p):
    """forward(x) -> reconstruction (first element of the (recon, None, None) tuple)."""
    B = x_nchw.shape[0]
    dim = p["fcEnc2_w"].shape[0]
    x = jnp.transpose(x_nchw, (0, 2, 3, 1)).astype(jnp.float32)        # NHWC

    # ---- encode ----
    x = conv2d(x, p["conv1_w"], p["conv1_b"], act="relu")              # (B,24,24,128)
    x = maxpool2x2(x, p["conv1_w"].shape[0])                           # (B,12,12,26)
    x = conv2d(x, p["conv2_w"], p["conv2_b"], act="relu")              # (B,8,8,128)
    x = maxpool2x2(x, p["conv2_w"].shape[0])                           # (B,4,4,36)
    flat = jnp.transpose(x, (0, 3, 1, 2)).reshape(B, -1)               # (B,576) NCHW order
    z = mlp2(flat, p["fcEnc1_w"].T, p["fcEnc1_b"],
             p["fcEnc2_w"].T, p["fcEnc2_b"], "relu", "none")[:, :dim]  # latent (B,dim)

    # ---- decode ----
    # fcDec -> (deconv2 applied to a 1x1 map == linear), fused into one call.
    w_dec2 = p["deconv2_w"].reshape(p["deconv2_w"].shape[0], -1)       # (250, 36*4*4)
    b_dec2 = jnp.repeat(p["deconv2_b"], 16)
    h = mlp2(z, p["fcDec_w"].T, p["fcDec_b"], w_dec2, b_dec2, "relu", "relu")
    x = jnp.transpose(h[:, :576].reshape(B, 36, 4, 4), (0, 2, 3, 1))   # (B,4,4,36) NHWC
    x = unpool_deconv(x, p["deconv1_w"], p["deconv1_b"], "relu")       # (B,12,12,26)
    x = unpool_deconv(x, p["deconv0_w"], p["deconv0_b"], "sigmoid")    # (B,28,28,C)
    return jnp.transpose(x, (0, 3, 1, 2))                              # NCHW


if __name__ == "__main__":
    key = jax.random.PRNGKey(0)
    kx, kp = jax.random.split(key)
    # MNIST geometry is required: fcEnc1 expects 576 = 36*4*4, so H=W=28.
    x = jax.random.uniform(kx, (2, 1, 28, 28), jnp.float32)
    params = init_params(kp, channel_size=1, dim=32)
    out = jax.jit(ae_cnn_mnist_forward)(x, params)
    jax.block_until_ready(out)
    assert out.shape == (2, 1, 28, 28) and out.dtype == jnp.float32
    print("KERNEL_OK")
</pallas_src>

<mosaic_0001>
module attributes {stable_mosaic.version = 11 : i64} {
  func.func @_matmul_bias_act_kernel(%arg0: i32, %arg1: memref<384x25xbf16, #tpu.memory_space<vmem>>, %arg2: memref<25x128xbf16, #tpu.memory_space<vmem>>, %arg3: memref<1x128xf32, #tpu.memory_space<vmem>>, %arg4: memref<384x128xf32, #tpu.memory_space<vmem>>) attributes {dimension_semantics = [#tpu.dimension_semantics<parallel>], iteration_bounds = array<i64: 3>, scalar_prefetch = 0 : i64, scratch_operands = 0 : i64, tpu.core_type = #tpu.core_type<tc>, window_params = [{transform_indices = @transform_0, window_bounds = array<i64: 384, 25>}, {pipeline_mode = #tpu.pipeline_mode<synchronous>, transform_indices = @transform_1, window_bounds = array<i64: 25, 128>}, {pipeline_mode = #tpu.pipeline_mode<synchronous>, transform_indices = @transform_2, window_bounds = array<i64: 1, 128>}, {transform_indices = @transform_3, window_bounds = array<i64: 384, 128>}]} {
    %c0 = arith.constant 0 : index
    %c0_0 = arith.constant 0 : index
    %0 = vector.load %arg1[%c0, %c0_0] : memref<384x25xbf16, #tpu.memory_space<vmem>>, vector<384x25xbf16>
    %c0_1 = arith.constant 0 : index
    %c0_2 = arith.constant 0 : index
    %1 = vector.load %arg2[%c0_1, %c0_2] : memref<25x128xbf16, #tpu.memory_space<vmem>>, vector<25x128xbf16>
    %cst = arith.constant dense<0.000000e+00> : vector<384x128xf32>
    %2 = tpu.matmul %0, %1, %cst {dimension_numbers = #tpu.dot_dimension_numbers<[1], [0], [0], [1], [0, 0, 1, 1], [], []>} : vector<384x25xbf16>, vector<25x128xbf16>, vector<384x128xf32> -> vector<384x128xf32>
    %c0_3 = arith.constant 0 : index
    %c0_4 = arith.constant 0 : index
    %3 = vector.load %arg3[%c0_3, %c0_4] : memref<1x128xf32, #tpu.memory_space<vmem>>, vector<1x128xf32>
    %4 = vector.broadcast %3 : vector<1x128xf32> to vector<384x128xf32>
    %5 = arith.addf %2, %4 : vector<384x128xf32>
    %cst_5 = arith.constant 0.000000e+00 : f32
    %6 = vector.broadcast %cst_5 : f32 to vector<384x128xf32>
    %7 = arith.maximumf %5, %6 : vector<384x128xf32>
    %c0_6 = arith.constant 0 : index
    %c0_7 = arith.constant 0 : index
    %8 = vector.load %arg4[%c0_6, %c0_7] : memref<384x128xf32, #tpu.memory_space<vmem>>, vector<384x128xf32>
    tpu.vector_store %arg4[%c0_6, %c0_7], %7 {strides = array<i32>} : memref<384x128xf32, #tpu.memory_space<vmem>>, vector<384x128xf32>,
    return
  }
  func.func @transform_0(%arg0: i32) -> (i32, i32) {
    %c0_i32 = arith.constant 0 : i32
    %c0_i32_0 = arith.constant 0 : i32
    return %arg0, %c0_i32 : i32, i32
  }
  func.func @transform_1(%arg0: i32) -> (i32, i32) {
    %c0_i32 = arith.constant 0 : i32
    %c0_i32_0 = arith.constant 0 : i32
    %c0_i32_1 = arith.constant 0 : i32
    return %c0_i32, %c0_i32_0 : i32, i32
  }
  func.func @transform_2(%arg0: i32) -> (i32, i32) {
    %c0_i32 = arith.constant 0 : i32
    %c0_i32_0 = arith.constant 0 : i32
    %c0_i32_1 = arith.constant 0 : i32
    return %c0_i32, %c0_i32_0 : i32, i32
  }
  func.func @transform_3(%arg0: i32) -> (i32, i32) {
    %c0_i32 = arith.constant 0 : i32
    %c0_i32_0 = arith.constant 0 : i32
    return %arg0, %c0_i32 : i32, i32
  }
}

module attributes {stable_mosaic.version = 11 : i64} {
  func.func @_maxpool_kernel(%arg0: i32, %arg1: memref<24x2x12x256xf32, #tpu.memory_space<vmem>>, %arg2: memref<24x12x26xf32, #tpu.memory_space<vmem>>) attributes {dimension_semantics = [#tpu.dimension_semantics<parallel>], iteration_bounds = array<i64: 1>, scalar_prefetch = 0 : i64, scratch_operands = 0 : i64, tpu.core_type = #tpu.core_type<tc>, window_params = [{transform_indices = @transform_0, window_bounds = array<i64: 24, 2, 12, 256>}, {transform_indices = @transform_1, window_bounds = array<i64: 24, 12, 26>}]} {
    %c0 = arith.constant 0 : index
    %c0_0 = arith.constant 0 : index
    %c0_1 = arith.constant 0 : index
    %c0_2 = arith.constant 0 : index
    %0 = vector.load %arg1[%c0, %c0_0, %c0_1, %c0_2] : memref<24x2x12x256xf32, #tpu.memory_space<vmem>>, vector<24x1x12x256xf32>
    %1 = vector.shape_cast %0 : vector<24x1x12x256xf32> to vector<24x12x256xf32>
    %c0_3 = arith.constant 0 : index
    %c1 = arith.constant 1 : index
    %c0_4 = arith.constant 0 : index
    %c0_5 = arith.constant 0 : index
    %2 = vector.load %arg1[%c0_3, %c1, %c0_4, %c0_5] : memref<24x2x12x256xf32, #tpu.memory_space<vmem>>, vector<24x1x12x256xf32>
    %3 = vector.shape_cast %2 : vector<24x1x12x256xf32> to vector<24x12x256xf32>
    %4 = arith.maximumf %1, %3 : vector<24x12x256xf32>
    %5 = vector.extract_strided_slice %4 {offsets = [0, 0, 0], sizes = [24, 12, 128], strides = [1, 1, 1]} : vector<24x12x256xf32> to vector<24x12x128xf32>
    %6 = vector.extract_strided_slice %4 {offsets = [0, 0, 128], sizes = [24, 12, 128], strides = [1, 1, 1]} : vector<24x12x256xf32> to vector<24x12x128xf32>
    %7 = arith.maximumf %5, %6 : vector<24x12x128xf32>
    %8 = vector.extract_strided_slice %7 {offsets = [0, 0, 0], sizes = [24, 12, 26], strides = [1, 1, 1]} : vector<24x12x128xf32> to vector<24x12x26xf32>
    %c0_6 = arith.constant 0 : index
    %c0_7 = arith.constant 0 : index
    %c0_8 = arith.constant 0 : index
    %9 = vector.load %arg2[%c0_6, %c0_7, %c0_8] : memref<24x12x26xf32, #tpu.memory_space<vmem>>, vector<24x12x26xf32>
    tpu.vector_store %arg2[%c0_6, %c0_7, %c0_8], %8 {strides = array<i32>} : memref<24x12x26xf32, #tpu.memory_space<vmem>>, vector<24x12x26xf32>,
    return
  }
  func.func @transform_0(%arg0: i32) -> (i32, i32, i32, i32) {
    %c0_i32 = arith.constant 0 : i32
    %c0_i32_0 = arith.constant 0 : i32
    %c0_i32_1 = arith.constant 0 : i32
    %c0_i32_2 = arith.constant 0 : i32
    return %arg0, %c0_i32, %c0_i32_0, %c0_i32_1 : i32, i32, i32, i32
  }
  func.func @transform_1(%arg0: i32) -> (i32, i32, i32) {
    %c0_i32 = arith.constant 0 : i32
    %c0_i32_0 = arith.constant 0 : i32
    %c0_i32_1 = arith.constant 0 : i32
    return %arg0, %c0_i32, %c0_i32_0 : i32, i32, i32
  }
}

module attributes {stable_mosaic.version = 11 : i64} {
  func.func @_matmul_bias_act_kernel(%arg0: i32, %arg1: memref<128x650xbf16, #tpu.memory_space<vmem>>, %arg2: memref<650x128xbf16, #tpu.memory_space<vmem>>, %arg3: memref<1x128xf32, #tpu.memory_space<vmem>>, %arg4: memref<128x128xf32, #tpu.memory_space<vmem>>) attributes {dimension_semantics = [#tpu.dimension_semantics<parallel>], iteration_bounds = array<i64: 1>, scalar_prefetch = 0 : i64, scratch_operands = 0 : i64, tpu.core_type = #tpu.core_type<tc>, window_params = [{transform_indices = @transform_0, window_bounds = array<i64: 128, 650>}, {pipeline_mode = #tpu.pipeline_mode<synchronous>, transform_indices = @transform_1, window_bounds = array<i64: 650, 128>}, {pipeline_mode = #tpu.pipeline_mode<synchronous>, transform_indices = @transform_2, window_bounds = array<i64: 1, 128>}, {transform_indices = @transform_3, window_bounds = array<i64: 128, 128>}]} {
    %c0 = arith.constant 0 : index
    %c0_0 = arith.constant 0 : index
    %0 = vector.load %arg1[%c0, %c0_0] : memref<128x650xbf16, #tpu.memory_space<vmem>>, vector<128x650xbf16>
    %c0_1 = arith.constant 0 : index
    %c0_2 = arith.constant 0 : index
    %1 = vector.load %arg2[%c0_1, %c0_2] : memref<650x128xbf16, #tpu.memory_space<vmem>>, vector<650x128xbf16>
    %cst = arith.constant dense<0.000000e+00> : vector<128x128xf32>
    %2 = tpu.matmul %0, %1, %cst {dimension_numbers = #tpu.dot_dimension_numbers<[1], [0], [0], [1], [0, 0, 1, 1], [], []>} : vector<128x650xbf16>, vector<650x128xbf16>, vector<128x128xf32> -> vector<128x128xf32>
    %c0_3 = arith.constant 0 : index
    %c0_4 = arith.constant 0 : index
    %3 = vector.load %arg3[%c0_3, %c0_4] : memref<1x128xf32, #tpu.memory_space<vmem>>, vector<1x128xf32>
    %4 = vector.broadcast %3 : vector<1x128xf32> to vector<128x128xf32>
    %5 = arith.addf %2, %4 : vector<128x128xf32>
    %cst_5 = arith.constant 0.000000e+00 : f32
    %6 = vector.broadcast %cst_5 : f32 to vector<128x128xf32>
    %7 = arith.maximumf %5, %6 : vector<128x128xf32>
    %c0_6 = arith.constant 0 : index
    %c0_7 = arith.constant 0 : index
    %8 = vector.load %arg4[%c0_6, %c0_7] : memref<128x128xf32, #tpu.memory_space<vmem>>, vector<128x128xf32>
    tpu.vector_store %arg4[%c0_6, %c0_7], %7 {strides = array<i32>} : memref<128x128xf32, #tpu.memory_space<vmem>>, vector<128x128xf32>,
    return
  }
  func.func @transform_0(%arg0: i32) -> (i32, i32) {
    %c0_i32 = arith.constant 0 : i32
    %c0_i32_0 = arith.constant 0 : i32
    return %arg0, %c0_i32 : i32, i32
  }
  func.func @transform_1(%arg0: i32) -> (i32, i32) {
    %c0_i32 = arith.constant 0 : i32
    %c0_i32_0 = arith.constant 0 : i32
    %c0_i32_1 = arith.constant 0 : i32
    return %c0_i32, %c0_i32_0 : i32, i32
  }
  func.func @transform_2(%arg0: i32) -> (i32, i32) {
    %c0_i32 = arith.constant 0 : i32
    %c0_i32_0 = arith.constant 0 : i32
    %c0_i32_1 = arith.constant 0 : i32
    return %c0_i32, %c0_i32_0 : i32, i32
  }
  func.func @transform_3(%arg0: i32) -> (i32, i32) {
    %c0_i32 = arith.constant 0 : i32
    %c0_i32_0 = arith.constant 0 : i32
    return %arg0, %c0_i32 : i32, i32
  }
}

module attributes {stable_mosaic.version = 11 : i64} {
  func.func @_maxpool_kernel(%arg0: i32, %arg1: memref<8x2x4x256xf32, #tpu.memory_space<vmem>>, %arg2: memref<8x4x36xf32, #tpu.memory_space<vmem>>) attributes {dimension_semantics = [#tpu.dimension_semantics<parallel>], iteration_bounds = array<i64: 1>, scalar_prefetch = 0 : i64, scratch_operands = 0 : i64, tpu.core_type = #tpu.core_type<tc>, window_params = [{transform_indices = @transform_0, window_bounds = array<i64: 8, 2, 4, 256>}, {transform_indices = @transform_1, window_bounds = array<i64: 8, 4, 36>}]} {
    %c0 = arith.constant 0 : index
    %c0_0 = arith.constant 0 : index
    %c0_1 = arith.constant 0 : index
    %c0_2 = arith.constant 0 : index
    %0 = vector.load %arg1[%c0, %c0_0, %c0_1, %c0_2] : memref<8x2x4x256xf32, #tpu.memory_space<vmem>>, vector<8x1x4x256xf32>
    %1 = vector.shape_cast %0 : vector<8x1x4x256xf32> to vector<8x4x256xf32>
    %c0_3 = arith.constant 0 : index
    %c1 = arith.constant 1 : index
    %c0_4 = arith.constant 0 : index
    %c0_5 = arith.constant 0 : index
    %2 = vector.load %arg1[%c0_3, %c1, %c0_4, %c0_5] : memref<8x2x4x256xf32, #tpu.memory_space<vmem>>, vector<8x1x4x256xf32>
    %3 = vector.shape_cast %2 : vector<8x1x4x256xf32> to vector<8x4x256xf32>
    %4 = arith.maximumf %1, %3 : vector<8x4x256xf32>
    %5 = vector.extract_strided_slice %4 {offsets = [0, 0, 0], sizes = [8, 4, 128], strides = [1, 1, 1]} : vector<8x4x256xf32> to vector<8x4x128xf32>
    %6 = vector.extract_strided_slice %4 {offsets = [0, 0, 128], sizes = [8, 4, 128], strides = [1, 1, 1]} : vector<8x4x256xf32> to vector<8x4x128xf32>
    %7 = arith.maximumf %5, %6 : vector<8x4x128xf32>
    %8 = vector.extract_strided_slice %7 {offsets = [0, 0, 0], sizes = [8, 4, 36], strides = [1, 1, 1]} : vector<8x4x128xf32> to vector<8x4x36xf32>
    %c0_6 = arith.constant 0 : index
    %c0_7 = arith.constant 0 : index
    %c0_8 = arith.constant 0 : index
    %9 = vector.load %arg2[%c0_6, %c0_7, %c0_8] : memref<8x4x36xf32, #tpu.memory_space<vmem>>, vector<8x4x36xf32>
    tpu.vector_store %arg2[%c0_6, %c0_7, %c0_8], %8 {strides = array<i32>} : memref<8x4x36xf32, #tpu.memory_space<vmem>>, vector<8x4x36xf32>,
    return
  }
  func.func @transform_0(%arg0: i32) -> (i32, i32, i32, i32) {
    %c0_i32 = arith.constant 0 : i32
    %c0_i32_0 = arith.constant 0 : i32
    %c0_i32_1 = arith.constant 0 : i32
    %c0_i32_2 = arith.constant 0 : i32
    return %arg0, %c0_i32, %c0_i32_0, %c0_i32_1 : i32, i32, i32, i32
  }
  func.func @transform_1(%arg0: i32) -> (i32, i32, i32) {
    %c0_i32 = arith.constant 0 : i32
    %c0_i32_0 = arith.constant 0 : i32
    %c0_i32_1 = arith.constant 0 : i32
    return %arg0, %c0_i32, %c0_i32_0 : i32, i32, i32
  }
}

module attributes {stable_mosaic.version = 11 : i64} {
  func.func @_mlp2_kernel(%arg0: i32, %arg1: memref<2x576xbf16, #tpu.memory_space<vmem>>, %arg2: memref<576x256xbf16, #tpu.memory_space<vmem>>, %arg3: memref<1x256xf32, #tpu.memory_space<vmem>>, %arg4: memref<256x128xbf16, #tpu.memory_space<vmem>>, %arg5: memref<1x128xf32, #tpu.memory_space<vmem>>, %arg6: memref<2x128xf32, #tpu.memory_space<vmem>>) attributes {dimension_semantics = [#tpu.dimension_semantics<parallel>], iteration_bounds = array<i64: 1>, scalar_prefetch = 0 : i64, scratch_operands = 0 : i64, tpu.core_type = #tpu.core_type<tc>, window_params = [{transform_indices = @transform_0, window_bounds = array<i64: 2, 576>}, {pipeline_mode = #tpu.pipeline_mode<synchronous>, transform_indices = @transform_1, window_bounds = array<i64: 576, 256>}, {pipeline_mode = #tpu.pipeline_mode<synchronous>, transform_indices = @transform_2, window_bounds = array<i64: 1, 256>}, {pipeline_mode = #tpu.pipeline_mode<synchronous>, transform_indices = @transform_3, window_bounds = array<i64: 256, 128>}, {pipeline_mode = #tpu.pipeline_mode<synchronous>, transform_indices = @transform_4, window_bounds = array<i64: 1, 128>}, {transform_indices = @transform_5, window_bounds = array<i64: 2, 128>}]} {
    %c0 = arith.constant 0 : index
    %c0_0 = arith.constant 0 : index
    %0 = vector.load %arg1[%c0, %c0_0] : memref<2x576xbf16, #tpu.memory_space<vmem>>, vector<2x576xbf16>
    %c0_1 = arith.constant 0 : index
    %c0_2 = arith.constant 0 : index
    %1 = vector.load %arg2[%c0_1, %c0_2] : memref<576x256xbf16, #tpu.memory_space<vmem>>, vector<576x256xbf16>
    %cst = arith.constant dense<0.000000e+00> : vector<2x256xf32>
    %2 = tpu.matmul %0, %1, %cst {dimension_numbers = #tpu.dot_dimension_numbers<[1], [0], [0], [1], [0, 0, 1, 1], [], []>} : vector<2x576xbf16>, vector<576x256xbf16>, vector<2x256xf32> -> vector<2x256xf32>
    %c0_3 = arith.constant 0 : index
    %c0_4 = arith.constant 0 : index
    %3 = vector.load %arg3[%c0_3, %c0_4] : memref<1x256xf32, #tpu.memory_space<vmem>>, vector<1x256xf32>
    %4 = vector.broadcast %3 : vector<1x256xf32> to vector<2x256xf32>
    %5 = arith.addf %2, %4 : vector<2x256xf32>
    %cst_5 = arith.constant 0.000000e+00 : f32
    %6 = vector.broadcast %cst_5 : f32 to vector<2x256xf32>
    %7 = arith.maximumf %5, %6 : vector<2x256xf32>
    %8 = arith.truncf %7 : vector<2x256xf32> to vector<2x256xbf16>
    %c0_6 = arith.constant 0 : index
    %c0_7 = arith.constant 0 : index
    %9 = vector.load %arg4[%c0_6, %c0_7] : memref<256x128xbf16, #tpu.memory_space<vmem>>, vector<256x128xbf16>
    %cst_8 = arith.constant dense<0.000000e+00> : vector<2x128xf32>
    %10 = tpu.matmul %8, %9, %cst_8 {dimension_numbers = #tpu.dot_dimension_numbers<[1], [0], [0], [1], [0, 0, 1, 1], [], []>} : vector<2x256xbf16>, vector<256x128xbf16>, vector<2x128xf32> -> vector<2x128xf32>
    %c0_9 = arith.constant 0 : index
    %c0_10 = arith.constant 0 : index
    %11 = vector.load %arg5[%c0_9, %c0_10] : memref<1x128xf32, #tpu.memory_space<vmem>>, vector<1x128xf32>
    %12 = vector.broadcast %11 : vector<1x128xf32> to vector<2x128xf32>
    %13 = arith.addf %10, %12 : vector<2x128xf32>
    %c0_11 = arith.constant 0 : index
    %c0_12 = arith.constant 0 : index
    %14 = vector.load %arg6[%c0_11, %c0_12] : memref<2x128xf32, #tpu.memory_space<vmem>>, vector<2x128xf32>
    tpu.vector_store %arg6[%c0_11, %c0_12], %13 {strides = array<i32>} : memref<2x128xf32, #tpu.memory_space<vmem>>, vector<2x128xf32>,
    return
  }
  func.func @transform_0(%arg0: i32) -> (i32, i32) {
    %c0_i32 = arith.constant 0 : i32
    %c0_i32_0 = arith.constant 0 : i32
    return %arg0, %c0_i32 : i32, i32
  }
  func.func @transform_1(%arg0: i32) -> (i32, i32) {
    %c0_i32 = arith.constant 0 : i32
    %c0_i32_0 = arith.constant 0 : i32
    %c0_i32_1 = arith.constant 0 : i32
    return %c0_i32, %c0_i32_0 : i32, i32
  }
  func.func @transform_2(%arg0: i32) -> (i32, i32) {
    %c0_i32 = arith.constant 0 : i32
    %c0_i32_0 = arith.constant 0 : i32
    %c0_i32_1 = arith.constant 0 : i32
    return %c0_i32, %c0_i32_0 : i32, i32
  }
  func.func @transform_3(%arg0: i32) -> (i32, i32) {
    %c0_i32 = arith.constant 0 : i32
    %c0_i32_0 = arith.constant 0 : i32
    %c0_i32_1 = arith.constant 0 : i32
    return %c0_i32, %c0_i32_0 : i32, i32
  }
  func.func @transform_4(%arg0: i32) -> (i32, i32) {
    %c0_i32 = arith.constant 0 : i32
    %c0_i32_0 = arith.constant 0 : i32
    %c0_i32_1 = arith.constant 0 : i32
    return %c0_i32, %c0_i32_0 : i32, i32
  }
  func.func @transform_5(%arg0: i32) -> (i32, i32) {
    %c0_i32 = arith.constant 0 : i32
    %c0_i32_0 = arith.constant 0 : i32
    return %arg0, %c0_i32 : i32, i32
  }
}

module attributes {stable_mosaic.version = 11 : i64} {
  func.func @_mlp2_kernel(%arg0: i32, %arg1: memref<2x32xbf16, #tpu.memory_space<vmem>>, %arg2: memref<32x256xbf16, #tpu.memory_space<vmem>>, %arg3: memref<1x256xf32, #tpu.memory_space<vmem>>, %arg4: memref<256x640xbf16, #tpu.memory_space<vmem>>, %arg5: memref<1x640xf32, #tpu.memory_space<vmem>>, %arg6: memref<2x640xf32, #tpu.memory_space<vmem>>) attributes {dimension_semantics = [#tpu.dimension_semantics<parallel>], iteration_bounds = array<i64: 1>, scalar_prefetch = 0 : i64, scratch_operands = 0 : i64, tpu.core_type = #tpu.core_type<tc>, window_params = [{transform_indices = @transform_0, window_bounds = array<i64: 2, 32>}, {pipeline_mode = #tpu.pipeline_mode<synchronous>, transform_indices = @transform_1, window_bounds = array<i64: 32, 256>}, {pipeline_mode = #tpu.pipeline_mode<synchronous>, transform_indices = @transform_2, window_bounds = array<i64: 1, 256>}, {pipeline_mode = #tpu.pipeline_mode<synchronous>, transform_indices = @transform_3, window_bounds = array<i64: 256, 640>}, {pipeline_mode = #tpu.pipeline_mode<synchronous>, transform_indices = @transform_4, window_bounds = array<i64: 1, 640>}, {transform_indices = @transform_5, window_bounds = array<i64: 2, 640>}]} {
    %c0 = arith.constant 0 : index
    %c0_0 = arith.constant 0 : index
    %0 = vector.load %arg1[%c0, %c0_0] : memref<2x32xbf16, #tpu.memory_space<vmem>>, vector<2x32xbf16>
    %c0_1 = arith.constant 0 : index
    %c0_2 = arith.constant 0 : index
    %1 = vector.load %arg2[%c0_1, %c0_2] : memref<32x256xbf16, #tpu.memory_space<vmem>>, vector<32x256xbf16>
    %cst = arith.constant dense<0.000000e+00> : vector<2x256xf32>
    %2 = tpu.matmul %0, %1, %cst {dimension_numbers = #tpu.dot_dimension_numbers<[1], [0], [0], [1], [0, 0, 1, 1], [], []>} : vector<2x32xbf16>, vector<32x256xbf16>, vector<2x256xf32> -> vector<2x256xf32>
    %c0_3 = arith.constant 0 : index
    %c0_4 = arith.constant 0 : index
    %3 = vector.load %arg3[%c0_3, %c0_4] : memref<1x256xf32, #tpu.memory_space<vmem>>, vector<1x256xf32>
    %4 = vector.broadcast %3 : vector<1x256xf32> to vector<2x256xf32>
    %5 = arith.addf %2, %4 : vector<2x256xf32>
    %cst_5 = arith.constant 0.000000e+00 : f32
    %6 = vector.broadcast %cst_5 : f32 to vector<2x256xf32>
    %7 = arith.maximumf %5, %6 : vector<2x256xf32>
    %8 = arith.truncf %7 : vector<2x256xf32> to vector<2x256xbf16>
    %c0_6 = arith.constant 0 : index
    %c0_7 = arith.constant 0 : index
    %9 = vector.load %arg4[%c0_6, %c0_7] : memref<256x640xbf16, #tpu.memory_space<vmem>>, vector<256x640xbf16>
    %cst_8 = arith.constant dense<0.000000e+00> : vector<2x640xf32>
    %10 = tpu.matmul %8, %9, %cst_8 {dimension_numbers = #tpu.dot_dimension_numbers<[1], [0], [0], [1], [0, 0, 1, 1], [], []>} : vector<2x256xbf16>, vector<256x640xbf16>, vector<2x640xf32> -> vector<2x640xf32>
    %c0_9 = arith.constant 0 : index
    %c0_10 = arith.constant 0 : index
    %11 = vector.load %arg5[%c0_9, %c0_10] : memref<1x640xf32, #tpu.memory_space<vmem>>, vector<1x640xf32>
    %12 = vector.broadcast %11 : vector<1x640xf32> to vector<2x640xf32>
    %13 = arith.addf %10, %12 : vector<2x640xf32>
    %cst_11 = arith.constant 0.000000e+00 : f32
    %14 = vector.broadcast %cst_11 : f32 to vector<2x640xf32>
    %15 = arith.maximumf %13, %14 : vector<2x640xf32>
    %c0_12 = arith.constant 0 : index
    %c0_13 = arith.constant 0 : index
    %16 = vector.load %arg6[%c0_12, %c0_13] : memref<2x640xf32, #tpu.memory_space<vmem>>, vector<2x640xf32>
    tpu.vector_store %arg6[%c0_12, %c0_13], %15 {strides = array<i32>} : memref<2x640xf32, #tpu.memory_space<vmem>>, vector<2x640xf32>,
    return
  }
  func.func @transform_0(%arg0: i32) -> (i32, i32) {
    %c0_i32 = arith.constant 0 : i32
    %c0_i32_0 = arith.constant 0 : i32
    return %arg0, %c0_i32 : i32, i32
  }
  func.func @transform_1(%arg0: i32) -> (i32, i32) {
    %c0_i32 = arith.constant 0 : i32
    %c0_i32_0 = arith.constant 0 : i32
    %c0_i32_1 = arith.constant 0 : i32
    return %c0_i32, %c0_i32_0 : i32, i32
  }
  func.func @transform_2(%arg0: i32) -> (i32, i32) {
    %c0_i32 = arith.constant 0 : i32
    %c0_i32_0 = arith.constant 0 : i32
    %c0_i32_1 = arith.constant 0 : i32
    return %c0_i32, %c0_i32_0 : i32, i32
  }
  func.func @transform_3(%arg0: i32) -> (i32, i32) {
    %c0_i32 = arith.constant 0 : i32
    %c0_i32_0 = arith.constant 0 : i32
    %c0_i32_1 = arith.constant 0 : i32
    return %c0_i32, %c0_i32_0 : i32, i32
  }
  func.func @transform_4(%arg0: i32) -> (i32, i32) {
    %c0_i32 = arith.constant 0 : i32
    %c0_i32_0 = arith.constant 0 : i32
    %c0_i32_1 = arith.constant 0 : i32
    return %c0_i32, %c0_i32_0 : i32, i32
  }
  func.func @transform_5(%arg0: i32) -> (i32, i32) {
    %c0_i32 = arith.constant 0 : i32
    %c0_i32_0 = arith.constant 0 : i32
    return %arg0, %c0_i32 : i32, i32
  }
}

module attributes {stable_mosaic.version = 11 : i64} {
  func.func @_matmul_bias_act_kernel(%arg0: i32, %arg1: memref<72x216xbf16, #tpu.memory_space<vmem>>, %arg2: memref<216x128xbf16, #tpu.memory_space<vmem>>, %arg3: memref<1x128xf32, #tpu.memory_space<vmem>>, %arg4: memref<72x128xf32, #tpu.memory_space<vmem>>) attributes {dimension_semantics = [#tpu.dimension_semantics<parallel>], iteration_bounds = array<i64: 1>, scalar_prefetch = 0 : i64, scratch_operands = 0 : i64, tpu.core_type = #tpu.core_type<tc>, window_params = [{transform_indices = @transform_0, window_bounds = array<i64: 72, 216>}, {pipeline_mode = #tpu.pipeline_mode<synchronous>, transform_indices = @transform_1, window_bounds = array<i64: 216, 128>}, {pipeline_mode = #tpu.pipeline_mode<synchronous>, transform_indices = @transform_2, window_bounds = array<i64: 1, 128>}, {transform_indices = @transform_3, window_bounds = array<i64: 72, 128>}]} {
    %c0 = arith.constant 0 : index
    %c0_0 = arith.constant 0 : index
    %0 = vector.load %arg1[%c0, %c0_0] : memref<72x216xbf16, #tpu.memory_space<vmem>>, vector<72x216xbf16>
    %c0_1 = arith.constant 0 : index
    %c0_2 = arith.constant 0 : index
    %1 = vector.load %arg2[%c0_1, %c0_2] : memref<216x128xbf16, #tpu.memory_space<vmem>>, vector<216x128xbf16>
    %cst = arith.constant dense<0.000000e+00> : vector<72x128xf32>
    %2 = tpu.matmul %0, %1, %cst {dimension_numbers = #tpu.dot_dimension_numbers<[1], [0], [0], [1], [0, 0, 1, 1], [], []>} : vector<72x216xbf16>, vector<216x128xbf16>, vector<72x128xf32> -> vector<72x128xf32>
    %c0_3 = arith.constant 0 : index
    %c0_4 = arith.constant 0 : index
    %3 = vector.load %arg3[%c0_3, %c0_4] : memref<1x128xf32, #tpu.memory_space<vmem>>, vector<1x128xf32>
    %4 = vector.broadcast %3 : vector<1x128xf32> to vector<72x128xf32>
    %5 = arith.addf %2, %4 : vector<72x128xf32>
    %cst_5 = arith.constant 0.000000e+00 : f32
    %6 = vector.broadcast %cst_5 : f32 to vector<72x128xf32>
    %7 = arith.maximumf %5, %6 : vector<72x128xf32>
    %c0_6 = arith.constant 0 : index
    %c0_7 = arith.constant 0 : index
    %8 = vector.load %arg4[%c0_6, %c0_7] : memref<72x128xf32, #tpu.memory_space<vmem>>, vector<72x128xf32>
    tpu.vector_store %arg4[%c0_6, %c0_7], %7 {strides = array<i32>} : memref<72x128xf32, #tpu.memory_space<vmem>>, vector<72x128xf32>,
    return
  }
  func.func @transform_0(%arg0: i32) -> (i32, i32) {
    %c0_i32 = arith.constant 0 : i32
    %c0_i32_0 = arith.constant 0 : i32
    return %arg0, %c0_i32 : i32, i32
  }
  func.func @transform_1(%arg0: i32) -> (i32, i32) {
    %c0_i32 = arith.constant 0 : i32
    %c0_i32_0 = arith.constant 0 : i32
    %c0_i32_1 = arith.constant 0 : i32
    return %c0_i32, %c0_i32_0 : i32, i32
  }
  func.func @transform_2(%arg0: i32) -> (i32, i32) {
    %c0_i32 = arith.constant 0 : i32
    %c0_i32_0 = arith.constant 0 : i32
    %c0_i32_1 = arith.constant 0 : i32
    return %c0_i32, %c0_i32_0 : i32, i32
  }
  func.func @transform_3(%arg0: i32) -> (i32, i32) {
    %c0_i32 = arith.constant 0 : i32
    %c0_i32_0 = arith.constant 0 : i32
    return %arg0, %c0_i32 : i32, i32
  }
}

module attributes {stable_mosaic.version = 11 : i64} {
  func.func @_matmul_bias_act_kernel(%arg0: i32, %arg1: memref<72x324xbf16, #tpu.memory_space<vmem>>, %arg2: memref<324x128xbf16, #tpu.memory_space<vmem>>, %arg3: memref<1x128xf32, #tpu.memory_space<vmem>>, %arg4: memref<72x128xf32, #tpu.memory_space<vmem>>) attributes {dimension_semantics = [#tpu.dimension_semantics<parallel>], iteration_bounds = array<i64: 1>, scalar_prefetch = 0 : i64, scratch_operands = 0 : i64, tpu.core_type = #tpu.core_type<tc>, window_params = [{transform_indices = @transform_0, window_bounds = array<i64: 72, 324>}, {pipeline_mode = #tpu.pipeline_mode<synchronous>, transform_indices = @transform_1, window_bounds = array<i64: 324, 128>}, {pipeline_mode = #tpu.pipeline_mode<synchronous>, transform_indices = @transform_2, window_bounds = array<i64: 1, 128>}, {transform_indices = @transform_3, window_bounds = array<i64: 72, 128>}]} {
    %c0 = arith.constant 0 : index
    %c0_0 = arith.constant 0 : index
    %0 = vector.load %arg1[%c0, %c0_0] : memref<72x324xbf16, #tpu.memory_space<vmem>>, vector<72x324xbf16>
    %c0_1 = arith.constant 0 : index
    %c0_2 = arith.constant 0 : index
    %1 = vector.load %arg2[%c0_1, %c0_2] : memref<324x128xbf16, #tpu.memory_space<vmem>>, vector<324x128xbf16>
    %cst = arith.constant dense<0.000000e+00> : vector<72x128xf32>
    %2 = tpu.matmul %0, %1, %cst {dimension_numbers = #tpu.dot_dimension_numbers<[1], [0], [0], [1], [0, 0, 1, 1], [], []>} : vector<72x324xbf16>, vector<324x128xbf16>, vector<72x128xf32> -> vector<72x128xf32>
    %c0_3 = arith.constant 0 : index
    %c0_4 = arith.constant 0 : index
    %3 = vector.load %arg3[%c0_3, %c0_4] : memref<1x128xf32, #tpu.memory_space<vmem>>, vector<1x128xf32>
    %4 = vector.broadcast %3 : vector<1x128xf32> to vector<72x128xf32>
    %5 = arith.addf %2, %4 : vector<72x128xf32>
    %cst_5 = arith.constant 0.000000e+00 : f32
    %6 = vector.broadcast %cst_5 : f32 to vector<72x128xf32>
    %7 = arith.maximumf %5, %6 : vector<72x128xf32>
    %c0_6 = arith.constant 0 : index
    %c0_7 = arith.constant 0 : index
    %8 = vector.load %arg4[%c0_6, %c0_7] : memref<72x128xf32, #tpu.memory_space<vmem>>, vector<72x128xf32>
    tpu.vector_store %arg4[%c0_6, %c0_7], %7 {strides = array<i32>} : memref<72x128xf32, #tpu.memory_space<vmem>>, vector<72x128xf32>,
    return
  }
  func.func @transform_0(%arg0: i32) -> (i32, i32) {
    %c0_i32 = arith.constant 0 : i32
    %c0_i32_0 = arith.constant 0 : i32
    return %arg0, %c0_i32 : i32, i32
  }
  func.func @transform_1(%arg0: i32) -> (i32, i32) {
    %c0_i32 = arith.constant 0 : i32
    %c0_i32_0 = arith.constant 0 : i32
    %c0_i32_1 = arith.constant 0 : i32
    return %c0_i32, %c0_i32_0 : i32, i32
  }
  func.func @transform_2(%arg0: i32) -> (i32, i32) {
    %c0_i32 = arith.constant 0 : i32
    %c0_i32_0 = arith.constant 0 : i32
    %c0_i32_1 = arith.constant 0 : i32
    return %c0_i32, %c0_i32_0 : i32, i32
  }
  func.func @transform_3(%arg0: i32) -> (i32, i32) {
    %c0_i32 = arith.constant 0 : i32
    %c0_i32_0 = arith.constant 0 : i32
    return %arg0, %c0_i32 : i32, i32
  }
}

module attributes {stable_mosaic.version = 11 : i64} {
  func.func @_matmul_bias_act_kernel(%arg0: i32, %arg1: memref<72x144xbf16, #tpu.memory_space<vmem>>, %arg2: memref<144x128xbf16, #tpu.memory_space<vmem>>, %arg3: memref<1x128xf32, #tpu.memory_space<vmem>>, %arg4: memref<72x128xf32, #tpu.memory_space<vmem>>) attributes {dimension_semantics = [#tpu.dimension_semantics<parallel>], iteration_bounds = array<i64: 1>, scalar_prefetch = 0 : i64, scratch_operands = 0 : i64, tpu.core_type = #tpu.core_type<tc>, window_params = [{transform_indices = @transform_0, window_bounds = array<i64: 72, 144>}, {pipeline_mode = #tpu.pipeline_mode<synchronous>, transform_indices = @transform_1, window_bounds = array<i64: 144, 128>}, {pipeline_mode = #tpu.pipeline_mode<synchronous>, transform_indices = @transform_2, window_bounds = array<i64: 1, 128>}, {transform_indices = @transform_3, window_bounds = array<i64: 72, 128>}]} {
    %c0 = arith.constant 0 : index
    %c0_0 = arith.constant 0 : index
    %0 = vector.load %arg1[%c0, %c0_0] : memref<72x144xbf16, #tpu.memory_space<vmem>>, vector<72x144xbf16>
    %c0_1 = arith.constant 0 : index
    %c0_2 = arith.constant 0 : index
    %1 = vector.load %arg2[%c0_1, %c0_2] : memref<144x128xbf16, #tpu.memory_space<vmem>>, vector<144x128xbf16>
    %cst = arith.constant dense<0.000000e+00> : vector<72x128xf32>
    %2 = tpu.matmul %0, %1, %cst {dimension_numbers = #tpu.dot_dimension_numbers<[1], [0], [0], [1], [0, 0, 1, 1], [], []>} : vector<72x144xbf16>, vector<144x128xbf16>, vector<72x128xf32> -> vector<72x128xf32>
    %c0_3 = arith.constant 0 : index
    %c0_4 = arith.constant 0 : index
    %3 = vector.load %arg3[%c0_3, %c0_4] : memref<1x128xf32, #tpu.memory_space<vmem>>, vector<1x128xf32>
    %4 = vector.broadcast %3 : vector<1x128xf32> to vector<72x128xf32>
    %5 = arith.addf %2, %4 : vector<72x128xf32>
    %cst_5 = arith.constant 0.000000e+00 : f32
    %6 = vector.broadcast %cst_5 : f32 to vector<72x128xf32>
    %7 = arith.maximumf %5, %6 : vector<72x128xf32>
    %c0_6 = arith.constant 0 : index
    %c0_7 = arith.constant 0 : index
    %8 = vector.load %arg4[%c0_6, %c0_7] : memref<72x128xf32, #tpu.memory_space<vmem>>, vector<72x128xf32>
    tpu.vector_store %arg4[%c0_6, %c0_7], %7 {strides = array<i32>} : memref<72x128xf32, #tpu.memory_space<vmem>>, vector<72x128xf32>,
    return
  }
  func.func @transform_0(%arg0: i32) -> (i32, i32) {
    %c0_i32 = arith.constant 0 : i32
    %c0_i32_0 = arith.constant 0 : i32
    return %arg0, %c0_i32 : i32, i32
  }
  func.func @transform_1(%arg0: i32) -> (i32, i32) {
    %c0_i32 = arith.constant 0 : i32
    %c0_i32_0 = arith.constant 0 : i32
    %c0_i32_1 = arith.constant 0 : i32
    return %c0_i32, %c0_i32_0 : i32, i32
  }
  func.func @transform_2(%arg0: i32) -> (i32, i32) {
    %c0_i32 = arith.constant 0 : i32
    %c0_i32_0 = arith.constant 0 : i32
    %c0_i32_1 = arith.constant 0 : i32
    return %c0_i32, %c0_i32_0 : i32, i32
  }
  func.func @transform_3(%arg0: i32) -> (i32, i32) {
    %c0_i32 = arith.constant 0 : i32
    %c0_i32_0 = arith.constant 0 : i32
    return %arg0, %c0_i32 : i32, i32
  }
}

module attributes {stable_mosaic.version = 11 : i64} {
  func.func @_matmul_bias_act_kernel(%arg0: i32, %arg1: memref<392x234xbf16, #tpu.memory_space<vmem>>, %arg2: memref<234x128xbf16, #tpu.memory_space<vmem>>, %arg3: memref<1x128xf32, #tpu.memory_space<vmem>>, %arg4: memref<392x128xf32, #tpu.memory_space<vmem>>) attributes {dimension_semantics = [#tpu.dimension_semantics<parallel>], iteration_bounds = array<i64: 1>, scalar_prefetch = 0 : i64, scratch_operands = 0 : i64, tpu.core_type = #tpu.core_type<tc>, window_params = [{transform_indices = @transform_0, window_bounds = array<i64: 392, 234>}, {pipeline_mode = #tpu.pipeline_mode<synchronous>, transform_indices = @transform_1, window_bounds = array<i64: 234, 128>}, {pipeline_mode = #tpu.pipeline_mode<synchronous>, transform_indices = @transform_2, window_bounds = array<i64: 1, 128>}, {transform_indices = @transform_3, window_bounds = array<i64: 392, 128>}]} {
    %c0 = arith.constant 0 : index
    %c0_0 = arith.constant 0 : index
    %0 = vector.load %arg1[%c0, %c0_0] : memref<392x234xbf16, #tpu.memory_space<vmem>>, vector<392x234xbf16>
    %c0_1 = arith.constant 0 : index
    %c0_2 = arith.constant 0 : index
    %1 = vector.load %arg2[%c0_1, %c0_2] : memref<234x128xbf16, #tpu.memory_space<vmem>>, vector<234x128xbf16>
    %cst = arith.constant dense<0.000000e+00> : vector<392x128xf32>
    %2 = tpu.matmul %0, %1, %cst {dimension_numbers = #tpu.dot_dimension_numbers<[1], [0], [0], [1], [0, 0, 1, 1], [], []>} : vector<392x234xbf16>, vector<234x128xbf16>, vector<392x128xf32> -> vector<392x128xf32>
    %c0_3 = arith.constant 0 : index
    %c0_4 = arith.constant 0 : index
    %3 = vector.load %arg3[%c0_3, %c0_4] : memref<1x128xf32, #tpu.memory_space<vmem>>, vector<1x128xf32>
    %4 = vector.broadcast %3 : vector<1x128xf32> to vector<392x128xf32>
    %5 = arith.addf %2, %4 : vector<392x128xf32>
    %6 = arith.negf %5 : vector<392x128xf32>
    %7 = math.exp %6 : vector<392x128xf32>
    %cst_5 = arith.constant 1.000000e+00 : f32
    %8 = vector.broadcast %cst_5 : f32 to vector<392x128xf32>
    %9 = arith.addf %8, %7 : vector<392x128xf32>
    %10 = arith.divf %8, %9 : vector<392x128xf32>
    %c0_6 = arith.constant 0 : index
    %c0_7 = arith.constant 0 : index
    %11 = vector.load %arg4[%c0_6, %c0_7] : memref<392x128xf32, #tpu.memory_space<vmem>>, vector<392x128xf32>
    tpu.vector_store %arg4[%c0_6, %c0_7], %10 {strides = array<i32>} : memref<392x128xf32, #tpu.memory_space<vmem>>, vector<392x128xf32>,
    return
  }
  func.func @transform_0(%arg0: i32) -> (i32, i32) {
    %c0_i32 = arith.constant 0 : i32
    %c0_i32_0 = arith.constant 0 : i32
    return %arg0, %c0_i32 : i32, i32
  }
  func.func @transform_1(%arg0: i32) -> (i32, i32) {
    %c0_i32 = arith.constant 0 : i32
    %c0_i32_0 = arith.constant 0 : i32
    %c0_i32_1 = arith.constant 0 : i32
    return %c0_i32, %c0_i32_0 : i32, i32
  }
  func.func @transform_2(%arg0: i32) -> (i32, i32) {
    %c0_i32 = arith.constant 0 : i32
    %c0_i32_0 = arith.constant 0 : i32
    %c0_i32_1 = arith.constant 0 : i32
    return %c0_i32, %c0_i32_0 : i32, i32
  }
  func.func @transform_3(%arg0: i32) -> (i32, i32) {
    %c0_i32 = arith.constant 0 : i32
    %c0_i32_0 = arith.constant 0 : i32
    return %arg0, %c0_i32 : i32, i32
  }
}

module attributes {stable_mosaic.version = 11 : i64} {
  func.func @_matmul_bias_act_kernel(%arg0: i32, %arg1: memref<392x156xbf16, #tpu.memory_space<vmem>>, %arg2: memref<156x128xbf16, #tpu.memory_space<vmem>>, %arg3: memref<1x128xf32, #tpu.memory_space<vmem>>, %arg4: memref<392x128xf32, #tpu.memory_space<vmem>>) attributes {dimension_semantics = [#tpu.dimension_semantics<parallel>], iteration_bounds = array<i64: 1>, scalar_prefetch = 0 : i64, scratch_operands = 0 : i64, tpu.core_type = #tpu.core_type<tc>, window_params = [{transform_indices = @transform_0, window_bounds = array<i64: 392, 156>}, {pipeline_mode = #tpu.pipeline_mode<synchronous>, transform_indices = @transform_1, window_bounds = array<i64: 156, 128>}, {pipeline_mode = #tpu.pipeline_mode<synchronous>, transform_indices = @transform_2, window_bounds = array<i64: 1, 128>}, {transform_indices = @transform_3, window_bounds = array<i64: 392, 128>}]} {
    %c0 = arith.constant 0 : index
    %c0_0 = arith.constant 0 : index
    %0 = vector.load %arg1[%c0, %c0_0] : memref<392x156xbf16, #tpu.memory_space<vmem>>, vector<392x156xbf16>
    %c0_1 = arith.constant 0 : index
    %c0_2 = arith.constant 0 : index
    %1 = vector.load %arg2[%c0_1, %c0_2] : memref<156x128xbf16, #tpu.memory_space<vmem>>, vector<156x128xbf16>
    %cst = arith.constant dense<0.000000e+00> : vector<392x128xf32>
    %2 = tpu.matmul %0, %1, %cst {dimension_numbers = #tpu.dot_dimension_numbers<[1], [0], [0], [1], [0, 0, 1, 1], [], []>} : vector<392x156xbf16>, vector<156x128xbf16>, vector<392x128xf32> -> vector<392x128xf32>
    %c0_3 = arith.constant 0 : index
    %c0_4 = arith.constant 0 : index
    %3 = vector.load %arg3[%c0_3, %c0_4] : memref<1x128xf32, #tpu.memory_space<vmem>>, vector<1x128xf32>
    %4 = vector.broadcast %3 : vector<1x128xf32> to vector<392x128xf32>
    %5 = arith.addf %2, %4 : vector<392x128xf32>
    %6 = arith.negf %5 : vector<392x128xf32>
    %7 = math.exp %6 : vector<392x128xf32>
    %cst_5 = arith.constant 1.000000e+00 : f32
    %8 = vector.broadcast %cst_5 : f32 to vector<392x128xf32>
    %9 = arith.addf %8, %7 : vector<392x128xf32>
    %10 = arith.divf %8, %9 : vector<392x128xf32>
    %c0_6 = arith.constant 0 : index
    %c0_7 = arith.constant 0 : index
    %11 = vector.load %arg4[%c0_6, %c0_7] : memref<392x128xf32, #tpu.memory_space<vmem>>, vector<392x128xf32>
    tpu.vector_store %arg4[%c0_6, %c0_7], %10 {strides = array<i32>} : memref<392x128xf32, #tpu.memory_space<vmem>>, vector<392x128xf32>,
    return
  }
  func.func @transform_0(%arg0: i32) -> (i32, i32) {
    %c0_i32 = arith.constant 0 : i32
    %c0_i32_0 = arith.constant 0 : i32
    return %arg0, %c0_i32 : i32, i32
  }
  func.func @transform_1(%arg0: i32) -> (i32, i32) {
    %c0_i32 = arith.constant 0 : i32
    %c0_i32_0 = arith.constant 0 : i32
    %c0_i32_1 = arith.constant 0 : i32
    return %c0_i32, %c0_i32_0 : i32, i32
  }
  func.func @transform_2(%arg0: i32) -> (i32, i32) {
    %c0_i32 = arith.constant 0 : i32
    %c0_i32_0 = arith.constant 0 : i32
    %c0_i32_1 = arith.constant 0 : i32
    return %c0_i32, %c0_i32_0 : i32, i32
  }
  func.func @transform_3(%arg0: i32) -> (i32, i32) {
    %c0_i32 = arith.constant 0 : i32
    %c0_i32_0 = arith.constant 0 : i32
    return %arg0, %c0_i32 : i32, i32
  }
}

module attributes {stable_mosaic.version = 11 : i64} {
  func.func @_matmul_bias_act_kernel(%arg0: i32, %arg1: memref<392x104xbf16, #tpu.memory_space<vmem>>, %arg2: memref<104x128xbf16, #tpu.memory_space<vmem>>, %arg3: memref<1x128xf32, #tpu.memory_space<vmem>>, %arg4: memref<392x128xf32, #tpu.memory_space<vmem>>) attributes {dimension_semantics = [#tpu.dimension_semantics<parallel>], iteration_bounds = array<i64: 1>, scalar_prefetch = 0 : i64, scratch_operands = 0 : i64, tpu.core_type = #tpu.core_type<tc>, window_params = [{transform_indices = @transform_0, window_bounds = array<i64: 392, 104>}, {pipeline_mode = #tpu.pipeline_mode<synchronous>, transform_indices = @transform_1, window_bounds = array<i64: 104, 128>}, {pipeline_mode = #tpu.pipeline_mode<synchronous>, transform_indices = @transform_2, window_bounds = array<i64: 1, 128>}, {transform_indices = @transform_3, window_bounds = array<i64: 392, 128>}]} {
    %c0 = arith.constant 0 : index
    %c0_0 = arith.constant 0 : index
    %0 = vector.load %arg1[%c0, %c0_0] : memref<392x104xbf16, #tpu.memory_space<vmem>>, vector<392x104xbf16>
    %c0_1 = arith.constant 0 : index
    %c0_2 = arith.constant 0 : index
    %1 = vector.load %arg2[%c0_1, %c0_2] : memref<104x128xbf16, #tpu.memory_space<vmem>>, vector<104x128xbf16>
    %cst = arith.constant dense<0.000000e+00> : vector<392x128xf32>
    %2 = tpu.matmul %0, %1, %cst {dimension_numbers = #tpu.dot_dimension_numbers<[1], [0], [0], [1], [0, 0, 1, 1], [], []>} : vector<392x104xbf16>, vector<104x128xbf16>, vector<392x128xf32> -> vector<392x128xf32>
    %c0_3 = arith.constant 0 : index
    %c0_4 = arith.constant 0 : index
    %3 = vector.load %arg3[%c0_3, %c0_4] : memref<1x128xf32, #tpu.memory_space<vmem>>, vector<1x128xf32>
    %4 = vector.broadcast %3 : vector<1x128xf32> to vector<392x128xf32>
    %5 = arith.addf %2, %4 : vector<392x128xf32>
    %6 = arith.negf %5 : vector<392x128xf32>
    %7 = math.exp %6 : vector<392x128xf32>
    %cst_5 = arith.constant 1.000000e+00 : f32
    %8 = vector.broadcast %cst_5 : f32 to vector<392x128xf32>
    %9 = arith.addf %8, %7 : vector<392x128xf32>
    %10 = arith.divf %8, %9 : vector<392x128xf32>
    %c0_6 = arith.constant 0 : index
    %c0_7 = arith.constant 0 : index
    %11 = vector.load %arg4[%c0_6, %c0_7] : memref<392x128xf32, #tpu.memory_space<vmem>>, vector<392x128xf32>
    tpu.vector_store %arg4[%c0_6, %c0_7], %10 {strides = array<i32>} : memref<392x128xf32, #tpu.memory_space<vmem>>, vector<392x128xf32>,
    return
  }
  func.func @transform_0(%arg0: i32) -> (i32, i32) {
    %c0_i32 = arith.constant 0 : i32
    %c0_i32_0 = arith.constant 0 : i32
    return %arg0, %c0_i32 : i32, i32
  }
  func.func @transform_1(%arg0: i32) -> (i32, i32) {
    %c0_i32 = arith.constant 0 : i32
    %c0_i32_0 = arith.constant 0 : i32
    %c0_i32_1 = arith.constant 0 : i32
    return %c0_i32, %c0_i32_0 : i32, i32
  }
  func.func @transform_2(%arg0: i32) -> (i32, i32) {
    %c0_i32 = arith.constant 0 : i32
    %c0_i32_0 = arith.constant 0 : i32
    %c0_i32_1 = arith.constant 0 : i32
    return %c0_i32, %c0_i32_0 : i32, i32
  }
  func.func @transform_3(%arg0: i32) -> (i32, i32) {
    %c0_i32 = arith.constant 0 : i32
    %c0_i32_0 = arith.constant 0 : i32
    return %arg0, %c0_i32 : i32, i32
  }
}

</mosaic_0001>

<llo_original>
// kernel: ae_cnn_mnist_forward.14
$region0: #{ae_cnn_mnist_forward.14}
  #allocation0 [shape = 'u32[]', space=smem, size = 0x4, offset = 0x4, fixed_abs, tag = 'smem constant byte address 0x4 - core index']
  #allocation1 [shape = 'u32[72,128]{1,0:T(1,128)}', space=vmem, size = 0x9000, scoped, tag = 'internal scratch']
  %s0 = inlined_call_operand.vmem [shape: bf16[1152,25], index: 0, kind: input, shape index: {}]
  %s1 = inlined_call_operand.vmem [shape: bf16[25,128], index: 1, kind: input, shape index: {}]
  %s2 = inlined_call_operand.vmem [shape: f32[1,128], index: 2, kind: input, shape index: {}]
  %s3 = inlined_call_operand.vmem [shape: f32[1152,128], index: 3, kind: output, shape index: {}]
  %s4 = sld [smem:[#allocation0]]
  $region45: #{ae_cnn_mnist_forward.14} parent=0
    _
  %s6 = ssub.s32 1, %s4
  %s7 = scalar_select 0, %s6, %s4
  loop: start=0, step=1, limit=5
  $region2: #{ae_cnn_mnist_forward.14} parent=0 // loop_pre_header
    _
  $region3: #{ae_cnn_mnist_forward.14} parent=0 // loop_header
    %s9 = sphi 0, %s13
    %p10 = scmp.ge.s32.totalorder %s9, 5
    %s19 = sphi 0, %s21
    %s22 = sphi 0, %s19
    %s23 = sphi 0, %s22
    %s39 = sphi 0, %s23
    %s43 = sphi 0, %s43
    %s45 = sphi 0, %s43
    %s46 = sphi 0, %s45
    %s60 = sphi 0, %s46
    %s64 = sphi 0, %s64
    %s66 = sphi 0, %s64
    %s67 = sphi 0, %s66
    %s81 = sphi 0, %s67
    %s87 = sphi 0, %s89
    %s90 = sphi 0, %s87
    %s91 = sphi 0, %s90
    %s107 = sphi 0, %s91
  $region4: #{ae_cnn_mnist_forward.14} parent=0 // loop_header_branch
    %12 = sbr.rel (%p10) target = $region8
  $region5: #{ae_cnn_mnist_forward.14} parent=0 // loop_body
    %s14 = ssub.s32 %s9, 1
    %s15 = ssub.s32 %s9, 2
    %s16 = sadd.s32 %s9, 1
    %s17 = ssub.s32 %s9, %s16
    %p18 = scmp.eq.s32.totalorder %s17, 0
    %s20 = sadd.s32 %s19, 1
    %s21 = scalar_select %p18, %s19, %s20
    %p24 = pneg %p18
    %p25 = scmp.eq.s32.totalorder %s9, 2
    %p26 = por %p24, %p25
    %p27 = scmp.ne.s32.totalorder %s19, %s22
    %p28 = scmp.eq.s32.totalorder %s9, 0
    %p29 = por %p27, %p28
    %p30 = scmp.ne.s32.totalorder %s19, %s22
    %p31 = scmp.eq.s32.totalorder %s14, 2
    %p32 = por %p30, %p31
    %p33 = scmp.ne.s32.totalorder %s22, %s23
    %p34 = scmp.eq.s32.totalorder %s14, 0
    %p35 = por %p33, %p34
    %p36 = scmp.ne.s32.totalorder %s22, %s23
    %p37 = scmp.eq.s32.totalorder %s15, 2
    %p38 = por %p36, %p37
    %p40 = scmp.ne.s32.totalorder %s23, %s39
    %p41 = scmp.eq.s32.totalorder %s15, 0
    %p42 = por %p40, %p41
    %s44 = sadd.s32 %s43, 1
    %p47 = scmp.eq.s32.totalorder %s9, 2
    %p48 = scmp.ne.s32.totalorder %s43, %s45
    %p49 = scmp.eq.s32.totalorder %s9, 0
    %p50 = por %p48, %p49
    %p51 = scmp.ne.s32.totalorder %s43, %s45
    %p52 = scmp.eq.s32.totalorder %s14, 2
    %p53 = por %p51, %p52
    %p54 = scmp.ne.s32.totalorder %s45, %s46
    %p55 = scmp.eq.s32.totalorder %s14, 0
    %p56 = por %p54, %p55
    %p57 = scmp.ne.s32.totalorder %s45, %s46
    %p58 = scmp.eq.s32.totalorder %s15, 2
    %p59 = por %p57, %p58
    %p61 = scmp.ne.s32.totalorder %s46, %s60
    %p62 = scmp.eq.s32.totalorder %s15, 0
    %p63 = por %p61, %p62
    %s65 = sadd.s32 %s64, 1
    %p68 = scmp.eq.s32.totalorder %s9, 2
    %p69 = scmp.ne.s32.totalorder %s64, %s66
    %p70 = scmp.eq.s32.totalorder %s9, 0
    %p71 = por %p69, %p70
    %p72 = scmp.ne.s32.totalorder %s64, %s66
    %p73 = scmp.eq.s32.totalorder %s14, 2
    %p74 = por %p72, %p73
    %p75 = scmp.ne.s32.totalorder %s66, %s67
    %p76 = scmp.eq.s32.totalorder %s14, 0
    %p77 = por %p75, %p76
    %p78 = scmp.ne.s32.totalorder %s66, %s67
    %p79 = scmp.eq.s32.totalorder %s15, 2
    %p80 = por %p78, %p79
    %p82 = scmp.ne.s32.totalorder %s67, %s81
    %p83 = scmp.eq.s32.totalorder %s15, 0
    %p84 = por %p82, %p83
    %s85 = ssub.s32 %s9, %s16
    %p86 = scmp.eq.s32.totalorder %s85, 0
    %s88 = sadd.s32 %s87, 1
    %s89 = scalar_select %p86, %s87, %s88
    %p92 = pneg %p86
    %p93 = scmp.eq.s32.totalorder %s9, 2
    %p94 = por %p92, %p93
    %p95 = scmp.ne.s32.totalorder %s87, %s90
    %p96 = scmp.eq.s32.totalorder %s9, 0
    %p97 = por %p95, %p96
    %p98 = scmp.ne.s32.totalorder %s87, %s90
    %p99 = scmp.eq.s32.totalorder %s14, 2
    %p100 = por %p98, %p99
    %p101 = scmp.ne.s32.totalorder %s90, %s91
    %p102 = scmp.eq.s32.totalorder %s14, 0
    %p103 = por %p101, %p102
    %p104 = scmp.ne.s32.totalorder %s90, %s91
    %p105 = scmp.eq.s32.totalorder %s15, 2
    %p106 = por %p104, %p105
    %p108 = scmp.ne.s32.totalorder %s91, %s107
    %p109 = scmp.eq.s32.totalorder %s15, 0
    %p110 = por %p108, %p109
    %p111 = scmp.le.s32.totalorder 1, %s9
    %p112 = scmp.lt.s32.totalorder %s9, 4
    %p113 = pnand %p111, %p112
    %p114 = pneg %p113
    // Predicated region
    $region9: #{ae_cnn_mnist_forward.14} parent=5 // pred_check
      _
    $region10: #{ae_cnn_mnist_forward.14} parent=5 // pred_check_branch
      %116 = sbr.rel (%p113) target = $region12
    $region11: #{ae_cnn_mnist_forward.14} parent=5 // pred_region
      %s117 = ssub.s32 %s9, 1
      // Predicated region
      $region13: #{ae_cnn_mnist_forward.14} parent=11 // pred_check
        %p118 = pneg %p56
      $region14: #{ae_cnn_mnist_forward.14} parent=11 // pred_check_branch
        %120 = sbr.rel (%p118) target = $region16
      $region15: #{ae_cnn_mnist_forward.14} parent=11 // pred_region
        _
      $region16: #{ae_cnn_mnist_forward.14} parent=11 // pred_fallthru
        _
      // Predicated region
      $region17: #{ae_cnn_mnist_forward.14} parent=11 // pred_check
        %p121 = pneg %p77
      $region18: #{ae_cnn_mnist_forward.14} parent=11 // pred_check_branch
        %123 = sbr.rel (%p121) target = $region20
      $region19: #{ae_cnn_mnist_forward.14} parent=11 // pred_region
        _
      $region20: #{ae_cnn_mnist_forward.14} parent=11 // pred_fallthru
        _
    $region12: #{ae_cnn_mnist_forward.14} parent=5 // pred_fallthru
      _
    %p124 = scmp.lt.s32.totalorder %s9, 3
    // Predicated region
    $region21: #{ae_cnn_mnist_forward.14} parent=5 // pred_check
      %p125 = pneg %p124
    $region22: #{ae_cnn_mnist_forward.14} parent=5 // pred_check_branch
      %127 = sbr.rel (%p125) target = $region24
    $region23: #{ae_cnn_mnist_forward.14} parent=5 // pred_region
      // Predicated region
      $region25: #{ae_cnn_mnist_forward.14} parent=23 // pred_check
        %p128 = pneg %p29
      $region26: #{ae_cnn_mnist_forward.14} parent=23 // pred_check_branch
        %130 = sbr.rel (%p128) target = $region28
      $region27: #{ae_cnn_mnist_forward.14} parent=23 // pred_region
        %s131 = smul.u32 48, %s9
        %p132 = scmp.lt.s32.totalorder %s131, 143
        %s133 = scalar_select %p132, %s131, 143
        %s134 = smul.addr %s133, 4
        %s135 = scalar_lea.vmem %s0, %s134
        %s136 = smul.u32 48, %s9
      $region28: #{ae_cnn_mnist_forward.14} parent=23 // pred_fallthru
        _
    $region24: #{ae_cnn_mnist_forward.14} parent=5 // pred_fallthru
      _
    %p137 = scmp.le.s32.totalorder 1, %s9
    %p138 = scmp.lt.s32.totalorder %s9, 4
    %p139 = pnand %p137, %p138
    %p140 = pneg %p139
    // Predicated region
    $region29: #{ae_cnn_mnist_forward.14} parent=5 // pred_check
      _
    $region30: #{ae_cnn_mnist_forward.14} parent=5 // pred_check_branch
      %142 = sbr.rel (%p139) target = $region32
    $region31: #{ae_cnn_mnist_forward.14} parent=5 // pred_region
      %s143 = ssub.s32 %s9, 1
      %s144 = smul.u32 48, %s14
      %p145 = scmp.lt.s32.totalorder %s144, 143
      %s146 = scalar_select %p145, %s144, 143
      %s147 = smul.addr %s146, 4
      %s148 = scalar_lea.vmem %s0, %s147
      %p149 = pneg %p35
      %p150 = pneg %p32
      %p151 = pneg %p56
      %p152 = pneg %p53
      %p153 = pneg %p77
      %p154 = pneg %p74
      %p155 = pneg %p103
      %p156 = pneg %p100
      %s157 = smul.u32 48, %s14
      %p158 = scmp.lt.s32.totalorder %s157, 143
      %s159 = scalar_select %p158, %s157, 143
      %s160 = smul.addr %s159, 8
      %s161 = scalar_lea.vmem %s3, %s160
      %s162 = smul.u32 48, %s14
      %p163 = scmp.lt.s32.totalorder %s162, 143
      %s164 = scalar_select %p163, %s162, 143
      %s165 = smul.addr %s164, 4
      %s166 = scalar_lea.vmem %s0, %s165
      %s167 = smul.u32 48, %s14
      %s168 = smul.u32 48, %s14
      %p169 = scmp.lt.s32.totalorder %s168, 143
      %s170 = scalar_select %p169, %s168, 143
      %s171 = smul.addr %s170, 8
      %s172 = scalar_lea.vmem %s3, %s171
      %s173 = smul.u32 48, %s14
      %v175 = vld [vmem:[%s166] sm:$0xf]
      %v176 = vld [vmem:[%s166 + $0x4] sm:$0xf]
      %v177 = vld [vmem:[%s166 + $0x8] sm:$0xf]
      %v178 = vld [vmem:[%s166 + $0xc] sm:$0xf]
      %v179 = vld [vmem:[%s166 + $0x10] sm:$0xf]
      %v180 = vld [vmem:[%s166 + $0x14] sm:$0xf]
      %v181 = vld [vmem:[%s166 + $0x18] sm:$0xf]
      %v182 = vld [vmem:[%s166 + $0x1c] sm:$0xf]
      %v183 = vld [vmem:[%s166 + $0x20] sm:$0xf]
      %v184 = vld [vmem:[%s166 + $0x24] sm:$0xf]
      %v185 = vld [vmem:[%s166 + $0x28] sm:$0xf]
      %v186 = vld [vmem:[%s166 + $0x2c] sm:$0xf]
      %v187 = vld [vmem:[%s166 + $0x30] sm:$0xf]
      %v188 = vld [vmem:[%s166 + $0x34] sm:$0xf]
      %v189 = vld [vmem:[%s166 + $0x38] sm:$0xf]
      %v190 = vld [vmem:[%s166 + $0x3c] sm:$0xf]
      %v191 = vld [vmem:[%s166 + $0x40] sm:$0xf]
      %v192 = vld [vmem:[%s166 + $0x44] sm:$0xf]
      %v193 = vld [vmem:[%s166 + $0x48] sm:$0xf]
      %v194 = vld [vmem:[%s166 + $0x4c] sm:$0xf]
      %v195 = vld [vmem:[%s166 + $0x50] sm:$0xf]
      %v196 = vld [vmem:[%s166 + $0x54] sm:$0xf]
      %v197 = vld [vmem:[%s166 + $0x58] sm:$0xf]
      %v198 = vld [vmem:[%s166 + $0x5c] sm:$0xf]
      %v199 = vld [vmem:[%s166 + $0x60] sm:$0xf]
      %v200 = vld [vmem:[%s166 + $0x64] sm:$0xf]
      %v201 = vld [vmem:[%s166 + $0x68] sm:$0xf]
      %v202 = vld [vmem:[%s166 + $0x6c] sm:$0xf]
      %v203 = vld [vmem:[%s166 + $0x70] sm:$0xf]
      %v204 = vld [vmem:[%s166 + $0x74] sm:$0xf]
      %v205 = vld [vmem:[%s166 + $0x78] sm:$0xf]
      %v206 = vld [vmem:[%s166 + $0x7c] sm:$0xf]
      %v207 = vld [vmem:[%s166 + $0x80] sm:$0xf]
      %v208 = vld [vmem:[%s166 + $0x84] sm:$0xf]
      %v209 = vld [vmem:[%s166 + $0x88] sm:$0xf]
      %v210 = vld [vmem:[%s166 + $0x8c] sm:$0xf]
      %v211 = vld [vmem:[%s166 + $0x90] sm:$0xf]
      %v212 = vld [vmem:[%s166 + $0x94] sm:$0xf]
      %v213 = vld [vmem:[%s166 + $0x98] sm:$0xf]
      %v214 = vld [vmem:[%s166 + $0x9c] sm:$0xf]
      %v215 = vld [vmem:[%s166 + $0xa0] sm:$0xf]
      %v216 = vld [vmem:[%s166 + $0xa4] sm:$0xf]
      %v217 = vld [vmem:[%s166 + $0xa8] sm:$0xf]
      %v218 = vld [vmem:[%s166 + $0xac] sm:$0xf]
      %v219 = vld [vmem:[%s166 + $0xb0] sm:$0xf]
      %v220 = vld [vmem:[%s166 + $0xb4] sm:$0xf]
      %v221 = vld [vmem:[%s166 + $0xb8] sm:$0xf]
      %v222 = vld [vmem:[%s166 + $0xbc] sm:$0xf]
      %v223 = vld [vmem:[%s1] sm:$0xf]
      %v224 = vld [vmem:[%s1 + $0x4] sm:$0xf]
      %v225 = vld [vmem:[%s1 + $0x8] sm:$0xf]
      %v226 = vld [vmem:[%s1 + $0xc] sm:$0x1]
      %v227 = vld [vmem:[%s2] sm:$0x1]
      %v229 = vperm.slane %v227, 0
      %v279 = vunpack.c.l.b16 %v175
      %v280 = vunpack.c.l.b16 %v176
      %v281 = vunpack.c.l.b16 %v177
      %v282 = vunpack.c.l.b16 %v178
      %v283 = vunpack.c.l.b16 %v179
      %v284 = vunpack.c.l.b16 %v180
      %v285 = vunpack.c.l.b16 %v181
      %v286 = vunpack.c.l.b16 %v182
      %v287 = vunpack.c.l.b16 %v183
      %v288 = vunpack.c.l.b16 %v184
      %v289 = vunpack.c.l.b16 %v185
      %v290 = vunpack.c.l.b16 %v186
      %v291 = vunpack.c.l.b16 %v187
      %v292 = vunpack.c.l.b16 %v188
      %v293 = vunpack.c.l.b16 %v189
      %v294 = vunpack.c.l.b16 %v190
      %v295 = vunpack.c.l.b16 %v191
      %v296 = vunpack.c.l.b16 %v192
      %v297 = vunpack.c.l.b16 %v193
      %v298 = vunpack.c.l.b16 %v194
      %v299 = vunpack.c.l.b16 %v195
      %v300 = vunpack.c.l.b16 %v196
      %v301 = vunpack.c.l.b16 %v197
      %v302 = vunpack.c.l.b16 %v198
      %v303 = vunpack.c.l.b16 %v199
      %v304 = vunpack.c.l.b16 %v200
      %v305 = vunpack.c.l.b16 %v201
      %v306 = vunpack.c.l.b16 %v202
      %v307 = vunpack.c.l.b16 %v203
      %v308 = vunpack.c.l.b16 %v204
      %v309 = vunpack.c.l.b16 %v205
      %v310 = vunpack.c.l.b16 %v206
      %v311 = vunpack.c.l.b16 %v207
      %v312 = vunpack.c.l.b16 %v208
      %v313 = vunpack.c.l.b16 %v209
      %v314 = vunpack.c.l.b16 %v210
      %v315 = vunpack.c.l.b16 %v211
      %v316 = vunpack.c.l.b16 %v212
      %v317 = vunpack.c.l.b16 %v213
      %v318 = vunpack.c.l.b16 %v214
      %v319 = vunpack.c.l.b16 %v215
      %v320 = vunpack.c.l.b16 %v216
      %v321 = vunpack.c.l.b16 %v217
      %v322 = vunpack.c.l.b16 %v218
      %v323 = vunpack.c.l.b16 %v219
      %v324 = vunpack.c.l.b16 %v220
      %v325 = vunpack.c.l.b16 %v221
      %v326 = vunpack.c.l.b16 %v222
      %v327 = vpack.c.b16 %v280, %v279
      %v328 = vpack.c.b16 %v282, %v281
      %v329 = vpack.c.b16 %v284, %v283
      %v330 = vpack.c.b16 %v286, %v285
      %v331 = vpack.c.b16 %v288, %v287
      %v332 = vpack.c.b16 %v290, %v289
      %v333 = vpack.c.b16 %v292, %v291
      %v334 = vpack.c.b16 %v294, %v293
      %v335 = vpack.c.b16 %v296, %v295
      %v336 = vpack.c.b16 %v298, %v297
      %v337 = vpack.c.b16 %v300, %v299
      %v338 = vpack.c.b16 %v302, %v301
      %v339 = vpack.c.b16 %v304, %v303
      %v340 = vpack.c.b16 %v306, %v305
      %v341 = vpack.c.b16 %v308, %v307
      %v342 = vpack.c.b16 %v310, %v309
      %v343 = vpack.c.b16 %v312, %v311
      %v344 = vpack.c.b16 %v314, %v313
      %v345 = vpack.c.b16 %v316, %v315
      %v346 = vpack.c.b16 %v318, %v317
      %v347 = vpack.c.b16 %v320, %v319
      %v348 = vpack.c.b16 %v322, %v321
      %v349 = vpack.c.b16 %v324, %v323
      %v350 = vpack.c.b16 %v326, %v325
      %v355 = vunpack.c.l.b16 %v223
      %v356 = vunpack.c.l.b16 %v224
      %v357 = vunpack.c.l.b16 %v225
      %v358 = vunpack.c.l.b16 %v226
      %v359 = vpack.c.b16 %v356, %v355
      %v360 = vpack.c.b16 %v358, %v357
      %vm362 = vcmask 203776
      %v364 = vsel %vm362, %v327, 0
      %v367 = vsel %vm362, %v328, 0
      %v370 = vsel %vm362, %v329, 0
      %v373 = vsel %vm362, %v330, 0
      %v376 = vsel %vm362, %v331, 0
      %v379 = vsel %vm362, %v332, 0
      %v382 = vsel %vm362, %v333, 0
      %v385 = vsel %vm362, %v334, 0
      %v388 = vsel %vm362, %v335, 0
      %v391 = vsel %vm362, %v336, 0
      %v394 = vsel %vm362, %v337, 0
      %v397 = vsel %vm362, %v338, 0
      %v400 = vsel %vm362, %v339, 0
      %v403 = vsel %vm362, %v340, 0
      %v406 = vsel %vm362, %v341, 0
      %v409 = vsel %vm362, %v342, 0
      %v412 = vsel %vm362, %v343, 0
      %v415 = vsel %vm362, %v344, 0
      %v418 = vsel %vm362, %v345, 0
      %v421 = vsel %vm362, %v346, 0
      %v424 = vsel %vm362, %v347, 0
      %v427 = vsel %vm362, %v348, 0
      %v430 = vsel %vm362, %v349, 0
      %v433 = vsel %vm362, %v350, 0
      %vm435 = vcmask 1043456
      %vm436 = vcmask 1044480
      %v437 = vsel %vm435, 4294967295, 65535
      %v438 = vsel %vm436, %v437, 0
      %v440 = vand.u32 %v360, %v438
      %442 = vmatpush.bf16.msra.mxu0 0
      %443 = vmatpush.bf16.msra.mxu0 0
      %444 = vmatpush.bf16.msra.mxu0 0
      %445 = vmatpush.bf16.msra.mxu0 0
      %446 = vmatpush.bf16.msra.mxu0 0
      %447 = vmatpush.bf16.msra.mxu0 0
      %448 = vmatpush.bf16.msra.mxu0 %v440
      %449 = vmatpush.bf16.msra.mxu0 %v359
      %450 = vmatmul.bf16.gmra.mxu0 %v364
      %v451 = vpop.f32.mrf.mxu0
      %v452 = vadd.f32 %v229, %v451
      %v453 = vpop.f32.mrf.mxu0
      %v454 = vadd.f32 %v229, %v453
      %455 = vmatmul.bf16.gmra.mxu0 %v367
      %v456 = vpop.f32.mrf.mxu0
      %v457 = vadd.f32 %v229, %v456
      %v458 = vpop.f32.mrf.mxu0
      %v459 = vadd.f32 %v229, %v458
      %460 = vmatmul.bf16.gmra.mxu0 %v370
      %v461 = vpop.f32.mrf.mxu0
      %v462 = vadd.f32 %v229, %v461
      %v463 = vpop.f32.mrf.mxu0
      %v464 = vadd.f32 %v229, %v463
      %465 = vmatmul.bf16.gmra.mxu0 %v373
      %v466 = vpop.f32.mrf.mxu0
      %v467 = vadd.f32 %v229, %v466
      %v468 = vpop.f32.mrf.mxu0
      %v469 = vadd.f32 %v229, %v468
      %470 = vmatmul.bf16.gmra.mxu0 %v376
      %v471 = vpop.f32.mrf.mxu0
      %v472 = vadd.f32 %v229, %v471
      %v473 = vpop.f32.mrf.mxu0
      %v474 = vadd.f32 %v229, %v473
      %475 = vmatmul.bf16.gmra.mxu0 %v379
      %v476 = vpop.f32.mrf.mxu0
      %v477 = vadd.f32 %v229, %v476
      %v478 = vpop.f32.mrf.mxu0
      %v479 = vadd.f32 %v229, %v478
      %480 = vmatmul.bf16.gmra.mxu0 %v382
      %v481 = vpop.f32.mrf.mxu0
      %v482 = vadd.f32 %v229, %v481
      %v483 = vpop.f32.mrf.mxu0
      %v484 = vadd.f32 %v229, %v483
      %485 = vmatmul.bf16.gmra.mxu0 %v385
      %v486 = vpop.f32.mrf.mxu0
      %v487 = vadd.f32 %v229, %v486
      %v488 = vpop.f32.mrf.mxu0
      %v489 = vadd.f32 %v229, %v488
      %490 = vmatmul.bf16.gmra.mxu0 %v388
      %v491 = vpop.f32.mrf.mxu0
      %v492 = vadd.f32 %v229, %v491
      %v493 = vpop.f32.mrf.mxu0
      %v494 = vadd.f32 %v229, %v493
      %495 = vmatmul.bf16.gmra.mxu0 %v391
      %v496 = vpop.f32.mrf.mxu0
      %v497 = vadd.f32 %v229, %v496
      %v498 = vpop.f32.mrf.mxu0
      %v499 = vadd.f32 %v229, %v498
      %500 = vmatmul.bf16.gmra.mxu0 %v394
      %v501 = vpop.f32.mrf.mxu0
      %v502 = vadd.f32 %v229, %v501
      %v503 = vpop.f32.mrf.mxu0
      %v504 = vadd.f32 %v229, %v503
      %505 = vmatmul.bf16.gmra.mxu0 %v397
      %v506 = vpop.f32.mrf.mxu0
      %v507 = vadd.f32 %v229, %v506
      %v508 = vpop.f32.mrf.mxu0
      %v509 = vadd.f32 %v229, %v508
      %510 = vmatmul.bf16.gmra.mxu0 %v400
      %v511 = vpop.f32.mrf.mxu0
      %v512 = vadd.f32 %v229, %v511
      %v513 = vpop.f32.mrf.mxu0
      %v514 = vadd.f32 %v229, %v513
      %515 = vmatmul.bf16.gmra.mxu0 %v403
      %v516 = vpop.f32.mrf.mxu0
      %v517 = vadd.f32 %v229, %v516
      %v518 = vpop.f32.mrf.mxu0
      %v519 = vadd.f32 %v229, %v518
      %520 = vmatmul.bf16.gmra.mxu0 %v406
      %v521 = vpop.f32.mrf.mxu0
      %v522 = vadd.f32 %v229, %v521
      %v523 = vpop.f32.mrf.mxu0
      %v524 = vadd.f32 %v229, %v523
      %525 = vmatmul.bf16.gmra.mxu0 %v409
      %v526 = vpop.f32.mrf.mxu0
      %v527 = vadd.f32 %v229, %v526
      %v528 = vpop.f32.mrf.mxu0
      %v529 = vadd.f32 %v229, %v528
      %530 = vmatmul.bf16.gmra.mxu0 %v412
      %v531 = vpop.f32.mrf.mxu0
      %v532 = vadd.f32 %v229, %v531
      %v533 = vpop.f32.mrf.mxu0
      %v534 = vadd.f32 %v229, %v533
      %535 = vmatmul.bf16.gmra.mxu0 %v415
      %v536 = vpop.f32.mrf.mxu0
      %v537 = vadd.f32 %v229, %v536
      %v538 = vpop.f32.mrf.mxu0
      %v539 = vadd.f32 %v229, %v538
      %540 = vmatmul.bf16.gmra.mxu0 %v418
      %v541 = vpop.f32.mrf.mxu0
      %v542 = vadd.f32 %v229, %v541
      %v543 = vpop.f32.mrf.mxu0
      %v544 = vadd.f32 %v229, %v543
      %545 = vmatmul.bf16.gmra.mxu0 %v421
      %v546 = vpop.f32.mrf.mxu0
      %v547 = vadd.f32 %v229, %v546
      %v548 = vpop.f32.mrf.mxu0
      %v549 = vadd.f32 %v229, %v548
      %550 = vmatmul.bf16.gmra.mxu0 %v424
      %v551 = vpop.f32.mrf.mxu0
      %v552 = vadd.f32 %v229, %v551
      %v553 = vpop.f32.mrf.mxu0
      %v554 = vadd.f32 %v229, %v553
      %555 = vmatmul.bf16.gmra.mxu0 %v427
      %v556 = vpop.f32.mrf.mxu0
      %v557 = vadd.f32 %v229, %v556
      %v558 = vpop.f32.mrf.mxu0
      %v559 = vadd.f32 %v229, %v558
      %560 = vmatmul.bf16.gmra.mxu0 %v430
      %v561 = vpop.f32.mrf.mxu0
      %v562 = vadd.f32 %v229, %v561
      %v563 = vpop.f32.mrf.mxu0
      %v564 = vadd.f32 %v229, %v563
      %565 = vmatmul.bf16.gmra.mxu0 %v433
      %v566 = vpop.f32.mrf.mxu0
      %v567 = vadd.f32 %v229, %v566
      %v568 = vpop.f32.mrf.mxu0
      %v569 = vadd.f32 %v229, %v568
      %570 = vdwg.mxu0
      %v571 = vmax.f32 %v452, 0.0
      %v572 = vmax.f32 %v454, 0.0
      %v573 = vmax.f32 %v457, 0.0
      %v574 = vmax.f32 %v459, 0.0
      %v575 = vmax.f32 %v462, 0.0
      %v576 = vmax.f32 %v464, 0.0
      %v577 = vmax.f32 %v467, 0.0
      %v578 = vmax.f32 %v469, 0.0
      %v579 = vmax.f32 %v472, 0.0
      %v580 = vmax.f32 %v474, 0.0
      %v581 = vmax.f32 %v477, 0.0
      %v582 = vmax.f32 %v479, 0.0
      %v583 = vmax.f32 %v482, 0.0
      %v584 = vmax.f32 %v484, 0.0
      %v585 = vmax.f32 %v487, 0.0
      %v586 = vmax.f32 %v489, 0.0
      %v587 = vmax.f32 %v492, 0.0
      %v588 = vmax.f32 %v494, 0.0
      %v589 = vmax.f32 %v497, 0.0
      %v590 = vmax.f32 %v499, 0.0
      %v591 = vmax.f32 %v502, 0.0
      %v592 = vmax.f32 %v504, 0.0
      %v593 = vmax.f32 %v507, 0.0
      %v594 = vmax.f32 %v509, 0.0
      %v595 = vmax.f32 %v512, 0.0
      %v596 = vmax.f32 %v514, 0.0
      %v597 = vmax.f32 %v517, 0.0
      %v598 = vmax.f32 %v519, 0.0
      %v599 = vmax.f32 %v522, 0.0
      %v600 = vmax.f32 %v524, 0.0
      %v601 = vmax.f32 %v527, 0.0
      %v602 = vmax.f32 %v529, 0.0
      %v603 = vmax.f32 %v532, 0.0
      %v604 = vmax.f32 %v534, 0.0
      %v605 = vmax.f32 %v537, 0.0
      %v606 = vmax.f32 %v539, 0.0
      %v607 = vmax.f32 %v542, 0.0
      %v608 = vmax.f32 %v544, 0.0
      %v609 = vmax.f32 %v547, 0.0
      %v610 = vmax.f32 %v549, 0.0
      %v611 = vmax.f32 %v552, 0.0
      %v612 = vmax.f32 %v554, 0.0
      %v613 = vmax.f32 %v557, 0.0
      %v614 = vmax.f32 %v559, 0.0
      %v615 = vmax.f32 %v562, 0.0
      %v616 = vmax.f32 %v564, 0.0
      %v617 = vmax.f32 %v567, 0.0
      %v618 = vmax.f32 %v569, 0.0
      %619 = vst [vmem:[%s172] sm:$0xff] %v571
      %620 = vst [vmem:[%s172 + $0x8] sm:$0xff] %v572
      %621 = vst [vmem:[%s172 + $0x10] sm:$0xff] %v573
      %622 = vst [vmem:[%s172 + $0x18] sm:$0xff] %v574
      %623 = vst [vmem:[%s172 + $0x20] sm:$0xff] %v575
      %624 = vst [vmem:[%s172 + $0x28] sm:$0xff] %v576
      %625 = vst [vmem:[%s172 + $0x30] sm:$0xff] %v577
      %626 = vst [vmem:[%s172 + $0x38] sm:$0xff] %v578
      %627 = vst [vmem:[%s172 + $0x40] sm:$0xff] %v579
      %628 = vst [vmem:[%s172 + $0x48] sm:$0xff] %v580
      %629 = vst [vmem:[%s172 + $0x50] sm:$0xff] %v581
      %630 = vst [vmem:[%s172 + $0x58] sm:$0xff] %v582
      %631 = vst [vmem:[%s172 + $0x60] sm:$0xff] %v583
      %632 = vst [vmem:[%s172 + $0x68] sm:$0xff] %v584
      %633 = vst [vmem:[%s172 + $0x70] sm:$0xff] %v585
      %634 = vst [vmem:[%s172 + $0x78] sm:$0xff] %v586
      %635 = vst [vmem:[%s172 + $0x80] sm:$0xff] %v587
      %636 = vst [vmem:[%s172 + $0x88] sm:$0xff] %v588
      %637 = vst [vmem:[%s172 + $0x90] sm:$0xff] %v589
      %638 = vst [vmem:[%s172 + $0x98] sm:$0xff] %v590
      %639 = vst [vmem:[%s172 + $0xa0] sm:$0xff] %v591
      %640 = vst [vmem:[%s172 + $0xa8] sm:$0xff] %v592
      %641 = vst [vmem:[%s172 + $0xb0] sm:$0xff] %v593
      %642 = vst [vmem:[%s172 + $0xb8] sm:$0xff] %v594
      %643 = vst [vmem:[%s172 + $0xc0] sm:$0xff] %v595
      %644 = vst [vmem:[%s172 + $0xc8] sm:$0xff] %v596
      %645 = vst [vmem:[%s172 + $0xd0] sm:$0xff] %v597
      %646 = vst [vmem:[%s172 + $0xd8] sm:$0xff] %v598
      %647 = vst [vmem:[%s172 + $0xe0] sm:$0xff] %v599
      %648 = vst [vmem:[%s172 + $0xe8] sm:$0xff] %v600
      %649 = vst [vmem:[%s172 + $0xf0] sm:$0xff] %v601
      %650 = vst [vmem:[%s172 + $0xf8] sm:$0xff] %v602
      %651 = vst [vmem:[%s172 + $0x100] sm:$0xff] %v603
      %652 = vst [vmem:[%s172 + $0x108] sm:$0xff] %v604
      %653 = vst [vmem:[%s172 + $0x110] sm:$0xff] %v605
      %654 = vst [vmem:[%s172 + $0x118] sm:$0xff] %v606
      %655 = vst [vmem:[%s172 + $0x120] sm:$0xff] %v607
      %656 = vst [vmem:[%s172 + $0x128] sm:$0xff] %v608
      %657 = vst [vmem:[%s172 + $0x130] sm:$0xff] %v609
      %658 = vst [vmem:[%s172 + $0x138] sm:$0xff] %v610
      %659 = vst [vmem:[%s172 + $0x140] sm:$0xff] %v611
      %660 = vst [vmem:[%s172 + $0x148] sm:$0xff] %v612
      %661 = vst [vmem:[%s172 + $0x150] sm:$0xff] %v613
      %662 = vst [vmem:[%s172 + $0x158] sm:$0xff] %v614
      %663 = vst [vmem:[%s172 + $0x160] sm:$0xff] %v615
      %664 = vst [vmem:[%s172 + $0x168] sm:$0xff] %v616
      %665 = vst [vmem:[%s172 + $0x170] sm:$0xff] %v617
      %666 = vst [vmem:[%s172 + $0x178] sm:$0xff] %v618
      %s667 = smul.u32 48, %s14
      %p668 = scmp.lt.s32.totalorder %s667, 143
      %s669 = scalar_select %p668, %s667, 143
      %s670 = smul.addr %s669, 8
      %s671 = scalar_lea.vmem %s3, %s670
      // Predicated region
      $region33: #{ae_cnn_mnist_forward.14} parent=31 // pred_check
        %p672 = pneg %p100
      $region34: #{ae_cnn_mnist_forward.14} parent=31 // pred_check_branch
        %674 = sbr.rel (%p672) target = $region36
      $region35: #{ae_cnn_mnist_forward.14} parent=31 // pred_region
        %s675 = smul.u32 48, %s14
      $region36: #{ae_cnn_mnist_forward.14} parent=31 // pred_fallthru
        _
    $region32: #{ae_cnn_mnist_forward.14} parent=5 // pred_fallthru
      _
    %p676 = scmp.le.s32.totalorder 2, %s9
    // Predicated region
    $region37: #{ae_cnn_mnist_forward.14} parent=5 // pred_check
      %p677 = pneg %p676
    $region38: #{ae_cnn_mnist_forward.14} parent=5 // pred_check_branch
      %679 = sbr.rel (%p677) target = $region40
    $region39: #{ae_cnn_mnist_forward.14} parent=5 // pred_region
      %s680 = ssub.s32 %s9, 2
      // Predicated region
      $region41: #{ae_cnn_mnist_forward.14} parent=39 // pred_check
        %p681 = pneg %p106
      $region42: #{ae_cnn_mnist_forward.14} parent=39 // pred_check_branch
        %683 = sbr.rel (%p681) target = $region44
      $region43: #{ae_cnn_mnist_forward.14} parent=39 // pred_region
        %s684 = smul.u32 48, %s15
        %p685 = scmp.lt.s32.totalorder %s684, 143
        %s686 = scalar_select %p685, %s684, 143
        %s687 = smul.addr %s686, 8
        %s688 = scalar_lea.vmem %s3, %s687
      $region44: #{ae_cnn_mnist_forward.14} parent=39 // pred_fallthru
        _
    $region40: #{ae_cnn_mnist_forward.14} parent=5 // pred_fallthru
      _
  $region6: #{ae_cnn_mnist_forward.14} parent=0 // loop_footer
    %s13 = sadd.s32 1, %s9
  $region7: #{ae_cnn_mnist_forward.14} parent=0 // loop_footer_branch
    %8 = sbr.rel target = $region3
  $region8: #{ae_cnn_mnist_forward.14} parent=0 // loop_exit
    _

// kernel: ae_cnn_mnist_forward.15
$region0: #{ae_cnn_mnist_forward.15}
  #allocation0 [shape = 'u32[]', space=smem, size = 0x4, offset = 0x4, fixed_abs, tag = 'smem constant byte address 0x4 - core index']
  #allocation1 [shape = 'u32[72,128]{1,0:T(1,128)}', space=vmem, size = 0x9000, scoped, tag = 'internal scratch']
  %s0 = inlined_call_operand.vmem [shape: f32[24,2,12,256], index: 0, kind: input, shape index: {}]
  %s1 = inlined_call_operand.vmem [shape: f32[24,12,26], index: 1, kind: output, shape index: {}]
  %s2 = sld [smem:[#allocation0]]
  $region14: #{ae_cnn_mnist_forward.15} parent=0
    _
  %s4 = ssub.s32 1, %s2
  %s5 = scalar_select 0, %s4, %s2
  // Predicated region
  $region2: #{ae_cnn_mnist_forward.15} parent=0 // pred_check
    _
  $region3: #{ae_cnn_mnist_forward.15} parent=0 // pred_check_branch
    %7 = sbr.rel (0) target = $region5
  $region4: #{ae_cnn_mnist_forward.15} parent=0 // pred_region
    _
  $region5: #{ae_cnn_mnist_forward.15} parent=0 // pred_fallthru
    _
  %v8 = vld [vmem:[%s0] sm:$0xff]
  %v9 = vld [vmem:[%s0 + $0x8] sm:$0xff]
  %v10 = vld [vmem:[%s0 + $0x10] sm:$0xf]
  %v11 = vld [vmem:[%s0 + $0x18] sm:$0xf]
  %v12 = vld [vmem:[%s0 + $0x40] sm:$0xff]
  %v13 = vld [vmem:[%s0 + $0x48] sm:$0xff]
  %v14 = vld [vmem:[%s0 + $0x50] sm:$0xf]
  %v15 = vld [vmem:[%s0 + $0x58] sm:$0xf]
  %v16 = vld [vmem:[%s0 + $0x80] sm:$0xff]
  %v17 = vld [vmem:[%s0 + $0x88] sm:$0xff]
  %v18 = vld [vmem:[%s0 + $0x90] sm:$0xf]
  %v19 = vld [vmem:[%s0 + $0x98] sm:$0xf]
  %v20 = vld [vmem:[%s0 + $0xc0] sm:$0xff]
  %v21 = vld [vmem:[%s0 + $0xc8] sm:$0xff]
  %v22 = vld [vmem:[%s0 + $0xd0] sm:$0xf]
  %v23 = vld [vmem:[%s0 + $0xd8] sm:$0xf]
  %v24 = vld [vmem:[%s0 + $0x100] sm:$0xff]
  %v25 = vld [vmem:[%s0 + $0x108] sm:$0xff]
  %v26 = vld [vmem:[%s0 + $0x110] sm:$0xf]
  %v27 = vld [vmem:[%s0 + $0x118] sm:$0xf]
  %v28 = vld [vmem:[%s0 + $0x140] sm:$0xff]
  %v29 = vld [vmem:[%s0 + $0x148] sm:$0xff]
  %v30 = vld [vmem:[%s0 + $0x150] sm:$0xf]
  %v31 = vld [vmem:[%s0 + $0x158] sm:$0xf]
  %v32 = vld [vmem:[%s0 + $0x180] sm:$0xff]
  %v33 = vld [vmem:[%s0 + $0x188] sm:$0xff]
  %v34 = vld [vmem:[%s0 + $0x190] sm:$0xf]
  %v35 = vld [vmem:[%s0 + $0x198] sm:$0xf]
  %v36 = vld [vmem:[%s0 + $0x1c0] sm:$0xff]
  %v37 = vld [vmem:[%s0 + $0x1c8] sm:$0xff]
  %v38 = vld [vmem:[%s0 + $0x1d0] sm:$0xf]
  %v39 = vld [vmem:[%s0 + $0x1d8] sm:$0xf]
  %v40 = vld [vmem:[%s0 + $0x200] sm:$0xff]
  %v41 = vld [vmem:[%s0 + $0x208] sm:$0xff]
  %v42 = vld [vmem:[%s0 + $0x210] sm:$0xf]
  %v43 = vld [vmem:[%s0 + $0x218] sm:$0xf]
  %v44 = vld [vmem:[%s0 + $0x240] sm:$0xff]
  %v45 = vld [vmem:[%s0 + $0x248] sm:$0xff]
  %v46 = vld [vmem:[%s0 + $0x250] sm:$0xf]
  %v47 = vld [vmem:[%s0 + $0x258] sm:$0xf]
  %v48 = vld [vmem:[%s0 + $0x280] sm:$0xff]
  %v49 = vld [vmem:[%s0 + $0x288] sm:$0xff]
  %v50 = vld [vmem:[%s0 + $0x290] sm:$0xf]
  %v51 = vld [vmem:[%s0 + $0x298] sm:$0xf]
  %v52 = vld [vmem:[%s0 + $0x2c0] sm:$0xff]
  %v53 = vld [vmem:[%s0 + $0x2c8] sm:$0xff]
  %v54 = vld [vmem:[%s0 + $0x2d0] sm:$0xf]
  %v55 = vld [vmem:[%s0 + $0x2d8] sm:$0xf]
  %v56 = vld [vmem:[%s0 + $0x300] sm:$0xff]
  %v57 = vld [vmem:[%s0 + $0x308] sm:$0xff]
  %v58 = vld [vmem:[%s0 + $0x310] sm:$0xf]
  %v59 = vld [vmem:[%s0 + $0x318] sm:$0xf]
  %v60 = vld [vmem:[%s0 + $0x340] sm:$0xff]
  %v61 = vld [vmem:[%s0 + $0x348] sm:$0xff]
  %v62 = vld [vmem:[%s0 + $0x350] sm:$0xf]
  %v63 = vld [vmem:[%s0 + $0x358] sm:$0xf]
  %v64 = vld [vmem:[%s0 + $0x380] sm:$0xff]
  %v65 = vld [vmem:[%s0 + $0x388] sm:$0xff]
  %v66 = vld [vmem:[%s0 + $0x390] sm:$0xf]
  %v67 = vld [vmem:[%s0 + $0x398] sm:$0xf]
  %v68 = vld [vmem:[%s0 + $0x3c0] sm:$0xff]
  %v69 = vld [vmem:[%s0 + $0x3c8] sm:$0xff]
  %v70 = vld [vmem:[%s0 + $0x3d0] sm:$0xf]
  %v71 = vld [vmem:[%s0 + $0x3d8] sm:$0xf]
  %v72 = vld [vmem:[%s0 + $0x400] sm:$0xff]
  %v73 = vld [vmem:[%s0 + $0x408] sm:$0xff]
  %v74 = vld [vmem:[%s0 + $0x410] sm:$0xf]
  %v75 = vld [vmem:[%s0 + $0x418] sm:$0xf]
  %v76 = vld [vmem:[%s0 + $0x440] sm:$0xff]
  %v77 = vld [vmem:[%s0 + $0x448] sm:$0xff]
  %v78 = vld [vmem:[%s0 + $0x450] sm:$0xf]
  %v79 = vld [vmem:[%s0 + $0x458] sm:$0xf]
  %v80 = vld [vmem:[%s0 + $0x480] sm:$0xff]
  %v81 = vld [vmem:[%s0 + $0x488] sm:$0xff]
  %v82 = vld [vmem:[%s0 + $0x490] sm:$0xf]
  %v83 = vld [vmem:[%s0 + $0x498] sm:$0xf]
  %v84 = vld [vmem:[%s0 + $0x4c0] sm:$0xff]
  %v85 = vld [vmem:[%s0 + $0x4c8] sm:$0xff]
  %v86 = vld [vmem:[%s0 + $0x4d0] sm:$0xf]
  %v87 = vld [vmem:[%s0 + $0x4d8] sm:$0xf]
  %v88 = vld [vmem:[%s0 + $0x500] sm:$0xff]
  %v89 = vld [vmem:[%s0 + $0x508] sm:$0xff]
  %v90 = vld [vmem:[%s0 + $0x510] sm:$0xf]
  %v91 = vld [vmem:[%s0 + $0x518] sm:$0xf]
  %v92 = vld [vmem:[%s0 + $0x540] sm:$0xff]
  %v93 = vld [vmem:[%s0 + $0x548] sm:$0xff]
  %v94 = vld [vmem:[%s0 + $0x550] sm:$0xf]
  %v95 = vld [vmem:[%s0 + $0x558] sm:$0xf]
  %v96 = vld [vmem:[%s0 + $0x580] sm:$0xff]
  %v97 = vld [vmem:[%s0 + $0x588] sm:$0xff]
  %v98 = vld [vmem:[%s0 + $0x590] sm:$0xf]
  %v99 = vld [vmem:[%s0 + $0x598] sm:$0xf]
  %v100 = vld [vmem:[%s0 + $0x5c0] sm:$0xff]
  %v101 = vld [vmem:[%s0 + $0x5c8] sm:$0xff]
  %v102 = vld [vmem:[%s0 + $0x5d0] sm:$0xf]
  %v103 = vld [vmem:[%s0 + $0x5d8] sm:$0xf]
  %s104 = scalar_lea.vmem %s0, 32
  %v105 = vld [vmem:[%s104] sm:$0xff]
  %v106 = vld [vmem:[%s104 + $0x8] sm:$0xff]
  %v107 = vld [vmem:[%s104 + $0x10] sm:$0xf]
  %v108 = vld [vmem:[%s104 + $0x18] sm:$0xf]
  %v109 = vld [vmem:[%s104 + $0x40] sm:$0xff]
  %v110 = vld [vmem:[%s104 + $0x48] sm:$0xff]
  %v111 = vld [vmem:[%s104 + $0x50] sm:$0xf]
  %v112 = vld [vmem:[%s104 + $0x58] sm:$0xf]
  %v113 = vld [vmem:[%s104 + $0x80] sm:$0xff]
  %v114 = vld [vmem:[%s104 + $0x88] sm:$0xff]
  %v115 = vld [vmem:[%s104 + $0x90] sm:$0xf]
  %v116 = vld [vmem:[%s104 + $0x98] sm:$0xf]
  %v117 = vld [vmem:[%s104 + $0xc0] sm:$0xff]
  %v118 = vld [vmem:[%s104 + $0xc8] sm:$0xff]
  %v119 = vld [vmem:[%s104 + $0xd0] sm:$0xf]
  %v120 = vld [vmem:[%s104 + $0xd8] sm:$0xf]
  %v121 = vld [vmem:[%s104 + $0x100] sm:$0xff]
  %v122 = vld [vmem:[%s104 + $0x108] sm:$0xff]
  %v123 = vld [vmem:[%s104 + $0x110] sm:$0xf]
  %v124 = vld [vmem:[%s104 + $0x118] sm:$0xf]
  %v125 = vld [vmem:[%s104 + $0x140] sm:$0xff]
  %v126 = vld [vmem:[%s104 + $0x148] sm:$0xff]
  %v127 = vld [vmem:[%s104 + $0x150] sm:$0xf]
  %v128 = vld [vmem:[%s104 + $0x158] sm:$0xf]
  %v129 = vld [vmem:[%s104 + $0x180] sm:$0xff]
  %v130 = vld [vmem:[%s104 + $0x188] sm:$0xff]
  %v131 = vld [vmem:[%s104 + $0x190] sm:$0xf]
  %v132 = vld [vmem:[%s104 + $0x198] sm:$0xf]
  %v133 = vld [vmem:[%s104 + $0x1c0] sm:$0xff]
  %v134 = vld [vmem:[%s104 + $0x1c8] sm:$0xff]
  %v135 = vld [vmem:[%s104 + $0x1d0] sm:$0xf]
  %v136 = vld [vmem:[%s104 + $0x1d8] sm:$0xf]
  %v137 = vld [vmem:[%s104 + $0x200] sm:$0xff]
  %v138 = vld [vmem:[%s104 + $0x208] sm:$0xff]
  %v139 = vld [vmem:[%s104 + $0x210] sm:$0xf]
  %v140 = vld [vmem:[%s104 + $0x218] sm:$0xf]
  %v141 = vld [vmem:[%s104 + $0x240] sm:$0xff]
  %v142 = vld [vmem:[%s104 + $0x248] sm:$0xff]
  %v143 = vld [vmem:[%s104 + $0x250] sm:$0xf]
  %v144 = vld [vmem:[%s104 + $0x258] sm:$0xf]
  %v145 = vld [vmem:[%s104 + $0x280] sm:$0xff]
  %v146 = vld [vmem:[%s104 + $0x288] sm:$0xff]
  %v147 = vld [vmem:[%s104 + $0x290] sm:$0xf]
  %v148 = vld [vmem:[%s104 + $0x298] sm:$0xf]
  %v149 = vld [vmem:[%s104 + $0x2c0] sm:$0xff]
  %v150 = vld [vmem:[%s104 + $0x2c8] sm:$0xff]
  %v151 = vld [vmem:[%s104 + $0x2d0] sm:$0xf]
  %v152 = vld [vmem:[%s104 + $0x2d8] sm:$0xf]
  %v153 = vld [vmem:[%s104 + $0x300] sm:$0xff]
  %v154 = vld [vmem:[%s104 + $0x308] sm:$0xff]
  %v155 = vld [vmem:[%s104 + $0x310] sm:$0xf]
  %v156 = vld [vmem:[%s104 + $0x318] sm:$0xf]
  %v157 = vld [vmem:[%s104 + $0x340] sm:$0xff]
  %v158 = vld [vmem:[%s104 + $0x348] sm:$0xff]
  %v159 = vld [vmem:[%s104 + $0x350] sm:$0xf]
  %v160 = vld [vmem:[%s104 + $0x358] sm:$0xf]
  %v161 = vld [vmem:[%s104 + $0x380] sm:$0xff]
  %v162 = vld [vmem:[%s104 + $0x388] sm:$0xff]
  %v163 = vld [vmem:[%s104 + $0x390] sm:$0xf]
  %v164 = vld [vmem:[%s104 + $0x398] sm:$0xf]
  %v165 = vld [vmem:[%s104 + $0x3c0] sm:$0xff]
  %v166 = vld [vmem:[%s104 + $0x3c8] sm:$0xff]
  %v167 = vld [vmem:[%s104 + $0x3d0] sm:$0xf]
  %v168 = vld [vmem:[%s104 + $0x3d8] sm:$0xf]
  %v169 = vld [vmem:[%s104 + $0x400] sm:$0xff]
  %v170 = vld [vmem:[%s104 + $0x408] sm:$0xff]
  %v171 = vld [vmem:[%s104 + $0x410] sm:$0xf]
  %v172 = vld [vmem:[%s104 + $0x418] sm:$0xf]
  %v173 = vld [vmem:[%s104 + $0x440] sm:$0xff]
  %v174 = vld [vmem:[%s104 + $0x448] sm:$0xff]
  %v175 = vld [vmem:[%s104 + $0x450] sm:$0xf]
  %v176 = vld [vmem:[%s104 + $0x458] sm:$0xf]
  %v177 = vld [vmem:[%s104 + $0x480] sm:$0xff]
  %v178 = vld [vmem:[%s104 + $0x488] sm:$0xff]
  %v179 = vld [vmem:[%s104 + $0x490] sm:$0xf]
  %v180 = vld [vmem:[%s104 + $0x498] sm:$0xf]
  %v181 = vld [vmem:[%s104 + $0x4c0] sm:$0xff]
  %v182 = vld [vmem:[%s104 + $0x4c8] sm:$0xff]
  %v183 = vld [vmem:[%s104 + $0x4d0] sm:$0xf]
  %v184 = vld [vmem:[%s104 + $0x4d8] sm:$0xf]
  %v185 = vld [vmem:[%s104 + $0x500] sm:$0xff]
  %v186 = vld [vmem:[%s104 + $0x508] sm:$0xff]
  %v187 = vld [vmem:[%s104 + $0x510] sm:$0xf]
  %v188 = vld [vmem:[%s104 + $0x518] sm:$0xf]
  %v189 = vld [vmem:[%s104 + $0x540] sm:$0xff]
  %v190 = vld [vmem:[%s104 + $0x548] sm:$0xff]
  %v191 = vld [vmem:[%s104 + $0x550] sm:$0xf]
  %v192 = vld [vmem:[%s104 + $0x558] sm:$0xf]
  %v193 = vld [vmem:[%s104 + $0x580] sm:$0xff]
  %v194 = vld [vmem:[%s104 + $0x588] sm:$0xff]
  %v195 = vld [vmem:[%s104 + $0x590] sm:$0xf]
  %v196 = vld [vmem:[%s104 + $0x598] sm:$0xf]
  %v197 = vld [vmem:[%s104 + $0x5c0] sm:$0xff]
  %v198 = vld [vmem:[%s104 + $0x5c8] sm:$0xff]
  %v199 = vld [vmem:[%s104 + $0x5d0] sm:$0xf]
  %v200 = vld [vmem:[%s104 + $0x5d8] sm:$0xf]
  %v201 = vmax.f32 %v8, %v105
  %v202 = vmax.f32 %v9, %v106
  %v203 = vmax.f32 %v10, %v107
  %v204 = vmax.f32 %v11, %v108
  %v205 = vmax.f32 %v12, %v109
  %v206 = vmax.f32 %v13, %v110
  %v207 = vmax.f32 %v14, %v111
  %v208 = vmax.f32 %v15, %v112
  %v209 = vmax.f32 %v16, %v113
  %v210 = vmax.f32 %v17, %v114
  %v211 = vmax.f32 %v18, %v115
  %v212 = vmax.f32 %v19, %v116
  %v213 = vmax.f32 %v20, %v117
  %v214 = vmax.f32 %v21, %v118
  %v215 = vmax.f32 %v22, %v119
  %v216 = vmax.f32 %v23, %v120
  %v217 = vmax.f32 %v24, %v121
  %v218 = vmax.f32 %v25, %v122
  %v219 = vmax.f32 %v26, %v123
  %v220 = vmax.f32 %v27, %v124
  %v221 = vmax.f32 %v28, %v125
  %v222 = vmax.f32 %v29, %v126
  %v223 = vmax.f32 %v30, %v127
  %v224 = vmax.f32 %v31, %v128
  %v225 = vmax.f32 %v32, %v129
  %v226 = vmax.f32 %v33, %v130
  %v227 = vmax.f32 %v34, %v131
  %v228 = vmax.f32 %v35, %v132
  %v229 = vmax.f32 %v36, %v133
  %v230 = vmax.f32 %v37, %v134
  %v231 = vmax.f32 %v38, %v135
  %v232 = vmax.f32 %v39, %v136
  %v233 = vmax.f32 %v40, %v137
  %v234 = vmax.f32 %v41, %v138
  %v235 = vmax.f32 %v42, %v139
  %v236 = vmax.f32 %v43, %v140
  %v237 = vmax.f32 %v44, %v141
  %v238 = vmax.f32 %v45, %v142
  %v239 = vmax.f32 %v46, %v143
  %v240 = vmax.f32 %v47, %v144
  %v241 = vmax.f32 %v48, %v145
  %v242 = vmax.f32 %v49, %v146
  %v243 = vmax.f32 %v50, %v147
  %v244 = vmax.f32 %v51, %v148
  %v245 = vmax.f32 %v52, %v149
  %v246 = vmax.f32 %v53, %v150
  %v247 = vmax.f32 %v54, %v151
  %v248 = vmax.f32 %v55, %v152
  %v249 = vmax.f32 %v56, %v153
  %v250 = vmax.f32 %v57, %v154
  %v251 = vmax.f32 %v58, %v155
  %v252 = vmax.f32 %v59, %v156
  %v253 = vmax.f32 %v60, %v157
  %v254 = vmax.f32 %v61, %v158
  %v255 = vmax.f32 %v62, %v159
  %v256 = vmax.f32 %v63, %v160
  %v257 = vmax.f32 %v64, %v161
  %v258 = vmax.f32 %v65, %v162
  %v259 = vmax.f32 %v66, %v163
  %v260 = vmax.f32 %v67, %v164
  %v261 = vmax.f32 %v68, %v165
  %v262 = vmax.f32 %v69, %v166
  %v263 = vmax.f32 %v70, %v167
  %v264 = vmax.f32 %v71, %v168
  %v265 = vmax.f32 %v72, %v169
  %v266 = vmax.f32 %v73, %v170
  %v267 = vmax.f32 %v74, %v171
  %v268 = vmax.f32 %v75, %v172
  %v269 = vmax.f32 %v76, %v173
  %v270 = vmax.f32 %v77, %v174
  %v271 = vmax.f32 %v78, %v175
  %v272 = vmax.f32 %v79, %v176
  %v273 = vmax.f32 %v80, %v177
  %v274 = vmax.f32 %v81, %v178
  %v275 = vmax.f32 %v82, %v179
  %v276 = vmax.f32 %v83, %v180
  %v277 = vmax.f32 %v84, %v181
  %v278 = vmax.f32 %v85, %v182
  %v279 = vmax.f32 %v86, %v183
  %v280 = vmax.f32 %v87, %v184
  %v281 = vmax.f32 %v88, %v185
  %v282 = vmax.f32 %v89, %v186
  %v283 = vmax.f32 %v90, %v187
  %v284 = vmax.f32 %v91, %v188
  %v285 = vmax.f32 %v92, %v189
  %v286 = vmax.f32 %v93, %v190
  %v287 = vmax.f32 %v94, %v191
  %v288 = vmax.f32 %v95, %v192
  %v289 = vmax.f32 %v96, %v193
  %v290 = vmax.f32 %v97, %v194
  %v291 = vmax.f32 %v98, %v195
  %v292 = vmax.f32 %v99, %v196
  %v293 = vmax.f32 %v100, %v197
  %v294 = vmax.f32 %v101, %v198
  %v295 = vmax.f32 %v102, %v199
  %v296 = vmax.f32 %v103, %v200
  %v297 = vmax.f32 %v201, %v202
  %v298 = vmax.f32 %v203, %v204
  %v299 = vmax.f32 %v205, %v206
  %v300 = vmax.f32 %v207, %v208
  %v301 = vmax.f32 %v209, %v210
  %v302 = vmax.f32 %v211, %v212
  %v303 = vmax.f32 %v213, %v214
  %v304 = vmax.f32 %v215, %v216
  %v305 = vmax.f32 %v217, %v218
  %v306 = vmax.f32 %v219, %v220
  %v307 = vmax.f32 %v221, %v222
  %v308 = vmax.f32 %v223, %v224
  %v309 = vmax.f32 %v225, %v226
  %v310 = vmax.f32 %v227, %v228
  %v311 = vmax.f32 %v229, %v230
  %v312 = vmax.f32 %v231, %v232
  %v313 = vmax.f32 %v233, %v234
  %v314 = vmax.f32 %v235, %v236
  %v315 = vmax.f32 %v237, %v238
  %v316 = vmax.f32 %v239, %v240
  %v317 = vmax.f32 %v241, %v242
  %v318 = vmax.f32 %v243, %v244
  %v319 = vmax.f32 %v245, %v246
  %v320 = vmax.f32 %v247, %v248
  %v321 = vmax.f32 %v249, %v250
  %v322 = vmax.f32 %v251, %v252
  %v323 = vmax.f32 %v253, %v254
  %v324 = vmax.f32 %v255, %v256
  %v325 = vmax.f32 %v257, %v258
  %v326 = vmax.f32 %v259, %v260
  %v327 = vmax.f32 %v261, %v262
  %v328 = vmax.f32 %v263, %v264
  %v329 = vmax.f32 %v265, %v266
  %v330 = vmax.f32 %v267, %v268
  %v331 = vmax.f32 %v269, %v270
  %v332 = vmax.f32 %v271, %v272
  %v333 = vmax.f32 %v273, %v274
  %v334 = vmax.f32 %v275, %v276
  %v335 = vmax.f32 %v277, %v278
  %v336 = vmax.f32 %v279, %v280
  %v337 = vmax.f32 %v281, %v282
  %v338 = vmax.f32 %v283, %v284
  %v339 = vmax.f32 %v285, %v286
  %v340 = vmax.f32 %v287, %v288
  %v341 = vmax.f32 %v289, %v290
  %v342 = vmax.f32 %v291, %v292
  %v343 = vmax.f32 %v293, %v294
  %v344 = vmax.f32 %v295, %v296
  %vm345 = vcmask 211968
  %346 = vst.msk [vmem:[%s1] sm:$0xff] %vm345, %v297
  %vm347 = vcmask 207872
  %348 = vst.msk [vmem:[%s1 + $0x8] sm:$0xf] %vm347, %v298
  %349 = vst.msk [vmem:[%s1 + $0x10] sm:$0xff] %vm345, %v299
  %350 = vst.msk [vmem:[%s1 + $0x18] sm:$0xf] %vm347, %v300
  %351 = vst.msk [vmem:[%s1 + $0x20] sm:$0xff] %vm345, %v301
  %352 = vst.msk [vmem:[%s1 + $0x28] sm:$0xf] %vm347, %v302
  %353 = vst.msk [vmem:[%s1 + $0x30] sm:$0xff] %vm345, %v303
  %354 = vst.msk [vmem:[%s1 + $0x38] sm:$0xf] %vm347, %v304
  %355 = vst.msk [vmem:[%s1 + $0x40] sm:$0xff] %vm345, %v305
  %356 = vst.msk [vmem:[%s1 + $0x48] sm:$0xf] %vm347, %v306
  %357 = vst.msk [vmem:[%s1 + $0x50] sm:$0xff] %vm345, %v307
  %358 = vst.msk [vmem:[%s1 + $0x58] sm:$0xf] %vm347, %v308
  %359 = vst.msk [vmem:[%s1 + $0x60] sm:$0xff] %vm345, %v309
  %360 = vst.msk [vmem:[%s1 + $0x68] sm:$0xf] %vm347, %v310
  %361 = vst.msk [vmem:[%s1 + $0x70] sm:$0xff] %vm345, %v311
  %362 = vst.msk [vmem:[%s1 + $0x78] sm:$0xf] %vm347, %v312
  %363 = vst.msk [vmem:[%s1 + $0x80] sm:$0xff] %vm345, %v313
  %364 = vst.msk [vmem:[%s1 + $0x88] sm:$0xf] %vm347, %v314
  %365 = vst.msk [vmem:[%s1 + $0x90] sm:$0xff] %vm345, %v315
  %366 = vst.msk [vmem:[%s1 + $0x98] sm:$0xf] %vm347, %v316
  %367 = vst.msk [vmem:[%s1 + $0xa0] sm:$0xff] %vm345, %v317
  %368 = vst.msk [vmem:[%s1 + $0xa8] sm:$0xf] %vm347, %v318
  %369 = vst.msk [vmem:[%s1 + $0xb0] sm:$0xff] %vm345, %v319
  %370 = vst.msk [vmem:[%s1 + $0xb8] sm:$0xf] %vm347, %v320
  %371 = vst.msk [vmem:[%s1 + $0xc0] sm:$0xff] %vm345, %v321
  %372 = vst.msk [vmem:[%s1 + $0xc8] sm:$0xf] %vm347, %v322
  %373 = vst.msk [vmem:[%s1 + $0xd0] sm:$0xff] %vm345, %v323
  %374 = vst.msk [vmem:[%s1 + $0xd8] sm:$0xf] %vm347, %v324
  %375 = vst.msk [vmem:[%s1 + $0xe0] sm:$0xff] %vm345, %v325
  %376 = vst.msk [vmem:[%s1 + $0xe8] sm:$0xf] %vm347, %v326
  %377 = vst.msk [vmem:[%s1 + $0xf0] sm:$0xff] %vm345, %v327
  %378 = vst.msk [vmem:[%s1 + $0xf8] sm:$0xf] %vm347, %v328
  %379 = vst.msk [vmem:[%s1 + $0x100] sm:$0xff] %vm345, %v329
  %380 = vst.msk [vmem:[%s1 + $0x108] sm:$0xf] %vm347, %v330
  %381 = vst.msk [vmem:[%s1 + $0x110] sm:$0xff] %vm345, %v331
  %382 = vst.msk [vmem:[%s1 + $0x118] sm:$0xf] %vm347, %v332
  %383 = vst.msk [vmem:[%s1 + $0x120] sm:$0xff] %vm345, %v333
  %384 = vst.msk [vmem:[%s1 + $0x128] sm:$0xf] %vm347, %v334
  %385 = vst.msk [vmem:[%s1 + $0x130] sm:$0xff] %vm345, %v335
  %386 = vst.msk [vmem:[%s1 + $0x138] sm:$0xf] %vm347, %v336
  %387 = vst.msk [vmem:[%s1 + $0x140] sm:$0xff] %vm345, %v337
  %388 = vst.msk [vmem:[%s1 + $0x148] sm:$0xf] %vm347, %v338
  %389 = vst.msk [vmem:[%s1 + $0x150] sm:$0xff] %vm345, %v339
  %390 = vst.msk [vmem:[%s1 + $0x158] sm:$0xf] %vm347, %v340
  %391 = vst.msk [vmem:[%s1 + $0x160] sm:$0xff] %vm345, %v341
  %392 = vst.msk [vmem:[%s1 + $0x168] sm:$0xf] %vm347, %v342
  %393 = vst.msk [vmem:[%s1 + $0x170] sm:$0xff] %vm345, %v343
  %394 = vst.msk [vmem:[%s1 + $0x178] sm:$0xf] %vm347, %v344
  // Predicated region
  $region6: #{ae_cnn_mnist_forward.15} parent=0 // pred_check
    _
  $region7: #{ae_cnn_mnist_forward.15} parent=0 // pred_check_branch
    %396 = sbr.rel (0) target = $region9
  $region8: #{ae_cnn_mnist_forward.15} parent=0 // pred_region
    _
  $region9: #{ae_cnn_mnist_forward.15} parent=0 // pred_fallthru
    _
  // Predicated region
  $region10: #{ae_cnn_mnist_forward.15} parent=0 // pred_check
    _
  $region11: #{ae_cnn_mnist_forward.15} parent=0 // pred_check_branch
    %398 = sbr.rel (0) target = $region13
  $region12: #{ae_cnn_mnist_forward.15} parent=0 // pred_region
    _
  $region13: #{ae_cnn_mnist_forward.15} parent=0 // pred_fallthru
    _

// kernel: ae_cnn_mnist_forward.17
$region0: #{ae_cnn_mnist_forward.17}
  #allocation0 [shape = 'u32[]', space=smem, size = 0x4, offset = 0x4, fixed_abs, tag = 'smem constant byte address 0x4 - core index']
  #allocation1 [shape = 'u32[72,128]{1,0:T(1,128)}', space=vmem, size = 0x9000, scoped, tag = 'internal scratch']
  %s0 = inlined_call_operand.vmem [shape: f32[8,2,4,256], index: 0, kind: input, shape index: {}]
  %s1 = inlined_call_operand.vmem [shape: f32[8,4,36], index: 1, kind: output, shape index: {}]
  %s2 = sld [smem:[#allocation0]]
  $region14: #{ae_cnn_mnist_forward.17} parent=0
    _
  %s4 = ssub.s32 1, %s2
  %s5 = scalar_select 0, %s4, %s2
  // Predicated region
  $region2: #{ae_cnn_mnist_forward.17} parent=0 // pred_check
    _
  $region3: #{ae_cnn_mnist_forward.17} parent=0 // pred_check_branch
    %7 = sbr.rel (0) target = $region5
  $region4: #{ae_cnn_mnist_forward.17} parent=0 // pred_region
    _
  $region5: #{ae_cnn_mnist_forward.17} parent=0 // pred_fallthru
    _
  %v8 = vld [vmem:[%s0] sm:$0xff]
  %v9 = vld [vmem:[%s0 + $0x10] sm:$0xff]
  %v10 = vld [vmem:[%s0 + $0x20] sm:$0xff]
  %v11 = vld [vmem:[%s0 + $0x30] sm:$0xff]
  %v12 = vld [vmem:[%s0 + $0x40] sm:$0xff]
  %v13 = vld [vmem:[%s0 + $0x50] sm:$0xff]
  %v14 = vld [vmem:[%s0 + $0x60] sm:$0xff]
  %v15 = vld [vmem:[%s0 + $0x70] sm:$0xff]
  %s16 = scalar_lea.vmem %s0, 8
  %v17 = vld [vmem:[%s16] sm:$0xff]
  %v18 = vld [vmem:[%s16 + $0x10] sm:$0xff]
  %v19 = vld [vmem:[%s16 + $0x20] sm:$0xff]
  %v20 = vld [vmem:[%s16 + $0x30] sm:$0xff]
  %v21 = vld [vmem:[%s16 + $0x40] sm:$0xff]
  %v22 = vld [vmem:[%s16 + $0x50] sm:$0xff]
  %v23 = vld [vmem:[%s16 + $0x60] sm:$0xff]
  %v24 = vld [vmem:[%s16 + $0x70] sm:$0xff]
  %v25 = vmax.f32 %v8, %v17
  %v26 = vmax.f32 %v9, %v18
  %v27 = vmax.f32 %v10, %v19
  %v28 = vmax.f32 %v11, %v20
  %v29 = vmax.f32 %v12, %v21
  %v30 = vmax.f32 %v13, %v22
  %v31 = vmax.f32 %v14, %v23
  %v32 = vmax.f32 %v15, %v24
  %v41 = vrot.slane %v25, 4
  %v42 = vrot.slane %v26, 4
  %v43 = vrot.slane %v27, 4
  %v44 = vrot.slane %v28, 4
  %v45 = vrot.slane %v29, 4
  %v46 = vrot.slane %v30, 4
  %v47 = vrot.slane %v31, 4
  %v48 = vrot.slane %v32, 4
  %v57 = vmax.f32 %v25, %v41
  %v58 = vmax.f32 %v26, %v42
  %v59 = vmax.f32 %v27, %v43
  %v60 = vmax.f32 %v28, %v44
  %v61 = vmax.f32 %v29, %v45
  %v62 = vmax.f32 %v30, %v46
  %v63 = vmax.f32 %v31, %v47
  %v64 = vmax.f32 %v32, %v48
  %vm65 = vcmask 289792
  %66 = vst.msk [vmem:[%s1] sm:$0xf] %vm65, %v57
  %67 = vst.msk [vmem:[%s1 + $0x4] sm:$0xf] %vm65, %v58
  %68 = vst.msk [vmem:[%s1 + $0x8] sm:$0xf] %vm65, %v59
  %69 = vst.msk [vmem:[%s1 + $0xc] sm:$0xf] %vm65, %v60
  %70 = vst.msk [vmem:[%s1 + $0x10] sm:$0xf] %vm65, %v61
  %71 = vst.msk [vmem:[%s1 + $0x14] sm:$0xf] %vm65, %v62
  %72 = vst.msk [vmem:[%s1 + $0x18] sm:$0xf] %vm65, %v63
  %73 = vst.msk [vmem:[%s1 + $0x1c] sm:$0xf] %vm65, %v64
  // Predicated region
  $region6: #{ae_cnn_mnist_forward.17} parent=0 // pred_check
    _
  $region7: #{ae_cnn_mnist_forward.17} parent=0 // pred_check_branch
    %75 = sbr.rel (0) target = $region9
  $region8: #{ae_cnn_mnist_forward.17} parent=0 // pred_region
    _
  $region9: #{ae_cnn_mnist_forward.17} parent=0 // pred_fallthru
    _
  // Predicated region
  $region10: #{ae_cnn_mnist_forward.17} parent=0 // pred_check
    _
  $region11: #{ae_cnn_mnist_forward.17} parent=0 // pred_check_branch
    %77 = sbr.rel (0) target = $region13
  $region12: #{ae_cnn_mnist_forward.17} parent=0 // pred_region
    _
  $region13: #{ae_cnn_mnist_forward.17} parent=0 // pred_fallthru
    _

// kernel: ae_cnn_mnist_forward.16
$region0: #{ae_cnn_mnist_forward.16}
  #allocation0 [shape = 'u32[]', space=smem, size = 0x4, offset = 0x4, fixed_abs, tag = 'smem constant byte address 0x4 - core index']
  #allocation1 [shape = 'u32[72,128]{1,0:T(1,128)}', space=vmem, size = 0x9000, scoped, tag = 'internal scratch']
  %s0 = inlined_call_operand.vmem [shape: bf16[128,650], index: 0, kind: input, shape index: {}]
  %s1 = inlined_call_operand.vmem [shape: bf16[650,128], index: 1, kind: input, shape index: {}]
  %s2 = inlined_call_operand.vmem [shape: f32[1,128], index: 2, kind: input, shape index: {}]
  %s3 = inlined_call_operand.vmem [shape: f32[128,128], index: 3, kind: output, shape index: {}]
  %s4 = sld [smem:[#allocation0]]
  $region22: #{ae_cnn_mnist_forward.16} parent=0
    _
  %s6 = ssub.s32 1, %s4
  %s7 = scalar_select 0, %s6, %s4
  // Predicated region
  $region2: #{ae_cnn_mnist_forward.16} parent=0 // pred_check
    _
  $region3: #{ae_cnn_mnist_forward.16} parent=0 // pred_check_branch
    %9 = sbr.rel (0) target = $region5
  $region4: #{ae_cnn_mnist_forward.16} parent=0 // pred_region
    _
  $region5: #{ae_cnn_mnist_forward.16} parent=0 // pred_fallthru
    _
  // Predicated region
  $region6: #{ae_cnn_mnist_forward.16} parent=0 // pred_check
    _
  $region7: #{ae_cnn_mnist_forward.16} parent=0 // pred_check_branch
    %11 = sbr.rel (0) target = $region9
  $region8: #{ae_cnn_mnist_forward.16} parent=0 // pred_region
    _
  $region9: #{ae_cnn_mnist_forward.16} parent=0 // pred_fallthru
    _
  // Predicated region
  $region10: #{ae_cnn_mnist_forward.16} parent=0 // pred_check
    _
  $region11: #{ae_cnn_mnist_forward.16} parent=0 // pred_check_branch
    %13 = sbr.rel (0) target = $region13
  $region12: #{ae_cnn_mnist_forward.16} parent=0 // pred_region
    _
  $region13: #{ae_cnn_mnist_forward.16} parent=0 // pred_fallthru
    _
  %v15 = vld [vmem:[%s0] sm:$0xff]
  %v16 = vld [vmem:[%s0 + $0x8] sm:$0xff]
  %v17 = vld [vmem:[%s0 + $0x10] sm:$0xff]
  %v18 = vld [vmem:[%s0 + $0x18] sm:$0xff]
  %v19 = vld [vmem:[%s0 + $0x20] sm:$0xff]
  %v20 = vld [vmem:[%s0 + $0x28] sm:$0xff]
  %v21 = vld [vmem:[%s0 + $0x30] sm:$0xff]
  %v22 = vld [vmem:[%s0 + $0x38] sm:$0xff]
  %v23 = vld [vmem:[%s0 + $0x40] sm:$0xff]
  %v24 = vld [vmem:[%s0 + $0x48] sm:$0xff]
  %v25 = vld [vmem:[%s0 + $0x50] sm:$0xff]
  %v26 = vld [vmem:[%s0 + $0x58] sm:$0xff]
  %v27 = vld [vmem:[%s0 + $0x60] sm:$0xff]
  %v28 = vld [vmem:[%s0 + $0x68] sm:$0xff]
  %v29 = vld [vmem:[%s0 + $0x70] sm:$0xff]
  %v30 = vld [vmem:[%s0 + $0x78] sm:$0xff]
  %v31 = vld [vmem:[%s0 + $0x80] sm:$0xff]
  %v32 = vld [vmem:[%s0 + $0x88] sm:$0xff]
  %v33 = vld [vmem:[%s0 + $0x90] sm:$0xff]
  %v34 = vld [vmem:[%s0 + $0x98] sm:$0xff]
  %v35 = vld [vmem:[%s0 + $0xa0] sm:$0xff]
  %v36 = vld [vmem:[%s0 + $0xa8] sm:$0xff]
  %v37 = vld [vmem:[%s0 + $0xb0] sm:$0xff]
  %v38 = vld [vmem:[%s0 + $0xb8] sm:$0xff]
  %v39 = vld [vmem:[%s0 + $0xc0] sm:$0xff]
  %v40 = vld [vmem:[%s0 + $0xc8] sm:$0xff]
  %v41 = vld [vmem:[%s0 + $0xd0] sm:$0xff]
  %v42 = vld [vmem:[%s0 + $0xd8] sm:$0xff]
  %v43 = vld [vmem:[%s0 + $0xe0] sm:$0xff]
  %v44 = vld [vmem:[%s0 + $0xe8] sm:$0xff]
  %v45 = vld [vmem:[%s0 + $0xf0] sm:$0xff]
  %v46 = vld [vmem:[%s0 + $0xf8] sm:$0xff]
  %v47 = vld [vmem:[%s0 + $0x100] sm:$0xff]
  %v48 = vld [vmem:[%s0 + $0x108] sm:$0xff]
  %v49 = vld [vmem:[%s0 + $0x110] sm:$0xff]
  %v50 = vld [vmem:[%s0 + $0x118] sm:$0xff]
  %v51 = vld [vmem:[%s0 + $0x120] sm:$0xff]
  %v52 = vld [vmem:[%s0 + $0x128] sm:$0xff]
  %v53 = vld [vmem:[%s0 + $0x130] sm:$0xff]
  %v54 = vld [vmem:[%s0 + $0x138] sm:$0xff]
  %v55 = vld [vmem:[%s0 + $0x140] sm:$0xff]
  %v56 = vld [vmem:[%s0 + $0x148] sm:$0xff]
  %v57 = vld [vmem:[%s0 + $0x150] sm:$0xff]
  %v58 = vld [vmem:[%s0 + $0x158] sm:$0xff]
  %v59 = vld [vmem:[%s0 + $0x160] sm:$0xff]
  %v60 = vld [vmem:[%s0 + $0x168] sm:$0xff]
  %v61 = vld [vmem:[%s0 + $0x170] sm:$0xff]
  %v62 = vld [vmem:[%s0 + $0x178] sm:$0xff]
  %v63 = vld [vmem:[%s1] sm:$0xf]
  %v64 = vld [vmem:[%s1 + $0x4] sm:$0xf]
  %v65 = vld [vmem:[%s1 + $0x8] sm:$0xf]
  %v66 = vld [vmem:[%s1 + $0xc] sm:$0xf]
  %v67 = vld [vmem:[%s1 + $0x10] sm:$0xf]
  %v68 = vld [vmem:[%s1 + $0x14] sm:$0xf]
  %v69 = vld [vmem:[%s1 + $0x18] sm:$0xf]
  %v70 = vld [vmem:[%s1 + $0x1c] sm:$0xf]
  %v71 = vld [vmem:[%s1 + $0x20] sm:$0xf]
  %v72 = vld [vmem:[%s1 + $0x24] sm:$0xf]
  %v73 = vld [vmem:[%s1 + $0x28] sm:$0xf]
  %v74 = vld [vmem:[%s1 + $0x2c] sm:$0xf]
  %v75 = vld [vmem:[%s1 + $0x30] sm:$0xf]
  %v76 = vld [vmem:[%s1 + $0x34] sm:$0xf]
  %v77 = vld [vmem:[%s1 + $0x38] sm:$0xf]
  %v78 = vld [vmem:[%s1 + $0x3c] sm:$0xf]
  %v79 = vld [vmem:[%s1 + $0x40] sm:$0xf]
  %v80 = vld [vmem:[%s1 + $0x44] sm:$0xf]
  %v81 = vld [vmem:[%s1 + $0x48] sm:$0xf]
  %v82 = vld [vmem:[%s1 + $0x4c] sm:$0xf]
  %v83 = vld [vmem:[%s1 + $0x50] sm:$0xf]
  %v84 = vld [vmem:[%s1 + $0x54] sm:$0xf]
  %v85 = vld [vmem:[%s1 + $0x58] sm:$0xf]
  %v86 = vld [vmem:[%s1 + $0x5c] sm:$0xf]
  %v87 = vld [vmem:[%s1 + $0x60] sm:$0xf]
  %v88 = vld [vmem:[%s1 + $0x64] sm:$0xf]
  %v89 = vld [vmem:[%s1 + $0x68] sm:$0xf]
  %v90 = vld [vmem:[%s1 + $0x6c] sm:$0xf]
  %v91 = vld [vmem:[%s1 + $0x70] sm:$0xf]
  %v92 = vld [vmem:[%s1 + $0x74] sm:$0xf]
  %v93 = vld [vmem:[%s1 + $0x78] sm:$0xf]
  %v94 = vld [vmem:[%s1 + $0x7c] sm:$0xf]
  %v95 = vld [vmem:[%s1 + $0x80] sm:$0xf]
  %v96 = vld [vmem:[%s1 + $0x84] sm:$0xf]
  %v97 = vld [vmem:[%s1 + $0x88] sm:$0xf]
  %v98 = vld [vmem:[%s1 + $0x8c] sm:$0xf]
  %v99 = vld [vmem:[%s1 + $0x90] sm:$0xf]
  %v100 = vld [vmem:[%s1 + $0x94] sm:$0xf]
  %v101 = vld [vmem:[%s1 + $0x98] sm:$0xf]
  %v102 = vld [vmem:[%s1 + $0x9c] sm:$0xf]
  %v103 = vld [vmem:[%s1 + $0xa0] sm:$0xf]
  %v104 = vld [vmem:[%s1 + $0xa4] sm:$0xf]
  %v105 = vld [vmem:[%s1 + $0xa8] sm:$0xf]
  %v106 = vld [vmem:[%s1 + $0xac] sm:$0xf]
  %v107 = vld [vmem:[%s1 + $0xb0] sm:$0xf]
  %v108 = vld [vmem:[%s1 + $0xb4] sm:$0xf]
  %v109 = vld [vmem:[%s1 + $0xb8] sm:$0xf]
  %v110 = vld [vmem:[%s1 + $0xbc] sm:$0xf]
  %v111 = vld [vmem:[%s1 + $0xc0] sm:$0xf]
  %v112 = vld [vmem:[%s1 + $0xc4] sm:$0xf]
  %v113 = vld [vmem:[%s1 + $0xc8] sm:$0xf]
  %v114 = vld [vmem:[%s1 + $0xcc] sm:$0xf]
  %v115 = vld [vmem:[%s1 + $0xd0] sm:$0xf]
  %v116 = vld [vmem:[%s1 + $0xd4] sm:$0xf]
  %v117 = vld [vmem:[%s1 + $0xd8] sm:$0xf]
  %v118 = vld [vmem:[%s1 + $0xdc] sm:$0xf]
  %v119 = vld [vmem:[%s1 + $0xe0] sm:$0xf]
  %v120 = vld [vmem:[%s1 + $0xe4] sm:$0xf]
  %v121 = vld [vmem:[%s1 + $0xe8] sm:$0xf]
  %v122 = vld [vmem:[%s1 + $0xec] sm:$0xf]
  %v123 = vld [vmem:[%s1 + $0xf0] sm:$0xf]
  %v124 = vld [vmem:[%s1 + $0xf4] sm:$0xf]
  %v125 = vld [vmem:[%s1 + $0xf8] sm:$0xf]
  %v126 = vld [vmem:[%s1 + $0xfc] sm:$0xf]
  %v127 = vld [vmem:[%s1 + $0x100] sm:$0xf]
  %v128 = vld [vmem:[%s1 + $0x104] sm:$0xf]
  %v129 = vld [vmem:[%s1 + $0x108] sm:$0xf]
  %v130 = vld [vmem:[%s1 + $0x10c] sm:$0xf]
  %v131 = vld [vmem:[%s1 + $0x110] sm:$0xf]
  %v132 = vld [vmem:[%s1 + $0x114] sm:$0xf]
  %v133 = vld [vmem:[%s1 + $0x118] sm:$0xf]
  %v134 = vld [vmem:[%s1 + $0x11c] sm:$0xf]
  %v135 = vld [vmem:[%s1 + $0x120] sm:$0xf]
  %v136 = vld [vmem:[%s1 + $0x124] sm:$0xf]
  %v137 = vld [vmem:[%s1 + $0x128] sm:$0xf]
  %v138 = vld [vmem:[%s1 + $0x12c] sm:$0xf]
  %v139 = vld [vmem:[%s1 + $0x130] sm:$0xf]
  %v140 = vld [vmem:[%s1 + $0x134] sm:$0xf]
  %v141 = vld [vmem:[%s1 + $0x138] sm:$0xf]
  %v142 = vld [vmem:[%s1 + $0x13c] sm:$0xf]
  %v143 = vld [vmem:[%s1 + $0x140] sm:$0xf]
  %v144 = vld [vmem:[%s1 + $0x144] sm:$0x1]
  %v145 = vld [vmem:[%s2] sm:$0x1]
  %v147 = vperm.slane %v145, 0
  %v197 = vunpack.c.l.b16 %v15
  %v198 = vunpack.c.h.b16 %v15
  %v199 = vunpack.c.l.b16 %v16
  %v200 = vunpack.c.h.b16 %v16
  %v201 = vunpack.c.l.b16 %v17
  %v202 = vunpack.c.h.b16 %v17
  %v203 = vunpack.c.l.b16 %v18
  %v204 = vunpack.c.h.b16 %v18
  %v205 = vunpack.c.l.b16 %v19
  %v206 = vunpack.c.h.b16 %v19
  %v207 = vunpack.c.l.b16 %v20
  %v208 = vunpack.c.h.b16 %v20
  %v209 = vunpack.c.l.b16 %v21
  %v210 = vunpack.c.h.b16 %v21
  %v211 = vunpack.c.l.b16 %v22
  %v212 = vunpack.c.h.b16 %v22
  %v213 = vunpack.c.l.b16 %v23
  %v214 = vunpack.c.h.b16 %v23
  %v215 = vunpack.c.l.b16 %v24
  %v216 = vunpack.c.h.b16 %v24
  %v217 = vunpack.c.l.b16 %v25
  %v218 = vunpack.c.h.b16 %v25
  %v219 = vunpack.c.l.b16 %v26
  %v220 = vunpack.c.h.b16 %v26
  %v221 = vunpack.c.l.b16 %v27
  %v222 = vunpack.c.h.b16 %v27
  %v223 = vunpack.c.l.b16 %v28
  %v224 = vunpack.c.h.b16 %v28
  %v225 = vunpack.c.l.b16 %v29
  %v226 = vunpack.c.h.b16 %v29
  %v227 = vunpack.c.l.b16 %v30
  %v228 = vunpack.c.h.b16 %v30
  %v229 = vunpack.c.l.b16 %v31
  %v230 = vunpack.c.h.b16 %v31
  %v231 = vunpack.c.l.b16 %v32
  %v232 = vunpack.c.h.b16 %v32
  %v233 = vunpack.c.l.b16 %v33
  %v234 = vunpack.c.h.b16 %v33
  %v235 = vunpack.c.l.b16 %v34
  %v236 = vunpack.c.h.b16 %v34
  %v237 = vunpack.c.l.b16 %v35
  %v238 = vunpack.c.h.b16 %v35
  %v239 = vunpack.c.l.b16 %v36
  %v240 = vunpack.c.h.b16 %v36
  %v241 = vunpack.c.l.b16 %v37
  %v242 = vunpack.c.h.b16 %v37
  %v243 = vunpack.c.l.b16 %v38
  %v244 = vunpack.c.h.b16 %v38
  %v245 = vunpack.c.l.b16 %v39
  %v246 = vunpack.c.h.b16 %v39
  %v247 = vunpack.c.l.b16 %v40
  %v248 = vunpack.c.h.b16 %v40
  %v249 = vunpack.c.l.b16 %v41
  %v250 = vunpack.c.h.b16 %v41
  %v251 = vunpack.c.l.b16 %v42
  %v252 = vunpack.c.h.b16 %v42
  %v253 = vunpack.c.l.b16 %v43
  %v254 = vunpack.c.h.b16 %v43
  %v255 = vunpack.c.l.b16 %v44
  %v256 = vunpack.c.h.b16 %v44
  %v257 = vunpack.c.l.b16 %v45
  %v258 = vunpack.c.h.b16 %v45
  %v259 = vunpack.c.l.b16 %v46
  %v260 = vunpack.c.h.b16 %v46
  %v261 = vunpack.c.l.b16 %v47
  %v262 = vunpack.c.h.b16 %v47
  %v263 = vunpack.c.l.b16 %v48
  %v264 = vunpack.c.h.b16 %v48
  %v265 = vunpack.c.l.b16 %v49
  %v266 = vunpack.c.h.b16 %v49
  %v267 = vunpack.c.l.b16 %v50
  %v268 = vunpack.c.h.b16 %v50
  %v269 = vunpack.c.l.b16 %v51
  %v270 = vunpack.c.h.b16 %v51
  %v271 = vunpack.c.l.b16 %v52
  %v272 = vunpack.c.h.b16 %v52
  %v273 = vunpack.c.l.b16 %v53
  %v274 = vunpack.c.h.b16 %v53
  %v275 = vunpack.c.l.b16 %v54
  %v276 = vunpack.c.h.b16 %v54
  %v277 = vunpack.c.l.b16 %v55
  %v278 = vunpack.c.h.b16 %v55
  %v279 = vunpack.c.l.b16 %v56
  %v280 = vunpack.c.h.b16 %v56
  %v281 = vunpack.c.l.b16 %v57
  %v282 = vunpack.c.h.b16 %v57
  %v283 = vunpack.c.l.b16 %v58
  %v284 = vunpack.c.h.b16 %v58
  %v285 = vunpack.c.l.b16 %v59
  %v286 = vunpack.c.h.b16 %v59
  %v287 = vunpack.c.l.b16 %v60
  %v288 = vunpack.c.h.b16 %v60
  %v289 = vunpack.c.l.b16 %v61
  %v290 = vunpack.c.h.b16 %v61
  %v291 = vunpack.c.l.b16 %v62
  %v292 = vunpack.c.h.b16 %v62
  %v293 = vpack.c.b16 %v203, %v197
  %v294 = vpack.c.b16 %v204, %v198
  %v295 = vpack.c.b16 %v205, %v199
  %v296 = vpack.c.b16 %v206, %v200
  %v297 = vpack.c.b16 %v207, %v201
  %v298 = vpack.c.b16 %v208, %v202
  %v299 = vpack.c.b16 %v215, %v209
  %v300 = vpack.c.b16 %v216, %v210
  %v301 = vpack.c.b16 %v217, %v211
  %v302 = vpack.c.b16 %v218, %v212
  %v303 = vpack.c.b16 %v219, %v213
  %v304 = vpack.c.b16 %v220, %v214
  %v305 = vpack.c.b16 %v227, %v221
  %v306 = vpack.c.b16 %v228, %v222
  %v307 = vpack.c.b16 %v229, %v223
  %v308 = vpack.c.b16 %v230, %v224
  %v309 = vpack.c.b16 %v231, %v225
  %v310 = vpack.c.b16 %v232, %v226
  %v311 = vpack.c.b16 %v239, %v233
  %v312 = vpack.c.b16 %v240, %v234
  %v313 = vpack.c.b16 %v241, %v235
  %v314 = vpack.c.b16 %v242, %v236
  %v315 = vpack.c.b16 %v243, %v237
  %v316 = vpack.c.b16 %v244, %v238
  %v317 = vpack.c.b16 %v251, %v245
  %v318 = vpack.c.b16 %v252, %v246
  %v319 = vpack.c.b16 %v253, %v247
  %v320 = vpack.c.b16 %v254, %v248
  %v321 = vpack.c.b16 %v255, %v249
  %v322 = vpack.c.b16 %v256, %v250
  %v323 = vpack.c.b16 %v263, %v257
  %v324 = vpack.c.b16 %v264, %v258
  %v325 = vpack.c.b16 %v265, %v259
  %v326 = vpack.c.b16 %v266, %v260
  %v327 = vpack.c.b16 %v267, %v261
  %v328 = vpack.c.b16 %v268, %v262
  %v329 = vpack.c.b16 %v275, %v269
  %v330 = vpack.c.b16 %v276, %v270
  %v331 = vpack.c.b16 %v277, %v271
  %v332 = vpack.c.b16 %v278, %v272
  %v333 = vpack.c.b16 %v279, %v273
  %v334 = vpack.c.b16 %v280, %v274
  %v335 = vpack.c.b16 %v287, %v281
  %v336 = vpack.c.b16 %v288, %v282
  %v337 = vpack.c.b16 %v289, %v283
  %v338 = vpack.c.b16 %v290, %v284
  %v339 = vpack.c.b16 %v291, %v285
  %v340 = vpack.c.b16 %v292, %v286
  %v463 = vunpack.c.l.b16 %v63
  %v464 = vunpack.c.l.b16 %v64
  %v465 = vunpack.c.l.b16 %v65
  %v466 = vunpack.c.l.b16 %v66
  %v467 = vunpack.c.l.b16 %v67
  %v468 = vunpack.c.l.b16 %v68
  %v469 = vunpack.c.l.b16 %v69
  %v470 = vunpack.c.l.b16 %v70
  %v471 = vunpack.c.l.b16 %v71
  %v472 = vunpack.c.l.b16 %v72
  %v473 = vunpack.c.l.b16 %v73
  %v474 = vunpack.c.l.b16 %v74
  %v475 = vunpack.c.l.b16 %v75
  %v476 = vunpack.c.l.b16 %v76
  %v477 = vunpack.c.l.b16 %v77
  %v478 = vunpack.c.l.b16 %v78
  %v479 = vunpack.c.l.b16 %v79
  %v480 = vunpack.c.l.b16 %v80
  %v481 = vunpack.c.l.b16 %v81
  %v482 = vunpack.c.l.b16 %v82
  %v483 = vunpack.c.l.b16 %v83
  %v484 = vunpack.c.l.b16 %v84
  %v485 = vunpack.c.l.b16 %v85
  %v486 = vunpack.c.l.b16 %v86
  %v487 = vunpack.c.l.b16 %v87
  %v488 = vunpack.c.l.b16 %v88
  %v489 = vunpack.c.l.b16 %v89
  %v490 = vunpack.c.l.b16 %v90
  %v491 = vunpack.c.l.b16 %v91
  %v492 = vunpack.c.l.b16 %v92
  %v493 = vunpack.c.l.b16 %v93
  %v494 = vunpack.c.l.b16 %v94
  %v495 = vunpack.c.l.b16 %v95
  %v496 = vunpack.c.l.b16 %v96
  %v497 = vunpack.c.l.b16 %v97
  %v498 = vunpack.c.l.b16 %v98
  %v499 = vunpack.c.l.b16 %v99
  %v500 = vunpack.c.l.b16 %v100
  %v501 = vunpack.c.l.b16 %v101
  %v502 = vunpack.c.l.b16 %v102
  %v503 = vunpack.c.l.b16 %v103
  %v504 = vunpack.c.l.b16 %v104
  %v505 = vunpack.c.l.b16 %v105
  %v506 = vunpack.c.l.b16 %v106
  %v507 = vunpack.c.l.b16 %v107
  %v508 = vunpack.c.l.b16 %v108
  %v509 = vunpack.c.l.b16 %v109
  %v510 = vunpack.c.l.b16 %v110
  %v511 = vunpack.c.l.b16 %v111
  %v512 = vunpack.c.l.b16 %v112
  %v513 = vunpack.c.l.b16 %v113
  %v514 = vunpack.c.l.b16 %v114
  %v515 = vunpack.c.l.b16 %v115
  %v516 = vunpack.c.l.b16 %v116
  %v517 = vunpack.c.l.b16 %v117
  %v518 = vunpack.c.l.b16 %v118
  %v519 = vunpack.c.l.b16 %v119
  %v520 = vunpack.c.l.b16 %v120
  %v521 = vunpack.c.l.b16 %v121
  %v522 = vunpack.c.l.b16 %v122
  %v523 = vunpack.c.l.b16 %v123
  %v524 = vunpack.c.l.b16 %v124
  %v525 = vunpack.c.l.b16 %v125
  %v526 = vunpack.c.l.b16 %v126
  %v527 = vunpack.c.l.b16 %v127
  %v528 = vunpack.c.l.b16 %v128
  %v529 = vunpack.c.l.b16 %v129
  %v530 = vunpack.c.l.b16 %v130
  %v531 = vunpack.c.l.b16 %v131
  %v532 = vunpack.c.l.b16 %v132
  %v533 = vunpack.c.l.b16 %v133
  %v534 = vunpack.c.l.b16 %v134
  %v535 = vunpack.c.l.b16 %v135
  %v536 = vunpack.c.l.b16 %v136
  %v537 = vunpack.c.l.b16 %v137
  %v538 = vunpack.c.l.b16 %v138
  %v539 = vunpack.c.l.b16 %v139
  %v540 = vunpack.c.l.b16 %v140
  %v541 = vunpack.c.l.b16 %v141
  %v542 = vunpack.c.l.b16 %v142
  %v543 = vunpack.c.l.b16 %v143
  %v544 = vunpack.c.l.b16 %v144
  %v545 = vpack.c.b16 %v464, %v463
  %v546 = vpack.c.b16 %v466, %v465
  %v547 = vpack.c.b16 %v468, %v467
  %v548 = vpack.c.b16 %v470, %v469
  %v549 = vpack.c.b16 %v472, %v471
  %v550 = vpack.c.b16 %v474, %v473
  %v551 = vpack.c.b16 %v476, %v475
  %v552 = vpack.c.b16 %v478, %v477
  %v553 = vpack.c.b16 %v480, %v479
  %v554 = vpack.c.b16 %v482, %v481
  %v555 = vpack.c.b16 %v484, %v483
  %v556 = vpack.c.b16 %v486, %v485
  %v557 = vpack.c.b16 %v488, %v487
  %v558 = vpack.c.b16 %v490, %v489
  %v559 = vpack.c.b16 %v492, %v491
  %v560 = vpack.c.b16 %v494, %v493
  %v561 = vpack.c.b16 %v496, %v495
  %v562 = vpack.c.b16 %v498, %v497
  %v563 = vpack.c.b16 %v500, %v499
  %v564 = vpack.c.b16 %v502, %v501
  %v565 = vpack.c.b16 %v504, %v503
  %v566 = vpack.c.b16 %v506, %v505
  %v567 = vpack.c.b16 %v508, %v507
  %v568 = vpack.c.b16 %v510, %v509
  %v569 = vpack.c.b16 %v512, %v511
  %v570 = vpack.c.b16 %v514, %v513
  %v571 = vpack.c.b16 %v516, %v515
  %v572 = vpack.c.b16 %v518, %v517
  %v573 = vpack.c.b16 %v520, %v519
  %v574 = vpack.c.b16 %v522, %v521
  %v575 = vpack.c.b16 %v524, %v523
  %v576 = vpack.c.b16 %v526, %v525
  %v577 = vpack.c.b16 %v528, %v527
  %v578 = vpack.c.b16 %v530, %v529
  %v579 = vpack.c.b16 %v532, %v531
  %v580 = vpack.c.b16 %v534, %v533
  %v581 = vpack.c.b16 %v536, %v535
  %v582 = vpack.c.b16 %v538, %v537
  %v583 = vpack.c.b16 %v540, %v539
  %v584 = vpack.c.b16 %v542, %v541
  %v585 = vpack.c.b16 %v544, %v543
  %vm626 = vcmask 80896
  %v628 = vsel %vm626, %v298, 0
  %v631 = vsel %vm626, %v304, 0
  %v634 = vsel %vm626, %v310, 0
  %v637 = vsel %vm626, %v316, 0
  %v640 = vsel %vm626, %v322, 0
  %v643 = vsel %vm626, %v328, 0
  %v646 = vsel %vm626, %v334, 0
  %v649 = vsel %vm626, %v340, 0
  %vm651 = vcmask 1044480
  %v653 = vsel %vm651, %v585, 0
  %655 = vmatpush.bf16.msra.mxu0 %v552
  %656 = vmatpush.bf16.msra.mxu0 %v551
  %657 = vmatpush.bf16.msra.mxu0 %v550
  %658 = vmatpush.bf16.msra.mxu0 %v549
  %659 = vmatpush.bf16.msra.mxu0 %v548
  %660 = vmatpush.bf16.msra.mxu0 %v547
  %661 = vmatpush.bf16.msra.mxu0 %v546
  %662 = vmatpush.bf16.msra.mxu0 %v545
  %663 = vmatmul.bf16.gmra.mxu0 %v293
  %v664 = vpop.f32.mrf.mxu0
  %v665 = vadd.f32 %v147, %v664
  %v666 = vpop.f32.mrf.mxu0
  %v667 = vadd.f32 %v147, %v666
  %668 = vmatmul.bf16.gmra.mxu0 %v299
  %v669 = vpop.f32.mrf.mxu0
  %v670 = vadd.f32 %v147, %v669
  %v671 = vpop.f32.mrf.mxu0
  %v672 = vadd.f32 %v147, %v671
  %673 = vmatmul.bf16.gmra.mxu0 %v305
  %v674 = vpop.f32.mrf.mxu0
  %v675 = vadd.f32 %v147, %v674
  %v676 = vpop.f32.mrf.mxu0
  %v677 = vadd.f32 %v147, %v676
  %678 = vmatmul.bf16.gmra.mxu0 %v311
  %v679 = vpop.f32.mrf.mxu0
  %v680 = vadd.f32 %v147, %v679
  %v681 = vpop.f32.mrf.mxu0
  %v682 = vadd.f32 %v147, %v681
  %683 = vmatmul.bf16.gmra.mxu0 %v317
  %v684 = vpop.f32.mrf.mxu0
  %v685 = vadd.f32 %v147, %v684
  %v686 = vpop.f32.mrf.mxu0
  %v687 = vadd.f32 %v147, %v686
  %688 = vmatmul.bf16.gmra.mxu0 %v323
  %v689 = vpop.f32.mrf.mxu0
  %v690 = vadd.f32 %v147, %v689
  %v691 = vpop.f32.mrf.mxu0
  %v692 = vadd.f32 %v147, %v691
  %693 = vmatmul.bf16.gmra.mxu0 %v329
  %v694 = vpop.f32.mrf.mxu0
  %v695 = vadd.f32 %v147, %v694
  %v696 = vpop.f32.mrf.mxu0
  %v697 = vadd.f32 %v147, %v696
  %698 = vmatmul.bf16.gmra.mxu0 %v335
  %v699 = vpop.f32.mrf.mxu0
  %v700 = vadd.f32 %v147, %v699
  %v701 = vpop.f32.mrf.mxu0
  %v702 = vadd.f32 %v147, %v701
  %703 = vdwg.mxu0
  %704 = vmatpush.bf16.msra.mxu0 %v560
  %705 = vmatpush.bf16.msra.mxu0 %v559
  %706 = vmatpush.bf16.msra.mxu0 %v558
  %707 = vmatpush.bf16.msra.mxu0 %v557
  %708 = vmatpush.bf16.msra.mxu0 %v556
  %709 = vmatpush.bf16.msra.mxu0 %v555
  %710 = vmatpush.bf16.msra.mxu0 %v554
  %711 = vmatpush.bf16.msra.mxu0 %v553
  %712 = vmatmul.bf16.gmra.mxu0 %v294
  %v713 = vpop.f32.mrf.mxu0
  %v714 = vadd.f32 %v665, %v713
  %v715 = vpop.f32.mrf.mxu0
  %v716 = vadd.f32 %v667, %v715
  %717 = vmatmul.bf16.gmra.mxu0 %v300
  %v718 = vpop.f32.mrf.mxu0
  %v719 = vadd.f32 %v670, %v718
  %v720 = vpop.f32.mrf.mxu0
  %v721 = vadd.f32 %v672, %v720
  %722 = vmatmul.bf16.gmra.mxu0 %v306
  %v723 = vpop.f32.mrf.mxu0
  %v724 = vadd.f32 %v675, %v723
  %v725 = vpop.f32.mrf.mxu0
  %v726 = vadd.f32 %v677, %v725
  %727 = vmatmul.bf16.gmra.mxu0 %v312
  %v728 = vpop.f32.mrf.mxu0
  %v729 = vadd.f32 %v680, %v728
  %v730 = vpop.f32.mrf.mxu0
  %v731 = vadd.f32 %v682, %v730
  %732 = vmatmul.bf16.gmra.mxu0 %v318
  %v733 = vpop.f32.mrf.mxu0
  %v734 = vadd.f32 %v685, %v733
  %v735 = vpop.f32.mrf.mxu0
  %v736 = vadd.f32 %v687, %v735
  %737 = vmatmul.bf16.gmra.mxu0 %v324
  %v738 = vpop.f32.mrf.mxu0
  %v739 = vadd.f32 %v690, %v738
  %v740 = vpop.f32.mrf.mxu0
  %v741 = vadd.f32 %v692, %v740
  %742 = vmatmul.bf16.gmra.mxu0 %v330
  %v743 = vpop.f32.mrf.mxu0
  %v744 = vadd.f32 %v695, %v743
  %v745 = vpop.f32.mrf.mxu0
  %v746 = vadd.f32 %v697, %v745
  %747 = vmatmul.bf16.gmra.mxu0 %v336
  %v748 = vpop.f32.mrf.mxu0
  %v749 = vadd.f32 %v700, %v748
  %v750 = vpop.f32.mrf.mxu0
  %v751 = vadd.f32 %v702, %v750
  %752 = vdwg.mxu0
  %753 = vmatpush.bf16.msra.mxu0 %v568
  %754 = vmatpush.bf16.msra.mxu0 %v567
  %755 = vmatpush.bf16.msra.mxu0 %v566
  %756 = vmatpush.bf16.msra.mxu0 %v565
  %757 = vmatpush.bf16.msra.mxu0 %v564
  %758 = vmatpush.bf16.msra.mxu0 %v563
  %759 = vmatpush.bf16.msra.mxu0 %v562
  %760 = vmatpush.bf16.msra.mxu0 %v561
  %761 = vmatmul.bf16.gmra.mxu0 %v295
  %v762 = vpop.f32.mrf.mxu0
  %v763 = vadd.f32 %v714, %v762
  %v764 = vpop.f32.mrf.mxu0
  %v765 = vadd.f32 %v716, %v764
  %766 = vmatmul.bf16.gmra.mxu0 %v301
  %v767 = vpop.f32.mrf.mxu0
  %v768 = vadd.f32 %v719, %v767
  %v769 = vpop.f32.mrf.mxu0
  %v770 = vadd.f32 %v721, %v769
  %771 = vmatmul.bf16.gmra.mxu0 %v307
  %v772 = vpop.f32.mrf.mxu0
  %v773 = vadd.f32 %v724, %v772
  %v774 = vpop.f32.mrf.mxu0
  %v775 = vadd.f32 %v726, %v774
  %776 = vmatmul.bf16.gmra.mxu0 %v313
  %v777 = vpop.f32.mrf.mxu0
  %v778 = vadd.f32 %v729, %v777
  %v779 = vpop.f32.mrf.mxu0
  %v780 = vadd.f32 %v731, %v779
  %781 = vmatmul.bf16.gmra.mxu0 %v319
  %v782 = vpop.f32.mrf.mxu0
  %v783 = vadd.f32 %v734, %v782
  %v784 = vpop.f32.mrf.mxu0
  %v785 = vadd.f32 %v736, %v784
  %786 = vmatmul.bf16.gmra.mxu0 %v325
  %v787 = vpop.f32.mrf.mxu0
  %v788 = vadd.f32 %v739, %v787
  %v789 = vpop.f32.mrf.mxu0
  %v790 = vadd.f32 %v741, %v789
  %791 = vmatmul.bf16.gmra.mxu0 %v331
  %v792 = vpop.f32.mrf.mxu0
  %v793 = vadd.f32 %v744, %v792
  %v794 = vpop.f32.mrf.mxu0
  %v795 = vadd.f32 %v746, %v794
  %796 = vmatmul.bf16.gmra.mxu0 %v337
  %v797 = vpop.f32.mrf.mxu0
  %v798 = vadd.f32 %v749, %v797
  %v799 = vpop.f32.mrf.mxu0
  %v800 = vadd.f32 %v751, %v799
  %801 = vdwg.mxu0
  %802 = vmatpush.bf16.msra.mxu0 %v576
  %803 = vmatpush.bf16.msra.mxu0 %v575
  %804 = vmatpush.bf16.msra.mxu0 %v574
  %805 = vmatpush.bf16.msra.mxu0 %v573
  %806 = vmatpush.bf16.msra.mxu0 %v572
  %807 = vmatpush.bf16.msra.mxu0 %v571
  %808 = vmatpush.bf16.msra.mxu0 %v570
  %809 = vmatpush.bf16.msra.mxu0 %v569
  %810 = vmatmul.bf16.gmra.mxu0 %v296
  %v811 = vpop.f32.mrf.mxu0
  %v812 = vadd.f32 %v763, %v811
  %v813 = vpop.f32.mrf.mxu0
  %v814 = vadd.f32 %v765, %v813
  %815 = vmatmul.bf16.gmra.mxu0 %v302
  %v816 = vpop.f32.mrf.mxu0
  %v817 = vadd.f32 %v768, %v816
  %v818 = vpop.f32.mrf.mxu0
  %v819 = vadd.f32 %v770, %v818
  %820 = vmatmul.bf16.gmra.mxu0 %v308
  %v821 = vpop.f32.mrf.mxu0
  %v822 = vadd.f32 %v773, %v821
  %v823 = vpop.f32.mrf.mxu0
  %v824 = vadd.f32 %v775, %v823
  %825 = vmatmul.bf16.gmra.mxu0 %v314
  %v826 = vpop.f32.mrf.mxu0
  %v827 = vadd.f32 %v778, %v826
  %v828 = vpop.f32.mrf.mxu0
  %v829 = vadd.f32 %v780, %v828
  %830 = vmatmul.bf16.gmra.mxu0 %v320
  %v831 = vpop.f32.mrf.mxu0
  %v832 = vadd.f32 %v783, %v831
  %v833 = vpop.f32.mrf.mxu0
  %v834 = vadd.f32 %v785, %v833
  %835 = vmatmul.bf16.gmra.mxu0 %v326
  %v836 = vpop.f32.mrf.mxu0
  %v837 = vadd.f32 %v788, %v836
  %v838 = vpop.f32.mrf.mxu0
  %v839 = vadd.f32 %v790, %v838
  %840 = vmatmul.bf16.gmra.mxu0 %v332
  %v841 = vpop.f32.mrf.mxu0
  %v842 = vadd.f32 %v793, %v841
  %v843 = vpop.f32.mrf.mxu0
  %v844 = vadd.f32 %v795, %v843
  %845 = vmatmul.bf16.gmra.mxu0 %v338
  %v846 = vpop.f32.mrf.mxu0
  %v847 = vadd.f32 %v798, %v846
  %v848 = vpop.f32.mrf.mxu0
  %v849 = vadd.f32 %v800, %v848
  %850 = vdwg.mxu0
  %851 = vmatpush.bf16.msra.mxu0 %v584
  %852 = vmatpush.bf16.msra.mxu0 %v583
  %853 = vmatpush.bf16.msra.mxu0 %v582
  %854 = vmatpush.bf16.msra.mxu0 %v581
  %855 = vmatpush.bf16.msra.mxu0 %v580
  %856 = vmatpush.bf16.msra.mxu0 %v579
  %857 = vmatpush.bf16.msra.mxu0 %v578
  %858 = vmatpush.bf16.msra.mxu0 %v577
  %859 = vmatmul.bf16.gmra.mxu0 %v297
  %v860 = vpop.f32.mrf.mxu0
  %v861 = vadd.f32 %v812, %v860
  %v862 = vpop.f32.mrf.mxu0
  %v863 = vadd.f32 %v814, %v862
  %864 = vmatmul.bf16.gmra.mxu0 %v303
  %v865 = vpop.f32.mrf.mxu0
  %v866 = vadd.f32 %v817, %v865
  %v867 = vpop.f32.mrf.mxu0
  %v868 = vadd.f32 %v819, %v867
  %869 = vmatmul.bf16.gmra.mxu0 %v309
  %v870 = vpop.f32.mrf.mxu0
  %v871 = vadd.f32 %v822, %v870
  %v872 = vpop.f32.mrf.mxu0
  %v873 = vadd.f32 %v824, %v872
  %874 = vmatmul.bf16.gmra.mxu0 %v315
  %v875 = vpop.f32.mrf.mxu0
  %v876 = vadd.f32 %v827, %v875
  %v877 = vpop.f32.mrf.mxu0
  %v878 = vadd.f32 %v829, %v877
  %879 = vmatmul.bf16.gmra.mxu0 %v321
  %v880 = vpop.f32.mrf.mxu0
  %v881 = vadd.f32 %v832, %v880
  %v882 = vpop.f32.mrf.mxu0
  %v883 = vadd.f32 %v834, %v882
  %884 = vmatmul.bf16.gmra.mxu0 %v327
  %v885 = vpop.f32.mrf.mxu0
  %v886 = vadd.f32 %v837, %v885
  %v887 = vpop.f32.mrf.mxu0
  %v888 = vadd.f32 %v839, %v887
  %889 = vmatmul.bf16.gmra.mxu0 %v333
  %v890 = vpop.f32.mrf.mxu0
  %v891 = vadd.f32 %v842, %v890
  %v892 = vpop.f32.mrf.mxu0
  %v893 = vadd.f32 %v844, %v892
  %894 = vmatmul.bf16.gmra.mxu0 %v339
  %v895 = vpop.f32.mrf.mxu0
  %v896 = vadd.f32 %v847, %v895
  %v897 = vpop.f32.mrf.mxu0
  %v898 = vadd.f32 %v849, %v897
  %899 = vdwg.mxu0
  %900 = vmatpush.bf16.msra.mxu0 0
  %901 = vmatpush.bf16.msra.mxu0 0
  %902 = vmatpush.bf16.msra.mxu0 0
  %903 = vmatpush.bf16.msra.mxu0 0
  %904 = vmatpush.bf16.msra.mxu0 0
  %905 = vmatpush.bf16.msra.mxu0 0
  %906 = vmatpush.bf16.msra.mxu0 0
  %907 = vmatpush.bf16.msra.mxu0 %v653
  %908 = vmatmul.bf16.gmra.mxu0 %v628
  %v909 = vpop.f32.mrf.mxu0
  %v910 = vadd.f32 %v861, %v909
  %v911 = vpop.f32.mrf.mxu0
  %v912 = vadd.f32 %v863, %v911
  %913 = vmatmul.bf16.gmra.mxu0 %v631
  %v914 = vpop.f32.mrf.mxu0
  %v915 = vadd.f32 %v866, %v914
  %v916 = vpop.f32.mrf.mxu0
  %v917 = vadd.f32 %v868, %v916
  %918 = vmatmul.bf16.gmra.mxu0 %v634
  %v919 = vpop.f32.mrf.mxu0
  %v920 = vadd.f32 %v871, %v919
  %v921 = vpop.f32.mrf.mxu0
  %v922 = vadd.f32 %v873, %v921
  %923 = vmatmul.bf16.gmra.mxu0 %v637
  %v924 = vpop.f32.mrf.mxu0
  %v925 = vadd.f32 %v876, %v924
  %v926 = vpop.f32.mrf.mxu0
  %v927 = vadd.f32 %v878, %v926
  %928 = vmatmul.bf16.gmra.mxu0 %v640
  %v929 = vpop.f32.mrf.mxu0
  %v930 = vadd.f32 %v881, %v929
  %v931 = vpop.f32.mrf.mxu0
  %v932 = vadd.f32 %v883, %v931
  %933 = vmatmul.bf16.gmra.mxu0 %v643
  %v934 = vpop.f32.mrf.mxu0
  %v935 = vadd.f32 %v886, %v934
  %v936 = vpop.f32.mrf.mxu0
  %v937 = vadd.f32 %v888, %v936
  %938 = vmatmul.bf16.gmra.mxu0 %v646
  %v939 = vpop.f32.mrf.mxu0
  %v940 = vadd.f32 %v891, %v939
  %v941 = vpop.f32.mrf.mxu0
  %v942 = vadd.f32 %v893, %v941
  %943 = vmatmul.bf16.gmra.mxu0 %v649
  %v944 = vpop.f32.mrf.mxu0
  %v945 = vadd.f32 %v896, %v944
  %v946 = vpop.f32.mrf.mxu0
  %v947 = vadd.f32 %v898, %v946
  %948 = vdwg.mxu0
  %v949 = vmax.f32 %v910, 0.0
  %v950 = vmax.f32 %v912, 0.0
  %v951 = vmax.f32 %v915, 0.0
  %v952 = vmax.f32 %v917, 0.0
  %v953 = vmax.f32 %v920, 0.0
  %v954 = vmax.f32 %v922, 0.0
  %v955 = vmax.f32 %v925, 0.0
  %v956 = vmax.f32 %v927, 0.0
  %v957 = vmax.f32 %v930, 0.0
  %v958 = vmax.f32 %v932, 0.0
  %v959 = vmax.f32 %v935, 0.0
  %v960 = vmax.f32 %v937, 0.0
  %v961 = vmax.f32 %v940, 0.0
  %v962 = vmax.f32 %v942, 0.0
  %v963 = vmax.f32 %v945, 0.0
  %v964 = vmax.f32 %v947, 0.0
  %965 = vst [vmem:[%s3] sm:$0xff] %v949
  %966 = vst [vmem:[%s3 + $0x8] sm:$0xff] %v950
  %967 = vst [vmem:[%s3 + $0x10] sm:$0xff] %v951
  %968 = vst [vmem:[%s3 + $0x18] sm:$0xff] %v952
  %969 = vst [vmem:[%s3 + $0x20] sm:$0xff] %v953
  %970 = vst [vmem:[%s3 + $0x28] sm:$0xff] %v954
  %971 = vst [vmem:[%s3 + $0x30] sm:$0xff] %v955
  %972 = vst [vmem:[%s3 + $0x38] sm:$0xff] %v956
  %973 = vst [vmem:[%s3 + $0x40] sm:$0xff] %v957
  %974 = vst [vmem:[%s3 + $0x48] sm:$0xff] %v958
  %975 = vst [vmem:[%s3 + $0x50] sm:$0xff] %v959
  %976 = vst [vmem:[%s3 + $0x58] sm:$0xff] %v960
  %977 = vst [vmem:[%s3 + $0x60] sm:$0xff] %v961
  %978 = vst [vmem:[%s3 + $0x68] sm:$0xff] %v962
  %979 = vst [vmem:[%s3 + $0x70] sm:$0xff] %v963
  %980 = vst [vmem:[%s3 + $0x78] sm:$0xff] %v964
  // Predicated region
  $region14: #{ae_cnn_mnist_forward.16} parent=0 // pred_check
    _
  $region15: #{ae_cnn_mnist_forward.16} parent=0 // pred_check_branch
    %982 = sbr.rel (0) target = $region17
  $region16: #{ae_cnn_mnist_forward.16} parent=0 // pred_region
    _
  $region17: #{ae_cnn_mnist_forward.16} parent=0 // pred_fallthru
    _
  // Predicated region
  $region18: #{ae_cnn_mnist_forward.16} parent=0 // pred_check
    _
  $region19: #{ae_cnn_mnist_forward.16} parent=0 // pred_check_branch
    %984 = sbr.rel (0) target = $region21
  $region20: #{ae_cnn_mnist_forward.16} parent=0 // pred_region
    _
  $region21: #{ae_cnn_mnist_forward.16} parent=0 // pred_fallthru
    _

// kernel: ae_cnn_mnist_forward.18
$region0: #{ae_cnn_mnist_forward.18}
  #allocation0 [shape = 'u32[]', space=smem, size = 0x4, offset = 0x4, fixed_abs, tag = 'smem constant byte address 0x4 - core index']
  #allocation1 [shape = 'u32[72,128]{1,0:T(1,128)}', space=vmem, size = 0x9000, scoped, tag = 'internal scratch']
  %s0 = inlined_call_operand.vmem [shape: bf16[2,576], index: 0, kind: input, shape index: {}]
  %s1 = inlined_call_operand.vmem [shape: bf16[576,256], index: 1, kind: input, shape index: {}]
  %s2 = inlined_call_operand.vmem [shape: f32[1,256], index: 2, kind: input, shape index: {}]
  %s3 = inlined_call_operand.vmem [shape: bf16[256,128], index: 3, kind: input, shape index: {}]
  %s4 = inlined_call_operand.vmem [shape: f32[1,128], index: 4, kind: input, shape index: {}]
  %s5 = inlined_call_operand.vmem [shape: f32[2,128], index: 5, kind: output, shape index: {}]
  %s6 = sld [smem:[#allocation0]]
  $region30: #{ae_cnn_mnist_forward.18} parent=0
    _
  %s8 = ssub.s32 1, %s6
  %s9 = scalar_select 0, %s8, %s6
  // Predicated region
  $region2: #{ae_cnn_mnist_forward.18} parent=0 // pred_check
    _
  $region3: #{ae_cnn_mnist_forward.18} parent=0 // pred_check_branch
    %11 = sbr.rel (0) target = $region5
  $region4: #{ae_cnn_mnist_forward.18} parent=0 // pred_region
    _
  $region5: #{ae_cnn_mnist_forward.18} parent=0 // pred_fallthru
    _
  // Predicated region
  $region6: #{ae_cnn_mnist_forward.18} parent=0 // pred_check
    _
  $region7: #{ae_cnn_mnist_forward.18} parent=0 // pred_check_branch
    %13 = sbr.rel (0) target = $region9
  $region8: #{ae_cnn_mnist_forward.18} parent=0 // pred_region
    _
  $region9: #{ae_cnn_mnist_forward.18} parent=0 // pred_fallthru
    _
  // Predicated region
  $region10: #{ae_cnn_mnist_forward.18} parent=0 // pred_check
    _
  $region11: #{ae_cnn_mnist_forward.18} parent=0 // pred_check_branch
    %15 = sbr.rel (0) target = $region13
  $region12: #{ae_cnn_mnist_forward.18} parent=0 // pred_region
    _
  $region13: #{ae_cnn_mnist_forward.18} parent=0 // pred_fallthru
    _
  // Predicated region
  $region14: #{ae_cnn_mnist_forward.18} parent=0 // pred_check
    _
  $region15: #{ae_cnn_mnist_forward.18} parent=0 // pred_check_branch
    %17 = sbr.rel (0) target = $region17
  $region16: #{ae_cnn_mnist_forward.18} parent=0 // pred_region
    _
  $region17: #{ae_cnn_mnist_forward.18} parent=0 // pred_fallthru
    _
  // Predicated region
  $region18: #{ae_cnn_mnist_forward.18} parent=0 // pred_check
    _
  $region19: #{ae_cnn_mnist_forward.18} parent=0 // pred_check_branch
    %19 = sbr.rel (0) target = $region21
  $region20: #{ae_cnn_mnist_forward.18} parent=0 // pred_region
    _
  $region21: #{ae_cnn_mnist_forward.18} parent=0 // pred_fallthru
    _
  %v21 = vld [vmem:[%s0] sm:$0x1f]
  %v22 = vld [vmem:[%s1] sm:$0xff]
  %v23 = vld [vmem:[%s1 + $0x8] sm:$0xff]
  %v24 = vld [vmem:[%s1 + $0x10] sm:$0xff]
  %v25 = vld [vmem:[%s1 + $0x18] sm:$0xff]
  %v26 = vld [vmem:[%s1 + $0x20] sm:$0xff]
  %v27 = vld [vmem:[%s1 + $0x28] sm:$0xff]
  %v28 = vld [vmem:[%s1 + $0x30] sm:$0xff]
  %v29 = vld [vmem:[%s1 + $0x38] sm:$0xff]
  %v30 = vld [vmem:[%s1 + $0x40] sm:$0xff]
  %v31 = vld [vmem:[%s1 + $0x48] sm:$0xff]
  %v32 = vld [vmem:[%s1 + $0x50] sm:$0xff]
  %v33 = vld [vmem:[%s1 + $0x58] sm:$0xff]
  %v34 = vld [vmem:[%s1 + $0x60] sm:$0xff]
  %v35 = vld [vmem:[%s1 + $0x68] sm:$0xff]
  %v36 = vld [vmem:[%s1 + $0x70] sm:$0xff]
  %v37 = vld [vmem:[%s1 + $0x78] sm:$0xff]
  %v38 = vld [vmem:[%s1 + $0x80] sm:$0xff]
  %v39 = vld [vmem:[%s1 + $0x88] sm:$0xff]
  %v40 = vld [vmem:[%s1 + $0x90] sm:$0xff]
  %v41 = vld [vmem:[%s1 + $0x98] sm:$0xff]
  %v42 = vld [vmem:[%s1 + $0xa0] sm:$0xff]
  %v43 = vld [vmem:[%s1 + $0xa8] sm:$0xff]
  %v44 = vld [vmem:[%s1 + $0xb0] sm:$0xff]
  %v45 = vld [vmem:[%s1 + $0xb8] sm:$0xff]
  %v46 = vld [vmem:[%s1 + $0xc0] sm:$0xff]
  %v47 = vld [vmem:[%s1 + $0xc8] sm:$0xff]
  %v48 = vld [vmem:[%s1 + $0xd0] sm:$0xff]
  %v49 = vld [vmem:[%s1 + $0xd8] sm:$0xff]
  %v50 = vld [vmem:[%s1 + $0xe0] sm:$0xff]
  %v51 = vld [vmem:[%s1 + $0xe8] sm:$0xff]
  %v52 = vld [vmem:[%s1 + $0xf0] sm:$0xff]
  %v53 = vld [vmem:[%s1 + $0xf8] sm:$0xff]
  %v54 = vld [vmem:[%s1 + $0x100] sm:$0xff]
  %v55 = vld [vmem:[%s1 + $0x108] sm:$0xff]
  %v56 = vld [vmem:[%s1 + $0x110] sm:$0xff]
  %v57 = vld [vmem:[%s1 + $0x118] sm:$0xff]
  %v58 = vld [vmem:[%s1 + $0x120] sm:$0xff]
  %v59 = vld [vmem:[%s1 + $0x128] sm:$0xff]
  %v60 = vld [vmem:[%s1 + $0x130] sm:$0xff]
  %v61 = vld [vmem:[%s1 + $0x138] sm:$0xff]
  %v62 = vld [vmem:[%s1 + $0x140] sm:$0xff]
  %v63 = vld [vmem:[%s1 + $0x148] sm:$0xff]
  %v64 = vld [vmem:[%s1 + $0x150] sm:$0xff]
  %v65 = vld [vmem:[%s1 + $0x158] sm:$0xff]
  %v66 = vld [vmem:[%s1 + $0x160] sm:$0xff]
  %v67 = vld [vmem:[%s1 + $0x168] sm:$0xff]
  %v68 = vld [vmem:[%s1 + $0x170] sm:$0xff]
  %v69 = vld [vmem:[%s1 + $0x178] sm:$0xff]
  %v70 = vld [vmem:[%s1 + $0x180] sm:$0xff]
  %v71 = vld [vmem:[%s1 + $0x188] sm:$0xff]
  %v72 = vld [vmem:[%s1 + $0x190] sm:$0xff]
  %v73 = vld [vmem:[%s1 + $0x198] sm:$0xff]
  %v74 = vld [vmem:[%s1 + $0x1a0] sm:$0xff]
  %v75 = vld [vmem:[%s1 + $0x1a8] sm:$0xff]
  %v76 = vld [vmem:[%s1 + $0x1b0] sm:$0xff]
  %v77 = vld [vmem:[%s1 + $0x1b8] sm:$0xff]
  %v78 = vld [vmem:[%s1 + $0x1c0] sm:$0xff]
  %v79 = vld [vmem:[%s1 + $0x1c8] sm:$0xff]
  %v80 = vld [vmem:[%s1 + $0x1d0] sm:$0xff]
  %v81 = vld [vmem:[%s1 + $0x1d8] sm:$0xff]
  %v82 = vld [vmem:[%s1 + $0x1e0] sm:$0xff]
  %v83 = vld [vmem:[%s1 + $0x1e8] sm:$0xff]
  %v84 = vld [vmem:[%s1 + $0x1f0] sm:$0xff]
  %v85 = vld [vmem:[%s1 + $0x1f8] sm:$0xff]
  %v86 = vld [vmem:[%s1 + $0x200] sm:$0xff]
  %v87 = vld [vmem:[%s1 + $0x208] sm:$0xff]
  %v88 = vld [vmem:[%s1 + $0x210] sm:$0xff]
  %v89 = vld [vmem:[%s1 + $0x218] sm:$0xff]
  %v90 = vld [vmem:[%s1 + $0x220] sm:$0xff]
  %v91 = vld [vmem:[%s1 + $0x228] sm:$0xff]
  %v92 = vld [vmem:[%s1 + $0x230] sm:$0xff]
  %v93 = vld [vmem:[%s1 + $0x238] sm:$0xff]
  %v94 = vld [vmem:[%s2] sm:$0x3]
  %v96 = vperm.slane %v94, 0
  %v97 = vperm.slane %v94, 1
  %101 = vst [vmem:[#allocation1] ss:$9 sm:$0xff] %v21
  %v102 = vld [vmem:[#allocation1] sm:$0xff]
  %v103 = vld [vmem:[#allocation1 + $0x9] sm:$0xff]
  %v104 = vld [vmem:[#allocation1 + $0x12] sm:$0xff]
  %v105 = vld [vmem:[#allocation1 + $0x1b] sm:$0xff]
  %v106 = vld [vmem:[#allocation1 + $0x24] sm:$0xff]
  %v183 = vunpack.c.l.b16 %v22
  %v184 = vunpack.c.h.b16 %v22
  %v185 = vunpack.c.l.b16 %v23
  %v186 = vunpack.c.h.b16 %v23
  %v187 = vunpack.c.l.b16 %v24
  %v188 = vunpack.c.h.b16 %v24
  %v189 = vunpack.c.l.b16 %v25
  %v190 = vunpack.c.h.b16 %v25
  %v191 = vunpack.c.l.b16 %v26
  %v192 = vunpack.c.h.b16 %v26
  %v193 = vunpack.c.l.b16 %v27
  %v194 = vunpack.c.h.b16 %v27
  %v195 = vunpack.c.l.b16 %v28
  %v196 = vunpack.c.h.b16 %v28
  %v197 = vunpack.c.l.b16 %v29
  %v198 = vunpack.c.h.b16 %v29
  %v199 = vunpack.c.l.b16 %v30
  %v200 = vunpack.c.h.b16 %v30
  %v201 = vunpack.c.l.b16 %v31
  %v202 = vunpack.c.h.b16 %v31
  %v203 = vunpack.c.l.b16 %v32
  %v204 = vunpack.c.h.b16 %v32
  %v205 = vunpack.c.l.b16 %v33
  %v206 = vunpack.c.h.b16 %v33
  %v207 = vunpack.c.l.b16 %v34
  %v208 = vunpack.c.h.b16 %v34
  %v209 = vunpack.c.l.b16 %v35
  %v210 = vunpack.c.h.b16 %v35
  %v211 = vunpack.c.l.b16 %v36
  %v212 = vunpack.c.h.b16 %v36
  %v213 = vunpack.c.l.b16 %v37
  %v214 = vunpack.c.h.b16 %v37
  %v215 = vunpack.c.l.b16 %v38
  %v216 = vunpack.c.h.b16 %v38
  %v217 = vunpack.c.l.b16 %v39
  %v218 = vunpack.c.h.b16 %v39
  %v219 = vunpack.c.l.b16 %v40
  %v220 = vunpack.c.h.b16 %v40
  %v221 = vunpack.c.l.b16 %v41
  %v222 = vunpack.c.h.b16 %v41
  %v223 = vunpack.c.l.b16 %v42
  %v224 = vunpack.c.h.b16 %v42
  %v225 = vunpack.c.l.b16 %v43
  %v226 = vunpack.c.h.b16 %v43
  %v227 = vunpack.c.l.b16 %v44
  %v228 = vunpack.c.h.b16 %v44
  %v229 = vunpack.c.l.b16 %v45
  %v230 = vunpack.c.h.b16 %v45
  %v231 = vunpack.c.l.b16 %v46
  %v232 = vunpack.c.h.b16 %v46
  %v233 = vunpack.c.l.b16 %v47
  %v234 = vunpack.c.h.b16 %v47
  %v235 = vunpack.c.l.b16 %v48
  %v236 = vunpack.c.h.b16 %v48
  %v237 = vunpack.c.l.b16 %v49
  %v238 = vunpack.c.h.b16 %v49
  %v239 = vunpack.c.l.b16 %v50
  %v240 = vunpack.c.h.b16 %v50
  %v241 = vunpack.c.l.b16 %v51
  %v242 = vunpack.c.h.b16 %v51
  %v243 = vunpack.c.l.b16 %v52
  %v244 = vunpack.c.h.b16 %v52
  %v245 = vunpack.c.l.b16 %v53
  %v246 = vunpack.c.h.b16 %v53
  %v247 = vunpack.c.l.b16 %v54
  %v248 = vunpack.c.h.b16 %v54
  %v249 = vunpack.c.l.b16 %v55
  %v250 = vunpack.c.h.b16 %v55
  %v251 = vunpack.c.l.b16 %v56
  %v252 = vunpack.c.h.b16 %v56
  %v253 = vunpack.c.l.b16 %v57
  %v254 = vunpack.c.h.b16 %v57
  %v255 = vunpack.c.l.b16 %v58
  %v256 = vunpack.c.h.b16 %v58
  %v257 = vunpack.c.l.b16 %v59
  %v258 = vunpack.c.h.b16 %v59
  %v259 = vunpack.c.l.b16 %v60
  %v260 = vunpack.c.h.b16 %v60
  %v261 = vunpack.c.l.b16 %v61
  %v262 = vunpack.c.h.b16 %v61
  %v263 = vunpack.c.l.b16 %v62
  %v264 = vunpack.c.h.b16 %v62
  %v265 = vunpack.c.l.b16 %v63
  %v266 = vunpack.c.h.b16 %v63
  %v267 = vunpack.c.l.b16 %v64
  %v268 = vunpack.c.h.b16 %v64
  %v269 = vunpack.c.l.b16 %v65
  %v270 = vunpack.c.h.b16 %v65
  %v271 = vunpack.c.l.b16 %v66
  %v272 = vunpack.c.h.b16 %v66
  %v273 = vunpack.c.l.b16 %v67
  %v274 = vunpack.c.h.b16 %v67
  %v275 = vunpack.c.l.b16 %v68
  %v276 = vunpack.c.h.b16 %v68
  %v277 = vunpack.c.l.b16 %v69
  %v278 = vunpack.c.h.b16 %v69
  %v279 = vunpack.c.l.b16 %v70
  %v280 = vunpack.c.h.b16 %v70
  %v281 = vunpack.c.l.b16 %v71
  %v282 = vunpack.c.h.b16 %v71
  %v283 = vunpack.c.l.b16 %v72
  %v284 = vunpack.c.h.b16 %v72
  %v285 = vunpack.c.l.b16 %v73
  %v286 = vunpack.c.h.b16 %v73
  %v287 = vunpack.c.l.b16 %v74
  %v288 = vunpack.c.h.b16 %v74
  %v289 = vunpack.c.l.b16 %v75
  %v290 = vunpack.c.h.b16 %v75
  %v291 = vunpack.c.l.b16 %v76
  %v292 = vunpack.c.h.b16 %v76
  %v293 = vunpack.c.l.b16 %v77
  %v294 = vunpack.c.h.b16 %v77
  %v295 = vunpack.c.l.b16 %v78
  %v296 = vunpack.c.h.b16 %v78
  %v297 = vunpack.c.l.b16 %v79
  %v298 = vunpack.c.h.b16 %v79
  %v299 = vunpack.c.l.b16 %v80
  %v300 = vunpack.c.h.b16 %v80
  %v301 = vunpack.c.l.b16 %v81
  %v302 = vunpack.c.h.b16 %v81
  %v303 = vunpack.c.l.b16 %v82
  %v304 = vunpack.c.h.b16 %v82
  %v305 = vunpack.c.l.b16 %v83
  %v306 = vunpack.c.h.b16 %v83
  %v307 = vunpack.c.l.b16 %v84
  %v308 = vunpack.c.h.b16 %v84
  %v309 = vunpack.c.l.b16 %v85
  %v310 = vunpack.c.h.b16 %v85
  %v311 = vunpack.c.l.b16 %v86
  %v312 = vunpack.c.h.b16 %v86
  %v313 = vunpack.c.l.b16 %v87
  %v314 = vunpack.c.h.b16 %v87
  %v315 = vunpack.c.l.b16 %v88
  %v316 = vunpack.c.h.b16 %v88
  %v317 = vunpack.c.l.b16 %v89
  %v318 = vunpack.c.h.b16 %v89
  %v319 = vunpack.c.l.b16 %v90
  %v320 = vunpack.c.h.b16 %v90
  %v321 = vunpack.c.l.b16 %v91
  %v322 = vunpack.c.h.b16 %v91
  %v323 = vunpack.c.l.b16 %v92
  %v324 = vunpack.c.h.b16 %v92
  %v325 = vunpack.c.l.b16 %v93
  %v326 = vunpack.c.h.b16 %v93
  %v327 = vpack.c.b16 %v185, %v183
  %v328 = vpack.c.b16 %v186, %v184
  %v329 = vpack.c.b16 %v189, %v187
  %v330 = vpack.c.b16 %v190, %v188
  %v331 = vpack.c.b16 %v193, %v191
  %v332 = vpack.c.b16 %v194, %v192
  %v333 = vpack.c.b16 %v197, %v195
  %v334 = vpack.c.b16 %v198, %v196
  %v335 = vpack.c.b16 %v201, %v199
  %v336 = vpack.c.b16 %v202, %v200
  %v337 = vpack.c.b16 %v205, %v203
  %v338 = vpack.c.b16 %v206, %v204
  %v339 = vpack.c.b16 %v209, %v207
  %v340 = vpack.c.b16 %v210, %v208
  %v341 = vpack.c.b16 %v213, %v211
  %v342 = vpack.c.b16 %v214, %v212
  %v343 = vpack.c.b16 %v217, %v215
  %v344 = vpack.c.b16 %v218, %v216
  %v345 = vpack.c.b16 %v221, %v219
  %v346 = vpack.c.b16 %v222, %v220
  %v347 = vpack.c.b16 %v225, %v223
  %v348 = vpack.c.b16 %v226, %v224
  %v349 = vpack.c.b16 %v229, %v227
  %v350 = vpack.c.b16 %v230, %v228
  %v351 = vpack.c.b16 %v233, %v231
  %v352 = vpack.c.b16 %v234, %v232
  %v353 = vpack.c.b16 %v237, %v235
  %v354 = vpack.c.b16 %v238, %v236
  %v355 = vpack.c.b16 %v241, %v239
  %v356 = vpack.c.b16 %v242, %v240
  %v357 = vpack.c.b16 %v245, %v243
  %v358 = vpack.c.b16 %v246, %v244
  %v359 = vpack.c.b16 %v249, %v247
  %v360 = vpack.c.b16 %v250, %v248
  %v361 = vpack.c.b16 %v253, %v251
  %v362 = vpack.c.b16 %v254, %v252
  %v363 = vpack.c.b16 %v257, %v255
  %v364 = vpack.c.b16 %v258, %v256
  %v365 = vpack.c.b16 %v261, %v259
  %v366 = vpack.c.b16 %v262, %v260
  %v367 = vpack.c.b16 %v265, %v263
  %v368 = vpack.c.b16 %v266, %v264
  %v369 = vpack.c.b16 %v269, %v267
  %v370 = vpack.c.b16 %v270, %v268
  %v371 = vpack.c.b16 %v273, %v271
  %v372 = vpack.c.b16 %v274, %v272
  %v373 = vpack.c.b16 %v277, %v275
  %v374 = vpack.c.b16 %v278, %v276
  %v375 = vpack.c.b16 %v281, %v279
  %v376 = vpack.c.b16 %v282, %v280
  %v377 = vpack.c.b16 %v285, %v283
  %v378 = vpack.c.b16 %v286, %v284
  %v379 = vpack.c.b16 %v289, %v287
  %v380 = vpack.c.b16 %v290, %v288
  %v381 = vpack.c.b16 %v293, %v291
  %v382 = vpack.c.b16 %v294, %v292
  %v383 = vpack.c.b16 %v297, %v295
  %v384 = vpack.c.b16 %v298, %v296
  %v385 = vpack.c.b16 %v301, %v299
  %v386 = vpack.c.b16 %v302, %v300
  %v387 = vpack.c.b16 %v305, %v303
  %v388 = vpack.c.b16 %v306, %v304
  %v389 = vpack.c.b16 %v309, %v307
  %v390 = vpack.c.b16 %v310, %v308
  %v391 = vpack.c.b16 %v313, %v311
  %v392 = vpack.c.b16 %v314, %v312
  %v393 = vpack.c.b16 %v317, %v315
  %v394 = vpack.c.b16 %v318, %v316
  %v395 = vpack.c.b16 %v321, %v319
  %v396 = vpack.c.b16 %v322, %v320
  %v397 = vpack.c.b16 %v325, %v323
  %v398 = vpack.c.b16 %v326, %v324
  %vm471 = vcmask 523264
  %v472 = vsel %vm471, %v106, 0
  %474 = vmatpush.bf16.msra.mxu0 %v341
  %475 = vmatpush.bf16.msra.mxu0 %v339
  %476 = vmatpush.bf16.msra.mxu0 %v337
  %477 = vmatpush.bf16.msra.mxu0 %v335
  %478 = vmatpush.bf16.msra.mxu0 %v333
  %479 = vmatpush.bf16.msra.mxu0 %v331
  %480 = vmatpush.bf16.msra.mxu0 %v329
  %481 = vmatpush.bf16.msra.mxu0 %v327
  %482 = vmatmul.bf16.gmra.mxu0 %v102
  %v483 = vpop.f32.mrf.mxu0
  %v484 = vadd.f32 %v96, %v483
  %v485 = vpop.f32.mrf.mxu0
  %486 = vdwg.mxu0
  %487 = vmatpush.bf16.msra.mxu0 %v357
  %488 = vmatpush.bf16.msra.mxu0 %v355
  %489 = vmatpush.bf16.msra.mxu0 %v353
  %490 = vmatpush.bf16.msra.mxu0 %v351
  %491 = vmatpush.bf16.msra.mxu0 %v349
  %492 = vmatpush.bf16.msra.mxu0 %v347
  %493 = vmatpush.bf16.msra.mxu0 %v345
  %494 = vmatpush.bf16.msra.mxu0 %v343
  %495 = vmatmul.bf16.gmra.mxu0 %v103
  %v496 = vpop.f32.mrf.mxu0
  %v497 = vadd.f32 %v484, %v496
  %v498 = vpop.f32.mrf.mxu0
  %499 = vdwg.mxu0
  %500 = vmatpush.bf16.msra.mxu0 %v373
  %501 = vmatpush.bf16.msra.mxu0 %v371
  %502 = vmatpush.bf16.msra.mxu0 %v369
  %503 = vmatpush.bf16.msra.mxu0 %v367
  %504 = vmatpush.bf16.msra.mxu0 %v365
  %505 = vmatpush.bf16.msra.mxu0 %v363
  %506 = vmatpush.bf16.msra.mxu0 %v361
  %507 = vmatpush.bf16.msra.mxu0 %v359
  %508 = vmatmul.bf16.gmra.mxu0 %v104
  %v509 = vpop.f32.mrf.mxu0
  %v510 = vadd.f32 %v497, %v509
  %v511 = vpop.f32.mrf.mxu0
  %512 = vdwg.mxu0
  %513 = vmatpush.bf16.msra.mxu0 %v389
  %514 = vmatpush.bf16.msra.mxu0 %v387
  %515 = vmatpush.bf16.msra.mxu0 %v385
  %516 = vmatpush.bf16.msra.mxu0 %v383
  %517 = vmatpush.bf16.msra.mxu0 %v381
  %518 = vmatpush.bf16.msra.mxu0 %v379
  %519 = vmatpush.bf16.msra.mxu0 %v377
  %520 = vmatpush.bf16.msra.mxu0 %v375
  %521 = vmatmul.bf16.gmra.mxu0 %v105
  %v522 = vpop.f32.mrf.mxu0
  %v523 = vadd.f32 %v510, %v522
  %v524 = vpop.f32.mrf.mxu0
  %525 = vdwg.mxu0
  %526 = vmatpush.bf16.msra.mxu0 0
  %527 = vmatpush.bf16.msra.mxu0 0
  %528 = vmatpush.bf16.msra.mxu0 0
  %529 = vmatpush.bf16.msra.mxu0 0
  %530 = vmatpush.bf16.msra.mxu0 %v397
  %531 = vmatpush.bf16.msra.mxu0 %v395
  %532 = vmatpush.bf16.msra.mxu0 %v393
  %533 = vmatpush.bf16.msra.mxu0 %v391
  %534 = vmatmul.bf16.gmra.mxu0 %v472
  %v535 = vpop.f32.mrf.mxu0
  %v536 = vadd.f32 %v523, %v535
  %v537 = vpop.f32.mrf.mxu0
  %538 = vdwg.mxu0
  %539 = vmatpush.bf16.msra.mxu0 %v342
  %540 = vmatpush.bf16.msra.mxu0 %v340
  %541 = vmatpush.bf16.msra.mxu0 %v338
  %542 = vmatpush.bf16.msra.mxu0 %v336
  %543 = vmatpush.bf16.msra.mxu0 %v334
  %544 = vmatpush.bf16.msra.mxu0 %v332
  %545 = vmatpush.bf16.msra.mxu0 %v330
  %546 = vmatpush.bf16.msra.mxu0 %v328
  %547 = vmatmul.bf16.gmra.mxu0 %v102
  %v548 = vpop.f32.mrf.mxu0
  %v549 = vadd.f32 %v97, %v548
  %v550 = vpop.f32.mrf.mxu0
  %551 = vdwg.mxu0
  %552 = vmatpush.bf16.msra.mxu0 %v358
  %553 = vmatpush.bf16.msra.mxu0 %v356
  %554 = vmatpush.bf16.msra.mxu0 %v354
  %555 = vmatpush.bf16.msra.mxu0 %v352
  %556 = vmatpush.bf16.msra.mxu0 %v350
  %557 = vmatpush.bf16.msra.mxu0 %v348
  %558 = vmatpush.bf16.msra.mxu0 %v346
  %559 = vmatpush.bf16.msra.mxu0 %v344
  %560 = vmatmul.bf16.gmra.mxu0 %v103
  %v561 = vpop.f32.mrf.mxu0
  %v562 = vadd.f32 %v549, %v561
  %v563 = vpop.f32.mrf.mxu0
  %564 = vdwg.mxu0
  %565 = vmatpush.bf16.msra.mxu0 %v374
  %566 = vmatpush.bf16.msra.mxu0 %v372
  %567 = vmatpush.bf16.msra.mxu0 %v370
  %568 = vmatpush.bf16.msra.mxu0 %v368
  %569 = vmatpush.bf16.msra.mxu0 %v366
  %570 = vmatpush.bf16.msra.mxu0 %v364
  %571 = vmatpush.bf16.msra.mxu0 %v362
  %572 = vmatpush.bf16.msra.mxu0 %v360
  %573 = vmatmul.bf16.gmra.mxu0 %v104
  %v574 = vpop.f32.mrf.mxu0
  %v575 = vadd.f32 %v562, %v574
  %v576 = vpop.f32.mrf.mxu0
  %577 = vdwg.mxu0
  %578 = vmatpush.bf16.msra.mxu0 %v390
  %579 = vmatpush.bf16.msra.mxu0 %v388
  %580 = vmatpush.bf16.msra.mxu0 %v386
  %581 = vmatpush.bf16.msra.mxu0 %v384
  %582 = vmatpush.bf16.msra.mxu0 %v382
  %583 = vmatpush.bf16.msra.mxu0 %v380
  %584 = vmatpush.bf16.msra.mxu0 %v378
  %585 = vmatpush.bf16.msra.mxu0 %v376
  %586 = vmatmul.bf16.gmra.mxu0 %v105
  %v587 = vpop.f32.mrf.mxu0
  %v588 = vadd.f32 %v575, %v587
  %v589 = vpop.f32.mrf.mxu0
  %590 = vdwg.mxu0
  %591 = vmatpush.bf16.msra.mxu0 0
  %592 = vmatpush.bf16.msra.mxu0 0
  %593 = vmatpush.bf16.msra.mxu0 0
  %594 = vmatpush.bf16.msra.mxu0 0
  %595 = vmatpush.bf16.msra.mxu0 %v398
  %596 = vmatpush.bf16.msra.mxu0 %v396
  %597 = vmatpush.bf16.msra.mxu0 %v394
  %598 = vmatpush.bf16.msra.mxu0 %v392
  %599 = vmatmul.bf16.gmra.mxu0 %v472
  %v600 = vpop.f32.mrf.mxu0
  %v601 = vadd.f32 %v588, %v600
  %v602 = vpop.f32.mrf.mxu0
  %603 = vdwg.mxu0
  %v604 = vmax.f32 %v536, 0.0
  %v605 = vmax.f32 %v601, 0.0
  %v606 = vpack.c.bf16 %v604, %v604
  %v607 = vpack.c.bf16 %v605, %v605
  %v608 = vld [vmem:[%s3] sm:$0xf]
  %v609 = vld [vmem:[%s3 + $0x4] sm:$0xf]
  %v610 = vld [vmem:[%s3 + $0x8] sm:$0xf]
  %v611 = vld [vmem:[%s3 + $0xc] sm:$0xf]
  %v612 = vld [vmem:[%s3 + $0x10] sm:$0xf]
  %v613 = vld [vmem:[%s3 + $0x14] sm:$0xf]
  %v614 = vld [vmem:[%s3 + $0x18] sm:$0xf]
  %v615 = vld [vmem:[%s3 + $0x1c] sm:$0xf]
  %v616 = vld [vmem:[%s3 + $0x20] sm:$0xf]
  %v617 = vld [vmem:[%s3 + $0x24] sm:$0xf]
  %v618 = vld [vmem:[%s3 + $0x28] sm:$0xf]
  %v619 = vld [vmem:[%s3 + $0x2c] sm:$0xf]
  %v620 = vld [vmem:[%s3 + $0x30] sm:$0xf]
  %v621 = vld [vmem:[%s3 + $0x34] sm:$0xf]
  %v622 = vld [vmem:[%s3 + $0x38] sm:$0xf]
  %v623 = vld [vmem:[%s3 + $0x3c] sm:$0xf]
  %v624 = vld [vmem:[%s3 + $0x40] sm:$0xf]
  %v625 = vld [vmem:[%s3 + $0x44] sm:$0xf]
  %v626 = vld [vmem:[%s3 + $0x48] sm:$0xf]
  %v627 = vld [vmem:[%s3 + $0x4c] sm:$0xf]
  %v628 = vld [vmem:[%s3 + $0x50] sm:$0xf]
  %v629 = vld [vmem:[%s3 + $0x54] sm:$0xf]
  %v630 = vld [vmem:[%s3 + $0x58] sm:$0xf]
  %v631 = vld [vmem:[%s3 + $0x5c] sm:$0xf]
  %v632 = vld [vmem:[%s3 + $0x60] sm:$0xf]
  %v633 = vld [vmem:[%s3 + $0x64] sm:$0xf]
  %v634 = vld [vmem:[%s3 + $0x68] sm:$0xf]
  %v635 = vld [vmem:[%s3 + $0x6c] sm:$0xf]
  %v636 = vld [vmem:[%s3 + $0x70] sm:$0xf]
  %v637 = vld [vmem:[%s3 + $0x74] sm:$0xf]
  %v638 = vld [vmem:[%s3 + $0x78] sm:$0xf]
  %v639 = vld [vmem:[%s3 + $0x7c] sm:$0xf]
  %v640 = vld [vmem:[%s4] sm:$0x1]
  %v642 = vperm.slane %v640, 0
  %v676 = vunpack.c.l.b16 %v608
  %v677 = vunpack.c.l.b16 %v609
  %v678 = vunpack.c.l.b16 %v610
  %v679 = vunpack.c.l.b16 %v611
  %v680 = vunpack.c.l.b16 %v612
  %v681 = vunpack.c.l.b16 %v613
  %v682 = vunpack.c.l.b16 %v614
  %v683 = vunpack.c.l.b16 %v615
  %v684 = vunpack.c.l.b16 %v616
  %v685 = vunpack.c.l.b16 %v617
  %v686 = vunpack.c.l.b16 %v618
  %v687 = vunpack.c.l.b16 %v619
  %v688 = vunpack.c.l.b16 %v620
  %v689 = vunpack.c.l.b16 %v621
  %v690 = vunpack.c.l.b16 %v622
  %v691 = vunpack.c.l.b16 %v623
  %v692 = vunpack.c.l.b16 %v624
  %v693 = vunpack.c.l.b16 %v625
  %v694 = vunpack.c.l.b16 %v626
  %v695 = vunpack.c.l.b16 %v627
  %v696 = vunpack.c.l.b16 %v628
  %v697 = vunpack.c.l.b16 %v629
  %v698 = vunpack.c.l.b16 %v630
  %v699 = vunpack.c.l.b16 %v631
  %v700 = vunpack.c.l.b16 %v632
  %v701 = vunpack.c.l.b16 %v633
  %v702 = vunpack.c.l.b16 %v634
  %v703 = vunpack.c.l.b16 %v635
  %v704 = vunpack.c.l.b16 %v636
  %v705 = vunpack.c.l.b16 %v637
  %v706 = vunpack.c.l.b16 %v638
  %v707 = vunpack.c.l.b16 %v639
  %v708 = vpack.c.b16 %v677, %v676
  %v709 = vpack.c.b16 %v679, %v678
  %v710 = vpack.c.b16 %v681, %v680
  %v711 = vpack.c.b16 %v683, %v682
  %v712 = vpack.c.b16 %v685, %v684
  %v713 = vpack.c.b16 %v687, %v686
  %v714 = vpack.c.b16 %v689, %v688
  %v715 = vpack.c.b16 %v691, %v690
  %v716 = vpack.c.b16 %v693, %v692
  %v717 = vpack.c.b16 %v695, %v694
  %v718 = vpack.c.b16 %v697, %v696
  %v719 = vpack.c.b16 %v699, %v698
  %v720 = vpack.c.b16 %v701, %v700
  %v721 = vpack.c.b16 %v703, %v702
  %v722 = vpack.c.b16 %v705, %v704
  %v723 = vpack.c.b16 %v707, %v706
  %740 = vmatpush.bf16.msra.mxu0 %v715
  %741 = vmatpush.bf16.msra.mxu0 %v714
  %742 = vmatpush.bf16.msra.mxu0 %v713
  %743 = vmatpush.bf16.msra.mxu0 %v712
  %744 = vmatpush.bf16.msra.mxu0 %v711
  %745 = vmatpush.bf16.msra.mxu0 %v710
  %746 = vmatpush.bf16.msra.mxu0 %v709
  %747 = vmatpush.bf16.msra.mxu0 %v708
  %748 = vmatmul.bf16.gmra.mxu0 %v606
  %v749 = vpop.f32.mrf.mxu0
  %v750 = vadd.f32 %v642, %v749
  %v751 = vpop.f32.mrf.mxu0
  %752 = vdwg.mxu0
  %753 = vmatpush.bf16.msra.mxu0 %v723
  %754 = vmatpush.bf16.msra.mxu0 %v722
  %755 = vmatpush.bf16.msra.mxu0 %v721
  %756 = vmatpush.bf16.msra.mxu0 %v720
  %757 = vmatpush.bf16.msra.mxu0 %v719
  %758 = vmatpush.bf16.msra.mxu0 %v718
  %759 = vmatpush.bf16.msra.mxu0 %v717
  %760 = vmatpush.bf16.msra.mxu0 %v716
  %761 = vmatmul.bf16.gmra.mxu0 %v607
  %v762 = vpop.f32.mrf.mxu0
  %v763 = vadd.f32 %v750, %v762
  %v764 = vpop.f32.mrf.mxu0
  %765 = vdwg.mxu0
  %766 = vst [vmem:[%s5] sm:$0x3] %v763
  // Predicated region
  $region22: #{ae_cnn_mnist_forward.18} parent=0 // pred_check
    _
  $region23: #{ae_cnn_mnist_forward.18} parent=0 // pred_check_branch
    %768 = sbr.rel (0) target = $region25
  $region24: #{ae_cnn_mnist_forward.18} parent=0 // pred_region
    _
  $region25: #{ae_cnn_mnist_forward.18} parent=0 // pred_fallthru
    _
  // Predicated region
  $region26: #{ae_cnn_mnist_forward.18} parent=0 // pred_check
    _
  $region27: #{ae_cnn_mnist_forward.18} parent=0 // pred_check_branch
    %770 = sbr.rel (0) target = $region29
  $region28: #{ae_cnn_mnist_forward.18} parent=0 // pred_region
    _
  $region29: #{ae_cnn_mnist_forward.18} parent=0 // pred_fallthru
    _

// kernel: ae_cnn_mnist_forward.19
$region0: #{ae_cnn_mnist_forward.19}
  #allocation0 [shape = 'u32[]', space=smem, size = 0x4, offset = 0x4, fixed_abs, tag = 'smem constant byte address 0x4 - core index']
  #allocation1 [shape = 'u32[72,128]{1,0:T(1,128)}', space=vmem, size = 0x9000, scoped, tag = 'internal scratch']
  %s0 = inlined_call_operand.vmem [shape: bf16[2,32], index: 0, kind: input, shape index: {}]
  %s1 = inlined_call_operand.vmem [shape: bf16[32,256], index: 1, kind: input, shape index: {}]
  %s2 = inlined_call_operand.vmem [shape: f32[1,256], index: 2, kind: input, shape index: {}]
  %s3 = inlined_call_operand.vmem [shape: bf16[256,640], index: 3, kind: input, shape index: {}]
  %s4 = inlined_call_operand.vmem [shape: f32[1,640], index: 4, kind: input, shape index: {}]
  %s5 = inlined_call_operand.vmem [shape: f32[2,640], index: 5, kind: output, shape index: {}]
  %s6 = sld [smem:[#allocation0]]
  $region30: #{ae_cnn_mnist_forward.19} parent=0
    _
  %s8 = ssub.s32 1, %s6
  %s9 = scalar_select 0, %s8, %s6
  // Predicated region
  $region2: #{ae_cnn_mnist_forward.19} parent=0 // pred_check
    _
  $region3: #{ae_cnn_mnist_forward.19} parent=0 // pred_check_branch
    %11 = sbr.rel (0) target = $region5
  $region4: #{ae_cnn_mnist_forward.19} parent=0 // pred_region
    _
  $region5: #{ae_cnn_mnist_forward.19} parent=0 // pred_fallthru
    _
  // Predicated region
  $region6: #{ae_cnn_mnist_forward.19} parent=0 // pred_check
    _
  $region7: #{ae_cnn_mnist_forward.19} parent=0 // pred_check_branch
    %13 = sbr.rel (0) target = $region9
  $region8: #{ae_cnn_mnist_forward.19} parent=0 // pred_region
    _
  $region9: #{ae_cnn_mnist_forward.19} parent=0 // pred_fallthru
    _
  // Predicated region
  $region10: #{ae_cnn_mnist_forward.19} parent=0 // pred_check
    _
  $region11: #{ae_cnn_mnist_forward.19} parent=0 // pred_check_branch
    %15 = sbr.rel (0) target = $region13
  $region12: #{ae_cnn_mnist_forward.19} parent=0 // pred_region
    _
  $region13: #{ae_cnn_mnist_forward.19} parent=0 // pred_fallthru
    _
  // Predicated region
  $region14: #{ae_cnn_mnist_forward.19} parent=0 // pred_check
    _
  $region15: #{ae_cnn_mnist_forward.19} parent=0 // pred_check_branch
    %17 = sbr.rel (0) target = $region17
  $region16: #{ae_cnn_mnist_forward.19} parent=0 // pred_region
    _
  $region17: #{ae_cnn_mnist_forward.19} parent=0 // pred_fallthru
    _
  // Predicated region
  $region18: #{ae_cnn_mnist_forward.19} parent=0 // pred_check
    _
  $region19: #{ae_cnn_mnist_forward.19} parent=0 // pred_check_branch
    %19 = sbr.rel (0) target = $region21
  $region20: #{ae_cnn_mnist_forward.19} parent=0 // pred_region
    _
  $region21: #{ae_cnn_mnist_forward.19} parent=0 // pred_fallthru
    _
  %v21 = vld [vmem:[%s0] sm:$0x1]
  %v22 = vld [vmem:[%s1] sm:$0xff]
  %v23 = vld [vmem:[%s1 + $0x8] sm:$0xff]
  %v24 = vld [vmem:[%s1 + $0x10] sm:$0xff]
  %v25 = vld [vmem:[%s1 + $0x18] sm:$0xff]
  %v26 = vld [vmem:[%s2] sm:$0x3]
  %v28 = vperm.slane %v26, 0
  %v29 = vperm.slane %v26, 1
  %v36 = vunpack.c.l.b16 %v22
  %v37 = vunpack.c.h.b16 %v22
  %v38 = vunpack.c.l.b16 %v23
  %v39 = vunpack.c.h.b16 %v23
  %v40 = vunpack.c.l.b16 %v24
  %v41 = vunpack.c.h.b16 %v24
  %v42 = vunpack.c.l.b16 %v25
  %v43 = vunpack.c.h.b16 %v25
  %v44 = vpack.c.b16 %v38, %v36
  %v45 = vpack.c.b16 %v39, %v37
  %v46 = vpack.c.b16 %v42, %v40
  %v47 = vpack.c.b16 %v43, %v41
  %vm52 = vcmask 261120
  %v54 = vsel %vm52, %v21, 0
  %56 = vmatpush.bf16.msra.mxu0 0
  %57 = vmatpush.bf16.msra.mxu0 0
  %58 = vmatpush.bf16.msra.mxu0 0
  %59 = vmatpush.bf16.msra.mxu0 0
  %60 = vmatpush.bf16.msra.mxu0 0
  %61 = vmatpush.bf16.msra.mxu0 0
  %62 = vmatpush.bf16.msra.mxu0 %v46
  %63 = vmatpush.bf16.msra.mxu0 %v44
  %64 = vmatmul.bf16.gmra.mxu0 %v54
  %v65 = vpop.f32.mrf.mxu0
  %v66 = vadd.f32 %v28, %v65
  %v67 = vpop.f32.mrf.mxu0
  %68 = vdwg.mxu0
  %69 = vmatpush.bf16.msra.mxu0 0
  %70 = vmatpush.bf16.msra.mxu0 0
  %71 = vmatpush.bf16.msra.mxu0 0
  %72 = vmatpush.bf16.msra.mxu0 0
  %73 = vmatpush.bf16.msra.mxu0 0
  %74 = vmatpush.bf16.msra.mxu0 0
  %75 = vmatpush.bf16.msra.mxu0 %v47
  %76 = vmatpush.bf16.msra.mxu0 %v45
  %77 = vmatmul.bf16.gmra.mxu0 %v54
  %v78 = vpop.f32.mrf.mxu0
  %v79 = vadd.f32 %v29, %v78
  %v80 = vpop.f32.mrf.mxu0
  %81 = vdwg.mxu0
  %v82 = vmax.f32 %v66, 0.0
  %v83 = vmax.f32 %v79, 0.0
  %v84 = vpack.c.bf16 %v82, %v82
  %v85 = vpack.c.bf16 %v83, %v83
  %v86 = vld [vmem:[%s3] sm:$0xff]
  %v87 = vld [vmem:[%s3 + $0x8] sm:$0xff]
  %v88 = vld [vmem:[%s3 + $0x10] sm:$0xf]
  %v89 = vld [vmem:[%s3 + $0x14] sm:$0xff]
  %v90 = vld [vmem:[%s3 + $0x1c] sm:$0xff]
  %v91 = vld [vmem:[%s3 + $0x24] sm:$0xf]
  %v92 = vld [vmem:[%s3 + $0x28] sm:$0xff]
  %v93 = vld [vmem:[%s3 + $0x30] sm:$0xff]
  %v94 = vld [vmem:[%s3 + $0x38] sm:$0xf]
  %v95 = vld [vmem:[%s3 + $0x3c] sm:$0xff]
  %v96 = vld [vmem:[%s3 + $0x44] sm:$0xff]
  %v97 = vld [vmem:[%s3 + $0x4c] sm:$0xf]
  %v98 = vld [vmem:[%s3 + $0x50] sm:$0xff]
  %v99 = vld [vmem:[%s3 + $0x58] sm:$0xff]
  %v100 = vld [vmem:[%s3 + $0x60] sm:$0xf]
  %v101 = vld [vmem:[%s3 + $0x64] sm:$0xff]
  %v102 = vld [vmem:[%s3 + $0x6c] sm:$0xff]
  %v103 = vld [vmem:[%s3 + $0x74] sm:$0xf]
  %v104 = vld [vmem:[%s3 + $0x78] sm:$0xff]
  %v105 = vld [vmem:[%s3 + $0x80] sm:$0xff]
  %v106 = vld [vmem:[%s3 + $0x88] sm:$0xf]
  %v107 = vld [vmem:[%s3 + $0x8c] sm:$0xff]
  %v108 = vld [vmem:[%s3 + $0x94] sm:$0xff]
  %v109 = vld [vmem:[%s3 + $0x9c] sm:$0xf]
  %v110 = vld [vmem:[%s3 + $0xa0] sm:$0xff]
  %v111 = vld [vmem:[%s3 + $0xa8] sm:$0xff]
  %v112 = vld [vmem:[%s3 + $0xb0] sm:$0xf]
  %v113 = vld [vmem:[%s3 + $0xb4] sm:$0xff]
  %v114 = vld [vmem:[%s3 + $0xbc] sm:$0xff]
  %v115 = vld [vmem:[%s3 + $0xc4] sm:$0xf]
  %v116 = vld [vmem:[%s3 + $0xc8] sm:$0xff]
  %v117 = vld [vmem:[%s3 + $0xd0] sm:$0xff]
  %v118 = vld [vmem:[%s3 + $0xd8] sm:$0xf]
  %v119 = vld [vmem:[%s3 + $0xdc] sm:$0xff]
  %v120 = vld [vmem:[%s3 + $0xe4] sm:$0xff]
  %v121 = vld [vmem:[%s3 + $0xec] sm:$0xf]
  %v122 = vld [vmem:[%s3 + $0xf0] sm:$0xff]
  %v123 = vld [vmem:[%s3 + $0xf8] sm:$0xff]
  %v124 = vld [vmem:[%s3 + $0x100] sm:$0xf]
  %v125 = vld [vmem:[%s3 + $0x104] sm:$0xff]
  %v126 = vld [vmem:[%s3 + $0x10c] sm:$0xff]
  %v127 = vld [vmem:[%s3 + $0x114] sm:$0xf]
  %v128 = vld [vmem:[%s3 + $0x118] sm:$0xff]
  %v129 = vld [vmem:[%s3 + $0x120] sm:$0xff]
  %v130 = vld [vmem:[%s3 + $0x128] sm:$0xf]
  %v131 = vld [vmem:[%s3 + $0x12c] sm:$0xff]
  %v132 = vld [vmem:[%s3 + $0x134] sm:$0xff]
  %v133 = vld [vmem:[%s3 + $0x13c] sm:$0xf]
  %v134 = vld [vmem:[%s3 + $0x140] sm:$0xff]
  %v135 = vld [vmem:[%s3 + $0x148] sm:$0xff]
  %v136 = vld [vmem:[%s3 + $0x150] sm:$0xf]
  %v137 = vld [vmem:[%s3 + $0x154] sm:$0xff]
  %v138 = vld [vmem:[%s3 + $0x15c] sm:$0xff]
  %v139 = vld [vmem:[%s3 + $0x164] sm:$0xf]
  %v140 = vld [vmem:[%s3 + $0x168] sm:$0xff]
  %v141 = vld [vmem:[%s3 + $0x170] sm:$0xff]
  %v142 = vld [vmem:[%s3 + $0x178] sm:$0xf]
  %v143 = vld [vmem:[%s3 + $0x17c] sm:$0xff]
  %v144 = vld [vmem:[%s3 + $0x184] sm:$0xff]
  %v145 = vld [vmem:[%s3 + $0x18c] sm:$0xf]
  %v146 = vld [vmem:[%s3 + $0x190] sm:$0xff]
  %v147 = vld [vmem:[%s3 + $0x198] sm:$0xff]
  %v148 = vld [vmem:[%s3 + $0x1a0] sm:$0xf]
  %v149 = vld [vmem:[%s3 + $0x1a4] sm:$0xff]
  %v150 = vld [vmem:[%s3 + $0x1ac] sm:$0xff]
  %v151 = vld [vmem:[%s3 + $0x1b4] sm:$0xf]
  %v152 = vld [vmem:[%s3 + $0x1b8] sm:$0xff]
  %v153 = vld [vmem:[%s3 + $0x1c0] sm:$0xff]
  %v154 = vld [vmem:[%s3 + $0x1c8] sm:$0xf]
  %v155 = vld [vmem:[%s3 + $0x1cc] sm:$0xff]
  %v156 = vld [vmem:[%s3 + $0x1d4] sm:$0xff]
  %v157 = vld [vmem:[%s3 + $0x1dc] sm:$0xf]
  %v158 = vld [vmem:[%s3 + $0x1e0] sm:$0xff]
  %v159 = vld [vmem:[%s3 + $0x1e8] sm:$0xff]
  %v160 = vld [vmem:[%s3 + $0x1f0] sm:$0xf]
  %v161 = vld [vmem:[%s3 + $0x1f4] sm:$0xff]
  %v162 = vld [vmem:[%s3 + $0x1fc] sm:$0xff]
  %v163 = vld [vmem:[%s3 + $0x204] sm:$0xf]
  %v164 = vld [vmem:[%s3 + $0x208] sm:$0xff]
  %v165 = vld [vmem:[%s3 + $0x210] sm:$0xff]
  %v166 = vld [vmem:[%s3 + $0x218] sm:$0xf]
  %v167 = vld [vmem:[%s3 + $0x21c] sm:$0xff]
  %v168 = vld [vmem:[%s3 + $0x224] sm:$0xff]
  %v169 = vld [vmem:[%s3 + $0x22c] sm:$0xf]
  %v170 = vld [vmem:[%s3 + $0x230] sm:$0xff]
  %v171 = vld [vmem:[%s3 + $0x238] sm:$0xff]
  %v172 = vld [vmem:[%s3 + $0x240] sm:$0xf]
  %v173 = vld [vmem:[%s3 + $0x244] sm:$0xff]
  %v174 = vld [vmem:[%s3 + $0x24c] sm:$0xff]
  %v175 = vld [vmem:[%s3 + $0x254] sm:$0xf]
  %v176 = vld [vmem:[%s3 + $0x258] sm:$0xff]
  %v177 = vld [vmem:[%s3 + $0x260] sm:$0xff]
  %v178 = vld [vmem:[%s3 + $0x268] sm:$0xf]
  %v179 = vld [vmem:[%s3 + $0x26c] sm:$0xff]
  %v180 = vld [vmem:[%s3 + $0x274] sm:$0xff]
  %v181 = vld [vmem:[%s3 + $0x27c] sm:$0xf]
  %v182 = vld [vmem:[%s4] sm:$0x1f]
  %v184 = vperm.slane %v182, 0
  %v185 = vperm.slane %v182, 1
  %v186 = vperm.slane %v182, 2
  %v187 = vperm.slane %v182, 3
  %v188 = vperm.slane %v182, 4
  %v290 = vunpack.c.l.b16 %v86
  %v291 = vunpack.c.h.b16 %v86
  %v292 = vunpack.c.l.b16 %v87
  %v293 = vunpack.c.h.b16 %v87
  %v294 = vunpack.c.l.b16 %v88
  %v295 = vunpack.c.l.b16 %v89
  %v296 = vunpack.c.h.b16 %v89
  %v297 = vunpack.c.l.b16 %v90
  %v298 = vunpack.c.h.b16 %v90
  %v299 = vunpack.c.l.b16 %v91
  %v300 = vunpack.c.l.b16 %v92
  %v301 = vunpack.c.h.b16 %v92
  %v302 = vunpack.c.l.b16 %v93
  %v303 = vunpack.c.h.b16 %v93
  %v304 = vunpack.c.l.b16 %v94
  %v305 = vunpack.c.l.b16 %v95
  %v306 = vunpack.c.h.b16 %v95
  %v307 = vunpack.c.l.b16 %v96
  %v308 = vunpack.c.h.b16 %v96
  %v309 = vunpack.c.l.b16 %v97
  %v310 = vunpack.c.l.b16 %v98
  %v311 = vunpack.c.h.b16 %v98
  %v312 = vunpack.c.l.b16 %v99
  %v313 = vunpack.c.h.b16 %v99
  %v314 = vunpack.c.l.b16 %v100
  %v315 = vunpack.c.l.b16 %v101
  %v316 = vunpack.c.h.b16 %v101
  %v317 = vunpack.c.l.b16 %v102
  %v318 = vunpack.c.h.b16 %v102
  %v319 = vunpack.c.l.b16 %v103
  %v320 = vunpack.c.l.b16 %v104
  %v321 = vunpack.c.h.b16 %v104
  %v322 = vunpack.c.l.b16 %v105
  %v323 = vunpack.c.h.b16 %v105
  %v324 = vunpack.c.l.b16 %v106
  %v325 = vunpack.c.l.b16 %v107
  %v326 = vunpack.c.h.b16 %v107
  %v327 = vunpack.c.l.b16 %v108
  %v328 = vunpack.c.h.b16 %v108
  %v329 = vunpack.c.l.b16 %v109
  %v330 = vunpack.c.l.b16 %v110
  %v331 = vunpack.c.h.b16 %v110
  %v332 = vunpack.c.l.b16 %v111
  %v333 = vunpack.c.h.b16 %v111
  %v334 = vunpack.c.l.b16 %v112
  %v335 = vunpack.c.l.b16 %v113
  %v336 = vunpack.c.h.b16 %v113
  %v337 = vunpack.c.l.b16 %v114
  %v338 = vunpack.c.h.b16 %v114
  %v339 = vunpack.c.l.b16 %v115
  %v340 = vunpack.c.l.b16 %v116
  %v341 = vunpack.c.h.b16 %v116
  %v342 = vunpack.c.l.b16 %v117
  %v343 = vunpack.c.h.b16 %v117
  %v344 = vunpack.c.l.b16 %v118
  %v345 = vunpack.c.l.b16 %v119
  %v346 = vunpack.c.h.b16 %v119
  %v347 = vunpack.c.l.b16 %v120
  %v348 = vunpack.c.h.b16 %v120
  %v349 = vunpack.c.l.b16 %v121
  %v350 = vunpack.c.l.b16 %v122
  %v351 = vunpack.c.h.b16 %v122
  %v352 = vunpack.c.l.b16 %v123
  %v353 = vunpack.c.h.b16 %v123
  %v354 = vunpack.c.l.b16 %v124
  %v355 = vunpack.c.l.b16 %v125
  %v356 = vunpack.c.h.b16 %v125
  %v357 = vunpack.c.l.b16 %v126
  %v358 = vunpack.c.h.b16 %v126
  %v359 = vunpack.c.l.b16 %v127
  %v360 = vunpack.c.l.b16 %v128
  %v361 = vunpack.c.h.b16 %v128
  %v362 = vunpack.c.l.b16 %v129
  %v363 = vunpack.c.h.b16 %v129
  %v364 = vunpack.c.l.b16 %v130
  %v365 = vunpack.c.l.b16 %v131
  %v366 = vunpack.c.h.b16 %v131
  %v367 = vunpack.c.l.b16 %v132
  %v368 = vunpack.c.h.b16 %v132
  %v369 = vunpack.c.l.b16 %v133
  %v370 = vunpack.c.l.b16 %v134
  %v371 = vunpack.c.h.b16 %v134
  %v372 = vunpack.c.l.b16 %v135
  %v373 = vunpack.c.h.b16 %v135
  %v374 = vunpack.c.l.b16 %v136
  %v375 = vunpack.c.l.b16 %v137
  %v376 = vunpack.c.h.b16 %v137
  %v377 = vunpack.c.l.b16 %v138
  %v378 = vunpack.c.h.b16 %v138
  %v379 = vunpack.c.l.b16 %v139
  %v380 = vunpack.c.l.b16 %v140
  %v381 = vunpack.c.h.b16 %v140
  %v382 = vunpack.c.l.b16 %v141
  %v383 = vunpack.c.h.b16 %v141
  %v384 = vunpack.c.l.b16 %v142
  %v385 = vunpack.c.l.b16 %v143
  %v386 = vunpack.c.h.b16 %v143
  %v387 = vunpack.c.l.b16 %v144
  %v388 = vunpack.c.h.b16 %v144
  %v389 = vunpack.c.l.b16 %v145
  %v390 = vunpack.c.l.b16 %v146
  %v391 = vunpack.c.h.b16 %v146
  %v392 = vunpack.c.l.b16 %v147
  %v393 = vunpack.c.h.b16 %v147
  %v394 = vunpack.c.l.b16 %v148
  %v395 = vunpack.c.l.b16 %v149
  %v396 = vunpack.c.h.b16 %v149
  %v397 = vunpack.c.l.b16 %v150
  %v398 = vunpack.c.h.b16 %v150
  %v399 = vunpack.c.l.b16 %v151
  %v400 = vunpack.c.l.b16 %v152
  %v401 = vunpack.c.h.b16 %v152
  %v402 = vunpack.c.l.b16 %v153
  %v403 = vunpack.c.h.b16 %v153
  %v404 = vunpack.c.l.b16 %v154
  %v405 = vunpack.c.l.b16 %v155
  %v406 = vunpack.c.h.b16 %v155
  %v407 = vunpack.c.l.b16 %v156
  %v408 = vunpack.c.h.b16 %v156
  %v409 = vunpack.c.l.b16 %v157
  %v410 = vunpack.c.l.b16 %v158
  %v411 = vunpack.c.h.b16 %v158
  %v412 = vunpack.c.l.b16 %v159
  %v413 = vunpack.c.h.b16 %v159
  %v414 = vunpack.c.l.b16 %v160
  %v415 = vunpack.c.l.b16 %v161
  %v416 = vunpack.c.h.b16 %v161
  %v417 = vunpack.c.l.b16 %v162
  %v418 = vunpack.c.h.b16 %v162
  %v419 = vunpack.c.l.b16 %v163
  %v420 = vunpack.c.l.b16 %v164
  %v421 = vunpack.c.h.b16 %v164
  %v422 = vunpack.c.l.b16 %v165
  %v423 = vunpack.c.h.b16 %v165
  %v424 = vunpack.c.l.b16 %v166
  %v425 = vunpack.c.l.b16 %v167
  %v426 = vunpack.c.h.b16 %v167
  %v427 = vunpack.c.l.b16 %v168
  %v428 = vunpack.c.h.b16 %v168
  %v429 = vunpack.c.l.b16 %v169
  %v430 = vunpack.c.l.b16 %v170
  %v431 = vunpack.c.h.b16 %v170
  %v432 = vunpack.c.l.b16 %v171
  %v433 = vunpack.c.h.b16 %v171
  %v434 = vunpack.c.l.b16 %v172
  %v435 = vunpack.c.l.b16 %v173
  %v436 = vunpack.c.h.b16 %v173
  %v437 = vunpack.c.l.b16 %v174
  %v438 = vunpack.c.h.b16 %v174
  %v439 = vunpack.c.l.b16 %v175
  %v440 = vunpack.c.l.b16 %v176
  %v441 = vunpack.c.h.b16 %v176
  %v442 = vunpack.c.l.b16 %v177
  %v443 = vunpack.c.h.b16 %v177
  %v444 = vunpack.c.l.b16 %v178
  %v445 = vunpack.c.l.b16 %v179
  %v446 = vunpack.c.h.b16 %v179
  %v447 = vunpack.c.l.b16 %v180
  %v448 = vunpack.c.h.b16 %v180
  %v449 = vunpack.c.l.b16 %v181
  %v450 = vpack.c.b16 %v295, %v290
  %v451 = vpack.c.b16 %v296, %v291
  %v452 = vpack.c.b16 %v297, %v292
  %v453 = vpack.c.b16 %v298, %v293
  %v454 = vpack.c.b16 %v299, %v294
  %v455 = vpack.c.b16 %v305, %v300
  %v456 = vpack.c.b16 %v306, %v301
  %v457 = vpack.c.b16 %v307, %v302
  %v458 = vpack.c.b16 %v308, %v303
  %v459 = vpack.c.b16 %v309, %v304
  %v460 = vpack.c.b16 %v315, %v310
  %v461 = vpack.c.b16 %v316, %v311
  %v462 = vpack.c.b16 %v317, %v312
  %v463 = vpack.c.b16 %v318, %v313
  %v464 = vpack.c.b16 %v319, %v314
  %v465 = vpack.c.b16 %v325, %v320
  %v466 = vpack.c.b16 %v326, %v321
  %v467 = vpack.c.b16 %v327, %v322
  %v468 = vpack.c.b16 %v328, %v323
  %v469 = vpack.c.b16 %v329, %v324
  %v470 = vpack.c.b16 %v335, %v330
  %v471 = vpack.c.b16 %v336, %v331
  %v472 = vpack.c.b16 %v337, %v332
  %v473 = vpack.c.b16 %v338, %v333
  %v474 = vpack.c.b16 %v339, %v334
  %v475 = vpack.c.b16 %v345, %v340
  %v476 = vpack.c.b16 %v346, %v341
  %v477 = vpack.c.b16 %v347, %v342
  %v478 = vpack.c.b16 %v348, %v343
  %v479 = vpack.c.b16 %v349, %v344
  %v480 = vpack.c.b16 %v355, %v350
  %v481 = vpack.c.b16 %v356, %v351
  %v482 = vpack.c.b16 %v357, %v352
  %v483 = vpack.c.b16 %v358, %v353
  %v484 = vpack.c.b16 %v359, %v354
  %v485 = vpack.c.b16 %v365, %v360
  %v486 = vpack.c.b16 %v366, %v361
  %v487 = vpack.c.b16 %v367, %v362
  %v488 = vpack.c.b16 %v368, %v363
  %v489 = vpack.c.b16 %v369, %v364
  %v490 = vpack.c.b16 %v375, %v370
  %v491 = vpack.c.b16 %v376, %v371
  %v492 = vpack.c.b16 %v377, %v372
  %v493 = vpack.c.b16 %v378, %v373
  %v494 = vpack.c.b16 %v379, %v374
  %v495 = vpack.c.b16 %v385, %v380
  %v496 = vpack.c.b16 %v386, %v381
  %v497 = vpack.c.b16 %v387, %v382
  %v498 = vpack.c.b16 %v388, %v383
  %v499 = vpack.c.b16 %v389, %v384
  %v500 = vpack.c.b16 %v395, %v390
  %v501 = vpack.c.b16 %v396, %v391
  %v502 = vpack.c.b16 %v397, %v392
  %v503 = vpack.c.b16 %v398, %v393
  %v504 = vpack.c.b16 %v399, %v394
  %v505 = vpack.c.b16 %v405, %v400
  %v506 = vpack.c.b16 %v406, %v401
  %v507 = vpack.c.b16 %v407, %v402
  %v508 = vpack.c.b16 %v408, %v403
  %v509 = vpack.c.b16 %v409, %v404
  %v510 = vpack.c.b16 %v415, %v410
  %v511 = vpack.c.b16 %v416, %v411
  %v512 = vpack.c.b16 %v417, %v412
  %v513 = vpack.c.b16 %v418, %v413
  %v514 = vpack.c.b16 %v419, %v414
  %v515 = vpack.c.b16 %v425, %v420
  %v516 = vpack.c.b16 %v426, %v421
  %v517 = vpack.c.b16 %v427, %v422
  %v518 = vpack.c.b16 %v428, %v423
  %v519 = vpack.c.b16 %v429, %v424
  %v520 = vpack.c.b16 %v435, %v430
  %v521 = vpack.c.b16 %v436, %v431
  %v522 = vpack.c.b16 %v437, %v432
  %v523 = vpack.c.b16 %v438, %v433
  %v524 = vpack.c.b16 %v439, %v434
  %v525 = vpack.c.b16 %v445, %v440
  %v526 = vpack.c.b16 %v446, %v441
  %v527 = vpack.c.b16 %v447, %v442
  %v528 = vpack.c.b16 %v448, %v443
  %v529 = vpack.c.b16 %v449, %v444
  %610 = vmatpush.bf16.msra.mxu0 %v485
  %611 = vmatpush.bf16.msra.mxu0 %v480
  %612 = vmatpush.bf16.msra.mxu0 %v475
  %613 = vmatpush.bf16.msra.mxu0 %v470
  %614 = vmatpush.bf16.msra.mxu0 %v465
  %615 = vmatpush.bf16.msra.mxu0 %v460
  %616 = vmatpush.bf16.msra.mxu0 %v455
  %617 = vmatpush.bf16.msra.mxu0 %v450
  %618 = vmatmul.bf16.gmra.mxu0 %v84
  %v619 = vpop.f32.mrf.mxu0
  %v620 = vadd.f32 %v184, %v619
  %v621 = vpop.f32.mrf.mxu0
  %622 = vdwg.mxu0
  %623 = vmatpush.bf16.msra.mxu0 %v525
  %624 = vmatpush.bf16.msra.mxu0 %v520
  %625 = vmatpush.bf16.msra.mxu0 %v515
  %626 = vmatpush.bf16.msra.mxu0 %v510
  %627 = vmatpush.bf16.msra.mxu0 %v505
  %628 = vmatpush.bf16.msra.mxu0 %v500
  %629 = vmatpush.bf16.msra.mxu0 %v495
  %630 = vmatpush.bf16.msra.mxu0 %v490
  %631 = vmatmul.bf16.gmra.mxu0 %v85
  %v632 = vpop.f32.mrf.mxu0
  %v633 = vadd.f32 %v620, %v632
  %v634 = vpop.f32.mrf.mxu0
  %635 = vdwg.mxu0
  %636 = vmatpush.bf16.msra.mxu0 %v486
  %637 = vmatpush.bf16.msra.mxu0 %v481
  %638 = vmatpush.bf16.msra.mxu0 %v476
  %639 = vmatpush.bf16.msra.mxu0 %v471
  %640 = vmatpush.bf16.msra.mxu0 %v466
  %641 = vmatpush.bf16.msra.mxu0 %v461
  %642 = vmatpush.bf16.msra.mxu0 %v456
  %643 = vmatpush.bf16.msra.mxu0 %v451
  %644 = vmatmul.bf16.gmra.mxu0 %v84
  %v645 = vpop.f32.mrf.mxu0
  %v646 = vadd.f32 %v185, %v645
  %v647 = vpop.f32.mrf.mxu0
  %648 = vdwg.mxu0
  %649 = vmatpush.bf16.msra.mxu0 %v526
  %650 = vmatpush.bf16.msra.mxu0 %v521
  %651 = vmatpush.bf16.msra.mxu0 %v516
  %652 = vmatpush.bf16.msra.mxu0 %v511
  %653 = vmatpush.bf16.msra.mxu0 %v506
  %654 = vmatpush.bf16.msra.mxu0 %v501
  %655 = vmatpush.bf16.msra.mxu0 %v496
  %656 = vmatpush.bf16.msra.mxu0 %v491
  %657 = vmatmul.bf16.gmra.mxu0 %v85
  %v658 = vpop.f32.mrf.mxu0
  %v659 = vadd.f32 %v646, %v658
  %v660 = vpop.f32.mrf.mxu0
  %661 = vdwg.mxu0
  %662 = vmatpush.bf16.msra.mxu0 %v487
  %663 = vmatpush.bf16.msra.mxu0 %v482
  %664 = vmatpush.bf16.msra.mxu0 %v477
  %665 = vmatpush.bf16.msra.mxu0 %v472
  %666 = vmatpush.bf16.msra.mxu0 %v467
  %667 = vmatpush.bf16.msra.mxu0 %v462
  %668 = vmatpush.bf16.msra.mxu0 %v457
  %669 = vmatpush.bf16.msra.mxu0 %v452
  %670 = vmatmul.bf16.gmra.mxu0 %v84
  %v671 = vpop.f32.mrf.mxu0
  %v672 = vadd.f32 %v186, %v671
  %v673 = vpop.f32.mrf.mxu0
  %674 = vdwg.mxu0
  %675 = vmatpush.bf16.msra.mxu0 %v527
  %676 = vmatpush.bf16.msra.mxu0 %v522
  %677 = vmatpush.bf16.msra.mxu0 %v517
  %678 = vmatpush.bf16.msra.mxu0 %v512
  %679 = vmatpush.bf16.msra.mxu0 %v507
  %680 = vmatpush.bf16.msra.mxu0 %v502
  %681 = vmatpush.bf16.msra.mxu0 %v497
  %682 = vmatpush.bf16.msra.mxu0 %v492
  %683 = vmatmul.bf16.gmra.mxu0 %v85
  %v684 = vpop.f32.mrf.mxu0
  %v685 = vadd.f32 %v672, %v684
  %v686 = vpop.f32.mrf.mxu0
  %687 = vdwg.mxu0
  %688 = vmatpush.bf16.msra.mxu0 %v488
  %689 = vmatpush.bf16.msra.mxu0 %v483
  %690 = vmatpush.bf16.msra.mxu0 %v478
  %691 = vmatpush.bf16.msra.mxu0 %v473
  %692 = vmatpush.bf16.msra.mxu0 %v468
  %693 = vmatpush.bf16.msra.mxu0 %v463
  %694 = vmatpush.bf16.msra.mxu0 %v458
  %695 = vmatpush.bf16.msra.mxu0 %v453
  %696 = vmatmul.bf16.gmra.mxu0 %v84
  %v697 = vpop.f32.mrf.mxu0
  %v698 = vadd.f32 %v187, %v697
  %v699 = vpop.f32.mrf.mxu0
  %700 = vdwg.mxu0
  %701 = vmatpush.bf16.msra.mxu0 %v528
  %702 = vmatpush.bf16.msra.mxu0 %v523
  %703 = vmatpush.bf16.msra.mxu0 %v518
  %704 = vmatpush.bf16.msra.mxu0 %v513
  %705 = vmatpush.bf16.msra.mxu0 %v508
  %706 = vmatpush.bf16.msra.mxu0 %v503
  %707 = vmatpush.bf16.msra.mxu0 %v498
  %708 = vmatpush.bf16.msra.mxu0 %v493
  %709 = vmatmul.bf16.gmra.mxu0 %v85
  %v710 = vpop.f32.mrf.mxu0
  %v711 = vadd.f32 %v698, %v710
  %v712 = vpop.f32.mrf.mxu0
  %713 = vdwg.mxu0
  %714 = vmatpush.bf16.msra.mxu0 %v489
  %715 = vmatpush.bf16.msra.mxu0 %v484
  %716 = vmatpush.bf16.msra.mxu0 %v479
  %717 = vmatpush.bf16.msra.mxu0 %v474
  %718 = vmatpush.bf16.msra.mxu0 %v469
  %719 = vmatpush.bf16.msra.mxu0 %v464
  %720 = vmatpush.bf16.msra.mxu0 %v459
  %721 = vmatpush.bf16.msra.mxu0 %v454
  %722 = vmatmul.bf16.gmra.mxu0 %v84
  %v723 = vpop.f32.mrf.mxu0
  %v724 = vadd.f32 %v188, %v723
  %v725 = vpop.f32.mrf.mxu0
  %726 = vdwg.mxu0
  %727 = vmatpush.bf16.msra.mxu0 %v529
  %728 = vmatpush.bf16.msra.mxu0 %v524
  %729 = vmatpush.bf16.msra.mxu0 %v519
  %730 = vmatpush.bf16.msra.mxu0 %v514
  %731 = vmatpush.bf16.msra.mxu0 %v509
  %732 = vmatpush.bf16.msra.mxu0 %v504
  %733 = vmatpush.bf16.msra.mxu0 %v499
  %734 = vmatpush.bf16.msra.mxu0 %v494
  %735 = vmatmul.bf16.gmra.mxu0 %v85
  %v736 = vpop.f32.mrf.mxu0
  %v737 = vadd.f32 %v724, %v736
  %v738 = vpop.f32.mrf.mxu0
  %739 = vdwg.mxu0
  %v740 = vmax.f32 %v633, 0.0
  %v741 = vmax.f32 %v659, 0.0
  %v742 = vmax.f32 %v685, 0.0
  %v743 = vmax.f32 %v711, 0.0
  %v744 = vmax.f32 %v737, 0.0
  %v749 = vrot.slane %v741, 6
  %v750 = vrot.slane %v742, 4
  %v751 = vrot.slane %v743, 2
  %vm752 = vcmask 1041408
  %v753 = vsel %vm752, %v740, %v749
  %vm754 = vcmask 1045508
  %v755 = vsel %vm754, %v750, %v751
  %vm756 = vcmask 1043456
  %v757 = vsel %vm756, %v753, %v755
  %759 = vst [vmem:[%s5] sm:$0xff] %v757
  %760 = vst [vmem:[%s5 + $0x8] sm:$0x3] %v744
  // Predicated region
  $region22: #{ae_cnn_mnist_forward.19} parent=0 // pred_check
    _
  $region23: #{ae_cnn_mnist_forward.19} parent=0 // pred_check_branch
    %762 = sbr.rel (0) target = $region25
  $region24: #{ae_cnn_mnist_forward.19} parent=0 // pred_region
    _
  $region25: #{ae_cnn_mnist_forward.19} parent=0 // pred_fallthru
    _
  // Predicated region
  $region26: #{ae_cnn_mnist_forward.19} parent=0 // pred_check
    _
  $region27: #{ae_cnn_mnist_forward.19} parent=0 // pred_check_branch
    %764 = sbr.rel (0) target = $region29
  $region28: #{ae_cnn_mnist_forward.19} parent=0 // pred_region
    _
  $region29: #{ae_cnn_mnist_forward.19} parent=0 // pred_fallthru
    _

// kernel: ae_cnn_mnist_forward.21
$region0: #{ae_cnn_mnist_forward.21}
  #allocation0 [shape = 'u32[]', space=smem, size = 0x4, offset = 0x4, fixed_abs, tag = 'smem constant byte address 0x4 - core index']
  #allocation1 [shape = 'u32[72,128]{1,0:T(1,128)}', space=vmem, size = 0x9000, scoped, tag = 'internal scratch']
  %s0 = inlined_call_operand.vmem [shape: bf16[72,216], index: 0, kind: input, shape index: {}]
  %s1 = inlined_call_operand.vmem [shape: bf16[216,128], index: 1, kind: input, shape index: {}]
  %s2 = inlined_call_operand.vmem [shape: f32[1,128], index: 2, kind: input, shape index: {}]
  %s3 = inlined_call_operand.vmem [shape: f32[72,128], index: 3, kind: output, shape index: {}]
  %s4 = sld [smem:[#allocation0]]
  $region22: #{ae_cnn_mnist_forward.21} parent=0
    _
  %s6 = ssub.s32 1, %s4
  %s7 = scalar_select 0, %s6, %s4
  // Predicated region
  $region2: #{ae_cnn_mnist_forward.21} parent=0 // pred_check
    _
  $region3: #{ae_cnn_mnist_forward.21} parent=0 // pred_check_branch
    %9 = sbr.rel (0) target = $region5
  $region4: #{ae_cnn_mnist_forward.21} parent=0 // pred_region
    _
  $region5: #{ae_cnn_mnist_forward.21} parent=0 // pred_fallthru
    _
  // Predicated region
  $region6: #{ae_cnn_mnist_forward.21} parent=0 // pred_check
    _
  $region7: #{ae_cnn_mnist_forward.21} parent=0 // pred_check_branch
    %11 = sbr.rel (0) target = $region9
  $region8: #{ae_cnn_mnist_forward.21} parent=0 // pred_region
    _
  $region9: #{ae_cnn_mnist_forward.21} parent=0 // pred_fallthru
    _
  // Predicated region
  $region10: #{ae_cnn_mnist_forward.21} parent=0 // pred_check
    _
  $region11: #{ae_cnn_mnist_forward.21} parent=0 // pred_check_branch
    %13 = sbr.rel (0) target = $region13
  $region12: #{ae_cnn_mnist_forward.21} parent=0 // pred_region
    _
  $region13: #{ae_cnn_mnist_forward.21} parent=0 // pred_fallthru
    _
  %v15 = vld [vmem:[%s0] sm:$0xff]
  %v16 = vld [vmem:[%s0 + $0x8] sm:$0xff]
  %v17 = vld [vmem:[%s0 + $0x10] sm:$0xff]
  %v18 = vld [vmem:[%s0 + $0x18] sm:$0xff]
  %v19 = vld [vmem:[%s0 + $0x20] sm:$0xff]
  %v20 = vld [vmem:[%s0 + $0x28] sm:$0xff]
  %v21 = vld [vmem:[%s0 + $0x30] sm:$0xff]
  %v22 = vld [vmem:[%s0 + $0x38] sm:$0xff]
  %v23 = vld [vmem:[%s0 + $0x40] sm:$0xff]
  %v24 = vld [vmem:[%s1] sm:$0xf]
  %v25 = vld [vmem:[%s1 + $0x4] sm:$0xf]
  %v26 = vld [vmem:[%s1 + $0x8] sm:$0xf]
  %v27 = vld [vmem:[%s1 + $0xc] sm:$0xf]
  %v28 = vld [vmem:[%s1 + $0x10] sm:$0xf]
  %v29 = vld [vmem:[%s1 + $0x14] sm:$0xf]
  %v30 = vld [vmem:[%s1 + $0x18] sm:$0xf]
  %v31 = vld [vmem:[%s1 + $0x1c] sm:$0xf]
  %v32 = vld [vmem:[%s1 + $0x20] sm:$0xf]
  %v33 = vld [vmem:[%s1 + $0x24] sm:$0xf]
  %v34 = vld [vmem:[%s1 + $0x28] sm:$0xf]
  %v35 = vld [vmem:[%s1 + $0x2c] sm:$0xf]
  %v36 = vld [vmem:[%s1 + $0x30] sm:$0xf]
  %v37 = vld [vmem:[%s1 + $0x34] sm:$0xf]
  %v38 = vld [vmem:[%s1 + $0x38] sm:$0xf]
  %v39 = vld [vmem:[%s1 + $0x3c] sm:$0xf]
  %v40 = vld [vmem:[%s1 + $0x40] sm:$0xf]
  %v41 = vld [vmem:[%s1 + $0x44] sm:$0xf]
  %v42 = vld [vmem:[%s1 + $0x48] sm:$0xf]
  %v43 = vld [vmem:[%s1 + $0x4c] sm:$0xf]
  %v44 = vld [vmem:[%s1 + $0x50] sm:$0xf]
  %v45 = vld [vmem:[%s1 + $0x54] sm:$0xf]
  %v46 = vld [vmem:[%s1 + $0x58] sm:$0xf]
  %v47 = vld [vmem:[%s1 + $0x5c] sm:$0xf]
  %v48 = vld [vmem:[%s1 + $0x60] sm:$0xf]
  %v49 = vld [vmem:[%s1 + $0x64] sm:$0xf]
  %v50 = vld [vmem:[%s1 + $0x68] sm:$0xf]
  %v51 = vld [vmem:[%s2] sm:$0x1]
  %v53 = vperm.slane %v51, 0
  %v64 = vunpack.c.l.b16 %v15
  %v65 = vunpack.c.h.b16 %v15
  %v66 = vunpack.c.l.b16 %v16
  %v67 = vunpack.c.h.b16 %v16
  %v68 = vunpack.c.l.b16 %v17
  %v69 = vunpack.c.h.b16 %v17
  %v70 = vunpack.c.l.b16 %v18
  %v71 = vunpack.c.h.b16 %v18
  %v72 = vunpack.c.l.b16 %v19
  %v73 = vunpack.c.h.b16 %v19
  %v74 = vunpack.c.l.b16 %v20
  %v75 = vunpack.c.h.b16 %v20
  %v76 = vunpack.c.l.b16 %v21
  %v77 = vunpack.c.h.b16 %v21
  %v78 = vunpack.c.l.b16 %v22
  %v79 = vunpack.c.h.b16 %v22
  %v80 = vunpack.c.l.b16 %v23
  %v81 = vunpack.c.h.b16 %v23
  %v82 = vpack.c.b16 %v66, %v64
  %v83 = vpack.c.b16 %v67, %v65
  %v84 = vpack.c.b16 %v70, %v68
  %v85 = vpack.c.b16 %v71, %v69
  %v86 = vpack.c.b16 %v74, %v72
  %v87 = vpack.c.b16 %v75, %v73
  %v88 = vpack.c.b16 %v78, %v76
  %v89 = vpack.c.b16 %v79, %v77
  %v90 = vpack.c.b16 %v80, %v80
  %v91 = vpack.c.b16 %v81, %v81
  %v124 = vunpack.c.l.b16 %v24
  %v125 = vunpack.c.l.b16 %v25
  %v126 = vunpack.c.l.b16 %v26
  %v127 = vunpack.c.l.b16 %v27
  %v128 = vunpack.c.l.b16 %v28
  %v129 = vunpack.c.l.b16 %v29
  %v130 = vunpack.c.l.b16 %v30
  %v131 = vunpack.c.l.b16 %v31
  %v132 = vunpack.c.l.b16 %v32
  %v133 = vunpack.c.l.b16 %v33
  %v134 = vunpack.c.l.b16 %v34
  %v135 = vunpack.c.l.b16 %v35
  %v136 = vunpack.c.l.b16 %v36
  %v137 = vunpack.c.l.b16 %v37
  %v138 = vunpack.c.l.b16 %v38
  %v139 = vunpack.c.l.b16 %v39
  %v140 = vunpack.c.l.b16 %v40
  %v141 = vunpack.c.l.b16 %v41
  %v142 = vunpack.c.l.b16 %v42
  %v143 = vunpack.c.l.b16 %v43
  %v144 = vunpack.c.l.b16 %v44
  %v145 = vunpack.c.l.b16 %v45
  %v146 = vunpack.c.l.b16 %v46
  %v147 = vunpack.c.l.b16 %v47
  %v148 = vunpack.c.l.b16 %v48
  %v149 = vunpack.c.l.b16 %v49
  %v150 = vunpack.c.l.b16 %v50
  %v151 = vpack.c.b16 %v125, %v124
  %v152 = vpack.c.b16 %v127, %v126
  %v153 = vpack.c.b16 %v129, %v128
  %v154 = vpack.c.b16 %v131, %v130
  %v155 = vpack.c.b16 %v133, %v132
  %v156 = vpack.c.b16 %v135, %v134
  %v157 = vpack.c.b16 %v137, %v136
  %v158 = vpack.c.b16 %v139, %v138
  %v159 = vpack.c.b16 %v141, %v140
  %v160 = vpack.c.b16 %v143, %v142
  %v161 = vpack.c.b16 %v145, %v144
  %v162 = vpack.c.b16 %v147, %v146
  %v163 = vpack.c.b16 %v149, %v148
  %v164 = vpack.c.b16 %v150, %v150
  %vm178 = vcmask 719872
  %v180 = vsel %vm178, %v83, 0
  %v183 = vsel %vm178, %v85, 0
  %v186 = vsel %vm178, %v87, 0
  %v189 = vsel %vm178, %v89, 0
  %v192 = vsel %vm178, %v91, 0
  %vm194 = vcmask 1043456
  %v196 = vsel %vm194, %v164, 0
  %198 = vmatpush.bf16.msra.mxu0 %v158
  %199 = vmatpush.bf16.msra.mxu0 %v157
  %200 = vmatpush.bf16.msra.mxu0 %v156
  %201 = vmatpush.bf16.msra.mxu0 %v155
  %202 = vmatpush.bf16.msra.mxu0 %v154
  %203 = vmatpush.bf16.msra.mxu0 %v153
  %204 = vmatpush.bf16.msra.mxu0 %v152
  %205 = vmatpush.bf16.msra.mxu0 %v151
  %206 = vmatmul.bf16.gmra.mxu0 %v82
  %v207 = vpop.f32.mrf.mxu0
  %v208 = vadd.f32 %v53, %v207
  %v209 = vpop.f32.mrf.mxu0
  %v210 = vadd.f32 %v53, %v209
  %211 = vmatmul.bf16.gmra.mxu0 %v84
  %v212 = vpop.f32.mrf.mxu0
  %v213 = vadd.f32 %v53, %v212
  %v214 = vpop.f32.mrf.mxu0
  %v215 = vadd.f32 %v53, %v214
  %216 = vmatmul.bf16.gmra.mxu0 %v86
  %v217 = vpop.f32.mrf.mxu0
  %v218 = vadd.f32 %v53, %v217
  %v219 = vpop.f32.mrf.mxu0
  %v220 = vadd.f32 %v53, %v219
  %221 = vmatmul.bf16.gmra.mxu0 %v88
  %v222 = vpop.f32.mrf.mxu0
  %v223 = vadd.f32 %v53, %v222
  %v224 = vpop.f32.mrf.mxu0
  %v225 = vadd.f32 %v53, %v224
  %226 = vmatmul.bf16.gmra.mxu0 %v90
  %v227 = vpop.f32.mrf.mxu0
  %v228 = vadd.f32 %v53, %v227
  %v229 = vpop.f32.mrf.mxu0
  %230 = vdwg.mxu0
  %231 = vmatpush.bf16.msra.mxu0 0
  %232 = vmatpush.bf16.msra.mxu0 0
  %233 = vmatpush.bf16.msra.mxu0 %v196
  %234 = vmatpush.bf16.msra.mxu0 %v163
  %235 = vmatpush.bf16.msra.mxu0 %v162
  %236 = vmatpush.bf16.msra.mxu0 %v161
  %237 = vmatpush.bf16.msra.mxu0 %v160
  %238 = vmatpush.bf16.msra.mxu0 %v159
  %239 = vmatmul.bf16.gmra.mxu0 %v180
  %v240 = vpop.f32.mrf.mxu0
  %v241 = vadd.f32 %v208, %v240
  %v242 = vpop.f32.mrf.mxu0
  %v243 = vadd.f32 %v210, %v242
  %244 = vmatmul.bf16.gmra.mxu0 %v183
  %v245 = vpop.f32.mrf.mxu0
  %v246 = vadd.f32 %v213, %v245
  %v247 = vpop.f32.mrf.mxu0
  %v248 = vadd.f32 %v215, %v247
  %249 = vmatmul.bf16.gmra.mxu0 %v186
  %v250 = vpop.f32.mrf.mxu0
  %v251 = vadd.f32 %v218, %v250
  %v252 = vpop.f32.mrf.mxu0
  %v253 = vadd.f32 %v220, %v252
  %254 = vmatmul.bf16.gmra.mxu0 %v189
  %v255 = vpop.f32.mrf.mxu0
  %v256 = vadd.f32 %v223, %v255
  %v257 = vpop.f32.mrf.mxu0
  %v258 = vadd.f32 %v225, %v257
  %259 = vmatmul.bf16.gmra.mxu0 %v192
  %v260 = vpop.f32.mrf.mxu0
  %v261 = vadd.f32 %v228, %v260
  %v262 = vpop.f32.mrf.mxu0
  %263 = vdwg.mxu0
  %v264 = vmax.f32 %v241, 0.0
  %v265 = vmax.f32 %v243, 0.0
  %v266 = vmax.f32 %v246, 0.0
  %v267 = vmax.f32 %v248, 0.0
  %v268 = vmax.f32 %v251, 0.0
  %v269 = vmax.f32 %v253, 0.0
  %v270 = vmax.f32 %v256, 0.0
  %v271 = vmax.f32 %v258, 0.0
  %v272 = vmax.f32 %v261, 0.0
  %273 = vst [vmem:[%s3] sm:$0xff] %v264
  %274 = vst [vmem:[%s3 + $0x8] sm:$0xff] %v265
  %275 = vst [vmem:[%s3 + $0x10] sm:$0xff] %v266
  %276 = vst [vmem:[%s3 + $0x18] sm:$0xff] %v267
  %277 = vst [vmem:[%s3 + $0x20] sm:$0xff] %v268
  %278 = vst [vmem:[%s3 + $0x28] sm:$0xff] %v269
  %279 = vst [vmem:[%s3 + $0x30] sm:$0xff] %v270
  %280 = vst [vmem:[%s3 + $0x38] sm:$0xff] %v271
  %281 = vst [vmem:[%s3 + $0x40] sm:$0xff] %v272
  // Predicated region
  $region14: #{ae_cnn_mnist_forward.21} parent=0 // pred_check
    _
  $region15: #{ae_cnn_mnist_forward.21} parent=0 // pred_check_branch
    %283 = sbr.rel (0) target = $region17
  $region16: #{ae_cnn_mnist_forward.21} parent=0 // pred_region
    _
  $region17: #{ae_cnn_mnist_forward.21} parent=0 // pred_fallthru
    _
  // Predicated region
  $region18: #{ae_cnn_mnist_forward.21} parent=0 // pred_check
    _
  $region19: #{ae_cnn_mnist_forward.21} parent=0 // pred_check_branch
    %285 = sbr.rel (0) target = $region21
  $region20: #{ae_cnn_mnist_forward.21} parent=0 // pred_region
    _
  $region21: #{ae_cnn_mnist_forward.21} parent=0 // pred_fallthru
    _

// kernel: ae_cnn_mnist_forward.20
$region0: #{ae_cnn_mnist_forward.20}
  #allocation0 [shape = 'u32[]', space=smem, size = 0x4, offset = 0x4, fixed_abs, tag = 'smem constant byte address 0x4 - core index']
  #allocation1 [shape = 'u32[72,128]{1,0:T(1,128)}', space=vmem, size = 0x9000, scoped, tag = 'internal scratch']
  %s0 = inlined_call_operand.vmem [shape: bf16[72,324], index: 0, kind: input, shape index: {}]
  %s1 = inlined_call_operand.vmem [shape: bf16[324,128], index: 1, kind: input, shape index: {}]
  %s2 = inlined_call_operand.vmem [shape: f32[1,128], index: 2, kind: input, shape index: {}]
  %s3 = inlined_call_operand.vmem [shape: f32[72,128], index: 3, kind: output, shape index: {}]
  %s4 = sld [smem:[#allocation0]]
  $region22: #{ae_cnn_mnist_forward.20} parent=0
    _
  %s6 = ssub.s32 1, %s4
  %s7 = scalar_select 0, %s6, %s4
  // Predicated region
  $region2: #{ae_cnn_mnist_forward.20} parent=0 // pred_check
    _
  $region3: #{ae_cnn_mnist_forward.20} parent=0 // pred_check_branch
    %9 = sbr.rel (0) target = $region5
  $region4: #{ae_cnn_mnist_forward.20} parent=0 // pred_region
    _
  $region5: #{ae_cnn_mnist_forward.20} parent=0 // pred_fallthru
    _
  // Predicated region
  $region6: #{ae_cnn_mnist_forward.20} parent=0 // pred_check
    _
  $region7: #{ae_cnn_mnist_forward.20} parent=0 // pred_check_branch
    %11 = sbr.rel (0) target = $region9
  $region8: #{ae_cnn_mnist_forward.20} parent=0 // pred_region
    _
  $region9: #{ae_cnn_mnist_forward.20} parent=0 // pred_fallthru
    _
  // Predicated region
  $region10: #{ae_cnn_mnist_forward.20} parent=0 // pred_check
    _
  $region11: #{ae_cnn_mnist_forward.20} parent=0 // pred_check_branch
    %13 = sbr.rel (0) target = $region13
  $region12: #{ae_cnn_mnist_forward.20} parent=0 // pred_region
    _
  $region13: #{ae_cnn_mnist_forward.20} parent=0 // pred_fallthru
    _
  %v15 = vld [vmem:[%s0] sm:$0xff]
  %v16 = vld [vmem:[%s0 + $0x8] sm:$0xf]
  %v17 = vld [vmem:[%s0 + $0xc] sm:$0xff]
  %v18 = vld [vmem:[%s0 + $0x14] sm:$0xf]
  %v19 = vld [vmem:[%s0 + $0x18] sm:$0xff]
  %v20 = vld [vmem:[%s0 + $0x20] sm:$0xf]
  %v21 = vld [vmem:[%s0 + $0x24] sm:$0xff]
  %v22 = vld [vmem:[%s0 + $0x2c] sm:$0xf]
  %v23 = vld [vmem:[%s0 + $0x30] sm:$0xff]
  %v24 = vld [vmem:[%s0 + $0x38] sm:$0xf]
  %v25 = vld [vmem:[%s0 + $0x3c] sm:$0xff]
  %v26 = vld [vmem:[%s0 + $0x44] sm:$0xf]
  %v27 = vld [vmem:[%s0 + $0x48] sm:$0xff]
  %v28 = vld [vmem:[%s0 + $0x50] sm:$0xf]
  %v29 = vld [vmem:[%s0 + $0x54] sm:$0xff]
  %v30 = vld [vmem:[%s0 + $0x5c] sm:$0xf]
  %v31 = vld [vmem:[%s0 + $0x60] sm:$0xff]
  %v32 = vld [vmem:[%s0 + $0x68] sm:$0xf]
  %v33 = vld [vmem:[%s1] sm:$0xf]
  %v34 = vld [vmem:[%s1 + $0x4] sm:$0xf]
  %v35 = vld [vmem:[%s1 + $0x8] sm:$0xf]
  %v36 = vld [vmem:[%s1 + $0xc] sm:$0xf]
  %v37 = vld [vmem:[%s1 + $0x10] sm:$0xf]
  %v38 = vld [vmem:[%s1 + $0x14] sm:$0xf]
  %v39 = vld [vmem:[%s1 + $0x18] sm:$0xf]
  %v40 = vld [vmem:[%s1 + $0x1c] sm:$0xf]
  %v41 = vld [vmem:[%s1 + $0x20] sm:$0xf]
  %v42 = vld [vmem:[%s1 + $0x24] sm:$0xf]
  %v43 = vld [vmem:[%s1 + $0x28] sm:$0xf]
  %v44 = vld [vmem:[%s1 + $0x2c] sm:$0xf]
  %v45 = vld [vmem:[%s1 + $0x30] sm:$0xf]
  %v46 = vld [vmem:[%s1 + $0x34] sm:$0xf]
  %v47 = vld [vmem:[%s1 + $0x38] sm:$0xf]
  %v48 = vld [vmem:[%s1 + $0x3c] sm:$0xf]
  %v49 = vld [vmem:[%s1 + $0x40] sm:$0xf]
  %v50 = vld [vmem:[%s1 + $0x44] sm:$0xf]
  %v51 = vld [vmem:[%s1 + $0x48] sm:$0xf]
  %v52 = vld [vmem:[%s1 + $0x4c] sm:$0xf]
  %v53 = vld [vmem:[%s1 + $0x50] sm:$0xf]
  %v54 = vld [vmem:[%s1 + $0x54] sm:$0xf]
  %v55 = vld [vmem:[%s1 + $0x58] sm:$0xf]
  %v56 = vld [vmem:[%s1 + $0x5c] sm:$0xf]
  %v57 = vld [vmem:[%s1 + $0x60] sm:$0xf]
  %v58 = vld [vmem:[%s1 + $0x64] sm:$0xf]
  %v59 = vld [vmem:[%s1 + $0x68] sm:$0xf]
  %v60 = vld [vmem:[%s1 + $0x6c] sm:$0xf]
  %v61 = vld [vmem:[%s1 + $0x70] sm:$0xf]
  %v62 = vld [vmem:[%s1 + $0x74] sm:$0xf]
  %v63 = vld [vmem:[%s1 + $0x78] sm:$0xf]
  %v64 = vld [vmem:[%s1 + $0x7c] sm:$0xf]
  %v65 = vld [vmem:[%s1 + $0x80] sm:$0xf]
  %v66 = vld [vmem:[%s1 + $0x84] sm:$0xf]
  %v67 = vld [vmem:[%s1 + $0x88] sm:$0xf]
  %v68 = vld [vmem:[%s1 + $0x8c] sm:$0xf]
  %v69 = vld [vmem:[%s1 + $0x90] sm:$0xf]
  %v70 = vld [vmem:[%s1 + $0x94] sm:$0xf]
  %v71 = vld [vmem:[%s1 + $0x98] sm:$0xf]
  %v72 = vld [vmem:[%s1 + $0x9c] sm:$0xf]
  %v73 = vld [vmem:[%s1 + $0xa0] sm:$0x3]
  %v74 = vld [vmem:[%s2] sm:$0x1]
  %v76 = vperm.slane %v74, 0
  %v96 = vunpack.c.l.b16 %v15
  %v97 = vunpack.c.h.b16 %v15
  %v98 = vunpack.c.l.b16 %v16
  %v99 = vunpack.c.l.b16 %v17
  %v100 = vunpack.c.h.b16 %v17
  %v101 = vunpack.c.l.b16 %v18
  %v102 = vunpack.c.l.b16 %v19
  %v103 = vunpack.c.h.b16 %v19
  %v104 = vunpack.c.l.b16 %v20
  %v105 = vunpack.c.l.b16 %v21
  %v106 = vunpack.c.h.b16 %v21
  %v107 = vunpack.c.l.b16 %v22
  %v108 = vunpack.c.l.b16 %v23
  %v109 = vunpack.c.h.b16 %v23
  %v110 = vunpack.c.l.b16 %v24
  %v111 = vunpack.c.l.b16 %v25
  %v112 = vunpack.c.h.b16 %v25
  %v113 = vunpack.c.l.b16 %v26
  %v114 = vunpack.c.l.b16 %v27
  %v115 = vunpack.c.h.b16 %v27
  %v116 = vunpack.c.l.b16 %v28
  %v117 = vunpack.c.l.b16 %v29
  %v118 = vunpack.c.h.b16 %v29
  %v119 = vunpack.c.l.b16 %v30
  %v120 = vunpack.c.l.b16 %v31
  %v121 = vunpack.c.h.b16 %v31
  %v122 = vunpack.c.l.b16 %v32
  %v123 = vpack.c.b16 %v99, %v96
  %v124 = vpack.c.b16 %v100, %v97
  %v125 = vpack.c.b16 %v101, %v98
  %v126 = vpack.c.b16 %v105, %v102
  %v127 = vpack.c.b16 %v106, %v103
  %v128 = vpack.c.b16 %v107, %v104
  %v129 = vpack.c.b16 %v111, %v108
  %v130 = vpack.c.b16 %v112, %v109
  %v131 = vpack.c.b16 %v113, %v110
  %v132 = vpack.c.b16 %v117, %v114
  %v133 = vpack.c.b16 %v118, %v115
  %v134 = vpack.c.b16 %v119, %v116
  %v135 = vpack.c.b16 %v120, %v120
  %v136 = vpack.c.b16 %v121, %v121
  %v137 = vpack.c.b16 %v122, %v122
  %v189 = vunpack.c.l.b16 %v33
  %v190 = vunpack.c.l.b16 %v34
  %v191 = vunpack.c.l.b16 %v35
  %v192 = vunpack.c.l.b16 %v36
  %v193 = vunpack.c.l.b16 %v37
  %v194 = vunpack.c.l.b16 %v38
  %v195 = vunpack.c.l.b16 %v39
  %v196 = vunpack.c.l.b16 %v40
  %v197 = vunpack.c.l.b16 %v41
  %v198 = vunpack.c.l.b16 %v42
  %v199 = vunpack.c.l.b16 %v43
  %v200 = vunpack.c.l.b16 %v44
  %v201 = vunpack.c.l.b16 %v45
  %v202 = vunpack.c.l.b16 %v46
  %v203 = vunpack.c.l.b16 %v47
  %v204 = vunpack.c.l.b16 %v48
  %v205 = vunpack.c.l.b16 %v49
  %v206 = vunpack.c.l.b16 %v50
  %v207 = vunpack.c.l.b16 %v51
  %v208 = vunpack.c.l.b16 %v52
  %v209 = vunpack.c.l.b16 %v53
  %v210 = vunpack.c.l.b16 %v54
  %v211 = vunpack.c.l.b16 %v55
  %v212 = vunpack.c.l.b16 %v56
  %v213 = vunpack.c.l.b16 %v57
  %v214 = vunpack.c.l.b16 %v58
  %v215 = vunpack.c.l.b16 %v59
  %v216 = vunpack.c.l.b16 %v60
  %v217 = vunpack.c.l.b16 %v61
  %v218 = vunpack.c.l.b16 %v62
  %v219 = vunpack.c.l.b16 %v63
  %v220 = vunpack.c.l.b16 %v64
  %v221 = vunpack.c.l.b16 %v65
  %v222 = vunpack.c.l.b16 %v66
  %v223 = vunpack.c.l.b16 %v67
  %v224 = vunpack.c.l.b16 %v68
  %v225 = vunpack.c.l.b16 %v69
  %v226 = vunpack.c.l.b16 %v70
  %v227 = vunpack.c.l.b16 %v71
  %v228 = vunpack.c.l.b16 %v72
  %v229 = vunpack.c.l.b16 %v73
  %v230 = vpack.c.b16 %v190, %v189
  %v231 = vpack.c.b16 %v192, %v191
  %v232 = vpack.c.b16 %v194, %v193
  %v233 = vpack.c.b16 %v196, %v195
  %v234 = vpack.c.b16 %v198, %v197
  %v235 = vpack.c.b16 %v200, %v199
  %v236 = vpack.c.b16 %v202, %v201
  %v237 = vpack.c.b16 %v204, %v203
  %v238 = vpack.c.b16 %v206, %v205
  %v239 = vpack.c.b16 %v208, %v207
  %v240 = vpack.c.b16 %v210, %v209
  %v241 = vpack.c.b16 %v212, %v211
  %v242 = vpack.c.b16 %v214, %v213
  %v243 = vpack.c.b16 %v216, %v215
  %v244 = vpack.c.b16 %v218, %v217
  %v245 = vpack.c.b16 %v220, %v219
  %v246 = vpack.c.b16 %v222, %v221
  %v247 = vpack.c.b16 %v224, %v223
  %v248 = vpack.c.b16 %v226, %v225
  %v249 = vpack.c.b16 %v228, %v227
  %v250 = vpack.c.b16 %v229, %v229
  %vm271 = vcmask 556032
  %v273 = vsel %vm271, %v125, 0
  %v276 = vsel %vm271, %v128, 0
  %v279 = vsel %vm271, %v131, 0
  %v282 = vsel %vm271, %v134, 0
  %v285 = vsel %vm271, %v137, 0
  %vm287 = vcmask 1041408
  %v289 = vsel %vm287, %v250, 0
  %291 = vmatpush.bf16.msra.mxu0 %v237
  %292 = vmatpush.bf16.msra.mxu0 %v236
  %293 = vmatpush.bf16.msra.mxu0 %v235
  %294 = vmatpush.bf16.msra.mxu0 %v234
  %295 = vmatpush.bf16.msra.mxu0 %v233
  %296 = vmatpush.bf16.msra.mxu0 %v232
  %297 = vmatpush.bf16.msra.mxu0 %v231
  %298 = vmatpush.bf16.msra.mxu0 %v230
  %299 = vmatmul.bf16.gmra.mxu0 %v123
  %v300 = vpop.f32.mrf.mxu0
  %v301 = vadd.f32 %v76, %v300
  %v302 = vpop.f32.mrf.mxu0
  %v303 = vadd.f32 %v76, %v302
  %304 = vmatmul.bf16.gmra.mxu0 %v126
  %v305 = vpop.f32.mrf.mxu0
  %v306 = vadd.f32 %v76, %v305
  %v307 = vpop.f32.mrf.mxu0
  %v308 = vadd.f32 %v76, %v307
  %309 = vmatmul.bf16.gmra.mxu0 %v129
  %v310 = vpop.f32.mrf.mxu0
  %v311 = vadd.f32 %v76, %v310
  %v312 = vpop.f32.mrf.mxu0
  %v313 = vadd.f32 %v76, %v312
  %314 = vmatmul.bf16.gmra.mxu0 %v132
  %v315 = vpop.f32.mrf.mxu0
  %v316 = vadd.f32 %v76, %v315
  %v317 = vpop.f32.mrf.mxu0
  %v318 = vadd.f32 %v76, %v317
  %319 = vmatmul.bf16.gmra.mxu0 %v135
  %v320 = vpop.f32.mrf.mxu0
  %v321 = vadd.f32 %v76, %v320
  %v322 = vpop.f32.mrf.mxu0
  %323 = vdwg.mxu0
  %324 = vmatpush.bf16.msra.mxu0 %v245
  %325 = vmatpush.bf16.msra.mxu0 %v244
  %326 = vmatpush.bf16.msra.mxu0 %v243
  %327 = vmatpush.bf16.msra.mxu0 %v242
  %328 = vmatpush.bf16.msra.mxu0 %v241
  %329 = vmatpush.bf16.msra.mxu0 %v240
  %330 = vmatpush.bf16.msra.mxu0 %v239
  %331 = vmatpush.bf16.msra.mxu0 %v238
  %332 = vmatmul.bf16.gmra.mxu0 %v124
  %v333 = vpop.f32.mrf.mxu0
  %v334 = vadd.f32 %v301, %v333
  %v335 = vpop.f32.mrf.mxu0
  %v336 = vadd.f32 %v303, %v335
  %337 = vmatmul.bf16.gmra.mxu0 %v127
  %v338 = vpop.f32.mrf.mxu0
  %v339 = vadd.f32 %v306, %v338
  %v340 = vpop.f32.mrf.mxu0
  %v341 = vadd.f32 %v308, %v340
  %342 = vmatmul.bf16.gmra.mxu0 %v130
  %v343 = vpop.f32.mrf.mxu0
  %v344 = vadd.f32 %v311, %v343
  %v345 = vpop.f32.mrf.mxu0
  %v346 = vadd.f32 %v313, %v345
  %347 = vmatmul.bf16.gmra.mxu0 %v133
  %v348 = vpop.f32.mrf.mxu0
  %v349 = vadd.f32 %v316, %v348
  %v350 = vpop.f32.mrf.mxu0
  %v351 = vadd.f32 %v318, %v350
  %352 = vmatmul.bf16.gmra.mxu0 %v136
  %v353 = vpop.f32.mrf.mxu0
  %v354 = vadd.f32 %v321, %v353
  %v355 = vpop.f32.mrf.mxu0
  %356 = vdwg.mxu0
  %357 = vmatpush.bf16.msra.mxu0 0
  %358 = vmatpush.bf16.msra.mxu0 0
  %359 = vmatpush.bf16.msra.mxu0 0
  %360 = vmatpush.bf16.msra.mxu0 %v289
  %361 = vmatpush.bf16.msra.mxu0 %v249
  %362 = vmatpush.bf16.msra.mxu0 %v248
  %363 = vmatpush.bf16.msra.mxu0 %v247
  %364 = vmatpush.bf16.msra.mxu0 %v246
  %365 = vmatmul.bf16.gmra.mxu0 %v273
  %v366 = vpop.f32.mrf.mxu0
  %v367 = vadd.f32 %v334, %v366
  %v368 = vpop.f32.mrf.mxu0
  %v369 = vadd.f32 %v336, %v368
  %370 = vmatmul.bf16.gmra.mxu0 %v276
  %v371 = vpop.f32.mrf.mxu0
  %v372 = vadd.f32 %v339, %v371
  %v373 = vpop.f32.mrf.mxu0
  %v374 = vadd.f32 %v341, %v373
  %375 = vmatmul.bf16.gmra.mxu0 %v279
  %v376 = vpop.f32.mrf.mxu0
  %v377 = vadd.f32 %v344, %v376
  %v378 = vpop.f32.mrf.mxu0
  %v379 = vadd.f32 %v346, %v378
  %380 = vmatmul.bf16.gmra.mxu0 %v282
  %v381 = vpop.f32.mrf.mxu0
  %v382 = vadd.f32 %v349, %v381
  %v383 = vpop.f32.mrf.mxu0
  %v384 = vadd.f32 %v351, %v383
  %385 = vmatmul.bf16.gmra.mxu0 %v285
  %v386 = vpop.f32.mrf.mxu0
  %v387 = vadd.f32 %v354, %v386
  %v388 = vpop.f32.mrf.mxu0
  %389 = vdwg.mxu0
  %v390 = vmax.f32 %v367, 0.0
  %v391 = vmax.f32 %v369, 0.0
  %v392 = vmax.f32 %v372, 0.0
  %v393 = vmax.f32 %v374, 0.0
  %v394 = vmax.f32 %v377, 0.0
  %v395 = vmax.f32 %v379, 0.0
  %v396 = vmax.f32 %v382, 0.0
  %v397 = vmax.f32 %v384, 0.0
  %v398 = vmax.f32 %v387, 0.0
  %399 = vst [vmem:[%s3] sm:$0xff] %v390
  %400 = vst [vmem:[%s3 + $0x8] sm:$0xff] %v391
  %401 = vst [vmem:[%s3 + $0x10] sm:$0xff] %v392
  %402 = vst [vmem:[%s3 + $0x18] sm:$0xff] %v393
  %403 = vst [vmem:[%s3 + $0x20] sm:$0xff] %v394
  %404 = vst [vmem:[%s3 + $0x28] sm:$0xff] %v395
  %405 = vst [vmem:[%s3 + $0x30] sm:$0xff] %v396
  %406 = vst [vmem:[%s3 + $0x38] sm:$0xff] %v397
  %407 = vst [vmem:[%s3 + $0x40] sm:$0xff] %v398
  // Predicated region
  $region14: #{ae_cnn_mnist_forward.20} parent=0 // pred_check
    _
  $region15: #{ae_cnn_mnist_forward.20} parent=0 // pred_check_branch
    %409 = sbr.rel (0) target = $region17
  $region16: #{ae_cnn_mnist_forward.20} parent=0 // pred_region
    _
  $region17: #{ae_cnn_mnist_forward.20} parent=0 // pred_fallthru
    _
  // Predicated region
  $region18: #{ae_cnn_mnist_forward.20} parent=0 // pred_check
    _
  $region19: #{ae_cnn_mnist_forward.20} parent=0 // pred_check_branch
    %411 = sbr.rel (0) target = $region21
  $region20: #{ae_cnn_mnist_forward.20} parent=0 // pred_region
    _
  $region21: #{ae_cnn_mnist_forward.20} parent=0 // pred_fallthru
    _

// kernel: ae_cnn_mnist_forward.23
$region0: #{ae_cnn_mnist_forward.23}
  #allocation0 [shape = 'u32[]', space=smem, size = 0x4, offset = 0x4, fixed_abs, tag = 'smem constant byte address 0x4 - core index']
  #allocation1 [shape = 'u32[72,128]{1,0:T(1,128)}', space=vmem, size = 0x9000, scoped, tag = 'internal scratch']
  %s0 = inlined_call_operand.vmem [shape: bf16[72,144], index: 0, kind: input, shape index: {}]
  %s1 = inlined_call_operand.vmem [shape: bf16[144,128], index: 1, kind: input, shape index: {}]
  %s2 = inlined_call_operand.vmem [shape: f32[1,128], index: 2, kind: input, shape index: {}]
  %s3 = inlined_call_operand.vmem [shape: f32[72,128], index: 3, kind: output, shape index: {}]
  %s4 = sld [smem:[#allocation0]]
  $region22: #{ae_cnn_mnist_forward.23} parent=0
    _
  %s6 = ssub.s32 1, %s4
  %s7 = scalar_select 0, %s6, %s4
  // Predicated region
  $region2: #{ae_cnn_mnist_forward.23} parent=0 // pred_check
    _
  $region3: #{ae_cnn_mnist_forward.23} parent=0 // pred_check_branch
    %9 = sbr.rel (0) target = $region5
  $region4: #{ae_cnn_mnist_forward.23} parent=0 // pred_region
    _
  $region5: #{ae_cnn_mnist_forward.23} parent=0 // pred_fallthru
    _
  // Predicated region
  $region6: #{ae_cnn_mnist_forward.23} parent=0 // pred_check
    _
  $region7: #{ae_cnn_mnist_forward.23} parent=0 // pred_check_branch
    %11 = sbr.rel (0) target = $region9
  $region8: #{ae_cnn_mnist_forward.23} parent=0 // pred_region
    _
  $region9: #{ae_cnn_mnist_forward.23} parent=0 // pred_fallthru
    _
  // Predicated region
  $region10: #{ae_cnn_mnist_forward.23} parent=0 // pred_check
    _
  $region11: #{ae_cnn_mnist_forward.23} parent=0 // pred_check_branch
    %13 = sbr.rel (0) target = $region13
  $region12: #{ae_cnn_mnist_forward.23} parent=0 // pred_region
    _
  $region13: #{ae_cnn_mnist_forward.23} parent=0 // pred_fallthru
    _
  %v15 = vld [vmem:[%s0] sm:$0xff]
  %v16 = vld [vmem:[%s0 + $0x8] sm:$0xff]
  %v17 = vld [vmem:[%s0 + $0x10] sm:$0xff]
  %v18 = vld [vmem:[%s0 + $0x18] sm:$0xff]
  %v19 = vld [vmem:[%s0 + $0x20] sm:$0xff]
  %v20 = vld [vmem:[%s0 + $0x28] sm:$0xff]
  %v21 = vld [vmem:[%s0 + $0x30] sm:$0xff]
  %v22 = vld [vmem:[%s0 + $0x38] sm:$0xff]
  %v23 = vld [vmem:[%s0 + $0x40] sm:$0xff]
  %v24 = vld [vmem:[%s1] sm:$0xf]
  %v25 = vld [vmem:[%s1 + $0x4] sm:$0xf]
  %v26 = vld [vmem:[%s1 + $0x8] sm:$0xf]
  %v27 = vld [vmem:[%s1 + $0xc] sm:$0xf]
  %v28 = vld [vmem:[%s1 + $0x10] sm:$0xf]
  %v29 = vld [vmem:[%s1 + $0x14] sm:$0xf]
  %v30 = vld [vmem:[%s1 + $0x18] sm:$0xf]
  %v31 = vld [vmem:[%s1 + $0x1c] sm:$0xf]
  %v32 = vld [vmem:[%s1 + $0x20] sm:$0xf]
  %v33 = vld [vmem:[%s1 + $0x24] sm:$0xf]
  %v34 = vld [vmem:[%s1 + $0x28] sm:$0xf]
  %v35 = vld [vmem:[%s1 + $0x2c] sm:$0xf]
  %v36 = vld [vmem:[%s1 + $0x30] sm:$0xf]
  %v37 = vld [vmem:[%s1 + $0x34] sm:$0xf]
  %v38 = vld [vmem:[%s1 + $0x38] sm:$0xf]
  %v39 = vld [vmem:[%s1 + $0x3c] sm:$0xf]
  %v40 = vld [vmem:[%s1 + $0x40] sm:$0xf]
  %v41 = vld [vmem:[%s1 + $0x44] sm:$0xf]
  %v42 = vld [vmem:[%s2] sm:$0x1]
  %v44 = vperm.slane %v42, 0
  %v55 = vunpack.c.l.b16 %v15
  %v56 = vunpack.c.h.b16 %v15
  %v57 = vunpack.c.l.b16 %v16
  %v58 = vunpack.c.h.b16 %v16
  %v59 = vunpack.c.l.b16 %v17
  %v60 = vunpack.c.h.b16 %v17
  %v61 = vunpack.c.l.b16 %v18
  %v62 = vunpack.c.h.b16 %v18
  %v63 = vunpack.c.l.b16 %v19
  %v64 = vunpack.c.h.b16 %v19
  %v65 = vunpack.c.l.b16 %v20
  %v66 = vunpack.c.h.b16 %v20
  %v67 = vunpack.c.l.b16 %v21
  %v68 = vunpack.c.h.b16 %v21
  %v69 = vunpack.c.l.b16 %v22
  %v70 = vunpack.c.h.b16 %v22
  %v71 = vunpack.c.l.b16 %v23
  %v72 = vunpack.c.h.b16 %v23
  %v73 = vpack.c.b16 %v57, %v55
  %v74 = vpack.c.b16 %v58, %v56
  %v75 = vpack.c.b16 %v61, %v59
  %v76 = vpack.c.b16 %v62, %v60
  %v77 = vpack.c.b16 %v65, %v63
  %v78 = vpack.c.b16 %v66, %v64
  %v79 = vpack.c.b16 %v69, %v67
  %v80 = vpack.c.b16 %v70, %v68
  %v81 = vpack.c.b16 %v71, %v71
  %v82 = vpack.c.b16 %v72, %v72
  %v106 = vunpack.c.l.b16 %v24
  %v107 = vunpack.c.l.b16 %v25
  %v108 = vunpack.c.l.b16 %v26
  %v109 = vunpack.c.l.b16 %v27
  %v110 = vunpack.c.l.b16 %v28
  %v111 = vunpack.c.l.b16 %v29
  %v112 = vunpack.c.l.b16 %v30
  %v113 = vunpack.c.l.b16 %v31
  %v114 = vunpack.c.l.b16 %v32
  %v115 = vunpack.c.l.b16 %v33
  %v116 = vunpack.c.l.b16 %v34
  %v117 = vunpack.c.l.b16 %v35
  %v118 = vunpack.c.l.b16 %v36
  %v119 = vunpack.c.l.b16 %v37
  %v120 = vunpack.c.l.b16 %v38
  %v121 = vunpack.c.l.b16 %v39
  %v122 = vunpack.c.l.b16 %v40
  %v123 = vunpack.c.l.b16 %v41
  %v124 = vpack.c.b16 %v107, %v106
  %v125 = vpack.c.b16 %v109, %v108
  %v126 = vpack.c.b16 %v111, %v110
  %v127 = vpack.c.b16 %v113, %v112
  %v128 = vpack.c.b16 %v115, %v114
  %v129 = vpack.c.b16 %v117, %v116
  %v130 = vpack.c.b16 %v119, %v118
  %v131 = vpack.c.b16 %v121, %v120
  %v132 = vpack.c.b16 %v123, %v122
  %vm142 = vcmask 130048
  %v144 = vsel %vm142, %v74, 0
  %v147 = vsel %vm142, %v76, 0
  %v150 = vsel %vm142, %v78, 0
  %v153 = vsel %vm142, %v80, 0
  %v156 = vsel %vm142, %v82, 0
  %158 = vmatpush.bf16.msra.mxu0 %v131
  %159 = vmatpush.bf16.msra.mxu0 %v130
  %160 = vmatpush.bf16.msra.mxu0 %v129
  %161 = vmatpush.bf16.msra.mxu0 %v128
  %162 = vmatpush.bf16.msra.mxu0 %v127
  %163 = vmatpush.bf16.msra.mxu0 %v126
  %164 = vmatpush.bf16.msra.mxu0 %v125
  %165 = vmatpush.bf16.msra.mxu0 %v124
  %166 = vmatmul.bf16.gmra.mxu0 %v73
  %v167 = vpop.f32.mrf.mxu0
  %v168 = vadd.f32 %v44, %v167
  %v169 = vpop.f32.mrf.mxu0
  %v170 = vadd.f32 %v44, %v169
  %171 = vmatmul.bf16.gmra.mxu0 %v75
  %v172 = vpop.f32.mrf.mxu0
  %v173 = vadd.f32 %v44, %v172
  %v174 = vpop.f32.mrf.mxu0
  %v175 = vadd.f32 %v44, %v174
  %176 = vmatmul.bf16.gmra.mxu0 %v77
  %v177 = vpop.f32.mrf.mxu0
  %v178 = vadd.f32 %v44, %v177
  %v179 = vpop.f32.mrf.mxu0
  %v180 = vadd.f32 %v44, %v179
  %181 = vmatmul.bf16.gmra.mxu0 %v79
  %v182 = vpop.f32.mrf.mxu0
  %v183 = vadd.f32 %v44, %v182
  %v184 = vpop.f32.mrf.mxu0
  %v185 = vadd.f32 %v44, %v184
  %186 = vmatmul.bf16.gmra.mxu0 %v81
  %v187 = vpop.f32.mrf.mxu0
  %v188 = vadd.f32 %v44, %v187
  %v189 = vpop.f32.mrf.mxu0
  %190 = vdwg.mxu0
  %191 = vmatpush.bf16.msra.mxu0 0
  %192 = vmatpush.bf16.msra.mxu0 0
  %193 = vmatpush.bf16.msra.mxu0 0
  %194 = vmatpush.bf16.msra.mxu0 0
  %195 = vmatpush.bf16.msra.mxu0 0
  %196 = vmatpush.bf16.msra.mxu0 0
  %197 = vmatpush.bf16.msra.mxu0 0
  %198 = vmatpush.bf16.msra.mxu0 %v132
  %199 = vmatmul.bf16.gmra.mxu0 %v144
  %v200 = vpop.f32.mrf.mxu0
  %v201 = vadd.f32 %v168, %v200
  %v202 = vpop.f32.mrf.mxu0
  %v203 = vadd.f32 %v170, %v202
  %204 = vmatmul.bf16.gmra.mxu0 %v147
  %v205 = vpop.f32.mrf.mxu0
  %v206 = vadd.f32 %v173, %v205
  %v207 = vpop.f32.mrf.mxu0
  %v208 = vadd.f32 %v175, %v207
  %209 = vmatmul.bf16.gmra.mxu0 %v150
  %v210 = vpop.f32.mrf.mxu0
  %v211 = vadd.f32 %v178, %v210
  %v212 = vpop.f32.mrf.mxu0
  %v213 = vadd.f32 %v180, %v212
  %214 = vmatmul.bf16.gmra.mxu0 %v153
  %v215 = vpop.f32.mrf.mxu0
  %v216 = vadd.f32 %v183, %v215
  %v217 = vpop.f32.mrf.mxu0
  %v218 = vadd.f32 %v185, %v217
  %219 = vmatmul.bf16.gmra.mxu0 %v156
  %v220 = vpop.f32.mrf.mxu0
  %v221 = vadd.f32 %v188, %v220
  %v222 = vpop.f32.mrf.mxu0
  %223 = vdwg.mxu0
  %v224 = vmax.f32 %v201, 0.0
  %v225 = vmax.f32 %v203, 0.0
  %v226 = vmax.f32 %v206, 0.0
  %v227 = vmax.f32 %v208, 0.0
  %v228 = vmax.f32 %v211, 0.0
  %v229 = vmax.f32 %v213, 0.0
  %v230 = vmax.f32 %v216, 0.0
  %v231 = vmax.f32 %v218, 0.0
  %v232 = vmax.f32 %v221, 0.0
  %233 = vst [vmem:[%s3] sm:$0xff] %v224
  %234 = vst [vmem:[%s3 + $0x8] sm:$0xff] %v225
  %235 = vst [vmem:[%s3 + $0x10] sm:$0xff] %v226
  %236 = vst [vmem:[%s3 + $0x18] sm:$0xff] %v227
  %237 = vst [vmem:[%s3 + $0x20] sm:$0xff] %v228
  %238 = vst [vmem:[%s3 + $0x28] sm:$0xff] %v229
  %239 = vst [vmem:[%s3 + $0x30] sm:$0xff] %v230
  %240 = vst [vmem:[%s3 + $0x38] sm:$0xff] %v231
  %241 = vst [vmem:[%s3 + $0x40] sm:$0xff] %v232
  // Predicated region
  $region14: #{ae_cnn_mnist_forward.23} parent=0 // pred_check
    _
  $region15: #{ae_cnn_mnist_forward.23} parent=0 // pred_check_branch
    %243 = sbr.rel (0) target = $region17
  $region16: #{ae_cnn_mnist_forward.23} parent=0 // pred_region
    _
  $region17: #{ae_cnn_mnist_forward.23} parent=0 // pred_fallthru
    _
  // Predicated region
  $region18: #{ae_cnn_mnist_forward.23} parent=0 // pred_check
    _
  $region19: #{ae_cnn_mnist_forward.23} parent=0 // pred_check_branch
    %245 = sbr.rel (0) target = $region21
  $region20: #{ae_cnn_mnist_forward.23} parent=0 // pred_region
    _
  $region21: #{ae_cnn_mnist_forward.23} parent=0 // pred_fallthru
    _

// kernel: ae_cnn_mnist_forward.24
$region0: #{ae_cnn_mnist_forward.24}
  #allocation0 [shape = 'u32[]', space=smem, size = 0x4, offset = 0x4, fixed_abs, tag = 'smem constant byte address 0x4 - core index']
  #allocation1 [shape = 'u32[72,128]{1,0:T(1,128)}', space=vmem, size = 0x9000, scoped, tag = 'internal scratch']
  %s0 = inlined_call_operand.vmem [shape: bf16[392,234], index: 0, kind: input, shape index: {}]
  %s1 = inlined_call_operand.vmem [shape: bf16[234,128], index: 1, kind: input, shape index: {}]
  %s2 = inlined_call_operand.vmem [shape: f32[1,128], index: 2, kind: input, shape index: {}]
  %s3 = inlined_call_operand.vmem [shape: f32[392,128], index: 3, kind: output, shape index: {}]
  %s4 = sld [smem:[#allocation0]]
  $region22: #{ae_cnn_mnist_forward.24} parent=0
    _
  %s6 = ssub.s32 1, %s4
  %s7 = scalar_select 0, %s6, %s4
  // Predicated region
  $region2: #{ae_cnn_mnist_forward.24} parent=0 // pred_check
    _
  $region3: #{ae_cnn_mnist_forward.24} parent=0 // pred_check_branch
    %9 = sbr.rel (0) target = $region5
  $region4: #{ae_cnn_mnist_forward.24} parent=0 // pred_region
    _
  $region5: #{ae_cnn_mnist_forward.24} parent=0 // pred_fallthru
    _
  // Predicated region
  $region6: #{ae_cnn_mnist_forward.24} parent=0 // pred_check
    _
  $region7: #{ae_cnn_mnist_forward.24} parent=0 // pred_check_branch
    %11 = sbr.rel (0) target = $region9
  $region8: #{ae_cnn_mnist_forward.24} parent=0 // pred_region
    _
  $region9: #{ae_cnn_mnist_forward.24} parent=0 // pred_fallthru
    _
  // Predicated region
  $region10: #{ae_cnn_mnist_forward.24} parent=0 // pred_check
    _
  $region11: #{ae_cnn_mnist_forward.24} parent=0 // pred_check_branch
    %13 = sbr.rel (0) target = $region13
  $region12: #{ae_cnn_mnist_forward.24} parent=0 // pred_region
    _
  $region13: #{ae_cnn_mnist_forward.24} parent=0 // pred_fallthru
    _
  %v15 = vld [vmem:[%s0] sm:$0xff]
  %v16 = vld [vmem:[%s0 + $0x8] sm:$0xff]
  %v17 = vld [vmem:[%s0 + $0x10] sm:$0xff]
  %v18 = vld [vmem:[%s0 + $0x18] sm:$0xff]
  %v19 = vld [vmem:[%s0 + $0x20] sm:$0xff]
  %v20 = vld [vmem:[%s0 + $0x28] sm:$0xff]
  %v21 = vld [vmem:[%s0 + $0x30] sm:$0xff]
  %v22 = vld [vmem:[%s0 + $0x38] sm:$0xff]
  %v23 = vld [vmem:[%s0 + $0x40] sm:$0xff]
  %v24 = vld [vmem:[%s0 + $0x48] sm:$0xff]
  %v25 = vld [vmem:[%s0 + $0x50] sm:$0xff]
  %v26 = vld [vmem:[%s0 + $0x58] sm:$0xff]
  %v27 = vld [vmem:[%s0 + $0x60] sm:$0xff]
  %v28 = vld [vmem:[%s0 + $0x68] sm:$0xff]
  %v29 = vld [vmem:[%s0 + $0x70] sm:$0xff]
  %v30 = vld [vmem:[%s0 + $0x78] sm:$0xff]
  %v31 = vld [vmem:[%s0 + $0x80] sm:$0xff]
  %v32 = vld [vmem:[%s0 + $0x88] sm:$0xff]
  %v33 = vld [vmem:[%s0 + $0x90] sm:$0xff]
  %v34 = vld [vmem:[%s0 + $0x98] sm:$0xff]
  %v35 = vld [vmem:[%s0 + $0xa0] sm:$0xff]
  %v36 = vld [vmem:[%s0 + $0xa8] sm:$0xff]
  %v37 = vld [vmem:[%s0 + $0xb0] sm:$0xff]
  %v38 = vld [vmem:[%s0 + $0xb8] sm:$0xff]
  %v39 = vld [vmem:[%s0 + $0xc0] sm:$0xff]
  %v40 = vld [vmem:[%s0 + $0xc8] sm:$0xff]
  %v41 = vld [vmem:[%s0 + $0xd0] sm:$0xff]
  %v42 = vld [vmem:[%s0 + $0xd8] sm:$0xff]
  %v43 = vld [vmem:[%s0 + $0xe0] sm:$0xff]
  %v44 = vld [vmem:[%s0 + $0xe8] sm:$0xff]
  %v45 = vld [vmem:[%s0 + $0xf0] sm:$0xff]
  %v46 = vld [vmem:[%s0 + $0xf8] sm:$0xff]
  %v47 = vld [vmem:[%s0 + $0x100] sm:$0xff]
  %v48 = vld [vmem:[%s0 + $0x108] sm:$0xff]
  %v49 = vld [vmem:[%s0 + $0x110] sm:$0xff]
  %v50 = vld [vmem:[%s0 + $0x118] sm:$0xff]
  %v51 = vld [vmem:[%s0 + $0x120] sm:$0xff]
  %v52 = vld [vmem:[%s0 + $0x128] sm:$0xff]
  %v53 = vld [vmem:[%s0 + $0x130] sm:$0xff]
  %v54 = vld [vmem:[%s0 + $0x138] sm:$0xff]
  %v55 = vld [vmem:[%s0 + $0x140] sm:$0xff]
  %v56 = vld [vmem:[%s0 + $0x148] sm:$0xff]
  %v57 = vld [vmem:[%s0 + $0x150] sm:$0xff]
  %v58 = vld [vmem:[%s0 + $0x158] sm:$0xff]
  %v59 = vld [vmem:[%s0 + $0x160] sm:$0xff]
  %v60 = vld [vmem:[%s0 + $0x168] sm:$0xff]
  %v61 = vld [vmem:[%s0 + $0x170] sm:$0xff]
  %v62 = vld [vmem:[%s0 + $0x178] sm:$0xff]
  %v63 = vld [vmem:[%s0 + $0x180] sm:$0xff]
  %v64 = vld [vmem:[%s1] sm:$0xf]
  %v65 = vld [vmem:[%s1 + $0x4] sm:$0xf]
  %v66 = vld [vmem:[%s1 + $0x8] sm:$0xf]
  %v67 = vld [vmem:[%s1 + $0xc] sm:$0xf]
  %v68 = vld [vmem:[%s1 + $0x10] sm:$0xf]
  %v69 = vld [vmem:[%s1 + $0x14] sm:$0xf]
  %v70 = vld [vmem:[%s1 + $0x18] sm:$0xf]
  %v71 = vld [vmem:[%s1 + $0x1c] sm:$0xf]
  %v72 = vld [vmem:[%s1 + $0x20] sm:$0xf]
  %v73 = vld [vmem:[%s1 + $0x24] sm:$0xf]
  %v74 = vld [vmem:[%s1 + $0x28] sm:$0xf]
  %v75 = vld [vmem:[%s1 + $0x2c] sm:$0xf]
  %v76 = vld [vmem:[%s1 + $0x30] sm:$0xf]
  %v77 = vld [vmem:[%s1 + $0x34] sm:$0xf]
  %v78 = vld [vmem:[%s1 + $0x38] sm:$0xf]
  %v79 = vld [vmem:[%s1 + $0x3c] sm:$0xf]
  %v80 = vld [vmem:[%s1 + $0x40] sm:$0xf]
  %v81 = vld [vmem:[%s1 + $0x44] sm:$0xf]
  %v82 = vld [vmem:[%s1 + $0x48] sm:$0xf]
  %v83 = vld [vmem:[%s1 + $0x4c] sm:$0xf]
  %v84 = vld [vmem:[%s1 + $0x50] sm:$0xf]
  %v85 = vld [vmem:[%s1 + $0x54] sm:$0xf]
  %v86 = vld [vmem:[%s1 + $0x58] sm:$0xf]
  %v87 = vld [vmem:[%s1 + $0x5c] sm:$0xf]
  %v88 = vld [vmem:[%s1 + $0x60] sm:$0xf]
  %v89 = vld [vmem:[%s1 + $0x64] sm:$0xf]
  %v90 = vld [vmem:[%s1 + $0x68] sm:$0xf]
  %v91 = vld [vmem:[%s1 + $0x6c] sm:$0xf]
  %v92 = vld [vmem:[%s1 + $0x70] sm:$0xf]
  %v93 = vld [vmem:[%s1 + $0x74] sm:$0x1]
  %v94 = vld [vmem:[%s2] sm:$0x1]
  %v96 = vperm.slane %v94, 0
  %v147 = vunpack.c.l.b16 %v15
  %v148 = vunpack.c.h.b16 %v15
  %v149 = vunpack.c.l.b16 %v16
  %v150 = vunpack.c.h.b16 %v16
  %v151 = vunpack.c.l.b16 %v17
  %v152 = vunpack.c.h.b16 %v17
  %v153 = vunpack.c.l.b16 %v18
  %v154 = vunpack.c.h.b16 %v18
  %v155 = vunpack.c.l.b16 %v19
  %v156 = vunpack.c.h.b16 %v19
  %v157 = vunpack.c.l.b16 %v20
  %v158 = vunpack.c.h.b16 %v20
  %v159 = vunpack.c.l.b16 %v21
  %v160 = vunpack.c.h.b16 %v21
  %v161 = vunpack.c.l.b16 %v22
  %v162 = vunpack.c.h.b16 %v22
  %v163 = vunpack.c.l.b16 %v23
  %v164 = vunpack.c.h.b16 %v23
  %v165 = vunpack.c.l.b16 %v24
  %v166 = vunpack.c.h.b16 %v24
  %v167 = vunpack.c.l.b16 %v25
  %v168 = vunpack.c.h.b16 %v25
  %v169 = vunpack.c.l.b16 %v26
  %v170 = vunpack.c.h.b16 %v26
  %v171 = vunpack.c.l.b16 %v27
  %v172 = vunpack.c.h.b16 %v27
  %v173 = vunpack.c.l.b16 %v28
  %v174 = vunpack.c.h.b16 %v28
  %v175 = vunpack.c.l.b16 %v29
  %v176 = vunpack.c.h.b16 %v29
  %v177 = vunpack.c.l.b16 %v30
  %v178 = vunpack.c.h.b16 %v30
  %v179 = vunpack.c.l.b16 %v31
  %v180 = vunpack.c.h.b16 %v31
  %v181 = vunpack.c.l.b16 %v32
  %v182 = vunpack.c.h.b16 %v32
  %v183 = vunpack.c.l.b16 %v33
  %v184 = vunpack.c.h.b16 %v33
  %v185 = vunpack.c.l.b16 %v34
  %v186 = vunpack.c.h.b16 %v34
  %v187 = vunpack.c.l.b16 %v35
  %v188 = vunpack.c.h.b16 %v35
  %v189 = vunpack.c.l.b16 %v36
  %v190 = vunpack.c.h.b16 %v36
  %v191 = vunpack.c.l.b16 %v37
  %v192 = vunpack.c.h.b16 %v37
  %v193 = vunpack.c.l.b16 %v38
  %v194 = vunpack.c.h.b16 %v38
  %v195 = vunpack.c.l.b16 %v39
  %v196 = vunpack.c.h.b16 %v39
  %v197 = vunpack.c.l.b16 %v40
  %v198 = vunpack.c.h.b16 %v40
  %v199 = vunpack.c.l.b16 %v41
  %v200 = vunpack.c.h.b16 %v41
  %v201 = vunpack.c.l.b16 %v42
  %v202 = vunpack.c.h.b16 %v42
  %v203 = vunpack.c.l.b16 %v43
  %v204 = vunpack.c.h.b16 %v43
  %v205 = vunpack.c.l.b16 %v44
  %v206 = vunpack.c.h.b16 %v44
  %v207 = vunpack.c.l.b16 %v45
  %v208 = vunpack.c.h.b16 %v45
  %v209 = vunpack.c.l.b16 %v46
  %v210 = vunpack.c.h.b16 %v46
  %v211 = vunpack.c.l.b16 %v47
  %v212 = vunpack.c.h.b16 %v47
  %v213 = vunpack.c.l.b16 %v48
  %v214 = vunpack.c.h.b16 %v48
  %v215 = vunpack.c.l.b16 %v49
  %v216 = vunpack.c.h.b16 %v49
  %v217 = vunpack.c.l.b16 %v50
  %v218 = vunpack.c.h.b16 %v50
  %v219 = vunpack.c.l.b16 %v51
  %v220 = vunpack.c.h.b16 %v51
  %v221 = vunpack.c.l.b16 %v52
  %v222 = vunpack.c.h.b16 %v52
  %v223 = vunpack.c.l.b16 %v53
  %v224 = vunpack.c.h.b16 %v53
  %v225 = vunpack.c.l.b16 %v54
  %v226 = vunpack.c.h.b16 %v54
  %v227 = vunpack.c.l.b16 %v55
  %v228 = vunpack.c.h.b16 %v55
  %v229 = vunpack.c.l.b16 %v56
  %v230 = vunpack.c.h.b16 %v56
  %v231 = vunpack.c.l.b16 %v57
  %v232 = vunpack.c.h.b16 %v57
  %v233 = vunpack.c.l.b16 %v58
  %v234 = vunpack.c.h.b16 %v58
  %v235 = vunpack.c.l.b16 %v59
  %v236 = vunpack.c.h.b16 %v59
  %v237 = vunpack.c.l.b16 %v60
  %v238 = vunpack.c.h.b16 %v60
  %v239 = vunpack.c.l.b16 %v61
  %v240 = vunpack.c.h.b16 %v61
  %v241 = vunpack.c.l.b16 %v62
  %v242 = vunpack.c.h.b16 %v62
  %v243 = vunpack.c.l.b16 %v63
  %v244 = vunpack.c.h.b16 %v63
  %v245 = vpack.c.b16 %v149, %v147
  %v246 = vpack.c.b16 %v150, %v148
  %v247 = vpack.c.b16 %v153, %v151
  %v248 = vpack.c.b16 %v154, %v152
  %v249 = vpack.c.b16 %v157, %v155
  %v250 = vpack.c.b16 %v158, %v156
  %v251 = vpack.c.b16 %v161, %v159
  %v252 = vpack.c.b16 %v162, %v160
  %v253 = vpack.c.b16 %v165, %v163
  %v254 = vpack.c.b16 %v166, %v164
  %v255 = vpack.c.b16 %v169, %v167
  %v256 = vpack.c.b16 %v170, %v168
  %v257 = vpack.c.b16 %v173, %v171
  %v258 = vpack.c.b16 %v174, %v172
  %v259 = vpack.c.b16 %v177, %v175
  %v260 = vpack.c.b16 %v178, %v176
  %v261 = vpack.c.b16 %v181, %v179
  %v262 = vpack.c.b16 %v182, %v180
  %v263 = vpack.c.b16 %v185, %v183
  %v264 = vpack.c.b16 %v186, %v184
  %v265 = vpack.c.b16 %v189, %v187
  %v266 = vpack.c.b16 %v190, %v188
  %v267 = vpack.c.b16 %v193, %v191
  %v268 = vpack.c.b16 %v194, %v192
  %v269 = vpack.c.b16 %v197, %v195
  %v270 = vpack.c.b16 %v198, %v196
  %v271 = vpack.c.b16 %v201, %v199
  %v272 = vpack.c.b16 %v202, %v200
  %v273 = vpack.c.b16 %v205, %v203
  %v274 = vpack.c.b16 %v206, %v204
  %v275 = vpack.c.b16 %v209, %v207
  %v276 = vpack.c.b16 %v210, %v208
  %v277 = vpack.c.b16 %v213, %v211
  %v278 = vpack.c.b16 %v214, %v212
  %v279 = vpack.c.b16 %v217, %v215
  %v280 = vpack.c.b16 %v218, %v216
  %v281 = vpack.c.b16 %v221, %v219
  %v282 = vpack.c.b16 %v222, %v220
  %v283 = vpack.c.b16 %v225, %v223
  %v284 = vpack.c.b16 %v226, %v224
  %v285 = vpack.c.b16 %v229, %v227
  %v286 = vpack.c.b16 %v230, %v228
  %v287 = vpack.c.b16 %v233, %v231
  %v288 = vpack.c.b16 %v234, %v232
  %v289 = vpack.c.b16 %v237, %v235
  %v290 = vpack.c.b16 %v238, %v236
  %v291 = vpack.c.b16 %v241, %v239
  %v292 = vpack.c.b16 %v242, %v240
  %v293 = vpack.c.b16 %v243, %v243
  %v294 = vpack.c.b16 %v244, %v244
  %v350 = vunpack.c.l.b16 %v64
  %v351 = vunpack.c.l.b16 %v65
  %v352 = vunpack.c.l.b16 %v66
  %v353 = vunpack.c.l.b16 %v67
  %v354 = vunpack.c.l.b16 %v68
  %v355 = vunpack.c.l.b16 %v69
  %v356 = vunpack.c.l.b16 %v70
  %v357 = vunpack.c.l.b16 %v71
  %v358 = vunpack.c.l.b16 %v72
  %v359 = vunpack.c.l.b16 %v73
  %v360 = vunpack.c.l.b16 %v74
  %v361 = vunpack.c.l.b16 %v75
  %v362 = vunpack.c.l.b16 %v76
  %v363 = vunpack.c.l.b16 %v77
  %v364 = vunpack.c.l.b16 %v78
  %v365 = vunpack.c.l.b16 %v79
  %v366 = vunpack.c.l.b16 %v80
  %v367 = vunpack.c.l.b16 %v81
  %v368 = vunpack.c.l.b16 %v82
  %v369 = vunpack.c.l.b16 %v83
  %v370 = vunpack.c.l.b16 %v84
  %v371 = vunpack.c.l.b16 %v85
  %v372 = vunpack.c.l.b16 %v86
  %v373 = vunpack.c.l.b16 %v87
  %v374 = vunpack.c.l.b16 %v88
  %v375 = vunpack.c.l.b16 %v89
  %v376 = vunpack.c.l.b16 %v90
  %v377 = vunpack.c.l.b16 %v91
  %v378 = vunpack.c.l.b16 %v92
  %v379 = vunpack.c.l.b16 %v93
  %v380 = vpack.c.b16 %v351, %v350
  %v381 = vpack.c.b16 %v353, %v352
  %v382 = vpack.c.b16 %v355, %v354
  %v383 = vpack.c.b16 %v357, %v356
  %v384 = vpack.c.b16 %v359, %v358
  %v385 = vpack.c.b16 %v361, %v360
  %v386 = vpack.c.b16 %v363, %v362
  %v387 = vpack.c.b16 %v365, %v364
  %v388 = vpack.c.b16 %v367, %v366
  %v389 = vpack.c.b16 %v369, %v368
  %v390 = vpack.c.b16 %v371, %v370
  %v391 = vpack.c.b16 %v373, %v372
  %v392 = vpack.c.b16 %v375, %v374
  %v393 = vpack.c.b16 %v377, %v376
  %v394 = vpack.c.b16 %v379, %v378
  %vm409 = vcmask 867328
  %v411 = vsel %vm409, %v246, 0
  %v414 = vsel %vm409, %v248, 0
  %v417 = vsel %vm409, %v250, 0
  %v420 = vsel %vm409, %v252, 0
  %v423 = vsel %vm409, %v254, 0
  %v426 = vsel %vm409, %v256, 0
  %v429 = vsel %vm409, %v258, 0
  %v432 = vsel %vm409, %v260, 0
  %v435 = vsel %vm409, %v262, 0
  %v438 = vsel %vm409, %v264, 0
  %v441 = vsel %vm409, %v266, 0
  %v444 = vsel %vm409, %v268, 0
  %v447 = vsel %vm409, %v270, 0
  %v450 = vsel %vm409, %v272, 0
  %v453 = vsel %vm409, %v274, 0
  %v456 = vsel %vm409, %v276, 0
  %v459 = vsel %vm409, %v278, 0
  %v462 = vsel %vm409, %v280, 0
  %v465 = vsel %vm409, %v282, 0
  %v468 = vsel %vm409, %v284, 0
  %v471 = vsel %vm409, %v286, 0
  %v474 = vsel %vm409, %v288, 0
  %v477 = vsel %vm409, %v290, 0
  %v480 = vsel %vm409, %v292, 0
  %v483 = vsel %vm409, %v294, 0
  %vm485 = vcmask 1044480
  %v487 = vsel %vm485, %v394, 0
  %489 = vmatpush.bf16.msra.mxu0 %v387
  %490 = vmatpush.bf16.msra.mxu0 %v386
  %491 = vmatpush.bf16.msra.mxu0 %v385
  %492 = vmatpush.bf16.msra.mxu0 %v384
  %493 = vmatpush.bf16.msra.mxu0 %v383
  %494 = vmatpush.bf16.msra.mxu0 %v382
  %495 = vmatpush.bf16.msra.mxu0 %v381
  %496 = vmatpush.bf16.msra.mxu0 %v380
  %497 = vmatmul.bf16.gmra.mxu0 %v245
  %v498 = vpop.f32.mrf.mxu0
  %v499 = vadd.f32 %v96, %v498
  %v500 = vpop.f32.mrf.mxu0
  %v501 = vadd.f32 %v96, %v500
  %502 = vmatmul.bf16.gmra.mxu0 %v247
  %v503 = vpop.f32.mrf.mxu0
  %v504 = vadd.f32 %v96, %v503
  %v505 = vpop.f32.mrf.mxu0
  %v506 = vadd.f32 %v96, %v505
  %507 = vmatmul.bf16.gmra.mxu0 %v249
  %v508 = vpop.f32.mrf.mxu0
  %v509 = vadd.f32 %v96, %v508
  %v510 = vpop.f32.mrf.mxu0
  %v511 = vadd.f32 %v96, %v510
  %512 = vmatmul.bf16.gmra.mxu0 %v251
  %v513 = vpop.f32.mrf.mxu0
  %v514 = vadd.f32 %v96, %v513
  %v515 = vpop.f32.mrf.mxu0
  %v516 = vadd.f32 %v96, %v515
  %517 = vmatmul.bf16.gmra.mxu0 %v253
  %v518 = vpop.f32.mrf.mxu0
  %v519 = vadd.f32 %v96, %v518
  %v520 = vpop.f32.mrf.mxu0
  %v521 = vadd.f32 %v96, %v520
  %522 = vmatmul.bf16.gmra.mxu0 %v255
  %v523 = vpop.f32.mrf.mxu0
  %v524 = vadd.f32 %v96, %v523
  %v525 = vpop.f32.mrf.mxu0
  %v526 = vadd.f32 %v96, %v525
  %527 = vmatmul.bf16.gmra.mxu0 %v257
  %v528 = vpop.f32.mrf.mxu0
  %v529 = vadd.f32 %v96, %v528
  %v530 = vpop.f32.mrf.mxu0
  %v531 = vadd.f32 %v96, %v530
  %532 = vmatmul.bf16.gmra.mxu0 %v259
  %v533 = vpop.f32.mrf.mxu0
  %v534 = vadd.f32 %v96, %v533
  %v535 = vpop.f32.mrf.mxu0
  %v536 = vadd.f32 %v96, %v535
  %537 = vmatmul.bf16.gmra.mxu0 %v261
  %v538 = vpop.f32.mrf.mxu0
  %v539 = vadd.f32 %v96, %v538
  %v540 = vpop.f32.mrf.mxu0
  %v541 = vadd.f32 %v96, %v540
  %542 = vmatmul.bf16.gmra.mxu0 %v263
  %v543 = vpop.f32.mrf.mxu0
  %v544 = vadd.f32 %v96, %v543
  %v545 = vpop.f32.mrf.mxu0
  %v546 = vadd.f32 %v96, %v545
  %547 = vmatmul.bf16.gmra.mxu0 %v265
  %v548 = vpop.f32.mrf.mxu0
  %v549 = vadd.f32 %v96, %v548
  %v550 = vpop.f32.mrf.mxu0
  %v551 = vadd.f32 %v96, %v550
  %552 = vmatmul.bf16.gmra.mxu0 %v267
  %v553 = vpop.f32.mrf.mxu0
  %v554 = vadd.f32 %v96, %v553
  %v555 = vpop.f32.mrf.mxu0
  %v556 = vadd.f32 %v96, %v555
  %557 = vmatmul.bf16.gmra.mxu0 %v269
  %v558 = vpop.f32.mrf.mxu0
  %v559 = vadd.f32 %v96, %v558
  %v560 = vpop.f32.mrf.mxu0
  %v561 = vadd.f32 %v96, %v560
  %562 = vmatmul.bf16.gmra.mxu0 %v271
  %v563 = vpop.f32.mrf.mxu0
  %v564 = vadd.f32 %v96, %v563
  %v565 = vpop.f32.mrf.mxu0
  %v566 = vadd.f32 %v96, %v565
  %567 = vmatmul.bf16.gmra.mxu0 %v273
  %v568 = vpop.f32.mrf.mxu0
  %v569 = vadd.f32 %v96, %v568
  %v570 = vpop.f32.mrf.mxu0
  %v571 = vadd.f32 %v96, %v570
  %572 = vmatmul.bf16.gmra.mxu0 %v275
  %v573 = vpop.f32.mrf.mxu0
  %v574 = vadd.f32 %v96, %v573
  %v575 = vpop.f32.mrf.mxu0
  %v576 = vadd.f32 %v96, %v575
  %577 = vmatmul.bf16.gmra.mxu0 %v277
  %v578 = vpop.f32.mrf.mxu0
  %v579 = vadd.f32 %v96, %v578
  %v580 = vpop.f32.mrf.mxu0
  %v581 = vadd.f32 %v96, %v580
  %582 = vmatmul.bf16.gmra.mxu0 %v279
  %v583 = vpop.f32.mrf.mxu0
  %v584 = vadd.f32 %v96, %v583
  %v585 = vpop.f32.mrf.mxu0
  %v586 = vadd.f32 %v96, %v585
  %587 = vmatmul.bf16.gmra.mxu0 %v281
  %v588 = vpop.f32.mrf.mxu0
  %v589 = vadd.f32 %v96, %v588
  %v590 = vpop.f32.mrf.mxu0
  %v591 = vadd.f32 %v96, %v590
  %592 = vmatmul.bf16.gmra.mxu0 %v283
  %v593 = vpop.f32.mrf.mxu0
  %v594 = vadd.f32 %v96, %v593
  %v595 = vpop.f32.mrf.mxu0
  %v596 = vadd.f32 %v96, %v595
  %597 = vmatmul.bf16.gmra.mxu0 %v285
  %v598 = vpop.f32.mrf.mxu0
  %v599 = vadd.f32 %v96, %v598
  %v600 = vpop.f32.mrf.mxu0
  %v601 = vadd.f32 %v96, %v600
  %602 = vmatmul.bf16.gmra.mxu0 %v287
  %v603 = vpop.f32.mrf.mxu0
  %v604 = vadd.f32 %v96, %v603
  %v605 = vpop.f32.mrf.mxu0
  %v606 = vadd.f32 %v96, %v605
  %607 = vmatmul.bf16.gmra.mxu0 %v289
  %v608 = vpop.f32.mrf.mxu0
  %v609 = vadd.f32 %v96, %v608
  %v610 = vpop.f32.mrf.mxu0
  %v611 = vadd.f32 %v96, %v610
  %612 = vmatmul.bf16.gmra.mxu0 %v291
  %v613 = vpop.f32.mrf.mxu0
  %v614 = vadd.f32 %v96, %v613
  %v615 = vpop.f32.mrf.mxu0
  %v616 = vadd.f32 %v96, %v615
  %617 = vmatmul.bf16.gmra.mxu0 %v293
  %v618 = vpop.f32.mrf.mxu0
  %v619 = vadd.f32 %v96, %v618
  %v620 = vpop.f32.mrf.mxu0
  %621 = vdwg.mxu0
  %622 = vmatpush.bf16.msra.mxu0 0
  %623 = vmatpush.bf16.msra.mxu0 %v487
  %624 = vmatpush.bf16.msra.mxu0 %v393
  %625 = vmatpush.bf16.msra.mxu0 %v392
  %626 = vmatpush.bf16.msra.mxu0 %v391
  %627 = vmatpush.bf16.msra.mxu0 %v390
  %628 = vmatpush.bf16.msra.mxu0 %v389
  %629 = vmatpush.bf16.msra.mxu0 %v388
  %630 = vmatmul.bf16.gmra.mxu0 %v411
  %v631 = vpop.f32.mrf.mxu0
  %v632 = vadd.f32 %v499, %v631
  %v633 = vpop.f32.mrf.mxu0
  %v634 = vadd.f32 %v501, %v633
  %635 = vmatmul.bf16.gmra.mxu0 %v414
  %v636 = vpop.f32.mrf.mxu0
  %v637 = vadd.f32 %v504, %v636
  %v638 = vpop.f32.mrf.mxu0
  %v639 = vadd.f32 %v506, %v638
  %640 = vmatmul.bf16.gmra.mxu0 %v417
  %v641 = vpop.f32.mrf.mxu0
  %v642 = vadd.f32 %v509, %v641
  %v643 = vpop.f32.mrf.mxu0
  %v644 = vadd.f32 %v511, %v643
  %645 = vmatmul.bf16.gmra.mxu0 %v420
  %v646 = vpop.f32.mrf.mxu0
  %v647 = vadd.f32 %v514, %v646
  %v648 = vpop.f32.mrf.mxu0
  %v649 = vadd.f32 %v516, %v648
  %650 = vmatmul.bf16.gmra.mxu0 %v423
  %v651 = vpop.f32.mrf.mxu0
  %v652 = vadd.f32 %v519, %v651
  %v653 = vpop.f32.mrf.mxu0
  %v654 = vadd.f32 %v521, %v653
  %655 = vmatmul.bf16.gmra.mxu0 %v426
  %v656 = vpop.f32.mrf.mxu0
  %v657 = vadd.f32 %v524, %v656
  %v658 = vpop.f32.mrf.mxu0
  %v659 = vadd.f32 %v526, %v658
  %660 = vmatmul.bf16.gmra.mxu0 %v429
  %v661 = vpop.f32.mrf.mxu0
  %v662 = vadd.f32 %v529, %v661
  %v663 = vpop.f32.mrf.mxu0
  %v664 = vadd.f32 %v531, %v663
  %665 = vmatmul.bf16.gmra.mxu0 %v432
  %v666 = vpop.f32.mrf.mxu0
  %v667 = vadd.f32 %v534, %v666
  %v668 = vpop.f32.mrf.mxu0
  %v669 = vadd.f32 %v536, %v668
  %670 = vmatmul.bf16.gmra.mxu0 %v435
  %v671 = vpop.f32.mrf.mxu0
  %v672 = vadd.f32 %v539, %v671
  %v673 = vpop.f32.mrf.mxu0
  %v674 = vadd.f32 %v541, %v673
  %675 = vmatmul.bf16.gmra.mxu0 %v438
  %v676 = vpop.f32.mrf.mxu0
  %v677 = vadd.f32 %v544, %v676
  %v678 = vpop.f32.mrf.mxu0
  %v679 = vadd.f32 %v546, %v678
  %680 = vmatmul.bf16.gmra.mxu0 %v441
  %v681 = vpop.f32.mrf.mxu0
  %v682 = vadd.f32 %v549, %v681
  %v683 = vpop.f32.mrf.mxu0
  %v684 = vadd.f32 %v551, %v683
  %685 = vmatmul.bf16.gmra.mxu0 %v444
  %v686 = vpop.f32.mrf.mxu0
  %v687 = vadd.f32 %v554, %v686
  %v688 = vpop.f32.mrf.mxu0
  %v689 = vadd.f32 %v556, %v688
  %690 = vmatmul.bf16.gmra.mxu0 %v447
  %v691 = vpop.f32.mrf.mxu0
  %v692 = vadd.f32 %v559, %v691
  %v693 = vpop.f32.mrf.mxu0
  %v694 = vadd.f32 %v561, %v693
  %695 = vmatmul.bf16.gmra.mxu0 %v450
  %v696 = vpop.f32.mrf.mxu0
  %v697 = vadd.f32 %v564, %v696
  %v698 = vpop.f32.mrf.mxu0
  %v699 = vadd.f32 %v566, %v698
  %700 = vmatmul.bf16.gmra.mxu0 %v453
  %v701 = vpop.f32.mrf.mxu0
  %v702 = vadd.f32 %v569, %v701
  %v703 = vpop.f32.mrf.mxu0
  %v704 = vadd.f32 %v571, %v703
  %705 = vmatmul.bf16.gmra.mxu0 %v456
  %v706 = vpop.f32.mrf.mxu0
  %v707 = vadd.f32 %v574, %v706
  %v708 = vpop.f32.mrf.mxu0
  %v709 = vadd.f32 %v576, %v708
  %710 = vmatmul.bf16.gmra.mxu0 %v459
  %v711 = vpop.f32.mrf.mxu0
  %v712 = vadd.f32 %v579, %v711
  %v713 = vpop.f32.mrf.mxu0
  %v714 = vadd.f32 %v581, %v713
  %715 = vmatmul.bf16.gmra.mxu0 %v462
  %v716 = vpop.f32.mrf.mxu0
  %v717 = vadd.f32 %v584, %v716
  %v718 = vpop.f32.mrf.mxu0
  %v719 = vadd.f32 %v586, %v718
  %720 = vmatmul.bf16.gmra.mxu0 %v465
  %v721 = vpop.f32.mrf.mxu0
  %v722 = vadd.f32 %v589, %v721
  %v723 = vpop.f32.mrf.mxu0
  %v724 = vadd.f32 %v591, %v723
  %725 = vmatmul.bf16.gmra.mxu0 %v468
  %v726 = vpop.f32.mrf.mxu0
  %v727 = vadd.f32 %v594, %v726
  %v728 = vpop.f32.mrf.mxu0
  %v729 = vadd.f32 %v596, %v728
  %730 = vmatmul.bf16.gmra.mxu0 %v471
  %v731 = vpop.f32.mrf.mxu0
  %v732 = vadd.f32 %v599, %v731
  %v733 = vpop.f32.mrf.mxu0
  %v734 = vadd.f32 %v601, %v733
  %735 = vmatmul.bf16.gmra.mxu0 %v474
  %v736 = vpop.f32.mrf.mxu0
  %v737 = vadd.f32 %v604, %v736
  %v738 = vpop.f32.mrf.mxu0
  %v739 = vadd.f32 %v606, %v738
  %740 = vmatmul.bf16.gmra.mxu0 %v477
  %v741 = vpop.f32.mrf.mxu0
  %v742 = vadd.f32 %v609, %v741
  %v743 = vpop.f32.mrf.mxu0
  %v744 = vadd.f32 %v611, %v743
  %745 = vmatmul.bf16.gmra.mxu0 %v480
  %v746 = vpop.f32.mrf.mxu0
  %v747 = vadd.f32 %v614, %v746
  %v748 = vpop.f32.mrf.mxu0
  %v749 = vadd.f32 %v616, %v748
  %750 = vmatmul.bf16.gmra.mxu0 %v483
  %v751 = vpop.f32.mrf.mxu0
  %v752 = vadd.f32 %v619, %v751
  %v753 = vpop.f32.mrf.mxu0
  %754 = vdwg.mxu0
  %v755 = vxor.u32 %v632, 2147483648
  %v756 = vxor.u32 %v634, 2147483648
  %v757 = vxor.u32 %v637, 2147483648
  %v758 = vxor.u32 %v639, 2147483648
  %v759 = vxor.u32 %v642, 2147483648
  %v760 = vxor.u32 %v644, 2147483648
  %v761 = vxor.u32 %v647, 2147483648
  %v762 = vxor.u32 %v649, 2147483648
  %v763 = vxor.u32 %v652, 2147483648
  %v764 = vxor.u32 %v654, 2147483648
  %v765 = vxor.u32 %v657, 2147483648
  %v766 = vxor.u32 %v659, 2147483648
  %v767 = vxor.u32 %v662, 2147483648
  %v768 = vxor.u32 %v664, 2147483648
  %v769 = vxor.u32 %v667, 2147483648
  %v770 = vxor.u32 %v669, 2147483648
  %v771 = vxor.u32 %v672, 2147483648
  %v772 = vxor.u32 %v674, 2147483648
  %v773 = vxor.u32 %v677, 2147483648
  %v774 = vxor.u32 %v679, 2147483648
  %v775 = vxor.u32 %v682, 2147483648
  %v776 = vxor.u32 %v684, 2147483648
  %v777 = vxor.u32 %v687, 2147483648
  %v778 = vxor.u32 %v689, 2147483648
  %v779 = vxor.u32 %v692, 2147483648
  %v780 = vxor.u32 %v694, 2147483648
  %v781 = vxor.u32 %v697, 2147483648
  %v782 = vxor.u32 %v699, 2147483648
  %v783 = vxor.u32 %v702, 2147483648
  %v784 = vxor.u32 %v704, 2147483648
  %v785 = vxor.u32 %v707, 2147483648
  %v786 = vxor.u32 %v709, 2147483648
  %v787 = vxor.u32 %v712, 2147483648
  %v788 = vxor.u32 %v714, 2147483648
  %v789 = vxor.u32 %v717, 2147483648
  %v790 = vxor.u32 %v719, 2147483648
  %v791 = vxor.u32 %v722, 2147483648
  %v792 = vxor.u32 %v724, 2147483648
  %v793 = vxor.u32 %v727, 2147483648
  %v794 = vxor.u32 %v729, 2147483648
  %v795 = vxor.u32 %v732, 2147483648
  %v796 = vxor.u32 %v734, 2147483648
  %v797 = vxor.u32 %v737, 2147483648
  %v798 = vxor.u32 %v739, 2147483648
  %v799 = vxor.u32 %v742, 2147483648
  %v800 = vxor.u32 %v744, 2147483648
  %v801 = vxor.u32 %v747, 2147483648
  %v802 = vxor.u32 %v749, 2147483648
  %v803 = vxor.u32 %v752, 2147483648
  %v804 = vmul.f32 %v755, 1.442695
  %v805 = vpow.pop %v804
  %v806 = vmul.f32 %v756, 1.442695
  %v807 = vpow.pop %v806
  %v808 = vmul.f32 %v757, 1.442695
  %v809 = vpow.pop %v808
  %v810 = vmul.f32 %v758, 1.442695
  %v811 = vpow.pop %v810
  %v812 = vmul.f32 %v759, 1.442695
  %v813 = vpow.pop %v812
  %v814 = vmul.f32 %v760, 1.442695
  %v815 = vpow.pop %v814
  %v816 = vmul.f32 %v761, 1.442695
  %v817 = vpow.pop %v816
  %v818 = vmul.f32 %v762, 1.442695
  %v819 = vpow.pop %v818
  %v820 = vmul.f32 %v763, 1.442695
  %v821 = vpow.pop %v820
  %v822 = vmul.f32 %v764, 1.442695
  %v823 = vpow.pop %v822
  %v824 = vmul.f32 %v765, 1.442695
  %v825 = vpow.pop %v824
  %v826 = vmul.f32 %v766, 1.442695
  %v827 = vpow.pop %v826
  %v828 = vmul.f32 %v767, 1.442695
  %v829 = vpow.pop %v828
  %v830 = vmul.f32 %v768, 1.442695
  %v831 = vpow.pop %v830
  %v832 = vmul.f32 %v769, 1.442695
  %v833 = vpow.pop %v832
  %v834 = vmul.f32 %v770, 1.442695
  %v835 = vpow.pop %v834
  %v836 = vmul.f32 %v771, 1.442695
  %v837 = vpow.pop %v836
  %v838 = vmul.f32 %v772, 1.442695
  %v839 = vpow.pop %v838
  %v840 = vmul.f32 %v773, 1.442695
  %v841 = vpow.pop %v840
  %v842 = vmul.f32 %v774, 1.442695
  %v843 = vpow.pop %v842
  %v844 = vmul.f32 %v775, 1.442695
  %v845 = vpow.pop %v844
  %v846 = vmul.f32 %v776, 1.442695
  %v847 = vpow.pop %v846
  %v848 = vmul.f32 %v777, 1.442695
  %v849 = vpow.pop %v848
  %v850 = vmul.f32 %v778, 1.442695
  %v851 = vpow.pop %v850
  %v852 = vmul.f32 %v779, 1.442695
  %v853 = vpow.pop %v852
  %v854 = vmul.f32 %v780, 1.442695
  %v855 = vpow.pop %v854
  %v856 = vmul.f32 %v781, 1.442695
  %v857 = vpow.pop %v856
  %v858 = vmul.f32 %v782, 1.442695
  %v859 = vpow.pop %v858
  %v860 = vmul.f32 %v783, 1.442695
  %v861 = vpow.pop %v860
  %v862 = vmul.f32 %v784, 1.442695
  %v863 = vpow.pop %v862
  %v864 = vmul.f32 %v785, 1.442695
  %v865 = vpow.pop %v864
  %v866 = vmul.f32 %v786, 1.442695
  %v867 = vpow.pop %v866
  %v868 = vmul.f32 %v787, 1.442695
  %v869 = vpow.pop %v868
  %v870 = vmul.f32 %v788, 1.442695
  %v871 = vpow.pop %v870
  %v872 = vmul.f32 %v789, 1.442695
  %v873 = vpow.pop %v872
  %v874 = vmul.f32 %v790, 1.442695
  %v875 = vpow.pop %v874
  %v876 = vmul.f32 %v791, 1.442695
  %v877 = vpow.pop %v876
  %v878 = vmul.f32 %v792, 1.442695
  %v879 = vpow.pop %v878
  %v880 = vmul.f32 %v793, 1.442695
  %v881 = vpow.pop %v880
  %v882 = vmul.f32 %v794, 1.442695
  %v883 = vpow.pop %v882
  %v884 = vmul.f32 %v795, 1.442695
  %v885 = vpow.pop %v884
  %v886 = vmul.f32 %v796, 1.442695
  %v887 = vpow.pop %v886
  %v888 = vmul.f32 %v797, 1.442695
  %v889 = vpow.pop %v888
  %v890 = vmul.f32 %v798, 1.442695
  %v891 = vpow.pop %v890
  %v892 = vmul.f32 %v799, 1.442695
  %v893 = vpow.pop %v892
  %v894 = vmul.f32 %v800, 1.442695
  %v895 = vpow.pop %v894
  %v896 = vmul.f32 %v801, 1.442695
  %v897 = vpow.pop %v896
  %v898 = vmul.f32 %v802, 1.442695
  %v899 = vpow.pop %v898
  %v900 = vmul.f32 %v803, 1.442695
  %v901 = vpow.pop %v900
  %v902 = vadd.f32 %v805, 1.0
  %v903 = vadd.f32 %v807, 1.0
  %v904 = vadd.f32 %v809, 1.0
  %v905 = vadd.f32 %v811, 1.0
  %v906 = vadd.f32 %v813, 1.0
  %v907 = vadd.f32 %v815, 1.0
  %v908 = vadd.f32 %v817, 1.0
  %v909 = vadd.f32 %v819, 1.0
  %v910 = vadd.f32 %v821, 1.0
  %v911 = vadd.f32 %v823, 1.0
  %v912 = vadd.f32 %v825, 1.0
  %v913 = vadd.f32 %v827, 1.0
  %v914 = vadd.f32 %v829, 1.0
  %v915 = vadd.f32 %v831, 1.0
  %v916 = vadd.f32 %v833, 1.0
  %v917 = vadd.f32 %v835, 1.0
  %v918 = vadd.f32 %v837, 1.0
  %v919 = vadd.f32 %v839, 1.0
  %v920 = vadd.f32 %v841, 1.0
  %v921 = vadd.f32 %v843, 1.0
  %v922 = vadd.f32 %v845, 1.0
  %v923 = vadd.f32 %v847, 1.0
  %v924 = vadd.f32 %v849, 1.0
  %v925 = vadd.f32 %v851, 1.0
  %v926 = vadd.f32 %v853, 1.0
  %v927 = vadd.f32 %v855, 1.0
  %v928 = vadd.f32 %v857, 1.0
  %v929 = vadd.f32 %v859, 1.0
  %v930 = vadd.f32 %v861, 1.0
  %v931 = vadd.f32 %v863, 1.0
  %v932 = vadd.f32 %v865, 1.0
  %v933 = vadd.f32 %v867, 1.0
  %v934 = vadd.f32 %v869, 1.0
  %v935 = vadd.f32 %v871, 1.0
  %v936 = vadd.f32 %v873, 1.0
  %v937 = vadd.f32 %v875, 1.0
  %v938 = vadd.f32 %v877, 1.0
  %v939 = vadd.f32 %v879, 1.0
  %v940 = vadd.f32 %v881, 1.0
  %v941 = vadd.f32 %v883, 1.0
  %v942 = vadd.f32 %v885, 1.0
  %v943 = vadd.f32 %v887, 1.0
  %v944 = vadd.f32 %v889, 1.0
  %v945 = vadd.f32 %v891, 1.0
  %v946 = vadd.f32 %v893, 1.0
  %v947 = vadd.f32 %v895, 1.0
  %v948 = vadd.f32 %v897, 1.0
  %v949 = vadd.f32 %v899, 1.0
  %v950 = vadd.f32 %v901, 1.0
  %v951 = vrcp.pop %v902
  %v952 = vmul.f32 %v902, %v951
  %v953 = vsub.f32 1.0, %v952
  %v954 = vmul.f32 %v951, %v953
  %v955 = vadd.f32 %v951, %v954
  %vm956 = vweird.f32 %v902
  %vm957 = vweird.f32 %v951
  %vm958 = vmor %vm956, %vm957
  %v959 = vsel %vm958, %v951, %v955
  %v960 = vand.u32 2147483647, %v902
  %vm961 = vcmp.eq.f32.partialorder %v960, 8.507059e+37
  %v962 = vand.u32 %v902, 2147483648
  %v963 = vor.u32 1.1754944e-38, %v962
  %v964 = vsel %vm961, %v963, %v959
  %v965 = vmul.f32 1.0, %v964
  %v966 = vrcp.pop %v903
  %v967 = vmul.f32 %v903, %v966
  %v968 = vsub.f32 1.0, %v967
  %v969 = vmul.f32 %v966, %v968
  %v970 = vadd.f32 %v966, %v969
  %vm971 = vweird.f32 %v903
  %vm972 = vweird.f32 %v966
  %vm973 = vmor %vm971, %vm972
  %v974 = vsel %vm973, %v966, %v970
  %v975 = vand.u32 2147483647, %v903
  %vm976 = vcmp.eq.f32.partialorder %v975, 8.507059e+37
  %v977 = vand.u32 %v903, 2147483648
  %v978 = vor.u32 1.1754944e-38, %v977
  %v979 = vsel %vm976, %v978, %v974
  %v980 = vmul.f32 1.0, %v979
  %v981 = vrcp.pop %v904
  %v982 = vmul.f32 %v904, %v981
  %v983 = vsub.f32 1.0, %v982
  %v984 = vmul.f32 %v981, %v983
  %v985 = vadd.f32 %v981, %v984
  %vm986 = vweird.f32 %v904
  %vm987 = vweird.f32 %v981
  %vm988 = vmor %vm986, %vm987
  %v989 = vsel %vm988, %v981, %v985
  %v990 = vand.u32 2147483647, %v904
  %vm991 = vcmp.eq.f32.partialorder %v990, 8.507059e+37
  %v992 = vand.u32 %v904, 2147483648
  %v993 = vor.u32 1.1754944e-38, %v992
  %v994 = vsel %vm991, %v993, %v989
  %v995 = vmul.f32 1.0, %v994
  %v996 = vrcp.pop %v905
  %v997 = vmul.f32 %v905, %v996
  %v998 = vsub.f32 1.0, %v997
  %v999 = vmul.f32 %v996, %v998
  %v1000 = vadd.f32 %v996, %v999
  %vm1001 = vweird.f32 %v905
  %vm1002 = vweird.f32 %v996
  %vm1003 = vmor %vm1001, %vm1002
  %v1004 = vsel %vm1003, %v996, %v1000
  %v1005 = vand.u32 2147483647, %v905
  %vm1006 = vcmp.eq.f32.partialorder %v1005, 8.507059e+37
  %v1007 = vand.u32 %v905, 2147483648
  %v1008 = vor.u32 1.1754944e-38, %v1007
  %v1009 = vsel %vm1006, %v1008, %v1004
  %v1010 = vmul.f32 1.0, %v1009
  %v1011 = vrcp.pop %v906
  %v1012 = vmul.f32 %v906, %v1011
  %v1013 = vsub.f32 1.0, %v1012
  %v1014 = vmul.f32 %v1011, %v1013
  %v1015 = vadd.f32 %v1011, %v1014
  %vm1016 = vweird.f32 %v906
  %vm1017 = vweird.f32 %v1011
  %vm1018 = vmor %vm1016, %vm1017
  %v1019 = vsel %vm1018, %v1011, %v1015
  %v1020 = vand.u32 2147483647, %v906
  %vm1021 = vcmp.eq.f32.partialorder %v1020, 8.507059e+37
  %v1022 = vand.u32 %v906, 2147483648
  %v1023 = vor.u32 1.1754944e-38, %v1022
  %v1024 = vsel %vm1021, %v1023, %v1019
  %v1025 = vmul.f32 1.0, %v1024
  %v1026 = vrcp.pop %v907
  %v1027 = vmul.f32 %v907, %v1026
  %v1028 = vsub.f32 1.0, %v1027
  %v1029 = vmul.f32 %v1026, %v1028
  %v1030 = vadd.f32 %v1026, %v1029
  %vm1031 = vweird.f32 %v907
  %vm1032 = vweird.f32 %v1026
  %vm1033 = vmor %vm1031, %vm1032
  %v1034 = vsel %vm1033, %v1026, %v1030
  %v1035 = vand.u32 2147483647, %v907
  %vm1036 = vcmp.eq.f32.partialorder %v1035, 8.507059e+37
  %v1037 = vand.u32 %v907, 2147483648
  %v1038 = vor.u32 1.1754944e-38, %v1037
  %v1039 = vsel %vm1036, %v1038, %v1034
  %v1040 = vmul.f32 1.0, %v1039
  %v1041 = vrcp.pop %v908
  %v1042 = vmul.f32 %v908, %v1041
  %v1043 = vsub.f32 1.0, %v1042
  %v1044 = vmul.f32 %v1041, %v1043
  %v1045 = vadd.f32 %v1041, %v1044
  %vm1046 = vweird.f32 %v908
  %vm1047 = vweird.f32 %v1041
  %vm1048 = vmor %vm1046, %vm1047
  %v1049 = vsel %vm1048, %v1041, %v1045
  %v1050 = vand.u32 2147483647, %v908
  %vm1051 = vcmp.eq.f32.partialorder %v1050, 8.507059e+37
  %v1052 = vand.u32 %v908, 2147483648
  %v1053 = vor.u32 1.1754944e-38, %v1052
  %v1054 = vsel %vm1051, %v1053, %v1049
  %v1055 = vmul.f32 1.0, %v1054
  %v1056 = vrcp.pop %v909
  %v1057 = vmul.f32 %v909, %v1056
  %v1058 = vsub.f32 1.0, %v1057
  %v1059 = vmul.f32 %v1056, %v1058
  %v1060 = vadd.f32 %v1056, %v1059
  %vm1061 = vweird.f32 %v909
  %vm1062 = vweird.f32 %v1056
  %vm1063 = vmor %vm1061, %vm1062
  %v1064 = vsel %vm1063, %v1056, %v1060
  %v1065 = vand.u32 2147483647, %v909
  %vm1066 = vcmp.eq.f32.partialorder %v1065, 8.507059e+37
  %v1067 = vand.u32 %v909, 2147483648
  %v1068 = vor.u32 1.1754944e-38, %v1067
  %v1069 = vsel %vm1066, %v1068, %v1064
  %v1070 = vmul.f32 1.0, %v1069
  %v1071 = vrcp.pop %v910
  %v1072 = vmul.f32 %v910, %v1071
  %v1073 = vsub.f32 1.0, %v1072
  %v1074 = vmul.f32 %v1071, %v1073
  %v1075 = vadd.f32 %v1071, %v1074
  %vm1076 = vweird.f32 %v910
  %vm1077 = vweird.f32 %v1071
  %vm1078 = vmor %vm1076, %vm1077
  %v1079 = vsel %vm1078, %v1071, %v1075
  %v1080 = vand.u32 2147483647, %v910
  %vm1081 = vcmp.eq.f32.partialorder %v1080, 8.507059e+37
  %v1082 = vand.u32 %v910, 2147483648
  %v1083 = vor.u32 1.1754944e-38, %v1082
  %v1084 = vsel %vm1081, %v1083, %v1079
  %v1085 = vmul.f32 1.0, %v1084
  %v1086 = vrcp.pop %v911
  %v1087 = vmul.f32 %v911, %v1086
  %v1088 = vsub.f32 1.0, %v1087
  %v1089 = vmul.f32 %v1086, %v1088
  %v1090 = vadd.f32 %v1086, %v1089
  %vm1091 = vweird.f32 %v911
  %vm1092 = vweird.f32 %v1086
  %vm1093 = vmor %vm1091, %vm1092
  %v1094 = vsel %vm1093, %v1086, %v1090
  %v1095 = vand.u32 2147483647, %v911
  %vm1096 = vcmp.eq.f32.partialorder %v1095, 8.507059e+37
  %v1097 = vand.u32 %v911, 2147483648
  %v1098 = vor.u32 1.1754944e-38, %v1097
  %v1099 = vsel %vm1096, %v1098, %v1094
  %v1100 = vmul.f32 1.0, %v1099
  %v1101 = vrcp.pop %v912
  %v1102 = vmul.f32 %v912, %v1101
  %v1103 = vsub.f32 1.0, %v1102
  %v1104 = vmul.f32 %v1101, %v1103
  %v1105 = vadd.f32 %v1101, %v1104
  %vm1106 = vweird.f32 %v912
  %vm1107 = vweird.f32 %v1101
  %vm1108 = vmor %vm1106, %vm1107
  %v1109 = vsel %vm1108, %v1101, %v1105
  %v1110 = vand.u32 2147483647, %v912
  %vm1111 = vcmp.eq.f32.partialorder %v1110, 8.507059e+37
  %v1112 = vand.u32 %v912, 2147483648
  %v1113 = vor.u32 1.1754944e-38, %v1112
  %v1114 = vsel %vm1111, %v1113, %v1109
  %v1115 = vmul.f32 1.0, %v1114
  %v1116 = vrcp.pop %v913
  %v1117 = vmul.f32 %v913, %v1116
  %v1118 = vsub.f32 1.0, %v1117
  %v1119 = vmul.f32 %v1116, %v1118
  %v1120 = vadd.f32 %v1116, %v1119
  %vm1121 = vweird.f32 %v913
  %vm1122 = vweird.f32 %v1116
  %vm1123 = vmor %vm1121, %vm1122
  %v1124 = vsel %vm1123, %v1116, %v1120
  %v1125 = vand.u32 2147483647, %v913
  %vm1126 = vcmp.eq.f32.partialorder %v1125, 8.507059e+37
  %v1127 = vand.u32 %v913, 2147483648
  %v1128 = vor.u32 1.1754944e-38, %v1127
  %v1129 = vsel %vm1126, %v1128, %v1124
  %v1130 = vmul.f32 1.0, %v1129
  %v1131 = vrcp.pop %v914
  %v1132 = vmul.f32 %v914, %v1131
  %v1133 = vsub.f32 1.0, %v1132
  %v1134 = vmul.f32 %v1131, %v1133
  %v1135 = vadd.f32 %v1131, %v1134
  %vm1136 = vweird.f32 %v914
  %vm1137 = vweird.f32 %v1131
  %vm1138 = vmor %vm1136, %vm1137
  %v1139 = vsel %vm1138, %v1131, %v1135
  %v1140 = vand.u32 2147483647, %v914
  %vm1141 = vcmp.eq.f32.partialorder %v1140, 8.507059e+37
  %v1142 = vand.u32 %v914, 2147483648
  %v1143 = vor.u32 1.1754944e-38, %v1142
  %v1144 = vsel %vm1141, %v1143, %v1139
  %v1145 = vmul.f32 1.0, %v1144
  %v1146 = vrcp.pop %v915
  %v1147 = vmul.f32 %v915, %v1146
  %v1148 = vsub.f32 1.0, %v1147
  %v1149 = vmul.f32 %v1146, %v1148
  %v1150 = vadd.f32 %v1146, %v1149
  %vm1151 = vweird.f32 %v915
  %vm1152 = vweird.f32 %v1146
  %vm1153 = vmor %vm1151, %vm1152
  %v1154 = vsel %vm1153, %v1146, %v1150
  %v1155 = vand.u32 2147483647, %v915
  %vm1156 = vcmp.eq.f32.partialorder %v1155, 8.507059e+37
  %v1157 = vand.u32 %v915, 2147483648
  %v1158 = vor.u32 1.1754944e-38, %v1157
  %v1159 = vsel %vm1156, %v1158, %v1154
  %v1160 = vmul.f32 1.0, %v1159
  %v1161 = vrcp.pop %v916
  %v1162 = vmul.f32 %v916, %v1161
  %v1163 = vsub.f32 1.0, %v1162
  %v1164 = vmul.f32 %v1161, %v1163
  %v1165 = vadd.f32 %v1161, %v1164
  %vm1166 = vweird.f32 %v916
  %vm1167 = vweird.f32 %v1161
  %vm1168 = vmor %vm1166, %vm1167
  %v1169 = vsel %vm1168, %v1161, %v1165
  %v1170 = vand.u32 2147483647, %v916
  %vm1171 = vcmp.eq.f32.partialorder %v1170, 8.507059e+37
  %v1172 = vand.u32 %v916, 2147483648
  %v1173 = vor.u32 1.1754944e-38, %v1172
  %v1174 = vsel %vm1171, %v1173, %v1169
  %v1175 = vmul.f32 1.0, %v1174
  %v1176 = vrcp.pop %v917
  %v1177 = vmul.f32 %v917, %v1176
  %v1178 = vsub.f32 1.0, %v1177
  %v1179 = vmul.f32 %v1176, %v1178
  %v1180 = vadd.f32 %v1176, %v1179
  %vm1181 = vweird.f32 %v917
  %vm1182 = vweird.f32 %v1176
  %vm1183 = vmor %vm1181, %vm1182
  %v1184 = vsel %vm1183, %v1176, %v1180
  %v1185 = vand.u32 2147483647, %v917
  %vm1186 = vcmp.eq.f32.partialorder %v1185, 8.507059e+37
  %v1187 = vand.u32 %v917, 2147483648
  %v1188 = vor.u32 1.1754944e-38, %v1187
  %v1189 = vsel %vm1186, %v1188, %v1184
  %v1190 = vmul.f32 1.0, %v1189
  %v1191 = vrcp.pop %v918
  %v1192 = vmul.f32 %v918, %v1191
  %v1193 = vsub.f32 1.0, %v1192
  %v1194 = vmul.f32 %v1191, %v1193
  %v1195 = vadd.f32 %v1191, %v1194
  %vm1196 = vweird.f32 %v918
  %vm1197 = vweird.f32 %v1191
  %vm1198 = vmor %vm1196, %vm1197
  %v1199 = vsel %vm1198, %v1191, %v1195
  %v1200 = vand.u32 2147483647, %v918
  %vm1201 = vcmp.eq.f32.partialorder %v1200, 8.507059e+37
  %v1202 = vand.u32 %v918, 2147483648
  %v1203 = vor.u32 1.1754944e-38, %v1202
  %v1204 = vsel %vm1201, %v1203, %v1199
  %v1205 = vmul.f32 1.0, %v1204
  %v1206 = vrcp.pop %v919
  %v1207 = vmul.f32 %v919, %v1206
  %v1208 = vsub.f32 1.0, %v1207
  %v1209 = vmul.f32 %v1206, %v1208
  %v1210 = vadd.f32 %v1206, %v1209
  %vm1211 = vweird.f32 %v919
  %vm1212 = vweird.f32 %v1206
  %vm1213 = vmor %vm1211, %vm1212
  %v1214 = vsel %vm1213, %v1206, %v1210
  %v1215 = vand.u32 2147483647, %v919
  %vm1216 = vcmp.eq.f32.partialorder %v1215, 8.507059e+37
  %v1217 = vand.u32 %v919, 2147483648
  %v1218 = vor.u32 1.1754944e-38, %v1217
  %v1219 = vsel %vm1216, %v1218, %v1214
  %v1220 = vmul.f32 1.0, %v1219
  %v1221 = vrcp.pop %v920
  %v1222 = vmul.f32 %v920, %v1221
  %v1223 = vsub.f32 1.0, %v1222
  %v1224 = vmul.f32 %v1221, %v1223
  %v1225 = vadd.f32 %v1221, %v1224
  %vm1226 = vweird.f32 %v920
  %vm1227 = vweird.f32 %v1221
  %vm1228 = vmor %vm1226, %vm1227
  %v1229 = vsel %vm1228, %v1221, %v1225
  %v1230 = vand.u32 2147483647, %v920
  %vm1231 = vcmp.eq.f32.partialorder %v1230, 8.507059e+37
  %v1232 = vand.u32 %v920, 2147483648
  %v1233 = vor.u32 1.1754944e-38, %v1232
  %v1234 = vsel %vm1231, %v1233, %v1229
  %v1235 = vmul.f32 1.0, %v1234
  %v1236 = vrcp.pop %v921
  %v1237 = vmul.f32 %v921, %v1236
  %v1238 = vsub.f32 1.0, %v1237
  %v1239 = vmul.f32 %v1236, %v1238
  %v1240 = vadd.f32 %v1236, %v1239
  %vm1241 = vweird.f32 %v921
  %vm1242 = vweird.f32 %v1236
  %vm1243 = vmor %vm1241, %vm1242
  %v1244 = vsel %vm1243, %v1236, %v1240
  %v1245 = vand.u32 2147483647, %v921
  %vm1246 = vcmp.eq.f32.partialorder %v1245, 8.507059e+37
  %v1247 = vand.u32 %v921, 2147483648
  %v1248 = vor.u32 1.1754944e-38, %v1247
  %v1249 = vsel %vm1246, %v1248, %v1244
  %v1250 = vmul.f32 1.0, %v1249
  %v1251 = vrcp.pop %v922
  %v1252 = vmul.f32 %v922, %v1251
  %v1253 = vsub.f32 1.0, %v1252
  %v1254 = vmul.f32 %v1251, %v1253
  %v1255 = vadd.f32 %v1251, %v1254
  %vm1256 = vweird.f32 %v922
  %vm1257 = vweird.f32 %v1251
  %vm1258 = vmor %vm1256, %vm1257
  %v1259 = vsel %vm1258, %v1251, %v1255
  %v1260 = vand.u32 2147483647, %v922
  %vm1261 = vcmp.eq.f32.partialorder %v1260, 8.507059e+37
  %v1262 = vand.u32 %v922, 2147483648
  %v1263 = vor.u32 1.1754944e-38, %v1262
  %v1264 = vsel %vm1261, %v1263, %v1259
  %v1265 = vmul.f32 1.0, %v1264
  %v1266 = vrcp.pop %v923
  %v1267 = vmul.f32 %v923, %v1266
  %v1268 = vsub.f32 1.0, %v1267
  %v1269 = vmul.f32 %v1266, %v1268
  %v1270 = vadd.f32 %v1266, %v1269
  %vm1271 = vweird.f32 %v923
  %vm1272 = vweird.f32 %v1266
  %vm1273 = vmor %vm1271, %vm1272
  %v1274 = vsel %vm1273, %v1266, %v1270
  %v1275 = vand.u32 2147483647, %v923
  %vm1276 = vcmp.eq.f32.partialorder %v1275, 8.507059e+37
  %v1277 = vand.u32 %v923, 2147483648
  %v1278 = vor.u32 1.1754944e-38, %v1277
  %v1279 = vsel %vm1276, %v1278, %v1274
  %v1280 = vmul.f32 1.0, %v1279
  %v1281 = vrcp.pop %v924
  %v1282 = vmul.f32 %v924, %v1281
  %v1283 = vsub.f32 1.0, %v1282
  %v1284 = vmul.f32 %v1281, %v1283
  %v1285 = vadd.f32 %v1281, %v1284
  %vm1286 = vweird.f32 %v924
  %vm1287 = vweird.f32 %v1281
  %vm1288 = vmor %vm1286, %vm1287
  %v1289 = vsel %vm1288, %v1281, %v1285
  %v1290 = vand.u32 2147483647, %v924
  %vm1291 = vcmp.eq.f32.partialorder %v1290, 8.507059e+37
  %v1292 = vand.u32 %v924, 2147483648
  %v1293 = vor.u32 1.1754944e-38, %v1292
  %v1294 = vsel %vm1291, %v1293, %v1289
  %v1295 = vmul.f32 1.0, %v1294
  %v1296 = vrcp.pop %v925
  %v1297 = vmul.f32 %v925, %v1296
  %v1298 = vsub.f32 1.0, %v1297
  %v1299 = vmul.f32 %v1296, %v1298
  %v1300 = vadd.f32 %v1296, %v1299
  %vm1301 = vweird.f32 %v925
  %vm1302 = vweird.f32 %v1296
  %vm1303 = vmor %vm1301, %vm1302
  %v1304 = vsel %vm1303, %v1296, %v1300
  %v1305 = vand.u32 2147483647, %v925
  %vm1306 = vcmp.eq.f32.partialorder %v1305, 8.507059e+37
  %v1307 = vand.u32 %v925, 2147483648
  %v1308 = vor.u32 1.1754944e-38, %v1307
  %v1309 = vsel %vm1306, %v1308, %v1304
  %v1310 = vmul.f32 1.0, %v1309
  %v1311 = vrcp.pop %v926
  %v1312 = vmul.f32 %v926, %v1311
  %v1313 = vsub.f32 1.0, %v1312
  %v1314 = vmul.f32 %v1311, %v1313
  %v1315 = vadd.f32 %v1311, %v1314
  %vm1316 = vweird.f32 %v926
  %vm1317 = vweird.f32 %v1311
  %vm1318 = vmor %vm1316, %vm1317
  %v1319 = vsel %vm1318, %v1311, %v1315
  %v1320 = vand.u32 2147483647, %v926
  %vm1321 = vcmp.eq.f32.partialorder %v1320, 8.507059e+37
  %v1322 = vand.u32 %v926, 2147483648
  %v1323 = vor.u32 1.1754944e-38, %v1322
  %v1324 = vsel %vm1321, %v1323, %v1319
  %v1325 = vmul.f32 1.0, %v1324
  %v1326 = vrcp.pop %v927
  %v1327 = vmul.f32 %v927, %v1326
  %v1328 = vsub.f32 1.0, %v1327
  %v1329 = vmul.f32 %v1326, %v1328
  %v1330 = vadd.f32 %v1326, %v1329
  %vm1331 = vweird.f32 %v927
  %vm1332 = vweird.f32 %v1326
  %vm1333 = vmor %vm1331, %vm1332
  %v1334 = vsel %vm1333, %v1326, %v1330
  %v1335 = vand.u32 2147483647, %v927
  %vm1336 = vcmp.eq.f32.partialorder %v1335, 8.507059e+37
  %v1337 = vand.u32 %v927, 2147483648
  %v1338 = vor.u32 1.1754944e-38, %v1337
  %v1339 = vsel %vm1336, %v1338, %v1334
  %v1340 = vmul.f32 1.0, %v1339
  %v1341 = vrcp.pop %v928
  %v1342 = vmul.f32 %v928, %v1341
  %v1343 = vsub.f32 1.0, %v1342
  %v1344 = vmul.f32 %v1341, %v1343
  %v1345 = vadd.f32 %v1341, %v1344
  %vm1346 = vweird.f32 %v928
  %vm1347 = vweird.f32 %v1341
  %vm1348 = vmor %vm1346, %vm1347
  %v1349 = vsel %vm1348, %v1341, %v1345
  %v1350 = vand.u32 2147483647, %v928
  %vm1351 = vcmp.eq.f32.partialorder %v1350, 8.507059e+37
  %v1352 = vand.u32 %v928, 2147483648
  %v1353 = vor.u32 1.1754944e-38, %v1352
  %v1354 = vsel %vm1351, %v1353, %v1349
  %v1355 = vmul.f32 1.0, %v1354
  %v1356 = vrcp.pop %v929
  %v1357 = vmul.f32 %v929, %v1356
  %v1358 = vsub.f32 1.0, %v1357
  %v1359 = vmul.f32 %v1356, %v1358
  %v1360 = vadd.f32 %v1356, %v1359
  %vm1361 = vweird.f32 %v929
  %vm1362 = vweird.f32 %v1356
  %vm1363 = vmor %vm1361, %vm1362
  %v1364 = vsel %vm1363, %v1356, %v1360
  %v1365 = vand.u32 2147483647, %v929
  %vm1366 = vcmp.eq.f32.partialorder %v1365, 8.507059e+37
  %v1367 = vand.u32 %v929, 2147483648
  %v1368 = vor.u32 1.1754944e-38, %v1367
  %v1369 = vsel %vm1366, %v1368, %v1364
  %v1370 = vmul.f32 1.0, %v1369
  %v1371 = vrcp.pop %v930
  %v1372 = vmul.f32 %v930, %v1371
  %v1373 = vsub.f32 1.0, %v1372
  %v1374 = vmul.f32 %v1371, %v1373
  %v1375 = vadd.f32 %v1371, %v1374
  %vm1376 = vweird.f32 %v930
  %vm1377 = vweird.f32 %v1371
  %vm1378 = vmor %vm1376, %vm1377
  %v1379 = vsel %vm1378, %v1371, %v1375
  %v1380 = vand.u32 2147483647, %v930
  %vm1381 = vcmp.eq.f32.partialorder %v1380, 8.507059e+37
  %v1382 = vand.u32 %v930, 2147483648
  %v1383 = vor.u32 1.1754944e-38, %v1382
  %v1384 = vsel %vm1381, %v1383, %v1379
  %v1385 = vmul.f32 1.0, %v1384
  %v1386 = vrcp.pop %v931
  %v1387 = vmul.f32 %v931, %v1386
  %v1388 = vsub.f32 1.0, %v1387
  %v1389 = vmul.f32 %v1386, %v1388
  %v1390 = vadd.f32 %v1386, %v1389
  %vm1391 = vweird.f32 %v931
  %vm1392 = vweird.f32 %v1386
  %vm1393 = vmor %vm1391, %vm1392
  %v1394 = vsel %vm1393, %v1386, %v1390
  %v1395 = vand.u32 2147483647, %v931
  %vm1396 = vcmp.eq.f32.partialorder %v1395, 8.507059e+37
  %v1397 = vand.u32 %v931, 2147483648
  %v1398 = vor.u32 1.1754944e-38, %v1397
  %v1399 = vsel %vm1396, %v1398, %v1394
  %v1400 = vmul.f32 1.0, %v1399
  %v1401 = vrcp.pop %v932
  %v1402 = vmul.f32 %v932, %v1401
  %v1403 = vsub.f32 1.0, %v1402
  %v1404 = vmul.f32 %v1401, %v1403
  %v1405 = vadd.f32 %v1401, %v1404
  %vm1406 = vweird.f32 %v932
  %vm1407 = vweird.f32 %v1401
  %vm1408 = vmor %vm1406, %vm1407
  %v1409 = vsel %vm1408, %v1401, %v1405
  %v1410 = vand.u32 2147483647, %v932
  %vm1411 = vcmp.eq.f32.partialorder %v1410, 8.507059e+37
  %v1412 = vand.u32 %v932, 2147483648
  %v1413 = vor.u32 1.1754944e-38, %v1412
  %v1414 = vsel %vm1411, %v1413, %v1409
  %v1415 = vmul.f32 1.0, %v1414
  %v1416 = vrcp.pop %v933
  %v1417 = vmul.f32 %v933, %v1416
  %v1418 = vsub.f32 1.0, %v1417
  %v1419 = vmul.f32 %v1416, %v1418
  %v1420 = vadd.f32 %v1416, %v1419
  %vm1421 = vweird.f32 %v933
  %vm1422 = vweird.f32 %v1416
  %vm1423 = vmor %vm1421, %vm1422
  %v1424 = vsel %vm1423, %v1416, %v1420
  %v1425 = vand.u32 2147483647, %v933
  %vm1426 = vcmp.eq.f32.partialorder %v1425, 8.507059e+37
  %v1427 = vand.u32 %v933, 2147483648
  %v1428 = vor.u32 1.1754944e-38, %v1427
  %v1429 = vsel %vm1426, %v1428, %v1424
  %v1430 = vmul.f32 1.0, %v1429
  %v1431 = vrcp.pop %v934
  %v1432 = vmul.f32 %v934, %v1431
  %v1433 = vsub.f32 1.0, %v1432
  %v1434 = vmul.f32 %v1431, %v1433
  %v1435 = vadd.f32 %v1431, %v1434
  %vm1436 = vweird.f32 %v934
  %vm1437 = vweird.f32 %v1431
  %vm1438 = vmor %vm1436, %vm1437
  %v1439 = vsel %vm1438, %v1431, %v1435
  %v1440 = vand.u32 2147483647, %v934
  %vm1441 = vcmp.eq.f32.partialorder %v1440, 8.507059e+37
  %v1442 = vand.u32 %v934, 2147483648
  %v1443 = vor.u32 1.1754944e-38, %v1442
  %v1444 = vsel %vm1441, %v1443, %v1439
  %v1445 = vmul.f32 1.0, %v1444
  %v1446 = vrcp.pop %v935
  %v1447 = vmul.f32 %v935, %v1446
  %v1448 = vsub.f32 1.0, %v1447
  %v1449 = vmul.f32 %v1446, %v1448
  %v1450 = vadd.f32 %v1446, %v1449
  %vm1451 = vweird.f32 %v935
  %vm1452 = vweird.f32 %v1446
  %vm1453 = vmor %vm1451, %vm1452
  %v1454 = vsel %vm1453, %v1446, %v1450
  %v1455 = vand.u32 2147483647, %v935
  %vm1456 = vcmp.eq.f32.partialorder %v1455, 8.507059e+37
  %v1457 = vand.u32 %v935, 2147483648
  %v1458 = vor.u32 1.1754944e-38, %v1457
  %v1459 = vsel %vm1456, %v1458, %v1454
  %v1460 = vmul.f32 1.0, %v1459
  %v1461 = vrcp.pop %v936
  %v1462 = vmul.f32 %v936, %v1461
  %v1463 = vsub.f32 1.0, %v1462
  %v1464 = vmul.f32 %v1461, %v1463
  %v1465 = vadd.f32 %v1461, %v1464
  %vm1466 = vweird.f32 %v936
  %vm1467 = vweird.f32 %v1461
  %vm1468 = vmor %vm1466, %vm1467
  %v1469 = vsel %vm1468, %v1461, %v1465
  %v1470 = vand.u32 2147483647, %v936
  %vm1471 = vcmp.eq.f32.partialorder %v1470, 8.507059e+37
  %v1472 = vand.u32 %v936, 2147483648
  %v1473 = vor.u32 1.1754944e-38, %v1472
  %v1474 = vsel %vm1471, %v1473, %v1469
  %v1475 = vmul.f32 1.0, %v1474
  %v1476 = vrcp.pop %v937
  %v1477 = vmul.f32 %v937, %v1476
  %v1478 = vsub.f32 1.0, %v1477
  %v1479 = vmul.f32 %v1476, %v1478
  %v1480 = vadd.f32 %v1476, %v1479
  %vm1481 = vweird.f32 %v937
  %vm1482 = vweird.f32 %v1476
  %vm1483 = vmor %vm1481, %vm1482
  %v1484 = vsel %vm1483, %v1476, %v1480
  %v1485 = vand.u32 2147483647, %v937
  %vm1486 = vcmp.eq.f32.partialorder %v1485, 8.507059e+37
  %v1487 = vand.u32 %v937, 2147483648
  %v1488 = vor.u32 1.1754944e-38, %v1487
  %v1489 = vsel %vm1486, %v1488, %v1484
  %v1490 = vmul.f32 1.0, %v1489
  %v1491 = vrcp.pop %v938
  %v1492 = vmul.f32 %v938, %v1491
  %v1493 = vsub.f32 1.0, %v1492
  %v1494 = vmul.f32 %v1491, %v1493
  %v1495 = vadd.f32 %v1491, %v1494
  %vm1496 = vweird.f32 %v938
  %vm1497 = vweird.f32 %v1491
  %vm1498 = vmor %vm1496, %vm1497
  %v1499 = vsel %vm1498, %v1491, %v1495
  %v1500 = vand.u32 2147483647, %v938
  %vm1501 = vcmp.eq.f32.partialorder %v1500, 8.507059e+37
  %v1502 = vand.u32 %v938, 2147483648
  %v1503 = vor.u32 1.1754944e-38, %v1502
  %v1504 = vsel %vm1501, %v1503, %v1499
  %v1505 = vmul.f32 1.0, %v1504
  %v1506 = vrcp.pop %v939
  %v1507 = vmul.f32 %v939, %v1506
  %v1508 = vsub.f32 1.0, %v1507
  %v1509 = vmul.f32 %v1506, %v1508
  %v1510 = vadd.f32 %v1506, %v1509
  %vm1511 = vweird.f32 %v939
  %vm1512 = vweird.f32 %v1506
  %vm1513 = vmor %vm1511, %vm1512
  %v1514 = vsel %vm1513, %v1506, %v1510
  %v1515 = vand.u32 2147483647, %v939
  %vm1516 = vcmp.eq.f32.partialorder %v1515, 8.507059e+37
  %v1517 = vand.u32 %v939, 2147483648
  %v1518 = vor.u32 1.1754944e-38, %v1517
  %v1519 = vsel %vm1516, %v1518, %v1514
  %v1520 = vmul.f32 1.0, %v1519
  %v1521 = vrcp.pop %v940
  %v1522 = vmul.f32 %v940, %v1521
  %v1523 = vsub.f32 1.0, %v1522
  %v1524 = vmul.f32 %v1521, %v1523
  %v1525 = vadd.f32 %v1521, %v1524
  %vm1526 = vweird.f32 %v940
  %vm1527 = vweird.f32 %v1521
  %vm1528 = vmor %vm1526, %vm1527
  %v1529 = vsel %vm1528, %v1521, %v1525
  %v1530 = vand.u32 2147483647, %v940
  %vm1531 = vcmp.eq.f32.partialorder %v1530, 8.507059e+37
  %v1532 = vand.u32 %v940, 2147483648
  %v1533 = vor.u32 1.1754944e-38, %v1532
  %v1534 = vsel %vm1531, %v1533, %v1529
  %v1535 = vmul.f32 1.0, %v1534
  %v1536 = vrcp.pop %v941
  %v1537 = vmul.f32 %v941, %v1536
  %v1538 = vsub.f32 1.0, %v1537
  %v1539 = vmul.f32 %v1536, %v1538
  %v1540 = vadd.f32 %v1536, %v1539
  %vm1541 = vweird.f32 %v941
  %vm1542 = vweird.f32 %v1536
  %vm1543 = vmor %vm1541, %vm1542
  %v1544 = vsel %vm1543, %v1536, %v1540
  %v1545 = vand.u32 2147483647, %v941
  %vm1546 = vcmp.eq.f32.partialorder %v1545, 8.507059e+37
  %v1547 = vand.u32 %v941, 2147483648
  %v1548 = vor.u32 1.1754944e-38, %v1547
  %v1549 = vsel %vm1546, %v1548, %v1544
  %v1550 = vmul.f32 1.0, %v1549
  %v1551 = vrcp.pop %v942
  %v1552 = vmul.f32 %v942, %v1551
  %v1553 = vsub.f32 1.0, %v1552
  %v1554 = vmul.f32 %v1551, %v1553
  %v1555 = vadd.f32 %v1551, %v1554
  %vm1556 = vweird.f32 %v942
  %vm1557 = vweird.f32 %v1551
  %vm1558 = vmor %vm1556, %vm1557
  %v1559 = vsel %vm1558, %v1551, %v1555
  %v1560 = vand.u32 2147483647, %v942
  %vm1561 = vcmp.eq.f32.partialorder %v1560, 8.507059e+37
  %v1562 = vand.u32 %v942, 2147483648
  %v1563 = vor.u32 1.1754944e-38, %v1562
  %v1564 = vsel %vm1561, %v1563, %v1559
  %v1565 = vmul.f32 1.0, %v1564
  %v1566 = vrcp.pop %v943
  %v1567 = vmul.f32 %v943, %v1566
  %v1568 = vsub.f32 1.0, %v1567
  %v1569 = vmul.f32 %v1566, %v1568
  %v1570 = vadd.f32 %v1566, %v1569
  %vm1571 = vweird.f32 %v943
  %vm1572 = vweird.f32 %v1566
  %vm1573 = vmor %vm1571, %vm1572
  %v1574 = vsel %vm1573, %v1566, %v1570
  %v1575 = vand.u32 2147483647, %v943
  %vm1576 = vcmp.eq.f32.partialorder %v1575, 8.507059e+37
  %v1577 = vand.u32 %v943, 2147483648
  %v1578 = vor.u32 1.1754944e-38, %v1577
  %v1579 = vsel %vm1576, %v1578, %v1574
  %v1580 = vmul.f32 1.0, %v1579
  %v1581 = vrcp.pop %v944
  %v1582 = vmul.f32 %v944, %v1581
  %v1583 = vsub.f32 1.0, %v1582
  %v1584 = vmul.f32 %v1581, %v1583
  %v1585 = vadd.f32 %v1581, %v1584
  %vm1586 = vweird.f32 %v944
  %vm1587 = vweird.f32 %v1581
  %vm1588 = vmor %vm1586, %vm1587
  %v1589 = vsel %vm1588, %v1581, %v1585
  %v1590 = vand.u32 2147483647, %v944
  %vm1591 = vcmp.eq.f32.partialorder %v1590, 8.507059e+37
  %v1592 = vand.u32 %v944, 2147483648
  %v1593 = vor.u32 1.1754944e-38, %v1592
  %v1594 = vsel %vm1591, %v1593, %v1589
  %v1595 = vmul.f32 1.0, %v1594
  %v1596 = vrcp.pop %v945
  %v1597 = vmul.f32 %v945, %v1596
  %v1598 = vsub.f32 1.0, %v1597
  %v1599 = vmul.f32 %v1596, %v1598
  %v1600 = vadd.f32 %v1596, %v1599
  %vm1601 = vweird.f32 %v945
  %vm1602 = vweird.f32 %v1596
  %vm1603 = vmor %vm1601, %vm1602
  %v1604 = vsel %vm1603, %v1596, %v1600
  %v1605 = vand.u32 2147483647, %v945
  %vm1606 = vcmp.eq.f32.partialorder %v1605, 8.507059e+37
  %v1607 = vand.u32 %v945, 2147483648
  %v1608 = vor.u32 1.1754944e-38, %v1607
  %v1609 = vsel %vm1606, %v1608, %v1604
  %v1610 = vmul.f32 1.0, %v1609
  %v1611 = vrcp.pop %v946
  %v1612 = vmul.f32 %v946, %v1611
  %v1613 = vsub.f32 1.0, %v1612
  %v1614 = vmul.f32 %v1611, %v1613
  %v1615 = vadd.f32 %v1611, %v1614
  %vm1616 = vweird.f32 %v946
  %vm1617 = vweird.f32 %v1611
  %vm1618 = vmor %vm1616, %vm1617
  %v1619 = vsel %vm1618, %v1611, %v1615
  %v1620 = vand.u32 2147483647, %v946
  %vm1621 = vcmp.eq.f32.partialorder %v1620, 8.507059e+37
  %v1622 = vand.u32 %v946, 2147483648
  %v1623 = vor.u32 1.1754944e-38, %v1622
  %v1624 = vsel %vm1621, %v1623, %v1619
  %v1625 = vmul.f32 1.0, %v1624
  %v1626 = vrcp.pop %v947
  %v1627 = vmul.f32 %v947, %v1626
  %v1628 = vsub.f32 1.0, %v1627
  %v1629 = vmul.f32 %v1626, %v1628
  %v1630 = vadd.f32 %v1626, %v1629
  %vm1631 = vweird.f32 %v947
  %vm1632 = vweird.f32 %v1626
  %vm1633 = vmor %vm1631, %vm1632
  %v1634 = vsel %vm1633, %v1626, %v1630
  %v1635 = vand.u32 2147483647, %v947
  %vm1636 = vcmp.eq.f32.partialorder %v1635, 8.507059e+37
  %v1637 = vand.u32 %v947, 2147483648
  %v1638 = vor.u32 1.1754944e-38, %v1637
  %v1639 = vsel %vm1636, %v1638, %v1634
  %v1640 = vmul.f32 1.0, %v1639
  %v1641 = vrcp.pop %v948
  %v1642 = vmul.f32 %v948, %v1641
  %v1643 = vsub.f32 1.0, %v1642
  %v1644 = vmul.f32 %v1641, %v1643
  %v1645 = vadd.f32 %v1641, %v1644
  %vm1646 = vweird.f32 %v948
  %vm1647 = vweird.f32 %v1641
  %vm1648 = vmor %vm1646, %vm1647
  %v1649 = vsel %vm1648, %v1641, %v1645
  %v1650 = vand.u32 2147483647, %v948
  %vm1651 = vcmp.eq.f32.partialorder %v1650, 8.507059e+37
  %v1652 = vand.u32 %v948, 2147483648
  %v1653 = vor.u32 1.1754944e-38, %v1652
  %v1654 = vsel %vm1651, %v1653, %v1649
  %v1655 = vmul.f32 1.0, %v1654
  %v1656 = vrcp.pop %v949
  %v1657 = vmul.f32 %v949, %v1656
  %v1658 = vsub.f32 1.0, %v1657
  %v1659 = vmul.f32 %v1656, %v1658
  %v1660 = vadd.f32 %v1656, %v1659
  %vm1661 = vweird.f32 %v949
  %vm1662 = vweird.f32 %v1656
  %vm1663 = vmor %vm1661, %vm1662
  %v1664 = vsel %vm1663, %v1656, %v1660
  %v1665 = vand.u32 2147483647, %v949
  %vm1666 = vcmp.eq.f32.partialorder %v1665, 8.507059e+37
  %v1667 = vand.u32 %v949, 2147483648
  %v1668 = vor.u32 1.1754944e-38, %v1667
  %v1669 = vsel %vm1666, %v1668, %v1664
  %v1670 = vmul.f32 1.0, %v1669
  %v1671 = vrcp.pop %v950
  %v1672 = vmul.f32 %v950, %v1671
  %v1673 = vsub.f32 1.0, %v1672
  %v1674 = vmul.f32 %v1671, %v1673
  %v1675 = vadd.f32 %v1671, %v1674
  %vm1676 = vweird.f32 %v950
  %vm1677 = vweird.f32 %v1671
  %vm1678 = vmor %vm1676, %vm1677
  %v1679 = vsel %vm1678, %v1671, %v1675
  %v1680 = vand.u32 2147483647, %v950
  %vm1681 = vcmp.eq.f32.partialorder %v1680, 8.507059e+37
  %v1682 = vand.u32 %v950, 2147483648
  %v1683 = vor.u32 1.1754944e-38, %v1682
  %v1684 = vsel %vm1681, %v1683, %v1679
  %v1685 = vmul.f32 1.0, %v1684
  %1686 = vst [vmem:[%s3] sm:$0xff] %v965
  %1687 = vst [vmem:[%s3 + $0x8] sm:$0xff] %v980
  %1688 = vst [vmem:[%s3 + $0x10] sm:$0xff] %v995
  %1689 = vst [vmem:[%s3 + $0x18] sm:$0xff] %v1010
  %1690 = vst [vmem:[%s3 + $0x20] sm:$0xff] %v1025
  %1691 = vst [vmem:[%s3 + $0x28] sm:$0xff] %v1040
  %1692 = vst [vmem:[%s3 + $0x30] sm:$0xff] %v1055
  %1693 = vst [vmem:[%s3 + $0x38] sm:$0xff] %v1070
  %1694 = vst [vmem:[%s3 + $0x40] sm:$0xff] %v1085
  %1695 = vst [vmem:[%s3 + $0x48] sm:$0xff] %v1100
  %1696 = vst [vmem:[%s3 + $0x50] sm:$0xff] %v1115
  %1697 = vst [vmem:[%s3 + $0x58] sm:$0xff] %v1130
  %1698 = vst [vmem:[%s3 + $0x60] sm:$0xff] %v1145
  %1699 = vst [vmem:[%s3 + $0x68] sm:$0xff] %v1160
  %1700 = vst [vmem:[%s3 + $0x70] sm:$0xff] %v1175
  %1701 = vst [vmem:[%s3 + $0x78] sm:$0xff] %v1190
  %1702 = vst [vmem:[%s3 + $0x80] sm:$0xff] %v1205
  %1703 = vst [vmem:[%s3 + $0x88] sm:$0xff] %v1220
  %1704 = vst [vmem:[%s3 + $0x90] sm:$0xff] %v1235
  %1705 = vst [vmem:[%s3 + $0x98] sm:$0xff] %v1250
  %1706 = vst [vmem:[%s3 + $0xa0] sm:$0xff] %v1265
  %1707 = vst [vmem:[%s3 + $0xa8] sm:$0xff] %v1280
  %1708 = vst [vmem:[%s3 + $0xb0] sm:$0xff] %v1295
  %1709 = vst [vmem:[%s3 + $0xb8] sm:$0xff] %v1310
  %1710 = vst [vmem:[%s3 + $0xc0] sm:$0xff] %v1325
  %1711 = vst [vmem:[%s3 + $0xc8] sm:$0xff] %v1340
  %1712 = vst [vmem:[%s3 + $0xd0] sm:$0xff] %v1355
  %1713 = vst [vmem:[%s3 + $0xd8] sm:$0xff] %v1370
  %1714 = vst [vmem:[%s3 + $0xe0] sm:$0xff] %v1385
  %1715 = vst [vmem:[%s3 + $0xe8] sm:$0xff] %v1400
  %1716 = vst [vmem:[%s3 + $0xf0] sm:$0xff] %v1415
  %1717 = vst [vmem:[%s3 + $0xf8] sm:$0xff] %v1430
  %1718 = vst [vmem:[%s3 + $0x100] sm:$0xff] %v1445
  %1719 = vst [vmem:[%s3 + $0x108] sm:$0xff] %v1460
  %1720 = vst [vmem:[%s3 + $0x110] sm:$0xff] %v1475
  %1721 = vst [vmem:[%s3 + $0x118] sm:$0xff] %v1490
  %1722 = vst [vmem:[%s3 + $0x120] sm:$0xff] %v1505
  %1723 = vst [vmem:[%s3 + $0x128] sm:$0xff] %v1520
  %1724 = vst [vmem:[%s3 + $0x130] sm:$0xff] %v1535
  %1725 = vst [vmem:[%s3 + $0x138] sm:$0xff] %v1550
  %1726 = vst [vmem:[%s3 + $0x140] sm:$0xff] %v1565
  %1727 = vst [vmem:[%s3 + $0x148] sm:$0xff] %v1580
  %1728 = vst [vmem:[%s3 + $0x150] sm:$0xff] %v1595
  %1729 = vst [vmem:[%s3 + $0x158] sm:$0xff] %v1610
  %1730 = vst [vmem:[%s3 + $0x160] sm:$0xff] %v1625
  %1731 = vst [vmem:[%s3 + $0x168] sm:$0xff] %v1640
  %1732 = vst [vmem:[%s3 + $0x170] sm:$0xff] %v1655
  %1733 = vst [vmem:[%s3 + $0x178] sm:$0xff] %v1670
  %1734 = vst [vmem:[%s3 + $0x180] sm:$0xff] %v1685
  // Predicated region
  $region14: #{ae_cnn_mnist_forward.24} parent=0 // pred_check
    _
  $region15: #{ae_cnn_mnist_forward.24} parent=0 // pred_check_branch
    %1736 = sbr.rel (0) target = $region17
  $region16: #{ae_cnn_mnist_forward.24} parent=0 // pred_region
    _
  $region17: #{ae_cnn_mnist_forward.24} parent=0 // pred_fallthru
    _
  // Predicated region
  $region18: #{ae_cnn_mnist_forward.24} parent=0 // pred_check
    _
  $region19: #{ae_cnn_mnist_forward.24} parent=0 // pred_check_branch
    %1738 = sbr.rel (0) target = $region21
  $region20: #{ae_cnn_mnist_forward.24} parent=0 // pred_region
    _
  $region21: #{ae_cnn_mnist_forward.24} parent=0 // pred_fallthru
    _

// kernel: ae_cnn_mnist_forward.25
$region0: #{ae_cnn_mnist_forward.25}
  #allocation0 [shape = 'u32[]', space=smem, size = 0x4, offset = 0x4, fixed_abs, tag = 'smem constant byte address 0x4 - core index']
  #allocation1 [shape = 'u32[72,128]{1,0:T(1,128)}', space=vmem, size = 0x9000, scoped, tag = 'internal scratch']
  %s0 = inlined_call_operand.vmem [shape: bf16[392,156], index: 0, kind: input, shape index: {}]
  %s1 = inlined_call_operand.vmem [shape: bf16[156,128], index: 1, kind: input, shape index: {}]
  %s2 = inlined_call_operand.vmem [shape: f32[1,128], index: 2, kind: input, shape index: {}]
  %s3 = inlined_call_operand.vmem [shape: f32[392,128], index: 3, kind: output, shape index: {}]
  %s4 = sld [smem:[#allocation0]]
  $region22: #{ae_cnn_mnist_forward.25} parent=0
    _
  %s6 = ssub.s32 1, %s4
  %s7 = scalar_select 0, %s6, %s4
  // Predicated region
  $region2: #{ae_cnn_mnist_forward.25} parent=0 // pred_check
    _
  $region3: #{ae_cnn_mnist_forward.25} parent=0 // pred_check_branch
    %9 = sbr.rel (0) target = $region5
  $region4: #{ae_cnn_mnist_forward.25} parent=0 // pred_region
    _
  $region5: #{ae_cnn_mnist_forward.25} parent=0 // pred_fallthru
    _
  // Predicated region
  $region6: #{ae_cnn_mnist_forward.25} parent=0 // pred_check
    _
  $region7: #{ae_cnn_mnist_forward.25} parent=0 // pred_check_branch
    %11 = sbr.rel (0) target = $region9
  $region8: #{ae_cnn_mnist_forward.25} parent=0 // pred_region
    _
  $region9: #{ae_cnn_mnist_forward.25} parent=0 // pred_fallthru
    _
  // Predicated region
  $region10: #{ae_cnn_mnist_forward.25} parent=0 // pred_check
    _
  $region11: #{ae_cnn_mnist_forward.25} parent=0 // pred_check_branch
    %13 = sbr.rel (0) target = $region13
  $region12: #{ae_cnn_mnist_forward.25} parent=0 // pred_region
    _
  $region13: #{ae_cnn_mnist_forward.25} parent=0 // pred_fallthru
    _
  %v15 = vld [vmem:[%s0] sm:$0xff]
  %v16 = vld [vmem:[%s0 + $0x8] sm:$0xff]
  %v17 = vld [vmem:[%s0 + $0x10] sm:$0xff]
  %v18 = vld [vmem:[%s0 + $0x18] sm:$0xff]
  %v19 = vld [vmem:[%s0 + $0x20] sm:$0xff]
  %v20 = vld [vmem:[%s0 + $0x28] sm:$0xff]
  %v21 = vld [vmem:[%s0 + $0x30] sm:$0xff]
  %v22 = vld [vmem:[%s0 + $0x38] sm:$0xff]
  %v23 = vld [vmem:[%s0 + $0x40] sm:$0xff]
  %v24 = vld [vmem:[%s0 + $0x48] sm:$0xff]
  %v25 = vld [vmem:[%s0 + $0x50] sm:$0xff]
  %v26 = vld [vmem:[%s0 + $0x58] sm:$0xff]
  %v27 = vld [vmem:[%s0 + $0x60] sm:$0xff]
  %v28 = vld [vmem:[%s0 + $0x68] sm:$0xff]
  %v29 = vld [vmem:[%s0 + $0x70] sm:$0xff]
  %v30 = vld [vmem:[%s0 + $0x78] sm:$0xff]
  %v31 = vld [vmem:[%s0 + $0x80] sm:$0xff]
  %v32 = vld [vmem:[%s0 + $0x88] sm:$0xff]
  %v33 = vld [vmem:[%s0 + $0x90] sm:$0xff]
  %v34 = vld [vmem:[%s0 + $0x98] sm:$0xff]
  %v35 = vld [vmem:[%s0 + $0xa0] sm:$0xff]
  %v36 = vld [vmem:[%s0 + $0xa8] sm:$0xff]
  %v37 = vld [vmem:[%s0 + $0xb0] sm:$0xff]
  %v38 = vld [vmem:[%s0 + $0xb8] sm:$0xff]
  %v39 = vld [vmem:[%s0 + $0xc0] sm:$0xff]
  %v40 = vld [vmem:[%s0 + $0xc8] sm:$0xff]
  %v41 = vld [vmem:[%s0 + $0xd0] sm:$0xff]
  %v42 = vld [vmem:[%s0 + $0xd8] sm:$0xff]
  %v43 = vld [vmem:[%s0 + $0xe0] sm:$0xff]
  %v44 = vld [vmem:[%s0 + $0xe8] sm:$0xff]
  %v45 = vld [vmem:[%s0 + $0xf0] sm:$0xff]
  %v46 = vld [vmem:[%s0 + $0xf8] sm:$0xff]
  %v47 = vld [vmem:[%s0 + $0x100] sm:$0xff]
  %v48 = vld [vmem:[%s0 + $0x108] sm:$0xff]
  %v49 = vld [vmem:[%s0 + $0x110] sm:$0xff]
  %v50 = vld [vmem:[%s0 + $0x118] sm:$0xff]
  %v51 = vld [vmem:[%s0 + $0x120] sm:$0xff]
  %v52 = vld [vmem:[%s0 + $0x128] sm:$0xff]
  %v53 = vld [vmem:[%s0 + $0x130] sm:$0xff]
  %v54 = vld [vmem:[%s0 + $0x138] sm:$0xff]
  %v55 = vld [vmem:[%s0 + $0x140] sm:$0xff]
  %v56 = vld [vmem:[%s0 + $0x148] sm:$0xff]
  %v57 = vld [vmem:[%s0 + $0x150] sm:$0xff]
  %v58 = vld [vmem:[%s0 + $0x158] sm:$0xff]
  %v59 = vld [vmem:[%s0 + $0x160] sm:$0xff]
  %v60 = vld [vmem:[%s0 + $0x168] sm:$0xff]
  %v61 = vld [vmem:[%s0 + $0x170] sm:$0xff]
  %v62 = vld [vmem:[%s0 + $0x178] sm:$0xff]
  %v63 = vld [vmem:[%s0 + $0x180] sm:$0xff]
  %v64 = vld [vmem:[%s1] sm:$0xf]
  %v65 = vld [vmem:[%s1 + $0x4] sm:$0xf]
  %v66 = vld [vmem:[%s1 + $0x8] sm:$0xf]
  %v67 = vld [vmem:[%s1 + $0xc] sm:$0xf]
  %v68 = vld [vmem:[%s1 + $0x10] sm:$0xf]
  %v69 = vld [vmem:[%s1 + $0x14] sm:$0xf]
  %v70 = vld [vmem:[%s1 + $0x18] sm:$0xf]
  %v71 = vld [vmem:[%s1 + $0x1c] sm:$0xf]
  %v72 = vld [vmem:[%s1 + $0x20] sm:$0xf]
  %v73 = vld [vmem:[%s1 + $0x24] sm:$0xf]
  %v74 = vld [vmem:[%s1 + $0x28] sm:$0xf]
  %v75 = vld [vmem:[%s1 + $0x2c] sm:$0xf]
  %v76 = vld [vmem:[%s1 + $0x30] sm:$0xf]
  %v77 = vld [vmem:[%s1 + $0x34] sm:$0xf]
  %v78 = vld [vmem:[%s1 + $0x38] sm:$0xf]
  %v79 = vld [vmem:[%s1 + $0x3c] sm:$0xf]
  %v80 = vld [vmem:[%s1 + $0x40] sm:$0xf]
  %v81 = vld [vmem:[%s1 + $0x44] sm:$0xf]
  %v82 = vld [vmem:[%s1 + $0x48] sm:$0xf]
  %v83 = vld [vmem:[%s1 + $0x4c] sm:$0x3]
  %v84 = vld [vmem:[%s2] sm:$0x1]
  %v86 = vperm.slane %v84, 0
  %v137 = vunpack.c.l.b16 %v15
  %v138 = vunpack.c.h.b16 %v15
  %v139 = vunpack.c.l.b16 %v16
  %v140 = vunpack.c.h.b16 %v16
  %v141 = vunpack.c.l.b16 %v17
  %v142 = vunpack.c.h.b16 %v17
  %v143 = vunpack.c.l.b16 %v18
  %v144 = vunpack.c.h.b16 %v18
  %v145 = vunpack.c.l.b16 %v19
  %v146 = vunpack.c.h.b16 %v19
  %v147 = vunpack.c.l.b16 %v20
  %v148 = vunpack.c.h.b16 %v20
  %v149 = vunpack.c.l.b16 %v21
  %v150 = vunpack.c.h.b16 %v21
  %v151 = vunpack.c.l.b16 %v22
  %v152 = vunpack.c.h.b16 %v22
  %v153 = vunpack.c.l.b16 %v23
  %v154 = vunpack.c.h.b16 %v23
  %v155 = vunpack.c.l.b16 %v24
  %v156 = vunpack.c.h.b16 %v24
  %v157 = vunpack.c.l.b16 %v25
  %v158 = vunpack.c.h.b16 %v25
  %v159 = vunpack.c.l.b16 %v26
  %v160 = vunpack.c.h.b16 %v26
  %v161 = vunpack.c.l.b16 %v27
  %v162 = vunpack.c.h.b16 %v27
  %v163 = vunpack.c.l.b16 %v28
  %v164 = vunpack.c.h.b16 %v28
  %v165 = vunpack.c.l.b16 %v29
  %v166 = vunpack.c.h.b16 %v29
  %v167 = vunpack.c.l.b16 %v30
  %v168 = vunpack.c.h.b16 %v30
  %v169 = vunpack.c.l.b16 %v31
  %v170 = vunpack.c.h.b16 %v31
  %v171 = vunpack.c.l.b16 %v32
  %v172 = vunpack.c.h.b16 %v32
  %v173 = vunpack.c.l.b16 %v33
  %v174 = vunpack.c.h.b16 %v33
  %v175 = vunpack.c.l.b16 %v34
  %v176 = vunpack.c.h.b16 %v34
  %v177 = vunpack.c.l.b16 %v35
  %v178 = vunpack.c.h.b16 %v35
  %v179 = vunpack.c.l.b16 %v36
  %v180 = vunpack.c.h.b16 %v36
  %v181 = vunpack.c.l.b16 %v37
  %v182 = vunpack.c.h.b16 %v37
  %v183 = vunpack.c.l.b16 %v38
  %v184 = vunpack.c.h.b16 %v38
  %v185 = vunpack.c.l.b16 %v39
  %v186 = vunpack.c.h.b16 %v39
  %v187 = vunpack.c.l.b16 %v40
  %v188 = vunpack.c.h.b16 %v40
  %v189 = vunpack.c.l.b16 %v41
  %v190 = vunpack.c.h.b16 %v41
  %v191 = vunpack.c.l.b16 %v42
  %v192 = vunpack.c.h.b16 %v42
  %v193 = vunpack.c.l.b16 %v43
  %v194 = vunpack.c.h.b16 %v43
  %v195 = vunpack.c.l.b16 %v44
  %v196 = vunpack.c.h.b16 %v44
  %v197 = vunpack.c.l.b16 %v45
  %v198 = vunpack.c.h.b16 %v45
  %v199 = vunpack.c.l.b16 %v46
  %v200 = vunpack.c.h.b16 %v46
  %v201 = vunpack.c.l.b16 %v47
  %v202 = vunpack.c.h.b16 %v47
  %v203 = vunpack.c.l.b16 %v48
  %v204 = vunpack.c.h.b16 %v48
  %v205 = vunpack.c.l.b16 %v49
  %v206 = vunpack.c.h.b16 %v49
  %v207 = vunpack.c.l.b16 %v50
  %v208 = vunpack.c.h.b16 %v50
  %v209 = vunpack.c.l.b16 %v51
  %v210 = vunpack.c.h.b16 %v51
  %v211 = vunpack.c.l.b16 %v52
  %v212 = vunpack.c.h.b16 %v52
  %v213 = vunpack.c.l.b16 %v53
  %v214 = vunpack.c.h.b16 %v53
  %v215 = vunpack.c.l.b16 %v54
  %v216 = vunpack.c.h.b16 %v54
  %v217 = vunpack.c.l.b16 %v55
  %v218 = vunpack.c.h.b16 %v55
  %v219 = vunpack.c.l.b16 %v56
  %v220 = vunpack.c.h.b16 %v56
  %v221 = vunpack.c.l.b16 %v57
  %v222 = vunpack.c.h.b16 %v57
  %v223 = vunpack.c.l.b16 %v58
  %v224 = vunpack.c.h.b16 %v58
  %v225 = vunpack.c.l.b16 %v59
  %v226 = vunpack.c.h.b16 %v59
  %v227 = vunpack.c.l.b16 %v60
  %v228 = vunpack.c.h.b16 %v60
  %v229 = vunpack.c.l.b16 %v61
  %v230 = vunpack.c.h.b16 %v61
  %v231 = vunpack.c.l.b16 %v62
  %v232 = vunpack.c.h.b16 %v62
  %v233 = vunpack.c.l.b16 %v63
  %v234 = vunpack.c.h.b16 %v63
  %v235 = vpack.c.b16 %v139, %v137
  %v236 = vpack.c.b16 %v140, %v138
  %v237 = vpack.c.b16 %v143, %v141
  %v238 = vpack.c.b16 %v144, %v142
  %v239 = vpack.c.b16 %v147, %v145
  %v240 = vpack.c.b16 %v148, %v146
  %v241 = vpack.c.b16 %v151, %v149
  %v242 = vpack.c.b16 %v152, %v150
  %v243 = vpack.c.b16 %v155, %v153
  %v244 = vpack.c.b16 %v156, %v154
  %v245 = vpack.c.b16 %v159, %v157
  %v246 = vpack.c.b16 %v160, %v158
  %v247 = vpack.c.b16 %v163, %v161
  %v248 = vpack.c.b16 %v164, %v162
  %v249 = vpack.c.b16 %v167, %v165
  %v250 = vpack.c.b16 %v168, %v166
  %v251 = vpack.c.b16 %v171, %v169
  %v252 = vpack.c.b16 %v172, %v170
  %v253 = vpack.c.b16 %v175, %v173
  %v254 = vpack.c.b16 %v176, %v174
  %v255 = vpack.c.b16 %v179, %v177
  %v256 = vpack.c.b16 %v180, %v178
  %v257 = vpack.c.b16 %v183, %v181
  %v258 = vpack.c.b16 %v184, %v182
  %v259 = vpack.c.b16 %v187, %v185
  %v260 = vpack.c.b16 %v188, %v186
  %v261 = vpack.c.b16 %v191, %v189
  %v262 = vpack.c.b16 %v192, %v190
  %v263 = vpack.c.b16 %v195, %v193
  %v264 = vpack.c.b16 %v196, %v194
  %v265 = vpack.c.b16 %v199, %v197
  %v266 = vpack.c.b16 %v200, %v198
  %v267 = vpack.c.b16 %v203, %v201
  %v268 = vpack.c.b16 %v204, %v202
  %v269 = vpack.c.b16 %v207, %v205
  %v270 = vpack.c.b16 %v208, %v206
  %v271 = vpack.c.b16 %v211, %v209
  %v272 = vpack.c.b16 %v212, %v210
  %v273 = vpack.c.b16 %v215, %v213
  %v274 = vpack.c.b16 %v216, %v214
  %v275 = vpack.c.b16 %v219, %v217
  %v276 = vpack.c.b16 %v220, %v218
  %v277 = vpack.c.b16 %v223, %v221
  %v278 = vpack.c.b16 %v224, %v222
  %v279 = vpack.c.b16 %v227, %v225
  %v280 = vpack.c.b16 %v228, %v226
  %v281 = vpack.c.b16 %v231, %v229
  %v282 = vpack.c.b16 %v232, %v230
  %v283 = vpack.c.b16 %v233, %v233
  %v284 = vpack.c.b16 %v234, %v234
  %v330 = vunpack.c.l.b16 %v64
  %v331 = vunpack.c.l.b16 %v65
  %v332 = vunpack.c.l.b16 %v66
  %v333 = vunpack.c.l.b16 %v67
  %v334 = vunpack.c.l.b16 %v68
  %v335 = vunpack.c.l.b16 %v69
  %v336 = vunpack.c.l.b16 %v70
  %v337 = vunpack.c.l.b16 %v71
  %v338 = vunpack.c.l.b16 %v72
  %v339 = vunpack.c.l.b16 %v73
  %v340 = vunpack.c.l.b16 %v74
  %v341 = vunpack.c.l.b16 %v75
  %v342 = vunpack.c.l.b16 %v76
  %v343 = vunpack.c.l.b16 %v77
  %v344 = vunpack.c.l.b16 %v78
  %v345 = vunpack.c.l.b16 %v79
  %v346 = vunpack.c.l.b16 %v80
  %v347 = vunpack.c.l.b16 %v81
  %v348 = vunpack.c.l.b16 %v82
  %v349 = vunpack.c.l.b16 %v83
  %v350 = vpack.c.b16 %v331, %v330
  %v351 = vpack.c.b16 %v333, %v332
  %v352 = vpack.c.b16 %v335, %v334
  %v353 = vpack.c.b16 %v337, %v336
  %v354 = vpack.c.b16 %v339, %v338
  %v355 = vpack.c.b16 %v341, %v340
  %v356 = vpack.c.b16 %v343, %v342
  %v357 = vpack.c.b16 %v345, %v344
  %v358 = vpack.c.b16 %v347, %v346
  %v359 = vpack.c.b16 %v349, %v348
  %vm369 = vcmask 228352
  %v371 = vsel %vm369, %v236, 0
  %v374 = vsel %vm369, %v238, 0
  %v377 = vsel %vm369, %v240, 0
  %v380 = vsel %vm369, %v242, 0
  %v383 = vsel %vm369, %v244, 0
  %v386 = vsel %vm369, %v246, 0
  %v389 = vsel %vm369, %v248, 0
  %v392 = vsel %vm369, %v250, 0
  %v395 = vsel %vm369, %v252, 0
  %v398 = vsel %vm369, %v254, 0
  %v401 = vsel %vm369, %v256, 0
  %v404 = vsel %vm369, %v258, 0
  %v407 = vsel %vm369, %v260, 0
  %v410 = vsel %vm369, %v262, 0
  %v413 = vsel %vm369, %v264, 0
  %v416 = vsel %vm369, %v266, 0
  %v419 = vsel %vm369, %v268, 0
  %v422 = vsel %vm369, %v270, 0
  %v425 = vsel %vm369, %v272, 0
  %v428 = vsel %vm369, %v274, 0
  %v431 = vsel %vm369, %v276, 0
  %v434 = vsel %vm369, %v278, 0
  %v437 = vsel %vm369, %v280, 0
  %v440 = vsel %vm369, %v282, 0
  %v443 = vsel %vm369, %v284, 0
  %vm445 = vcmask 1045504
  %v447 = vsel %vm445, %v359, 0
  %449 = vmatpush.bf16.msra.mxu0 %v357
  %450 = vmatpush.bf16.msra.mxu0 %v356
  %451 = vmatpush.bf16.msra.mxu0 %v355
  %452 = vmatpush.bf16.msra.mxu0 %v354
  %453 = vmatpush.bf16.msra.mxu0 %v353
  %454 = vmatpush.bf16.msra.mxu0 %v352
  %455 = vmatpush.bf16.msra.mxu0 %v351
  %456 = vmatpush.bf16.msra.mxu0 %v350
  %457 = vmatmul.bf16.gmra.mxu0 %v235
  %v458 = vpop.f32.mrf.mxu0
  %v459 = vadd.f32 %v86, %v458
  %v460 = vpop.f32.mrf.mxu0
  %v461 = vadd.f32 %v86, %v460
  %462 = vmatmul.bf16.gmra.mxu0 %v237
  %v463 = vpop.f32.mrf.mxu0
  %v464 = vadd.f32 %v86, %v463
  %v465 = vpop.f32.mrf.mxu0
  %v466 = vadd.f32 %v86, %v465
  %467 = vmatmul.bf16.gmra.mxu0 %v239
  %v468 = vpop.f32.mrf.mxu0
  %v469 = vadd.f32 %v86, %v468
  %v470 = vpop.f32.mrf.mxu0
  %v471 = vadd.f32 %v86, %v470
  %472 = vmatmul.bf16.gmra.mxu0 %v241
  %v473 = vpop.f32.mrf.mxu0
  %v474 = vadd.f32 %v86, %v473
  %v475 = vpop.f32.mrf.mxu0
  %v476 = vadd.f32 %v86, %v475
  %477 = vmatmul.bf16.gmra.mxu0 %v243
  %v478 = vpop.f32.mrf.mxu0
  %v479 = vadd.f32 %v86, %v478
  %v480 = vpop.f32.mrf.mxu0
  %v481 = vadd.f32 %v86, %v480
  %482 = vmatmul.bf16.gmra.mxu0 %v245
  %v483 = vpop.f32.mrf.mxu0
  %v484 = vadd.f32 %v86, %v483
  %v485 = vpop.f32.mrf.mxu0
  %v486 = vadd.f32 %v86, %v485
  %487 = vmatmul.bf16.gmra.mxu0 %v247
  %v488 = vpop.f32.mrf.mxu0
  %v489 = vadd.f32 %v86, %v488
  %v490 = vpop.f32.mrf.mxu0
  %v491 = vadd.f32 %v86, %v490
  %492 = vmatmul.bf16.gmra.mxu0 %v249
  %v493 = vpop.f32.mrf.mxu0
  %v494 = vadd.f32 %v86, %v493
  %v495 = vpop.f32.mrf.mxu0
  %v496 = vadd.f32 %v86, %v495
  %497 = vmatmul.bf16.gmra.mxu0 %v251
  %v498 = vpop.f32.mrf.mxu0
  %v499 = vadd.f32 %v86, %v498
  %v500 = vpop.f32.mrf.mxu0
  %v501 = vadd.f32 %v86, %v500
  %502 = vmatmul.bf16.gmra.mxu0 %v253
  %v503 = vpop.f32.mrf.mxu0
  %v504 = vadd.f32 %v86, %v503
  %v505 = vpop.f32.mrf.mxu0
  %v506 = vadd.f32 %v86, %v505
  %507 = vmatmul.bf16.gmra.mxu0 %v255
  %v508 = vpop.f32.mrf.mxu0
  %v509 = vadd.f32 %v86, %v508
  %v510 = vpop.f32.mrf.mxu0
  %v511 = vadd.f32 %v86, %v510
  %512 = vmatmul.bf16.gmra.mxu0 %v257
  %v513 = vpop.f32.mrf.mxu0
  %v514 = vadd.f32 %v86, %v513
  %v515 = vpop.f32.mrf.mxu0
  %v516 = vadd.f32 %v86, %v515
  %517 = vmatmul.bf16.gmra.mxu0 %v259
  %v518 = vpop.f32.mrf.mxu0
  %v519 = vadd.f32 %v86, %v518
  %v520 = vpop.f32.mrf.mxu0
  %v521 = vadd.f32 %v86, %v520
  %522 = vmatmul.bf16.gmra.mxu0 %v261
  %v523 = vpop.f32.mrf.mxu0
  %v524 = vadd.f32 %v86, %v523
  %v525 = vpop.f32.mrf.mxu0
  %v526 = vadd.f32 %v86, %v525
  %527 = vmatmul.bf16.gmra.mxu0 %v263
  %v528 = vpop.f32.mrf.mxu0
  %v529 = vadd.f32 %v86, %v528
  %v530 = vpop.f32.mrf.mxu0
  %v531 = vadd.f32 %v86, %v530
  %532 = vmatmul.bf16.gmra.mxu0 %v265
  %v533 = vpop.f32.mrf.mxu0
  %v534 = vadd.f32 %v86, %v533
  %v535 = vpop.f32.mrf.mxu0
  %v536 = vadd.f32 %v86, %v535
  %537 = vmatmul.bf16.gmra.mxu0 %v267
  %v538 = vpop.f32.mrf.mxu0
  %v539 = vadd.f32 %v86, %v538
  %v540 = vpop.f32.mrf.mxu0
  %v541 = vadd.f32 %v86, %v540
  %542 = vmatmul.bf16.gmra.mxu0 %v269
  %v543 = vpop.f32.mrf.mxu0
  %v544 = vadd.f32 %v86, %v543
  %v545 = vpop.f32.mrf.mxu0
  %v546 = vadd.f32 %v86, %v545
  %547 = vmatmul.bf16.gmra.mxu0 %v271
  %v548 = vpop.f32.mrf.mxu0
  %v549 = vadd.f32 %v86, %v548
  %v550 = vpop.f32.mrf.mxu0
  %v551 = vadd.f32 %v86, %v550
  %552 = vmatmul.bf16.gmra.mxu0 %v273
  %v553 = vpop.f32.mrf.mxu0
  %v554 = vadd.f32 %v86, %v553
  %v555 = vpop.f32.mrf.mxu0
  %v556 = vadd.f32 %v86, %v555
  %557 = vmatmul.bf16.gmra.mxu0 %v275
  %v558 = vpop.f32.mrf.mxu0
  %v559 = vadd.f32 %v86, %v558
  %v560 = vpop.f32.mrf.mxu0
  %v561 = vadd.f32 %v86, %v560
  %562 = vmatmul.bf16.gmra.mxu0 %v277
  %v563 = vpop.f32.mrf.mxu0
  %v564 = vadd.f32 %v86, %v563
  %v565 = vpop.f32.mrf.mxu0
  %v566 = vadd.f32 %v86, %v565
  %567 = vmatmul.bf16.gmra.mxu0 %v279
  %v568 = vpop.f32.mrf.mxu0
  %v569 = vadd.f32 %v86, %v568
  %v570 = vpop.f32.mrf.mxu0
  %v571 = vadd.f32 %v86, %v570
  %572 = vmatmul.bf16.gmra.mxu0 %v281
  %v573 = vpop.f32.mrf.mxu0
  %v574 = vadd.f32 %v86, %v573
  %v575 = vpop.f32.mrf.mxu0
  %v576 = vadd.f32 %v86, %v575
  %577 = vmatmul.bf16.gmra.mxu0 %v283
  %v578 = vpop.f32.mrf.mxu0
  %v579 = vadd.f32 %v86, %v578
  %v580 = vpop.f32.mrf.mxu0
  %581 = vdwg.mxu0
  %582 = vmatpush.bf16.msra.mxu0 0
  %583 = vmatpush.bf16.msra.mxu0 0
  %584 = vmatpush.bf16.msra.mxu0 0
  %585 = vmatpush.bf16.msra.mxu0 0
  %586 = vmatpush.bf16.msra.mxu0 0
  %587 = vmatpush.bf16.msra.mxu0 0
  %588 = vmatpush.bf16.msra.mxu0 %v447
  %589 = vmatpush.bf16.msra.mxu0 %v358
  %590 = vmatmul.bf16.gmra.mxu0 %v371
  %v591 = vpop.f32.mrf.mxu0
  %v592 = vadd.f32 %v459, %v591
  %v593 = vpop.f32.mrf.mxu0
  %v594 = vadd.f32 %v461, %v593
  %595 = vmatmul.bf16.gmra.mxu0 %v374
  %v596 = vpop.f32.mrf.mxu0
  %v597 = vadd.f32 %v464, %v596
  %v598 = vpop.f32.mrf.mxu0
  %v599 = vadd.f32 %v466, %v598
  %600 = vmatmul.bf16.gmra.mxu0 %v377
  %v601 = vpop.f32.mrf.mxu0
  %v602 = vadd.f32 %v469, %v601
  %v603 = vpop.f32.mrf.mxu0
  %v604 = vadd.f32 %v471, %v603
  %605 = vmatmul.bf16.gmra.mxu0 %v380
  %v606 = vpop.f32.mrf.mxu0
  %v607 = vadd.f32 %v474, %v606
  %v608 = vpop.f32.mrf.mxu0
  %v609 = vadd.f32 %v476, %v608
  %610 = vmatmul.bf16.gmra.mxu0 %v383
  %v611 = vpop.f32.mrf.mxu0
  %v612 = vadd.f32 %v479, %v611
  %v613 = vpop.f32.mrf.mxu0
  %v614 = vadd.f32 %v481, %v613
  %615 = vmatmul.bf16.gmra.mxu0 %v386
  %v616 = vpop.f32.mrf.mxu0
  %v617 = vadd.f32 %v484, %v616
  %v618 = vpop.f32.mrf.mxu0
  %v619 = vadd.f32 %v486, %v618
  %620 = vmatmul.bf16.gmra.mxu0 %v389
  %v621 = vpop.f32.mrf.mxu0
  %v622 = vadd.f32 %v489, %v621
  %v623 = vpop.f32.mrf.mxu0
  %v624 = vadd.f32 %v491, %v623
  %625 = vmatmul.bf16.gmra.mxu0 %v392
  %v626 = vpop.f32.mrf.mxu0
  %v627 = vadd.f32 %v494, %v626
  %v628 = vpop.f32.mrf.mxu0
  %v629 = vadd.f32 %v496, %v628
  %630 = vmatmul.bf16.gmra.mxu0 %v395
  %v631 = vpop.f32.mrf.mxu0
  %v632 = vadd.f32 %v499, %v631
  %v633 = vpop.f32.mrf.mxu0
  %v634 = vadd.f32 %v501, %v633
  %635 = vmatmul.bf16.gmra.mxu0 %v398
  %v636 = vpop.f32.mrf.mxu0
  %v637 = vadd.f32 %v504, %v636
  %v638 = vpop.f32.mrf.mxu0
  %v639 = vadd.f32 %v506, %v638
  %640 = vmatmul.bf16.gmra.mxu0 %v401
  %v641 = vpop.f32.mrf.mxu0
  %v642 = vadd.f32 %v509, %v641
  %v643 = vpop.f32.mrf.mxu0
  %v644 = vadd.f32 %v511, %v643
  %645 = vmatmul.bf16.gmra.mxu0 %v404
  %v646 = vpop.f32.mrf.mxu0
  %v647 = vadd.f32 %v514, %v646
  %v648 = vpop.f32.mrf.mxu0
  %v649 = vadd.f32 %v516, %v648
  %650 = vmatmul.bf16.gmra.mxu0 %v407
  %v651 = vpop.f32.mrf.mxu0
  %v652 = vadd.f32 %v519, %v651
  %v653 = vpop.f32.mrf.mxu0
  %v654 = vadd.f32 %v521, %v653
  %655 = vmatmul.bf16.gmra.mxu0 %v410
  %v656 = vpop.f32.mrf.mxu0
  %v657 = vadd.f32 %v524, %v656
  %v658 = vpop.f32.mrf.mxu0
  %v659 = vadd.f32 %v526, %v658
  %660 = vmatmul.bf16.gmra.mxu0 %v413
  %v661 = vpop.f32.mrf.mxu0
  %v662 = vadd.f32 %v529, %v661
  %v663 = vpop.f32.mrf.mxu0
  %v664 = vadd.f32 %v531, %v663
  %665 = vmatmul.bf16.gmra.mxu0 %v416
  %v666 = vpop.f32.mrf.mxu0
  %v667 = vadd.f32 %v534, %v666
  %v668 = vpop.f32.mrf.mxu0
  %v669 = vadd.f32 %v536, %v668
  %670 = vmatmul.bf16.gmra.mxu0 %v419
  %v671 = vpop.f32.mrf.mxu0
  %v672 = vadd.f32 %v539, %v671
  %v673 = vpop.f32.mrf.mxu0
  %v674 = vadd.f32 %v541, %v673
  %675 = vmatmul.bf16.gmra.mxu0 %v422
  %v676 = vpop.f32.mrf.mxu0
  %v677 = vadd.f32 %v544, %v676
  %v678 = vpop.f32.mrf.mxu0
  %v679 = vadd.f32 %v546, %v678
  %680 = vmatmul.bf16.gmra.mxu0 %v425
  %v681 = vpop.f32.mrf.mxu0
  %v682 = vadd.f32 %v549, %v681
  %v683 = vpop.f32.mrf.mxu0
  %v684 = vadd.f32 %v551, %v683
  %685 = vmatmul.bf16.gmra.mxu0 %v428
  %v686 = vpop.f32.mrf.mxu0
  %v687 = vadd.f32 %v554, %v686
  %v688 = vpop.f32.mrf.mxu0
  %v689 = vadd.f32 %v556, %v688
  %690 = vmatmul.bf16.gmra.mxu0 %v431
  %v691 = vpop.f32.mrf.mxu0
  %v692 = vadd.f32 %v559, %v691
  %v693 = vpop.f32.mrf.mxu0
  %v694 = vadd.f32 %v561, %v693
  %695 = vmatmul.bf16.gmra.mxu0 %v434
  %v696 = vpop.f32.mrf.mxu0
  %v697 = vadd.f32 %v564, %v696
  %v698 = vpop.f32.mrf.mxu0
  %v699 = vadd.f32 %v566, %v698
  %700 = vmatmul.bf16.gmra.mxu0 %v437
  %v701 = vpop.f32.mrf.mxu0
  %v702 = vadd.f32 %v569, %v701
  %v703 = vpop.f32.mrf.mxu0
  %v704 = vadd.f32 %v571, %v703
  %705 = vmatmul.bf16.gmra.mxu0 %v440
  %v706 = vpop.f32.mrf.mxu0
  %v707 = vadd.f32 %v574, %v706
  %v708 = vpop.f32.mrf.mxu0
  %v709 = vadd.f32 %v576, %v708
  %710 = vmatmul.bf16.gmra.mxu0 %v443
  %v711 = vpop.f32.mrf.mxu0
  %v712 = vadd.f32 %v579, %v711
  %v713 = vpop.f32.mrf.mxu0
  %714 = vdwg.mxu0
  %v715 = vxor.u32 %v592, 2147483648
  %v716 = vxor.u32 %v594, 2147483648
  %v717 = vxor.u32 %v597, 2147483648
  %v718 = vxor.u32 %v599, 2147483648
  %v719 = vxor.u32 %v602, 2147483648
  %v720 = vxor.u32 %v604, 2147483648
  %v721 = vxor.u32 %v607, 2147483648
  %v722 = vxor.u32 %v609, 2147483648
  %v723 = vxor.u32 %v612, 2147483648
  %v724 = vxor.u32 %v614, 2147483648
  %v725 = vxor.u32 %v617, 2147483648
  %v726 = vxor.u32 %v619, 2147483648
  %v727 = vxor.u32 %v622, 2147483648
  %v728 = vxor.u32 %v624, 2147483648
  %v729 = vxor.u32 %v627, 2147483648
  %v730 = vxor.u32 %v629, 2147483648
  %v731 = vxor.u32 %v632, 2147483648
  %v732 = vxor.u32 %v634, 2147483648
  %v733 = vxor.u32 %v637, 2147483648
  %v734 = vxor.u32 %v639, 2147483648
  %v735 = vxor.u32 %v642, 2147483648
  %v736 = vxor.u32 %v644, 2147483648
  %v737 = vxor.u32 %v647, 2147483648
  %v738 = vxor.u32 %v649, 2147483648
  %v739 = vxor.u32 %v652, 2147483648
  %v740 = vxor.u32 %v654, 2147483648
  %v741 = vxor.u32 %v657, 2147483648
  %v742 = vxor.u32 %v659, 2147483648
  %v743 = vxor.u32 %v662, 2147483648
  %v744 = vxor.u32 %v664, 2147483648
  %v745 = vxor.u32 %v667, 2147483648
  %v746 = vxor.u32 %v669, 2147483648
  %v747 = vxor.u32 %v672, 2147483648
  %v748 = vxor.u32 %v674, 2147483648
  %v749 = vxor.u32 %v677, 2147483648
  %v750 = vxor.u32 %v679, 2147483648
  %v751 = vxor.u32 %v682, 2147483648
  %v752 = vxor.u32 %v684, 2147483648
  %v753 = vxor.u32 %v687, 2147483648
  %v754 = vxor.u32 %v689, 2147483648
  %v755 = vxor.u32 %v692, 2147483648
  %v756 = vxor.u32 %v694, 2147483648
  %v757 = vxor.u32 %v697, 2147483648
  %v758 = vxor.u32 %v699, 2147483648
  %v759 = vxor.u32 %v702, 2147483648
  %v760 = vxor.u32 %v704, 2147483648
  %v761 = vxor.u32 %v707, 2147483648
  %v762 = vxor.u32 %v709, 2147483648
  %v763 = vxor.u32 %v712, 2147483648
  %v764 = vmul.f32 %v715, 1.442695
  %v765 = vpow.pop %v764
  %v766 = vmul.f32 %v716, 1.442695
  %v767 = vpow.pop %v766
  %v768 = vmul.f32 %v717, 1.442695
  %v769 = vpow.pop %v768
  %v770 = vmul.f32 %v718, 1.442695
  %v771 = vpow.pop %v770
  %v772 = vmul.f32 %v719, 1.442695
  %v773 = vpow.pop %v772
  %v774 = vmul.f32 %v720, 1.442695
  %v775 = vpow.pop %v774
  %v776 = vmul.f32 %v721, 1.442695
  %v777 = vpow.pop %v776
  %v778 = vmul.f32 %v722, 1.442695
  %v779 = vpow.pop %v778
  %v780 = vmul.f32 %v723, 1.442695
  %v781 = vpow.pop %v780
  %v782 = vmul.f32 %v724, 1.442695
  %v783 = vpow.pop %v782
  %v784 = vmul.f32 %v725, 1.442695
  %v785 = vpow.pop %v784
  %v786 = vmul.f32 %v726, 1.442695
  %v787 = vpow.pop %v786
  %v788 = vmul.f32 %v727, 1.442695
  %v789 = vpow.pop %v788
  %v790 = vmul.f32 %v728, 1.442695
  %v791 = vpow.pop %v790
  %v792 = vmul.f32 %v729, 1.442695
  %v793 = vpow.pop %v792
  %v794 = vmul.f32 %v730, 1.442695
  %v795 = vpow.pop %v794
  %v796 = vmul.f32 %v731, 1.442695
  %v797 = vpow.pop %v796
  %v798 = vmul.f32 %v732, 1.442695
  %v799 = vpow.pop %v798
  %v800 = vmul.f32 %v733, 1.442695
  %v801 = vpow.pop %v800
  %v802 = vmul.f32 %v734, 1.442695
  %v803 = vpow.pop %v802
  %v804 = vmul.f32 %v735, 1.442695
  %v805 = vpow.pop %v804
  %v806 = vmul.f32 %v736, 1.442695
  %v807 = vpow.pop %v806
  %v808 = vmul.f32 %v737, 1.442695
  %v809 = vpow.pop %v808
  %v810 = vmul.f32 %v738, 1.442695
  %v811 = vpow.pop %v810
  %v812 = vmul.f32 %v739, 1.442695
  %v813 = vpow.pop %v812
  %v814 = vmul.f32 %v740, 1.442695
  %v815 = vpow.pop %v814
  %v816 = vmul.f32 %v741, 1.442695
  %v817 = vpow.pop %v816
  %v818 = vmul.f32 %v742, 1.442695
  %v819 = vpow.pop %v818
  %v820 = vmul.f32 %v743, 1.442695
  %v821 = vpow.pop %v820
  %v822 = vmul.f32 %v744, 1.442695
  %v823 = vpow.pop %v822
  %v824 = vmul.f32 %v745, 1.442695
  %v825 = vpow.pop %v824
  %v826 = vmul.f32 %v746, 1.442695
  %v827 = vpow.pop %v826
  %v828 = vmul.f32 %v747, 1.442695
  %v829 = vpow.pop %v828
  %v830 = vmul.f32 %v748, 1.442695
  %v831 = vpow.pop %v830
  %v832 = vmul.f32 %v749, 1.442695
  %v833 = vpow.pop %v832
  %v834 = vmul.f32 %v750, 1.442695
  %v835 = vpow.pop %v834
  %v836 = vmul.f32 %v751, 1.442695
  %v837 = vpow.pop %v836
  %v838 = vmul.f32 %v752, 1.442695
  %v839 = vpow.pop %v838
  %v840 = vmul.f32 %v753, 1.442695
  %v841 = vpow.pop %v840
  %v842 = vmul.f32 %v754, 1.442695
  %v843 = vpow.pop %v842
  %v844 = vmul.f32 %v755, 1.442695
  %v845 = vpow.pop %v844
  %v846 = vmul.f32 %v756, 1.442695
  %v847 = vpow.pop %v846
  %v848 = vmul.f32 %v757, 1.442695
  %v849 = vpow.pop %v848
  %v850 = vmul.f32 %v758, 1.442695
  %v851 = vpow.pop %v850
  %v852 = vmul.f32 %v759, 1.442695
  %v853 = vpow.pop %v852
  %v854 = vmul.f32 %v760, 1.442695
  %v855 = vpow.pop %v854
  %v856 = vmul.f32 %v761, 1.442695
  %v857 = vpow.pop %v856
  %v858 = vmul.f32 %v762, 1.442695
  %v859 = vpow.pop %v858
  %v860 = vmul.f32 %v763, 1.442695
  %v861 = vpow.pop %v860
  %v862 = vadd.f32 %v765, 1.0
  %v863 = vadd.f32 %v767, 1.0
  %v864 = vadd.f32 %v769, 1.0
  %v865 = vadd.f32 %v771, 1.0
  %v866 = vadd.f32 %v773, 1.0
  %v867 = vadd.f32 %v775, 1.0
  %v868 = vadd.f32 %v777, 1.0
  %v869 = vadd.f32 %v779, 1.0
  %v870 = vadd.f32 %v781, 1.0
  %v871 = vadd.f32 %v783, 1.0
  %v872 = vadd.f32 %v785, 1.0
  %v873 = vadd.f32 %v787, 1.0
  %v874 = vadd.f32 %v789, 1.0
  %v875 = vadd.f32 %v791, 1.0
  %v876 = vadd.f32 %v793, 1.0
  %v877 = vadd.f32 %v795, 1.0
  %v878 = vadd.f32 %v797, 1.0
  %v879 = vadd.f32 %v799, 1.0
  %v880 = vadd.f32 %v801, 1.0
  %v881 = vadd.f32 %v803, 1.0
  %v882 = vadd.f32 %v805, 1.0
  %v883 = vadd.f32 %v807, 1.0
  %v884 = vadd.f32 %v809, 1.0
  %v885 = vadd.f32 %v811, 1.0
  %v886 = vadd.f32 %v813, 1.0
  %v887 = vadd.f32 %v815, 1.0
  %v888 = vadd.f32 %v817, 1.0
  %v889 = vadd.f32 %v819, 1.0
  %v890 = vadd.f32 %v821, 1.0
  %v891 = vadd.f32 %v823, 1.0
  %v892 = vadd.f32 %v825, 1.0
  %v893 = vadd.f32 %v827, 1.0
  %v894 = vadd.f32 %v829, 1.0
  %v895 = vadd.f32 %v831, 1.0
  %v896 = vadd.f32 %v833, 1.0
  %v897 = vadd.f32 %v835, 1.0
  %v898 = vadd.f32 %v837, 1.0
  %v899 = vadd.f32 %v839, 1.0
  %v900 = vadd.f32 %v841, 1.0
  %v901 = vadd.f32 %v843, 1.0
  %v902 = vadd.f32 %v845, 1.0
  %v903 = vadd.f32 %v847, 1.0
  %v904 = vadd.f32 %v849, 1.0
  %v905 = vadd.f32 %v851, 1.0
  %v906 = vadd.f32 %v853, 1.0
  %v907 = vadd.f32 %v855, 1.0
  %v908 = vadd.f32 %v857, 1.0
  %v909 = vadd.f32 %v859, 1.0
  %v910 = vadd.f32 %v861, 1.0
  %v911 = vrcp.pop %v862
  %v912 = vmul.f32 %v862, %v911
  %v913 = vsub.f32 1.0, %v912
  %v914 = vmul.f32 %v911, %v913
  %v915 = vadd.f32 %v911, %v914
  %vm916 = vweird.f32 %v862
  %vm917 = vweird.f32 %v911
  %vm918 = vmor %vm916, %vm917
  %v919 = vsel %vm918, %v911, %v915
  %v920 = vand.u32 2147483647, %v862
  %vm921 = vcmp.eq.f32.partialorder %v920, 8.507059e+37
  %v922 = vand.u32 %v862, 2147483648
  %v923 = vor.u32 1.1754944e-38, %v922
  %v924 = vsel %vm921, %v923, %v919
  %v925 = vmul.f32 1.0, %v924
  %v926 = vrcp.pop %v863
  %v927 = vmul.f32 %v863, %v926
  %v928 = vsub.f32 1.0, %v927
  %v929 = vmul.f32 %v926, %v928
  %v930 = vadd.f32 %v926, %v929
  %vm931 = vweird.f32 %v863
  %vm932 = vweird.f32 %v926
  %vm933 = vmor %vm931, %vm932
  %v934 = vsel %vm933, %v926, %v930
  %v935 = vand.u32 2147483647, %v863
  %vm936 = vcmp.eq.f32.partialorder %v935, 8.507059e+37
  %v937 = vand.u32 %v863, 2147483648
  %v938 = vor.u32 1.1754944e-38, %v937
  %v939 = vsel %vm936, %v938, %v934
  %v940 = vmul.f32 1.0, %v939
  %v941 = vrcp.pop %v864
  %v942 = vmul.f32 %v864, %v941
  %v943 = vsub.f32 1.0, %v942
  %v944 = vmul.f32 %v941, %v943
  %v945 = vadd.f32 %v941, %v944
  %vm946 = vweird.f32 %v864
  %vm947 = vweird.f32 %v941
  %vm948 = vmor %vm946, %vm947
  %v949 = vsel %vm948, %v941, %v945
  %v950 = vand.u32 2147483647, %v864
  %vm951 = vcmp.eq.f32.partialorder %v950, 8.507059e+37
  %v952 = vand.u32 %v864, 2147483648
  %v953 = vor.u32 1.1754944e-38, %v952
  %v954 = vsel %vm951, %v953, %v949
  %v955 = vmul.f32 1.0, %v954
  %v956 = vrcp.pop %v865
  %v957 = vmul.f32 %v865, %v956
  %v958 = vsub.f32 1.0, %v957
  %v959 = vmul.f32 %v956, %v958
  %v960 = vadd.f32 %v956, %v959
  %vm961 = vweird.f32 %v865
  %vm962 = vweird.f32 %v956
  %vm963 = vmor %vm961, %vm962
  %v964 = vsel %vm963, %v956, %v960
  %v965 = vand.u32 2147483647, %v865
  %vm966 = vcmp.eq.f32.partialorder %v965, 8.507059e+37
  %v967 = vand.u32 %v865, 2147483648
  %v968 = vor.u32 1.1754944e-38, %v967
  %v969 = vsel %vm966, %v968, %v964
  %v970 = vmul.f32 1.0, %v969
  %v971 = vrcp.pop %v866
  %v972 = vmul.f32 %v866, %v971
  %v973 = vsub.f32 1.0, %v972
  %v974 = vmul.f32 %v971, %v973
  %v975 = vadd.f32 %v971, %v974
  %vm976 = vweird.f32 %v866
  %vm977 = vweird.f32 %v971
  %vm978 = vmor %vm976, %vm977
  %v979 = vsel %vm978, %v971, %v975
  %v980 = vand.u32 2147483647, %v866
  %vm981 = vcmp.eq.f32.partialorder %v980, 8.507059e+37
  %v982 = vand.u32 %v866, 2147483648
  %v983 = vor.u32 1.1754944e-38, %v982
  %v984 = vsel %vm981, %v983, %v979
  %v985 = vmul.f32 1.0, %v984
  %v986 = vrcp.pop %v867
  %v987 = vmul.f32 %v867, %v986
  %v988 = vsub.f32 1.0, %v987
  %v989 = vmul.f32 %v986, %v988
  %v990 = vadd.f32 %v986, %v989
  %vm991 = vweird.f32 %v867
  %vm992 = vweird.f32 %v986
  %vm993 = vmor %vm991, %vm992
  %v994 = vsel %vm993, %v986, %v990
  %v995 = vand.u32 2147483647, %v867
  %vm996 = vcmp.eq.f32.partialorder %v995, 8.507059e+37
  %v997 = vand.u32 %v867, 2147483648
  %v998 = vor.u32 1.1754944e-38, %v997
  %v999 = vsel %vm996, %v998, %v994
  %v1000 = vmul.f32 1.0, %v999
  %v1001 = vrcp.pop %v868
  %v1002 = vmul.f32 %v868, %v1001
  %v1003 = vsub.f32 1.0, %v1002
  %v1004 = vmul.f32 %v1001, %v1003
  %v1005 = vadd.f32 %v1001, %v1004
  %vm1006 = vweird.f32 %v868
  %vm1007 = vweird.f32 %v1001
  %vm1008 = vmor %vm1006, %vm1007
  %v1009 = vsel %vm1008, %v1001, %v1005
  %v1010 = vand.u32 2147483647, %v868
  %vm1011 = vcmp.eq.f32.partialorder %v1010, 8.507059e+37
  %v1012 = vand.u32 %v868, 2147483648
  %v1013 = vor.u32 1.1754944e-38, %v1012
  %v1014 = vsel %vm1011, %v1013, %v1009
  %v1015 = vmul.f32 1.0, %v1014
  %v1016 = vrcp.pop %v869
  %v1017 = vmul.f32 %v869, %v1016
  %v1018 = vsub.f32 1.0, %v1017
  %v1019 = vmul.f32 %v1016, %v1018
  %v1020 = vadd.f32 %v1016, %v1019
  %vm1021 = vweird.f32 %v869
  %vm1022 = vweird.f32 %v1016
  %vm1023 = vmor %vm1021, %vm1022
  %v1024 = vsel %vm1023, %v1016, %v1020
  %v1025 = vand.u32 2147483647, %v869
  %vm1026 = vcmp.eq.f32.partialorder %v1025, 8.507059e+37
  %v1027 = vand.u32 %v869, 2147483648
  %v1028 = vor.u32 1.1754944e-38, %v1027
  %v1029 = vsel %vm1026, %v1028, %v1024
  %v1030 = vmul.f32 1.0, %v1029
  %v1031 = vrcp.pop %v870
  %v1032 = vmul.f32 %v870, %v1031
  %v1033 = vsub.f32 1.0, %v1032
  %v1034 = vmul.f32 %v1031, %v1033
  %v1035 = vadd.f32 %v1031, %v1034
  %vm1036 = vweird.f32 %v870
  %vm1037 = vweird.f32 %v1031
  %vm1038 = vmor %vm1036, %vm1037
  %v1039 = vsel %vm1038, %v1031, %v1035
  %v1040 = vand.u32 2147483647, %v870
  %vm1041 = vcmp.eq.f32.partialorder %v1040, 8.507059e+37
  %v1042 = vand.u32 %v870, 2147483648
  %v1043 = vor.u32 1.1754944e-38, %v1042
  %v1044 = vsel %vm1041, %v1043, %v1039
  %v1045 = vmul.f32 1.0, %v1044
  %v1046 = vrcp.pop %v871
  %v1047 = vmul.f32 %v871, %v1046
  %v1048 = vsub.f32 1.0, %v1047
  %v1049 = vmul.f32 %v1046, %v1048
  %v1050 = vadd.f32 %v1046, %v1049
  %vm1051 = vweird.f32 %v871
  %vm1052 = vweird.f32 %v1046
  %vm1053 = vmor %vm1051, %vm1052
  %v1054 = vsel %vm1053, %v1046, %v1050
  %v1055 = vand.u32 2147483647, %v871
  %vm1056 = vcmp.eq.f32.partialorder %v1055, 8.507059e+37
  %v1057 = vand.u32 %v871, 2147483648
  %v1058 = vor.u32 1.1754944e-38, %v1057
  %v1059 = vsel %vm1056, %v1058, %v1054
  %v1060 = vmul.f32 1.0, %v1059
  %v1061 = vrcp.pop %v872
  %v1062 = vmul.f32 %v872, %v1061
  %v1063 = vsub.f32 1.0, %v1062
  %v1064 = vmul.f32 %v1061, %v1063
  %v1065 = vadd.f32 %v1061, %v1064
  %vm1066 = vweird.f32 %v872
  %vm1067 = vweird.f32 %v1061
  %vm1068 = vmor %vm1066, %vm1067
  %v1069 = vsel %vm1068, %v1061, %v1065
  %v1070 = vand.u32 2147483647, %v872
  %vm1071 = vcmp.eq.f32.partialorder %v1070, 8.507059e+37
  %v1072 = vand.u32 %v872, 2147483648
  %v1073 = vor.u32 1.1754944e-38, %v1072
  %v1074 = vsel %vm1071, %v1073, %v1069
  %v1075 = vmul.f32 1.0, %v1074
  %v1076 = vrcp.pop %v873
  %v1077 = vmul.f32 %v873, %v1076
  %v1078 = vsub.f32 1.0, %v1077
  %v1079 = vmul.f32 %v1076, %v1078
  %v1080 = vadd.f32 %v1076, %v1079
  %vm1081 = vweird.f32 %v873
  %vm1082 = vweird.f32 %v1076
  %vm1083 = vmor %vm1081, %vm1082
  %v1084 = vsel %vm1083, %v1076, %v1080
  %v1085 = vand.u32 2147483647, %v873
  %vm1086 = vcmp.eq.f32.partialorder %v1085, 8.507059e+37
  %v1087 = vand.u32 %v873, 2147483648
  %v1088 = vor.u32 1.1754944e-38, %v1087
  %v1089 = vsel %vm1086, %v1088, %v1084
  %v1090 = vmul.f32 1.0, %v1089
  %v1091 = vrcp.pop %v874
  %v1092 = vmul.f32 %v874, %v1091
  %v1093 = vsub.f32 1.0, %v1092
  %v1094 = vmul.f32 %v1091, %v1093
  %v1095 = vadd.f32 %v1091, %v1094
  %vm1096 = vweird.f32 %v874
  %vm1097 = vweird.f32 %v1091
  %vm1098 = vmor %vm1096, %vm1097
  %v1099 = vsel %vm1098, %v1091, %v1095
  %v1100 = vand.u32 2147483647, %v874
  %vm1101 = vcmp.eq.f32.partialorder %v1100, 8.507059e+37
  %v1102 = vand.u32 %v874, 2147483648
  %v1103 = vor.u32 1.1754944e-38, %v1102
  %v1104 = vsel %vm1101, %v1103, %v1099
  %v1105 = vmul.f32 1.0, %v1104
  %v1106 = vrcp.pop %v875
  %v1107 = vmul.f32 %v875, %v1106
  %v1108 = vsub.f32 1.0, %v1107
  %v1109 = vmul.f32 %v1106, %v1108
  %v1110 = vadd.f32 %v1106, %v1109
  %vm1111 = vweird.f32 %v875
  %vm1112 = vweird.f32 %v1106
  %vm1113 = vmor %vm1111, %vm1112
  %v1114 = vsel %vm1113, %v1106, %v1110
  %v1115 = vand.u32 2147483647, %v875
  %vm1116 = vcmp.eq.f32.partialorder %v1115, 8.507059e+37
  %v1117 = vand.u32 %v875, 2147483648
  %v1118 = vor.u32 1.1754944e-38, %v1117
  %v1119 = vsel %vm1116, %v1118, %v1114
  %v1120 = vmul.f32 1.0, %v1119
  %v1121 = vrcp.pop %v876
  %v1122 = vmul.f32 %v876, %v1121
  %v1123 = vsub.f32 1.0, %v1122
  %v1124 = vmul.f32 %v1121, %v1123
  %v1125 = vadd.f32 %v1121, %v1124
  %vm1126 = vweird.f32 %v876
  %vm1127 = vweird.f32 %v1121
  %vm1128 = vmor %vm1126, %vm1127
  %v1129 = vsel %vm1128, %v1121, %v1125
  %v1130 = vand.u32 2147483647, %v876
  %vm1131 = vcmp.eq.f32.partialorder %v1130, 8.507059e+37
  %v1132 = vand.u32 %v876, 2147483648
  %v1133 = vor.u32 1.1754944e-38, %v1132
  %v1134 = vsel %vm1131, %v1133, %v1129
  %v1135 = vmul.f32 1.0, %v1134
  %v1136 = vrcp.pop %v877
  %v1137 = vmul.f32 %v877, %v1136
  %v1138 = vsub.f32 1.0, %v1137
  %v1139 = vmul.f32 %v1136, %v1138
  %v1140 = vadd.f32 %v1136, %v1139
  %vm1141 = vweird.f32 %v877
  %vm1142 = vweird.f32 %v1136
  %vm1143 = vmor %vm1141, %vm1142
  %v1144 = vsel %vm1143, %v1136, %v1140
  %v1145 = vand.u32 2147483647, %v877
  %vm1146 = vcmp.eq.f32.partialorder %v1145, 8.507059e+37
  %v1147 = vand.u32 %v877, 2147483648
  %v1148 = vor.u32 1.1754944e-38, %v1147
  %v1149 = vsel %vm1146, %v1148, %v1144
  %v1150 = vmul.f32 1.0, %v1149
  %v1151 = vrcp.pop %v878
  %v1152 = vmul.f32 %v878, %v1151
  %v1153 = vsub.f32 1.0, %v1152
  %v1154 = vmul.f32 %v1151, %v1153
  %v1155 = vadd.f32 %v1151, %v1154
  %vm1156 = vweird.f32 %v878
  %vm1157 = vweird.f32 %v1151
  %vm1158 = vmor %vm1156, %vm1157
  %v1159 = vsel %vm1158, %v1151, %v1155
  %v1160 = vand.u32 2147483647, %v878
  %vm1161 = vcmp.eq.f32.partialorder %v1160, 8.507059e+37
  %v1162 = vand.u32 %v878, 2147483648
  %v1163 = vor.u32 1.1754944e-38, %v1162
  %v1164 = vsel %vm1161, %v1163, %v1159
  %v1165 = vmul.f32 1.0, %v1164
  %v1166 = vrcp.pop %v879
  %v1167 = vmul.f32 %v879, %v1166
  %v1168 = vsub.f32 1.0, %v1167
  %v1169 = vmul.f32 %v1166, %v1168
  %v1170 = vadd.f32 %v1166, %v1169
  %vm1171 = vweird.f32 %v879
  %vm1172 = vweird.f32 %v1166
  %vm1173 = vmor %vm1171, %vm1172
  %v1174 = vsel %vm1173, %v1166, %v1170
  %v1175 = vand.u32 2147483647, %v879
  %vm1176 = vcmp.eq.f32.partialorder %v1175, 8.507059e+37
  %v1177 = vand.u32 %v879, 2147483648
  %v1178 = vor.u32 1.1754944e-38, %v1177
  %v1179 = vsel %vm1176, %v1178, %v1174
  %v1180 = vmul.f32 1.0, %v1179
  %v1181 = vrcp.pop %v880
  %v1182 = vmul.f32 %v880, %v1181
  %v1183 = vsub.f32 1.0, %v1182
  %v1184 = vmul.f32 %v1181, %v1183
  %v1185 = vadd.f32 %v1181, %v1184
  %vm1186 = vweird.f32 %v880
  %vm1187 = vweird.f32 %v1181
  %vm1188 = vmor %vm1186, %vm1187
  %v1189 = vsel %vm1188, %v1181, %v1185
  %v1190 = vand.u32 2147483647, %v880
  %vm1191 = vcmp.eq.f32.partialorder %v1190, 8.507059e+37
  %v1192 = vand.u32 %v880, 2147483648
  %v1193 = vor.u32 1.1754944e-38, %v1192
  %v1194 = vsel %vm1191, %v1193, %v1189
  %v1195 = vmul.f32 1.0, %v1194
  %v1196 = vrcp.pop %v881
  %v1197 = vmul.f32 %v881, %v1196
  %v1198 = vsub.f32 1.0, %v1197
  %v1199 = vmul.f32 %v1196, %v1198
  %v1200 = vadd.f32 %v1196, %v1199
  %vm1201 = vweird.f32 %v881
  %vm1202 = vweird.f32 %v1196
  %vm1203 = vmor %vm1201, %vm1202
  %v1204 = vsel %vm1203, %v1196, %v1200
  %v1205 = vand.u32 2147483647, %v881
  %vm1206 = vcmp.eq.f32.partialorder %v1205, 8.507059e+37
  %v1207 = vand.u32 %v881, 2147483648
  %v1208 = vor.u32 1.1754944e-38, %v1207
  %v1209 = vsel %vm1206, %v1208, %v1204
  %v1210 = vmul.f32 1.0, %v1209
  %v1211 = vrcp.pop %v882
  %v1212 = vmul.f32 %v882, %v1211
  %v1213 = vsub.f32 1.0, %v1212
  %v1214 = vmul.f32 %v1211, %v1213
  %v1215 = vadd.f32 %v1211, %v1214
  %vm1216 = vweird.f32 %v882
  %vm1217 = vweird.f32 %v1211
  %vm1218 = vmor %vm1216, %vm1217
  %v1219 = vsel %vm1218, %v1211, %v1215
  %v1220 = vand.u32 2147483647, %v882
  %vm1221 = vcmp.eq.f32.partialorder %v1220, 8.507059e+37
  %v1222 = vand.u32 %v882, 2147483648
  %v1223 = vor.u32 1.1754944e-38, %v1222
  %v1224 = vsel %vm1221, %v1223, %v1219
  %v1225 = vmul.f32 1.0, %v1224
  %v1226 = vrcp.pop %v883
  %v1227 = vmul.f32 %v883, %v1226
  %v1228 = vsub.f32 1.0, %v1227
  %v1229 = vmul.f32 %v1226, %v1228
  %v1230 = vadd.f32 %v1226, %v1229
  %vm1231 = vweird.f32 %v883
  %vm1232 = vweird.f32 %v1226
  %vm1233 = vmor %vm1231, %vm1232
  %v1234 = vsel %vm1233, %v1226, %v1230
  %v1235 = vand.u32 2147483647, %v883
  %vm1236 = vcmp.eq.f32.partialorder %v1235, 8.507059e+37
  %v1237 = vand.u32 %v883, 2147483648
  %v1238 = vor.u32 1.1754944e-38, %v1237
  %v1239 = vsel %vm1236, %v1238, %v1234
  %v1240 = vmul.f32 1.0, %v1239
  %v1241 = vrcp.pop %v884
  %v1242 = vmul.f32 %v884, %v1241
  %v1243 = vsub.f32 1.0, %v1242
  %v1244 = vmul.f32 %v1241, %v1243
  %v1245 = vadd.f32 %v1241, %v1244
  %vm1246 = vweird.f32 %v884
  %vm1247 = vweird.f32 %v1241
  %vm1248 = vmor %vm1246, %vm1247
  %v1249 = vsel %vm1248, %v1241, %v1245
  %v1250 = vand.u32 2147483647, %v884
  %vm1251 = vcmp.eq.f32.partialorder %v1250, 8.507059e+37
  %v1252 = vand.u32 %v884, 2147483648
  %v1253 = vor.u32 1.1754944e-38, %v1252
  %v1254 = vsel %vm1251, %v1253, %v1249
  %v1255 = vmul.f32 1.0, %v1254
  %v1256 = vrcp.pop %v885
  %v1257 = vmul.f32 %v885, %v1256
  %v1258 = vsub.f32 1.0, %v1257
  %v1259 = vmul.f32 %v1256, %v1258
  %v1260 = vadd.f32 %v1256, %v1259
  %vm1261 = vweird.f32 %v885
  %vm1262 = vweird.f32 %v1256
  %vm1263 = vmor %vm1261, %vm1262
  %v1264 = vsel %vm1263, %v1256, %v1260
  %v1265 = vand.u32 2147483647, %v885
  %vm1266 = vcmp.eq.f32.partialorder %v1265, 8.507059e+37
  %v1267 = vand.u32 %v885, 2147483648
  %v1268 = vor.u32 1.1754944e-38, %v1267
  %v1269 = vsel %vm1266, %v1268, %v1264
  %v1270 = vmul.f32 1.0, %v1269
  %v1271 = vrcp.pop %v886
  %v1272 = vmul.f32 %v886, %v1271
  %v1273 = vsub.f32 1.0, %v1272
  %v1274 = vmul.f32 %v1271, %v1273
  %v1275 = vadd.f32 %v1271, %v1274
  %vm1276 = vweird.f32 %v886
  %vm1277 = vweird.f32 %v1271
  %vm1278 = vmor %vm1276, %vm1277
  %v1279 = vsel %vm1278, %v1271, %v1275
  %v1280 = vand.u32 2147483647, %v886
  %vm1281 = vcmp.eq.f32.partialorder %v1280, 8.507059e+37
  %v1282 = vand.u32 %v886, 2147483648
  %v1283 = vor.u32 1.1754944e-38, %v1282
  %v1284 = vsel %vm1281, %v1283, %v1279
  %v1285 = vmul.f32 1.0, %v1284
  %v1286 = vrcp.pop %v887
  %v1287 = vmul.f32 %v887, %v1286
  %v1288 = vsub.f32 1.0, %v1287
  %v1289 = vmul.f32 %v1286, %v1288
  %v1290 = vadd.f32 %v1286, %v1289
  %vm1291 = vweird.f32 %v887
  %vm1292 = vweird.f32 %v1286
  %vm1293 = vmor %vm1291, %vm1292
  %v1294 = vsel %vm1293, %v1286, %v1290
  %v1295 = vand.u32 2147483647, %v887
  %vm1296 = vcmp.eq.f32.partialorder %v1295, 8.507059e+37
  %v1297 = vand.u32 %v887, 2147483648
  %v1298 = vor.u32 1.1754944e-38, %v1297
  %v1299 = vsel %vm1296, %v1298, %v1294
  %v1300 = vmul.f32 1.0, %v1299
  %v1301 = vrcp.pop %v888
  %v1302 = vmul.f32 %v888, %v1301
  %v1303 = vsub.f32 1.0, %v1302
  %v1304 = vmul.f32 %v1301, %v1303
  %v1305 = vadd.f32 %v1301, %v1304
  %vm1306 = vweird.f32 %v888
  %vm1307 = vweird.f32 %v1301
  %vm1308 = vmor %vm1306, %vm1307
  %v1309 = vsel %vm1308, %v1301, %v1305
  %v1310 = vand.u32 2147483647, %v888
  %vm1311 = vcmp.eq.f32.partialorder %v1310, 8.507059e+37
  %v1312 = vand.u32 %v888, 2147483648
  %v1313 = vor.u32 1.1754944e-38, %v1312
  %v1314 = vsel %vm1311, %v1313, %v1309
  %v1315 = vmul.f32 1.0, %v1314
  %v1316 = vrcp.pop %v889
  %v1317 = vmul.f32 %v889, %v1316
  %v1318 = vsub.f32 1.0, %v1317
  %v1319 = vmul.f32 %v1316, %v1318
  %v1320 = vadd.f32 %v1316, %v1319
  %vm1321 = vweird.f32 %v889
  %vm1322 = vweird.f32 %v1316
  %vm1323 = vmor %vm1321, %vm1322
  %v1324 = vsel %vm1323, %v1316, %v1320
  %v1325 = vand.u32 2147483647, %v889
  %vm1326 = vcmp.eq.f32.partialorder %v1325, 8.507059e+37
  %v1327 = vand.u32 %v889, 2147483648
  %v1328 = vor.u32 1.1754944e-38, %v1327
  %v1329 = vsel %vm1326, %v1328, %v1324
  %v1330 = vmul.f32 1.0, %v1329
  %v1331 = vrcp.pop %v890
  %v1332 = vmul.f32 %v890, %v1331
  %v1333 = vsub.f32 1.0, %v1332
  %v1334 = vmul.f32 %v1331, %v1333
  %v1335 = vadd.f32 %v1331, %v1334
  %vm1336 = vweird.f32 %v890
  %vm1337 = vweird.f32 %v1331
  %vm1338 = vmor %vm1336, %vm1337
  %v1339 = vsel %vm1338, %v1331, %v1335
  %v1340 = vand.u32 2147483647, %v890
  %vm1341 = vcmp.eq.f32.partialorder %v1340, 8.507059e+37
  %v1342 = vand.u32 %v890, 2147483648
  %v1343 = vor.u32 1.1754944e-38, %v1342
  %v1344 = vsel %vm1341, %v1343, %v1339
  %v1345 = vmul.f32 1.0, %v1344
  %v1346 = vrcp.pop %v891
  %v1347 = vmul.f32 %v891, %v1346
  %v1348 = vsub.f32 1.0, %v1347
  %v1349 = vmul.f32 %v1346, %v1348
  %v1350 = vadd.f32 %v1346, %v1349
  %vm1351 = vweird.f32 %v891
  %vm1352 = vweird.f32 %v1346
  %vm1353 = vmor %vm1351, %vm1352
  %v1354 = vsel %vm1353, %v1346, %v1350
  %v1355 = vand.u32 2147483647, %v891
  %vm1356 = vcmp.eq.f32.partialorder %v1355, 8.507059e+37
  %v1357 = vand.u32 %v891, 2147483648
  %v1358 = vor.u32 1.1754944e-38, %v1357
  %v1359 = vsel %vm1356, %v1358, %v1354
  %v1360 = vmul.f32 1.0, %v1359
  %v1361 = vrcp.pop %v892
  %v1362 = vmul.f32 %v892, %v1361
  %v1363 = vsub.f32 1.0, %v1362
  %v1364 = vmul.f32 %v1361, %v1363
  %v1365 = vadd.f32 %v1361, %v1364
  %vm1366 = vweird.f32 %v892
  %vm1367 = vweird.f32 %v1361
  %vm1368 = vmor %vm1366, %vm1367
  %v1369 = vsel %vm1368, %v1361, %v1365
  %v1370 = vand.u32 2147483647, %v892
  %vm1371 = vcmp.eq.f32.partialorder %v1370, 8.507059e+37
  %v1372 = vand.u32 %v892, 2147483648
  %v1373 = vor.u32 1.1754944e-38, %v1372
  %v1374 = vsel %vm1371, %v1373, %v1369
  %v1375 = vmul.f32 1.0, %v1374
  %v1376 = vrcp.pop %v893
  %v1377 = vmul.f32 %v893, %v1376
  %v1378 = vsub.f32 1.0, %v1377
  %v1379 = vmul.f32 %v1376, %v1378
  %v1380 = vadd.f32 %v1376, %v1379
  %vm1381 = vweird.f32 %v893
  %vm1382 = vweird.f32 %v1376
  %vm1383 = vmor %vm1381, %vm1382
  %v1384 = vsel %vm1383, %v1376, %v1380
  %v1385 = vand.u32 2147483647, %v893
  %vm1386 = vcmp.eq.f32.partialorder %v1385, 8.507059e+37
  %v1387 = vand.u32 %v893, 2147483648
  %v1388 = vor.u32 1.1754944e-38, %v1387
  %v1389 = vsel %vm1386, %v1388, %v1384
  %v1390 = vmul.f32 1.0, %v1389
  %v1391 = vrcp.pop %v894
  %v1392 = vmul.f32 %v894, %v1391
  %v1393 = vsub.f32 1.0, %v1392
  %v1394 = vmul.f32 %v1391, %v1393
  %v1395 = vadd.f32 %v1391, %v1394
  %vm1396 = vweird.f32 %v894
  %vm1397 = vweird.f32 %v1391
  %vm1398 = vmor %vm1396, %vm1397
  %v1399 = vsel %vm1398, %v1391, %v1395
  %v1400 = vand.u32 2147483647, %v894
  %vm1401 = vcmp.eq.f32.partialorder %v1400, 8.507059e+37
  %v1402 = vand.u32 %v894, 2147483648
  %v1403 = vor.u32 1.1754944e-38, %v1402
  %v1404 = vsel %vm1401, %v1403, %v1399
  %v1405 = vmul.f32 1.0, %v1404
  %v1406 = vrcp.pop %v895
  %v1407 = vmul.f32 %v895, %v1406
  %v1408 = vsub.f32 1.0, %v1407
  %v1409 = vmul.f32 %v1406, %v1408
  %v1410 = vadd.f32 %v1406, %v1409
  %vm1411 = vweird.f32 %v895
  %vm1412 = vweird.f32 %v1406
  %vm1413 = vmor %vm1411, %vm1412
  %v1414 = vsel %vm1413, %v1406, %v1410
  %v1415 = vand.u32 2147483647, %v895
  %vm1416 = vcmp.eq.f32.partialorder %v1415, 8.507059e+37
  %v1417 = vand.u32 %v895, 2147483648
  %v1418 = vor.u32 1.1754944e-38, %v1417
  %v1419 = vsel %vm1416, %v1418, %v1414
  %v1420 = vmul.f32 1.0, %v1419
  %v1421 = vrcp.pop %v896
  %v1422 = vmul.f32 %v896, %v1421
  %v1423 = vsub.f32 1.0, %v1422
  %v1424 = vmul.f32 %v1421, %v1423
  %v1425 = vadd.f32 %v1421, %v1424
  %vm1426 = vweird.f32 %v896
  %vm1427 = vweird.f32 %v1421
  %vm1428 = vmor %vm1426, %vm1427
  %v1429 = vsel %vm1428, %v1421, %v1425
  %v1430 = vand.u32 2147483647, %v896
  %vm1431 = vcmp.eq.f32.partialorder %v1430, 8.507059e+37
  %v1432 = vand.u32 %v896, 2147483648
  %v1433 = vor.u32 1.1754944e-38, %v1432
  %v1434 = vsel %vm1431, %v1433, %v1429
  %v1435 = vmul.f32 1.0, %v1434
  %v1436 = vrcp.pop %v897
  %v1437 = vmul.f32 %v897, %v1436
  %v1438 = vsub.f32 1.0, %v1437
  %v1439 = vmul.f32 %v1436, %v1438
  %v1440 = vadd.f32 %v1436, %v1439
  %vm1441 = vweird.f32 %v897
  %vm1442 = vweird.f32 %v1436
  %vm1443 = vmor %vm1441, %vm1442
  %v1444 = vsel %vm1443, %v1436, %v1440
  %v1445 = vand.u32 2147483647, %v897
  %vm1446 = vcmp.eq.f32.partialorder %v1445, 8.507059e+37
  %v1447 = vand.u32 %v897, 2147483648
  %v1448 = vor.u32 1.1754944e-38, %v1447
  %v1449 = vsel %vm1446, %v1448, %v1444
  %v1450 = vmul.f32 1.0, %v1449
  %v1451 = vrcp.pop %v898
  %v1452 = vmul.f32 %v898, %v1451
  %v1453 = vsub.f32 1.0, %v1452
  %v1454 = vmul.f32 %v1451, %v1453
  %v1455 = vadd.f32 %v1451, %v1454
  %vm1456 = vweird.f32 %v898
  %vm1457 = vweird.f32 %v1451
  %vm1458 = vmor %vm1456, %vm1457
  %v1459 = vsel %vm1458, %v1451, %v1455
  %v1460 = vand.u32 2147483647, %v898
  %vm1461 = vcmp.eq.f32.partialorder %v1460, 8.507059e+37
  %v1462 = vand.u32 %v898, 2147483648
  %v1463 = vor.u32 1.1754944e-38, %v1462
  %v1464 = vsel %vm1461, %v1463, %v1459
  %v1465 = vmul.f32 1.0, %v1464
  %v1466 = vrcp.pop %v899
  %v1467 = vmul.f32 %v899, %v1466
  %v1468 = vsub.f32 1.0, %v1467
  %v1469 = vmul.f32 %v1466, %v1468
  %v1470 = vadd.f32 %v1466, %v1469
  %vm1471 = vweird.f32 %v899
  %vm1472 = vweird.f32 %v1466
  %vm1473 = vmor %vm1471, %vm1472
  %v1474 = vsel %vm1473, %v1466, %v1470
  %v1475 = vand.u32 2147483647, %v899
  %vm1476 = vcmp.eq.f32.partialorder %v1475, 8.507059e+37
  %v1477 = vand.u32 %v899, 2147483648
  %v1478 = vor.u32 1.1754944e-38, %v1477
  %v1479 = vsel %vm1476, %v1478, %v1474
  %v1480 = vmul.f32 1.0, %v1479
  %v1481 = vrcp.pop %v900
  %v1482 = vmul.f32 %v900, %v1481
  %v1483 = vsub.f32 1.0, %v1482
  %v1484 = vmul.f32 %v1481, %v1483
  %v1485 = vadd.f32 %v1481, %v1484
  %vm1486 = vweird.f32 %v900
  %vm1487 = vweird.f32 %v1481
  %vm1488 = vmor %vm1486, %vm1487
  %v1489 = vsel %vm1488, %v1481, %v1485
  %v1490 = vand.u32 2147483647, %v900
  %vm1491 = vcmp.eq.f32.partialorder %v1490, 8.507059e+37
  %v1492 = vand.u32 %v900, 2147483648
  %v1493 = vor.u32 1.1754944e-38, %v1492
  %v1494 = vsel %vm1491, %v1493, %v1489
  %v1495 = vmul.f32 1.0, %v1494
  %v1496 = vrcp.pop %v901
  %v1497 = vmul.f32 %v901, %v1496
  %v1498 = vsub.f32 1.0, %v1497
  %v1499 = vmul.f32 %v1496, %v1498
  %v1500 = vadd.f32 %v1496, %v1499
  %vm1501 = vweird.f32 %v901
  %vm1502 = vweird.f32 %v1496
  %vm1503 = vmor %vm1501, %vm1502
  %v1504 = vsel %vm1503, %v1496, %v1500
  %v1505 = vand.u32 2147483647, %v901
  %vm1506 = vcmp.eq.f32.partialorder %v1505, 8.507059e+37
  %v1507 = vand.u32 %v901, 2147483648
  %v1508 = vor.u32 1.1754944e-38, %v1507
  %v1509 = vsel %vm1506, %v1508, %v1504
  %v1510 = vmul.f32 1.0, %v1509
  %v1511 = vrcp.pop %v902
  %v1512 = vmul.f32 %v902, %v1511
  %v1513 = vsub.f32 1.0, %v1512
  %v1514 = vmul.f32 %v1511, %v1513
  %v1515 = vadd.f32 %v1511, %v1514
  %vm1516 = vweird.f32 %v902
  %vm1517 = vweird.f32 %v1511
  %vm1518 = vmor %vm1516, %vm1517
  %v1519 = vsel %vm1518, %v1511, %v1515
  %v1520 = vand.u32 2147483647, %v902
  %vm1521 = vcmp.eq.f32.partialorder %v1520, 8.507059e+37
  %v1522 = vand.u32 %v902, 2147483648
  %v1523 = vor.u32 1.1754944e-38, %v1522
  %v1524 = vsel %vm1521, %v1523, %v1519
  %v1525 = vmul.f32 1.0, %v1524
  %v1526 = vrcp.pop %v903
  %v1527 = vmul.f32 %v903, %v1526
  %v1528 = vsub.f32 1.0, %v1527
  %v1529 = vmul.f32 %v1526, %v1528
  %v1530 = vadd.f32 %v1526, %v1529
  %vm1531 = vweird.f32 %v903
  %vm1532 = vweird.f32 %v1526
  %vm1533 = vmor %vm1531, %vm1532
  %v1534 = vsel %vm1533, %v1526, %v1530
  %v1535 = vand.u32 2147483647, %v903
  %vm1536 = vcmp.eq.f32.partialorder %v1535, 8.507059e+37
  %v1537 = vand.u32 %v903, 2147483648
  %v1538 = vor.u32 1.1754944e-38, %v1537
  %v1539 = vsel %vm1536, %v1538, %v1534
  %v1540 = vmul.f32 1.0, %v1539
  %v1541 = vrcp.pop %v904
  %v1542 = vmul.f32 %v904, %v1541
  %v1543 = vsub.f32 1.0, %v1542
  %v1544 = vmul.f32 %v1541, %v1543
  %v1545 = vadd.f32 %v1541, %v1544
  %vm1546 = vweird.f32 %v904
  %vm1547 = vweird.f32 %v1541
  %vm1548 = vmor %vm1546, %vm1547
  %v1549 = vsel %vm1548, %v1541, %v1545
  %v1550 = vand.u32 2147483647, %v904
  %vm1551 = vcmp.eq.f32.partialorder %v1550, 8.507059e+37
  %v1552 = vand.u32 %v904, 2147483648
  %v1553 = vor.u32 1.1754944e-38, %v1552
  %v1554 = vsel %vm1551, %v1553, %v1549
  %v1555 = vmul.f32 1.0, %v1554
  %v1556 = vrcp.pop %v905
  %v1557 = vmul.f32 %v905, %v1556
  %v1558 = vsub.f32 1.0, %v1557
  %v1559 = vmul.f32 %v1556, %v1558
  %v1560 = vadd.f32 %v1556, %v1559
  %vm1561 = vweird.f32 %v905
  %vm1562 = vweird.f32 %v1556
  %vm1563 = vmor %vm1561, %vm1562
  %v1564 = vsel %vm1563, %v1556, %v1560
  %v1565 = vand.u32 2147483647, %v905
  %vm1566 = vcmp.eq.f32.partialorder %v1565, 8.507059e+37
  %v1567 = vand.u32 %v905, 2147483648
  %v1568 = vor.u32 1.1754944e-38, %v1567
  %v1569 = vsel %vm1566, %v1568, %v1564
  %v1570 = vmul.f32 1.0, %v1569
  %v1571 = vrcp.pop %v906
  %v1572 = vmul.f32 %v906, %v1571
  %v1573 = vsub.f32 1.0, %v1572
  %v1574 = vmul.f32 %v1571, %v1573
  %v1575 = vadd.f32 %v1571, %v1574
  %vm1576 = vweird.f32 %v906
  %vm1577 = vweird.f32 %v1571
  %vm1578 = vmor %vm1576, %vm1577
  %v1579 = vsel %vm1578, %v1571, %v1575
  %v1580 = vand.u32 2147483647, %v906
  %vm1581 = vcmp.eq.f32.partialorder %v1580, 8.507059e+37
  %v1582 = vand.u32 %v906, 2147483648
  %v1583 = vor.u32 1.1754944e-38, %v1582
  %v1584 = vsel %vm1581, %v1583, %v1579
  %v1585 = vmul.f32 1.0, %v1584
  %v1586 = vrcp.pop %v907
  %v1587 = vmul.f32 %v907, %v1586
  %v1588 = vsub.f32 1.0, %v1587
  %v1589 = vmul.f32 %v1586, %v1588
  %v1590 = vadd.f32 %v1586, %v1589
  %vm1591 = vweird.f32 %v907
  %vm1592 = vweird.f32 %v1586
  %vm1593 = vmor %vm1591, %vm1592
  %v1594 = vsel %vm1593, %v1586, %v1590
  %v1595 = vand.u32 2147483647, %v907
  %vm1596 = vcmp.eq.f32.partialorder %v1595, 8.507059e+37
  %v1597 = vand.u32 %v907, 2147483648
  %v1598 = vor.u32 1.1754944e-38, %v1597
  %v1599 = vsel %vm1596, %v1598, %v1594
  %v1600 = vmul.f32 1.0, %v1599
  %v1601 = vrcp.pop %v908
  %v1602 = vmul.f32 %v908, %v1601
  %v1603 = vsub.f32 1.0, %v1602
  %v1604 = vmul.f32 %v1601, %v1603
  %v1605 = vadd.f32 %v1601, %v1604
  %vm1606 = vweird.f32 %v908
  %vm1607 = vweird.f32 %v1601
  %vm1608 = vmor %vm1606, %vm1607
  %v1609 = vsel %vm1608, %v1601, %v1605
  %v1610 = vand.u32 2147483647, %v908
  %vm1611 = vcmp.eq.f32.partialorder %v1610, 8.507059e+37
  %v1612 = vand.u32 %v908, 2147483648
  %v1613 = vor.u32 1.1754944e-38, %v1612
  %v1614 = vsel %vm1611, %v1613, %v1609
  %v1615 = vmul.f32 1.0, %v1614
  %v1616 = vrcp.pop %v909
  %v1617 = vmul.f32 %v909, %v1616
  %v1618 = vsub.f32 1.0, %v1617
  %v1619 = vmul.f32 %v1616, %v1618
  %v1620 = vadd.f32 %v1616, %v1619
  %vm1621 = vweird.f32 %v909
  %vm1622 = vweird.f32 %v1616
  %vm1623 = vmor %vm1621, %vm1622
  %v1624 = vsel %vm1623, %v1616, %v1620
  %v1625 = vand.u32 2147483647, %v909
  %vm1626 = vcmp.eq.f32.partialorder %v1625, 8.507059e+37
  %v1627 = vand.u32 %v909, 2147483648
  %v1628 = vor.u32 1.1754944e-38, %v1627
  %v1629 = vsel %vm1626, %v1628, %v1624
  %v1630 = vmul.f32 1.0, %v1629
  %v1631 = vrcp.pop %v910
  %v1632 = vmul.f32 %v910, %v1631
  %v1633 = vsub.f32 1.0, %v1632
  %v1634 = vmul.f32 %v1631, %v1633
  %v1635 = vadd.f32 %v1631, %v1634
  %vm1636 = vweird.f32 %v910
  %vm1637 = vweird.f32 %v1631
  %vm1638 = vmor %vm1636, %vm1637
  %v1639 = vsel %vm1638, %v1631, %v1635
  %v1640 = vand.u32 2147483647, %v910
  %vm1641 = vcmp.eq.f32.partialorder %v1640, 8.507059e+37
  %v1642 = vand.u32 %v910, 2147483648
  %v1643 = vor.u32 1.1754944e-38, %v1642
  %v1644 = vsel %vm1641, %v1643, %v1639
  %v1645 = vmul.f32 1.0, %v1644
  %1646 = vst [vmem:[%s3] sm:$0xff] %v925
  %1647 = vst [vmem:[%s3 + $0x8] sm:$0xff] %v940
  %1648 = vst [vmem:[%s3 + $0x10] sm:$0xff] %v955
  %1649 = vst [vmem:[%s3 + $0x18] sm:$0xff] %v970
  %1650 = vst [vmem:[%s3 + $0x20] sm:$0xff] %v985
  %1651 = vst [vmem:[%s3 + $0x28] sm:$0xff] %v1000
  %1652 = vst [vmem:[%s3 + $0x30] sm:$0xff] %v1015
  %1653 = vst [vmem:[%s3 + $0x38] sm:$0xff] %v1030
  %1654 = vst [vmem:[%s3 + $0x40] sm:$0xff] %v1045
  %1655 = vst [vmem:[%s3 + $0x48] sm:$0xff] %v1060
  %1656 = vst [vmem:[%s3 + $0x50] sm:$0xff] %v1075
  %1657 = vst [vmem:[%s3 + $0x58] sm:$0xff] %v1090
  %1658 = vst [vmem:[%s3 + $0x60] sm:$0xff] %v1105
  %1659 = vst [vmem:[%s3 + $0x68] sm:$0xff] %v1120
  %1660 = vst [vmem:[%s3 + $0x70] sm:$0xff] %v1135
  %1661 = vst [vmem:[%s3 + $0x78] sm:$0xff] %v1150
  %1662 = vst [vmem:[%s3 + $0x80] sm:$0xff] %v1165
  %1663 = vst [vmem:[%s3 + $0x88] sm:$0xff] %v1180
  %1664 = vst [vmem:[%s3 + $0x90] sm:$0xff] %v1195
  %1665 = vst [vmem:[%s3 + $0x98] sm:$0xff] %v1210
  %1666 = vst [vmem:[%s3 + $0xa0] sm:$0xff] %v1225
  %1667 = vst [vmem:[%s3 + $0xa8] sm:$0xff] %v1240
  %1668 = vst [vmem:[%s3 + $0xb0] sm:$0xff] %v1255
  %1669 = vst [vmem:[%s3 + $0xb8] sm:$0xff] %v1270
  %1670 = vst [vmem:[%s3 + $0xc0] sm:$0xff] %v1285
  %1671 = vst [vmem:[%s3 + $0xc8] sm:$0xff] %v1300
  %1672 = vst [vmem:[%s3 + $0xd0] sm:$0xff] %v1315
  %1673 = vst [vmem:[%s3 + $0xd8] sm:$0xff] %v1330
  %1674 = vst [vmem:[%s3 + $0xe0] sm:$0xff] %v1345
  %1675 = vst [vmem:[%s3 + $0xe8] sm:$0xff] %v1360
  %1676 = vst [vmem:[%s3 + $0xf0] sm:$0xff] %v1375
  %1677 = vst [vmem:[%s3 + $0xf8] sm:$0xff] %v1390
  %1678 = vst [vmem:[%s3 + $0x100] sm:$0xff] %v1405
  %1679 = vst [vmem:[%s3 + $0x108] sm:$0xff] %v1420
  %1680 = vst [vmem:[%s3 + $0x110] sm:$0xff] %v1435
  %1681 = vst [vmem:[%s3 + $0x118] sm:$0xff] %v1450
  %1682 = vst [vmem:[%s3 + $0x120] sm:$0xff] %v1465
  %1683 = vst [vmem:[%s3 + $0x128] sm:$0xff] %v1480
  %1684 = vst [vmem:[%s3 + $0x130] sm:$0xff] %v1495
  %1685 = vst [vmem:[%s3 + $0x138] sm:$0xff] %v1510
  %1686 = vst [vmem:[%s3 + $0x140] sm:$0xff] %v1525
  %1687 = vst [vmem:[%s3 + $0x148] sm:$0xff] %v1540
  %1688 = vst [vmem:[%s3 + $0x150] sm:$0xff] %v1555
  %1689 = vst [vmem:[%s3 + $0x158] sm:$0xff] %v1570
  %1690 = vst [vmem:[%s3 + $0x160] sm:$0xff] %v1585
  %1691 = vst [vmem:[%s3 + $0x168] sm:$0xff] %v1600
  %1692 = vst [vmem:[%s3 + $0x170] sm:$0xff] %v1615
  %1693 = vst [vmem:[%s3 + $0x178] sm:$0xff] %v1630
  %1694 = vst [vmem:[%s3 + $0x180] sm:$0xff] %v1645
  // Predicated region
  $region14: #{ae_cnn_mnist_forward.25} parent=0 // pred_check
    _
  $region15: #{ae_cnn_mnist_forward.25} parent=0 // pred_check_branch
    %1696 = sbr.rel (0) target = $region17
  $region16: #{ae_cnn_mnist_forward.25} parent=0 // pred_region
    _
  $region17: #{ae_cnn_mnist_forward.25} parent=0 // pred_fallthru
    _
  // Predicated region
  $region18: #{ae_cnn_mnist_forward.25} parent=0 // pred_check
    _
  $region19: #{ae_cnn_mnist_forward.25} parent=0 // pred_check_branch
    %1698 = sbr.rel (0) target = $region21
  $region20: #{ae_cnn_mnist_forward.25} parent=0 // pred_region
    _
  $region21: #{ae_cnn_mnist_forward.25} parent=0 // pred_fallthru
    _

// kernel: ae_cnn_mnist_forward.27
$region0: #{ae_cnn_mnist_forward.27}
  #allocation0 [shape = 'u32[]', space=smem, size = 0x4, offset = 0x4, fixed_abs, tag = 'smem constant byte address 0x4 - core index']
  #allocation1 [shape = 'u32[72,128]{1,0:T(1,128)}', space=vmem, size = 0x9000, scoped, tag = 'internal scratch']
  %s0 = inlined_call_operand.vmem [shape: bf16[392,104], index: 0, kind: input, shape index: {}]
  %s1 = inlined_call_operand.vmem [shape: bf16[104,128], index: 1, kind: input, shape index: {}]
  %s2 = inlined_call_operand.vmem [shape: f32[1,128], index: 2, kind: input, shape index: {}]
  %s3 = inlined_call_operand.vmem [shape: f32[392,128], index: 3, kind: output, shape index: {}]
  %s4 = sld [smem:[#allocation0]]
  $region22: #{ae_cnn_mnist_forward.27} parent=0
    _
  %s6 = ssub.s32 1, %s4
  %s7 = scalar_select 0, %s6, %s4
  // Predicated region
  $region2: #{ae_cnn_mnist_forward.27} parent=0 // pred_check
    _
  $region3: #{ae_cnn_mnist_forward.27} parent=0 // pred_check_branch
    %9 = sbr.rel (0) target = $region5
  $region4: #{ae_cnn_mnist_forward.27} parent=0 // pred_region
    _
  $region5: #{ae_cnn_mnist_forward.27} parent=0 // pred_fallthru
    _
  // Predicated region
  $region6: #{ae_cnn_mnist_forward.27} parent=0 // pred_check
    _
  $region7: #{ae_cnn_mnist_forward.27} parent=0 // pred_check_branch
    %11 = sbr.rel (0) target = $region9
  $region8: #{ae_cnn_mnist_forward.27} parent=0 // pred_region
    _
  $region9: #{ae_cnn_mnist_forward.27} parent=0 // pred_fallthru
    _
  // Predicated region
  $region10: #{ae_cnn_mnist_forward.27} parent=0 // pred_check
    _
  $region11: #{ae_cnn_mnist_forward.27} parent=0 // pred_check_branch
    %13 = sbr.rel (0) target = $region13
  $region12: #{ae_cnn_mnist_forward.27} parent=0 // pred_region
    _
  $region13: #{ae_cnn_mnist_forward.27} parent=0 // pred_fallthru
    _
  %v15 = vld [vmem:[%s0] sm:$0xf]
  %v16 = vld [vmem:[%s0 + $0x4] sm:$0xf]
  %v17 = vld [vmem:[%s0 + $0x8] sm:$0xf]
  %v18 = vld [vmem:[%s0 + $0xc] sm:$0xf]
  %v19 = vld [vmem:[%s0 + $0x10] sm:$0xf]
  %v20 = vld [vmem:[%s0 + $0x14] sm:$0xf]
  %v21 = vld [vmem:[%s0 + $0x18] sm:$0xf]
  %v22 = vld [vmem:[%s0 + $0x1c] sm:$0xf]
  %v23 = vld [vmem:[%s0 + $0x20] sm:$0xf]
  %v24 = vld [vmem:[%s0 + $0x24] sm:$0xf]
  %v25 = vld [vmem:[%s0 + $0x28] sm:$0xf]
  %v26 = vld [vmem:[%s0 + $0x2c] sm:$0xf]
  %v27 = vld [vmem:[%s0 + $0x30] sm:$0xf]
  %v28 = vld [vmem:[%s0 + $0x34] sm:$0xf]
  %v29 = vld [vmem:[%s0 + $0x38] sm:$0xf]
  %v30 = vld [vmem:[%s0 + $0x3c] sm:$0xf]
  %v31 = vld [vmem:[%s0 + $0x40] sm:$0xf]
  %v32 = vld [vmem:[%s0 + $0x44] sm:$0xf]
  %v33 = vld [vmem:[%s0 + $0x48] sm:$0xf]
  %v34 = vld [vmem:[%s0 + $0x4c] sm:$0xf]
  %v35 = vld [vmem:[%s0 + $0x50] sm:$0xf]
  %v36 = vld [vmem:[%s0 + $0x54] sm:$0xf]
  %v37 = vld [vmem:[%s0 + $0x58] sm:$0xf]
  %v38 = vld [vmem:[%s0 + $0x5c] sm:$0xf]
  %v39 = vld [vmem:[%s0 + $0x60] sm:$0xf]
  %v40 = vld [vmem:[%s0 + $0x64] sm:$0xf]
  %v41 = vld [vmem:[%s0 + $0x68] sm:$0xf]
  %v42 = vld [vmem:[%s0 + $0x6c] sm:$0xf]
  %v43 = vld [vmem:[%s0 + $0x70] sm:$0xf]
  %v44 = vld [vmem:[%s0 + $0x74] sm:$0xf]
  %v45 = vld [vmem:[%s0 + $0x78] sm:$0xf]
  %v46 = vld [vmem:[%s0 + $0x7c] sm:$0xf]
  %v47 = vld [vmem:[%s0 + $0x80] sm:$0xf]
  %v48 = vld [vmem:[%s0 + $0x84] sm:$0xf]
  %v49 = vld [vmem:[%s0 + $0x88] sm:$0xf]
  %v50 = vld [vmem:[%s0 + $0x8c] sm:$0xf]
  %v51 = vld [vmem:[%s0 + $0x90] sm:$0xf]
  %v52 = vld [vmem:[%s0 + $0x94] sm:$0xf]
  %v53 = vld [vmem:[%s0 + $0x98] sm:$0xf]
  %v54 = vld [vmem:[%s0 + $0x9c] sm:$0xf]
  %v55 = vld [vmem:[%s0 + $0xa0] sm:$0xf]
  %v56 = vld [vmem:[%s0 + $0xa4] sm:$0xf]
  %v57 = vld [vmem:[%s0 + $0xa8] sm:$0xf]
  %v58 = vld [vmem:[%s0 + $0xac] sm:$0xf]
  %v59 = vld [vmem:[%s0 + $0xb0] sm:$0xf]
  %v60 = vld [vmem:[%s0 + $0xb4] sm:$0xf]
  %v61 = vld [vmem:[%s0 + $0xb8] sm:$0xf]
  %v62 = vld [vmem:[%s0 + $0xbc] sm:$0xf]
  %v63 = vld [vmem:[%s0 + $0xc0] sm:$0xf]
  %v64 = vld [vmem:[%s1] sm:$0xf]
  %v65 = vld [vmem:[%s1 + $0x4] sm:$0xf]
  %v66 = vld [vmem:[%s1 + $0x8] sm:$0xf]
  %v67 = vld [vmem:[%s1 + $0xc] sm:$0xf]
  %v68 = vld [vmem:[%s1 + $0x10] sm:$0xf]
  %v69 = vld [vmem:[%s1 + $0x14] sm:$0xf]
  %v70 = vld [vmem:[%s1 + $0x18] sm:$0xf]
  %v71 = vld [vmem:[%s1 + $0x1c] sm:$0xf]
  %v72 = vld [vmem:[%s1 + $0x20] sm:$0xf]
  %v73 = vld [vmem:[%s1 + $0x24] sm:$0xf]
  %v74 = vld [vmem:[%s1 + $0x28] sm:$0xf]
  %v75 = vld [vmem:[%s1 + $0x2c] sm:$0xf]
  %v76 = vld [vmem:[%s1 + $0x30] sm:$0xf]
  %v77 = vld [vmem:[%s2] sm:$0x1]
  %v79 = vperm.slane %v77, 0
  %v130 = vunpack.c.l.b16 %v15
  %v131 = vunpack.c.l.b16 %v16
  %v132 = vunpack.c.l.b16 %v17
  %v133 = vunpack.c.l.b16 %v18
  %v134 = vunpack.c.l.b16 %v19
  %v135 = vunpack.c.l.b16 %v20
  %v136 = vunpack.c.l.b16 %v21
  %v137 = vunpack.c.l.b16 %v22
  %v138 = vunpack.c.l.b16 %v23
  %v139 = vunpack.c.l.b16 %v24
  %v140 = vunpack.c.l.b16 %v25
  %v141 = vunpack.c.l.b16 %v26
  %v142 = vunpack.c.l.b16 %v27
  %v143 = vunpack.c.l.b16 %v28
  %v144 = vunpack.c.l.b16 %v29
  %v145 = vunpack.c.l.b16 %v30
  %v146 = vunpack.c.l.b16 %v31
  %v147 = vunpack.c.l.b16 %v32
  %v148 = vunpack.c.l.b16 %v33
  %v149 = vunpack.c.l.b16 %v34
  %v150 = vunpack.c.l.b16 %v35
  %v151 = vunpack.c.l.b16 %v36
  %v152 = vunpack.c.l.b16 %v37
  %v153 = vunpack.c.l.b16 %v38
  %v154 = vunpack.c.l.b16 %v39
  %v155 = vunpack.c.l.b16 %v40
  %v156 = vunpack.c.l.b16 %v41
  %v157 = vunpack.c.l.b16 %v42
  %v158 = vunpack.c.l.b16 %v43
  %v159 = vunpack.c.l.b16 %v44
  %v160 = vunpack.c.l.b16 %v45
  %v161 = vunpack.c.l.b16 %v46
  %v162 = vunpack.c.l.b16 %v47
  %v163 = vunpack.c.l.b16 %v48
  %v164 = vunpack.c.l.b16 %v49
  %v165 = vunpack.c.l.b16 %v50
  %v166 = vunpack.c.l.b16 %v51
  %v167 = vunpack.c.l.b16 %v52
  %v168 = vunpack.c.l.b16 %v53
  %v169 = vunpack.c.l.b16 %v54
  %v170 = vunpack.c.l.b16 %v55
  %v171 = vunpack.c.l.b16 %v56
  %v172 = vunpack.c.l.b16 %v57
  %v173 = vunpack.c.l.b16 %v58
  %v174 = vunpack.c.l.b16 %v59
  %v175 = vunpack.c.l.b16 %v60
  %v176 = vunpack.c.l.b16 %v61
  %v177 = vunpack.c.l.b16 %v62
  %v178 = vunpack.c.l.b16 %v63
  %v179 = vpack.c.b16 %v131, %v130
  %v180 = vpack.c.b16 %v133, %v132
  %v181 = vpack.c.b16 %v135, %v134
  %v182 = vpack.c.b16 %v137, %v136
  %v183 = vpack.c.b16 %v139, %v138
  %v184 = vpack.c.b16 %v141, %v140
  %v185 = vpack.c.b16 %v143, %v142
  %v186 = vpack.c.b16 %v145, %v144
  %v187 = vpack.c.b16 %v147, %v146
  %v188 = vpack.c.b16 %v149, %v148
  %v189 = vpack.c.b16 %v151, %v150
  %v190 = vpack.c.b16 %v153, %v152
  %v191 = vpack.c.b16 %v155, %v154
  %v192 = vpack.c.b16 %v157, %v156
  %v193 = vpack.c.b16 %v159, %v158
  %v194 = vpack.c.b16 %v161, %v160
  %v195 = vpack.c.b16 %v163, %v162
  %v196 = vpack.c.b16 %v165, %v164
  %v197 = vpack.c.b16 %v167, %v166
  %v198 = vpack.c.b16 %v169, %v168
  %v199 = vpack.c.b16 %v171, %v170
  %v200 = vpack.c.b16 %v173, %v172
  %v201 = vpack.c.b16 %v175, %v174
  %v202 = vpack.c.b16 %v177, %v176
  %v203 = vpack.c.b16 %v178, %v178
  %v217 = vunpack.c.l.b16 %v64
  %v218 = vunpack.c.l.b16 %v65
  %v219 = vunpack.c.l.b16 %v66
  %v220 = vunpack.c.l.b16 %v67
  %v221 = vunpack.c.l.b16 %v68
  %v222 = vunpack.c.l.b16 %v69
  %v223 = vunpack.c.l.b16 %v70
  %v224 = vunpack.c.l.b16 %v71
  %v225 = vunpack.c.l.b16 %v72
  %v226 = vunpack.c.l.b16 %v73
  %v227 = vunpack.c.l.b16 %v74
  %v228 = vunpack.c.l.b16 %v75
  %v229 = vunpack.c.l.b16 %v76
  %v230 = vpack.c.b16 %v218, %v217
  %v231 = vpack.c.b16 %v220, %v219
  %v232 = vpack.c.b16 %v222, %v221
  %v233 = vpack.c.b16 %v224, %v223
  %v234 = vpack.c.b16 %v226, %v225
  %v235 = vpack.c.b16 %v228, %v227
  %v236 = vpack.c.b16 %v229, %v229
  %vm243 = vcmask 850944
  %v245 = vsel %vm243, %v179, 0
  %v248 = vsel %vm243, %v180, 0
  %v251 = vsel %vm243, %v181, 0
  %v254 = vsel %vm243, %v182, 0
  %v257 = vsel %vm243, %v183, 0
  %v260 = vsel %vm243, %v184, 0
  %v263 = vsel %vm243, %v185, 0
  %v266 = vsel %vm243, %v186, 0
  %v269 = vsel %vm243, %v187, 0
  %v272 = vsel %vm243, %v188, 0
  %v275 = vsel %vm243, %v189, 0
  %v278 = vsel %vm243, %v190, 0
  %v281 = vsel %vm243, %v191, 0
  %v284 = vsel %vm243, %v192, 0
  %v287 = vsel %vm243, %v193, 0
  %v290 = vsel %vm243, %v194, 0
  %v293 = vsel %vm243, %v195, 0
  %v296 = vsel %vm243, %v196, 0
  %v299 = vsel %vm243, %v197, 0
  %v302 = vsel %vm243, %v198, 0
  %v305 = vsel %vm243, %v199, 0
  %v308 = vsel %vm243, %v200, 0
  %v311 = vsel %vm243, %v201, 0
  %v314 = vsel %vm243, %v202, 0
  %v317 = vsel %vm243, %v203, 0
  %vm319 = vcmask 1043456
  %v321 = vsel %vm319, %v236, 0
  %323 = vmatpush.bf16.msra.mxu0 0
  %324 = vmatpush.bf16.msra.mxu0 %v321
  %325 = vmatpush.bf16.msra.mxu0 %v235
  %326 = vmatpush.bf16.msra.mxu0 %v234
  %327 = vmatpush.bf16.msra.mxu0 %v233
  %328 = vmatpush.bf16.msra.mxu0 %v232
  %329 = vmatpush.bf16.msra.mxu0 %v231
  %330 = vmatpush.bf16.msra.mxu0 %v230
  %331 = vmatmul.bf16.gmra.mxu0 %v245
  %v332 = vpop.f32.mrf.mxu0
  %v333 = vadd.f32 %v79, %v332
  %v334 = vpop.f32.mrf.mxu0
  %v335 = vadd.f32 %v79, %v334
  %336 = vmatmul.bf16.gmra.mxu0 %v248
  %v337 = vpop.f32.mrf.mxu0
  %v338 = vadd.f32 %v79, %v337
  %v339 = vpop.f32.mrf.mxu0
  %v340 = vadd.f32 %v79, %v339
  %341 = vmatmul.bf16.gmra.mxu0 %v251
  %v342 = vpop.f32.mrf.mxu0
  %v343 = vadd.f32 %v79, %v342
  %v344 = vpop.f32.mrf.mxu0
  %v345 = vadd.f32 %v79, %v344
  %346 = vmatmul.bf16.gmra.mxu0 %v254
  %v347 = vpop.f32.mrf.mxu0
  %v348 = vadd.f32 %v79, %v347
  %v349 = vpop.f32.mrf.mxu0
  %v350 = vadd.f32 %v79, %v349
  %351 = vmatmul.bf16.gmra.mxu0 %v257
  %v352 = vpop.f32.mrf.mxu0
  %v353 = vadd.f32 %v79, %v352
  %v354 = vpop.f32.mrf.mxu0
  %v355 = vadd.f32 %v79, %v354
  %356 = vmatmul.bf16.gmra.mxu0 %v260
  %v357 = vpop.f32.mrf.mxu0
  %v358 = vadd.f32 %v79, %v357
  %v359 = vpop.f32.mrf.mxu0
  %v360 = vadd.f32 %v79, %v359
  %361 = vmatmul.bf16.gmra.mxu0 %v263
  %v362 = vpop.f32.mrf.mxu0
  %v363 = vadd.f32 %v79, %v362
  %v364 = vpop.f32.mrf.mxu0
  %v365 = vadd.f32 %v79, %v364
  %366 = vmatmul.bf16.gmra.mxu0 %v266
  %v367 = vpop.f32.mrf.mxu0
  %v368 = vadd.f32 %v79, %v367
  %v369 = vpop.f32.mrf.mxu0
  %v370 = vadd.f32 %v79, %v369
  %371 = vmatmul.bf16.gmra.mxu0 %v269
  %v372 = vpop.f32.mrf.mxu0
  %v373 = vadd.f32 %v79, %v372
  %v374 = vpop.f32.mrf.mxu0
  %v375 = vadd.f32 %v79, %v374
  %376 = vmatmul.bf16.gmra.mxu0 %v272
  %v377 = vpop.f32.mrf.mxu0
  %v378 = vadd.f32 %v79, %v377
  %v379 = vpop.f32.mrf.mxu0
  %v380 = vadd.f32 %v79, %v379
  %381 = vmatmul.bf16.gmra.mxu0 %v275
  %v382 = vpop.f32.mrf.mxu0
  %v383 = vadd.f32 %v79, %v382
  %v384 = vpop.f32.mrf.mxu0
  %v385 = vadd.f32 %v79, %v384
  %386 = vmatmul.bf16.gmra.mxu0 %v278
  %v387 = vpop.f32.mrf.mxu0
  %v388 = vadd.f32 %v79, %v387
  %v389 = vpop.f32.mrf.mxu0
  %v390 = vadd.f32 %v79, %v389
  %391 = vmatmul.bf16.gmra.mxu0 %v281
  %v392 = vpop.f32.mrf.mxu0
  %v393 = vadd.f32 %v79, %v392
  %v394 = vpop.f32.mrf.mxu0
  %v395 = vadd.f32 %v79, %v394
  %396 = vmatmul.bf16.gmra.mxu0 %v284
  %v397 = vpop.f32.mrf.mxu0
  %v398 = vadd.f32 %v79, %v397
  %v399 = vpop.f32.mrf.mxu0
  %v400 = vadd.f32 %v79, %v399
  %401 = vmatmul.bf16.gmra.mxu0 %v287
  %v402 = vpop.f32.mrf.mxu0
  %v403 = vadd.f32 %v79, %v402
  %v404 = vpop.f32.mrf.mxu0
  %v405 = vadd.f32 %v79, %v404
  %406 = vmatmul.bf16.gmra.mxu0 %v290
  %v407 = vpop.f32.mrf.mxu0
  %v408 = vadd.f32 %v79, %v407
  %v409 = vpop.f32.mrf.mxu0
  %v410 = vadd.f32 %v79, %v409
  %411 = vmatmul.bf16.gmra.mxu0 %v293
  %v412 = vpop.f32.mrf.mxu0
  %v413 = vadd.f32 %v79, %v412
  %v414 = vpop.f32.mrf.mxu0
  %v415 = vadd.f32 %v79, %v414
  %416 = vmatmul.bf16.gmra.mxu0 %v296
  %v417 = vpop.f32.mrf.mxu0
  %v418 = vadd.f32 %v79, %v417
  %v419 = vpop.f32.mrf.mxu0
  %v420 = vadd.f32 %v79, %v419
  %421 = vmatmul.bf16.gmra.mxu0 %v299
  %v422 = vpop.f32.mrf.mxu0
  %v423 = vadd.f32 %v79, %v422
  %v424 = vpop.f32.mrf.mxu0
  %v425 = vadd.f32 %v79, %v424
  %426 = vmatmul.bf16.gmra.mxu0 %v302
  %v427 = vpop.f32.mrf.mxu0
  %v428 = vadd.f32 %v79, %v427
  %v429 = vpop.f32.mrf.mxu0
  %v430 = vadd.f32 %v79, %v429
  %431 = vmatmul.bf16.gmra.mxu0 %v305
  %v432 = vpop.f32.mrf.mxu0
  %v433 = vadd.f32 %v79, %v432
  %v434 = vpop.f32.mrf.mxu0
  %v435 = vadd.f32 %v79, %v434
  %436 = vmatmul.bf16.gmra.mxu0 %v308
  %v437 = vpop.f32.mrf.mxu0
  %v438 = vadd.f32 %v79, %v437
  %v439 = vpop.f32.mrf.mxu0
  %v440 = vadd.f32 %v79, %v439
  %441 = vmatmul.bf16.gmra.mxu0 %v311
  %v442 = vpop.f32.mrf.mxu0
  %v443 = vadd.f32 %v79, %v442
  %v444 = vpop.f32.mrf.mxu0
  %v445 = vadd.f32 %v79, %v444
  %446 = vmatmul.bf16.gmra.mxu0 %v314
  %v447 = vpop.f32.mrf.mxu0
  %v448 = vadd.f32 %v79, %v447
  %v449 = vpop.f32.mrf.mxu0
  %v450 = vadd.f32 %v79, %v449
  %451 = vmatmul.bf16.gmra.mxu0 %v317
  %v452 = vpop.f32.mrf.mxu0
  %v453 = vadd.f32 %v79, %v452
  %v454 = vpop.f32.mrf.mxu0
  %455 = vdwg.mxu0
  %v456 = vxor.u32 %v333, 2147483648
  %v457 = vxor.u32 %v335, 2147483648
  %v458 = vxor.u32 %v338, 2147483648
  %v459 = vxor.u32 %v340, 2147483648
  %v460 = vxor.u32 %v343, 2147483648
  %v461 = vxor.u32 %v345, 2147483648
  %v462 = vxor.u32 %v348, 2147483648
  %v463 = vxor.u32 %v350, 2147483648
  %v464 = vxor.u32 %v353, 2147483648
  %v465 = vxor.u32 %v355, 2147483648
  %v466 = vxor.u32 %v358, 2147483648
  %v467 = vxor.u32 %v360, 2147483648
  %v468 = vxor.u32 %v363, 2147483648
  %v469 = vxor.u32 %v365, 2147483648
  %v470 = vxor.u32 %v368, 2147483648
  %v471 = vxor.u32 %v370, 2147483648
  %v472 = vxor.u32 %v373, 2147483648
  %v473 = vxor.u32 %v375, 2147483648
  %v474 = vxor.u32 %v378, 2147483648
  %v475 = vxor.u32 %v380, 2147483648
  %v476 = vxor.u32 %v383, 2147483648
  %v477 = vxor.u32 %v385, 2147483648
  %v478 = vxor.u32 %v388, 2147483648
  %v479 = vxor.u32 %v390, 2147483648
  %v480 = vxor.u32 %v393, 2147483648
  %v481 = vxor.u32 %v395, 2147483648
  %v482 = vxor.u32 %v398, 2147483648
  %v483 = vxor.u32 %v400, 2147483648
  %v484 = vxor.u32 %v403, 2147483648
  %v485 = vxor.u32 %v405, 2147483648
  %v486 = vxor.u32 %v408, 2147483648
  %v487 = vxor.u32 %v410, 2147483648
  %v488 = vxor.u32 %v413, 2147483648
  %v489 = vxor.u32 %v415, 2147483648
  %v490 = vxor.u32 %v418, 2147483648
  %v491 = vxor.u32 %v420, 2147483648
  %v492 = vxor.u32 %v423, 2147483648
  %v493 = vxor.u32 %v425, 2147483648
  %v494 = vxor.u32 %v428, 2147483648
  %v495 = vxor.u32 %v430, 2147483648
  %v496 = vxor.u32 %v433, 2147483648
  %v497 = vxor.u32 %v435, 2147483648
  %v498 = vxor.u32 %v438, 2147483648
  %v499 = vxor.u32 %v440, 2147483648
  %v500 = vxor.u32 %v443, 2147483648
  %v501 = vxor.u32 %v445, 2147483648
  %v502 = vxor.u32 %v448, 2147483648
  %v503 = vxor.u32 %v450, 2147483648
  %v504 = vxor.u32 %v453, 2147483648
  %v505 = vmul.f32 %v456, 1.442695
  %v506 = vpow.pop %v505
  %v507 = vmul.f32 %v457, 1.442695
  %v508 = vpow.pop %v507
  %v509 = vmul.f32 %v458, 1.442695
  %v510 = vpow.pop %v509
  %v511 = vmul.f32 %v459, 1.442695
  %v512 = vpow.pop %v511
  %v513 = vmul.f32 %v460, 1.442695
  %v514 = vpow.pop %v513
  %v515 = vmul.f32 %v461, 1.442695
  %v516 = vpow.pop %v515
  %v517 = vmul.f32 %v462, 1.442695
  %v518 = vpow.pop %v517
  %v519 = vmul.f32 %v463, 1.442695
  %v520 = vpow.pop %v519
  %v521 = vmul.f32 %v464, 1.442695
  %v522 = vpow.pop %v521
  %v523 = vmul.f32 %v465, 1.442695
  %v524 = vpow.pop %v523
  %v525 = vmul.f32 %v466, 1.442695
  %v526 = vpow.pop %v525
  %v527 = vmul.f32 %v467, 1.442695
  %v528 = vpow.pop %v527
  %v529 = vmul.f32 %v468, 1.442695
  %v530 = vpow.pop %v529
  %v531 = vmul.f32 %v469, 1.442695
  %v532 = vpow.pop %v531
  %v533 = vmul.f32 %v470, 1.442695
  %v534 = vpow.pop %v533
  %v535 = vmul.f32 %v471, 1.442695
  %v536 = vpow.pop %v535
  %v537 = vmul.f32 %v472, 1.442695
  %v538 = vpow.pop %v537
  %v539 = vmul.f32 %v473, 1.442695
  %v540 = vpow.pop %v539
  %v541 = vmul.f32 %v474, 1.442695
  %v542 = vpow.pop %v541
  %v543 = vmul.f32 %v475, 1.442695
  %v544 = vpow.pop %v543
  %v545 = vmul.f32 %v476, 1.442695
  %v546 = vpow.pop %v545
  %v547 = vmul.f32 %v477, 1.442695
  %v548 = vpow.pop %v547
  %v549 = vmul.f32 %v478, 1.442695
  %v550 = vpow.pop %v549
  %v551 = vmul.f32 %v479, 1.442695
  %v552 = vpow.pop %v551
  %v553 = vmul.f32 %v480, 1.442695
  %v554 = vpow.pop %v553
  %v555 = vmul.f32 %v481, 1.442695
  %v556 = vpow.pop %v555
  %v557 = vmul.f32 %v482, 1.442695
  %v558 = vpow.pop %v557
  %v559 = vmul.f32 %v483, 1.442695
  %v560 = vpow.pop %v559
  %v561 = vmul.f32 %v484, 1.442695
  %v562 = vpow.pop %v561
  %v563 = vmul.f32 %v485, 1.442695
  %v564 = vpow.pop %v563
  %v565 = vmul.f32 %v486, 1.442695
  %v566 = vpow.pop %v565
  %v567 = vmul.f32 %v487, 1.442695
  %v568 = vpow.pop %v567
  %v569 = vmul.f32 %v488, 1.442695
  %v570 = vpow.pop %v569
  %v571 = vmul.f32 %v489, 1.442695
  %v572 = vpow.pop %v571
  %v573 = vmul.f32 %v490, 1.442695
  %v574 = vpow.pop %v573
  %v575 = vmul.f32 %v491, 1.442695
  %v576 = vpow.pop %v575
  %v577 = vmul.f32 %v492, 1.442695
  %v578 = vpow.pop %v577
  %v579 = vmul.f32 %v493, 1.442695
  %v580 = vpow.pop %v579
  %v581 = vmul.f32 %v494, 1.442695
  %v582 = vpow.pop %v581
  %v583 = vmul.f32 %v495, 1.442695
  %v584 = vpow.pop %v583
  %v585 = vmul.f32 %v496, 1.442695
  %v586 = vpow.pop %v585
  %v587 = vmul.f32 %v497, 1.442695
  %v588 = vpow.pop %v587
  %v589 = vmul.f32 %v498, 1.442695
  %v590 = vpow.pop %v589
  %v591 = vmul.f32 %v499, 1.442695
  %v592 = vpow.pop %v591
  %v593 = vmul.f32 %v500, 1.442695
  %v594 = vpow.pop %v593
  %v595 = vmul.f32 %v501, 1.442695
  %v596 = vpow.pop %v595
  %v597 = vmul.f32 %v502, 1.442695
  %v598 = vpow.pop %v597
  %v599 = vmul.f32 %v503, 1.442695
  %v600 = vpow.pop %v599
  %v601 = vmul.f32 %v504, 1.442695
  %v602 = vpow.pop %v601
  %v603 = vadd.f32 %v506, 1.0
  %v604 = vadd.f32 %v508, 1.0
  %v605 = vadd.f32 %v510, 1.0
  %v606 = vadd.f32 %v512, 1.0
  %v607 = vadd.f32 %v514, 1.0
  %v608 = vadd.f32 %v516, 1.0
  %v609 = vadd.f32 %v518, 1.0
  %v610 = vadd.f32 %v520, 1.0
  %v611 = vadd.f32 %v522, 1.0
  %v612 = vadd.f32 %v524, 1.0
  %v613 = vadd.f32 %v526, 1.0
  %v614 = vadd.f32 %v528, 1.0
  %v615 = vadd.f32 %v530, 1.0
  %v616 = vadd.f32 %v532, 1.0
  %v617 = vadd.f32 %v534, 1.0
  %v618 = vadd.f32 %v536, 1.0
  %v619 = vadd.f32 %v538, 1.0
  %v620 = vadd.f32 %v540, 1.0
  %v621 = vadd.f32 %v542, 1.0
  %v622 = vadd.f32 %v544, 1.0
  %v623 = vadd.f32 %v546, 1.0
  %v624 = vadd.f32 %v548, 1.0
  %v625 = vadd.f32 %v550, 1.0
  %v626 = vadd.f32 %v552, 1.0
  %v627 = vadd.f32 %v554, 1.0
  %v628 = vadd.f32 %v556, 1.0
  %v629 = vadd.f32 %v558, 1.0
  %v630 = vadd.f32 %v560, 1.0
  %v631 = vadd.f32 %v562, 1.0
  %v632 = vadd.f32 %v564, 1.0
  %v633 = vadd.f32 %v566, 1.0
  %v634 = vadd.f32 %v568, 1.0
  %v635 = vadd.f32 %v570, 1.0
  %v636 = vadd.f32 %v572, 1.0
  %v637 = vadd.f32 %v574, 1.0
  %v638 = vadd.f32 %v576, 1.0
  %v639 = vadd.f32 %v578, 1.0
  %v640 = vadd.f32 %v580, 1.0
  %v641 = vadd.f32 %v582, 1.0
  %v642 = vadd.f32 %v584, 1.0
  %v643 = vadd.f32 %v586, 1.0
  %v644 = vadd.f32 %v588, 1.0
  %v645 = vadd.f32 %v590, 1.0
  %v646 = vadd.f32 %v592, 1.0
  %v647 = vadd.f32 %v594, 1.0
  %v648 = vadd.f32 %v596, 1.0
  %v649 = vadd.f32 %v598, 1.0
  %v650 = vadd.f32 %v600, 1.0
  %v651 = vadd.f32 %v602, 1.0
  %v652 = vrcp.pop %v603
  %v653 = vmul.f32 %v603, %v652
  %v654 = vsub.f32 1.0, %v653
  %v655 = vmul.f32 %v652, %v654
  %v656 = vadd.f32 %v652, %v655
  %vm657 = vweird.f32 %v603
  %vm658 = vweird.f32 %v652
  %vm659 = vmor %vm657, %vm658
  %v660 = vsel %vm659, %v652, %v656
  %v661 = vand.u32 2147483647, %v603
  %vm662 = vcmp.eq.f32.partialorder %v661, 8.507059e+37
  %v663 = vand.u32 %v603, 2147483648
  %v664 = vor.u32 1.1754944e-38, %v663
  %v665 = vsel %vm662, %v664, %v660
  %v666 = vmul.f32 1.0, %v665
  %v667 = vrcp.pop %v604
  %v668 = vmul.f32 %v604, %v667
  %v669 = vsub.f32 1.0, %v668
  %v670 = vmul.f32 %v667, %v669
  %v671 = vadd.f32 %v667, %v670
  %vm672 = vweird.f32 %v604
  %vm673 = vweird.f32 %v667
  %vm674 = vmor %vm672, %vm673
  %v675 = vsel %vm674, %v667, %v671
  %v676 = vand.u32 2147483647, %v604
  %vm677 = vcmp.eq.f32.partialorder %v676, 8.507059e+37
  %v678 = vand.u32 %v604, 2147483648
  %v679 = vor.u32 1.1754944e-38, %v678
  %v680 = vsel %vm677, %v679, %v675
  %v681 = vmul.f32 1.0, %v680
  %v682 = vrcp.pop %v605
  %v683 = vmul.f32 %v605, %v682
  %v684 = vsub.f32 1.0, %v683
  %v685 = vmul.f32 %v682, %v684
  %v686 = vadd.f32 %v682, %v685
  %vm687 = vweird.f32 %v605
  %vm688 = vweird.f32 %v682
  %vm689 = vmor %vm687, %vm688
  %v690 = vsel %vm689, %v682, %v686
  %v691 = vand.u32 2147483647, %v605
  %vm692 = vcmp.eq.f32.partialorder %v691, 8.507059e+37
  %v693 = vand.u32 %v605, 2147483648
  %v694 = vor.u32 1.1754944e-38, %v693
  %v695 = vsel %vm692, %v694, %v690
  %v696 = vmul.f32 1.0, %v695
  %v697 = vrcp.pop %v606
  %v698 = vmul.f32 %v606, %v697
  %v699 = vsub.f32 1.0, %v698
  %v700 = vmul.f32 %v697, %v699
  %v701 = vadd.f32 %v697, %v700
  %vm702 = vweird.f32 %v606
  %vm703 = vweird.f32 %v697
  %vm704 = vmor %vm702, %vm703
  %v705 = vsel %vm704, %v697, %v701
  %v706 = vand.u32 2147483647, %v606
  %vm707 = vcmp.eq.f32.partialorder %v706, 8.507059e+37
  %v708 = vand.u32 %v606, 2147483648
  %v709 = vor.u32 1.1754944e-38, %v708
  %v710 = vsel %vm707, %v709, %v705
  %v711 = vmul.f32 1.0, %v710
  %v712 = vrcp.pop %v607
  %v713 = vmul.f32 %v607, %v712
  %v714 = vsub.f32 1.0, %v713
  %v715 = vmul.f32 %v712, %v714
  %v716 = vadd.f32 %v712, %v715
  %vm717 = vweird.f32 %v607
  %vm718 = vweird.f32 %v712
  %vm719 = vmor %vm717, %vm718
  %v720 = vsel %vm719, %v712, %v716
  %v721 = vand.u32 2147483647, %v607
  %vm722 = vcmp.eq.f32.partialorder %v721, 8.507059e+37
  %v723 = vand.u32 %v607, 2147483648
  %v724 = vor.u32 1.1754944e-38, %v723
  %v725 = vsel %vm722, %v724, %v720
  %v726 = vmul.f32 1.0, %v725
  %v727 = vrcp.pop %v608
  %v728 = vmul.f32 %v608, %v727
  %v729 = vsub.f32 1.0, %v728
  %v730 = vmul.f32 %v727, %v729
  %v731 = vadd.f32 %v727, %v730
  %vm732 = vweird.f32 %v608
  %vm733 = vweird.f32 %v727
  %vm734 = vmor %vm732, %vm733
  %v735 = vsel %vm734, %v727, %v731
  %v736 = vand.u32 2147483647, %v608
  %vm737 = vcmp.eq.f32.partialorder %v736, 8.507059e+37
  %v738 = vand.u32 %v608, 2147483648
  %v739 = vor.u32 1.1754944e-38, %v738
  %v740 = vsel %vm737, %v739, %v735
  %v741 = vmul.f32 1.0, %v740
  %v742 = vrcp.pop %v609
  %v743 = vmul.f32 %v609, %v742
  %v744 = vsub.f32 1.0, %v743
  %v745 = vmul.f32 %v742, %v744
  %v746 = vadd.f32 %v742, %v745
  %vm747 = vweird.f32 %v609
  %vm748 = vweird.f32 %v742
  %vm749 = vmor %vm747, %vm748
  %v750 = vsel %vm749, %v742, %v746
  %v751 = vand.u32 2147483647, %v609
  %vm752 = vcmp.eq.f32.partialorder %v751, 8.507059e+37
  %v753 = vand.u32 %v609, 2147483648
  %v754 = vor.u32 1.1754944e-38, %v753
  %v755 = vsel %vm752, %v754, %v750
  %v756 = vmul.f32 1.0, %v755
  %v757 = vrcp.pop %v610
  %v758 = vmul.f32 %v610, %v757
  %v759 = vsub.f32 1.0, %v758
  %v760 = vmul.f32 %v757, %v759
  %v761 = vadd.f32 %v757, %v760
  %vm762 = vweird.f32 %v610
  %vm763 = vweird.f32 %v757
  %vm764 = vmor %vm762, %vm763
  %v765 = vsel %vm764, %v757, %v761
  %v766 = vand.u32 2147483647, %v610
  %vm767 = vcmp.eq.f32.partialorder %v766, 8.507059e+37
  %v768 = vand.u32 %v610, 2147483648
  %v769 = vor.u32 1.1754944e-38, %v768
  %v770 = vsel %vm767, %v769, %v765
  %v771 = vmul.f32 1.0, %v770
  %v772 = vrcp.pop %v611
  %v773 = vmul.f32 %v611, %v772
  %v774 = vsub.f32 1.0, %v773
  %v775 = vmul.f32 %v772, %v774
  %v776 = vadd.f32 %v772, %v775
  %vm777 = vweird.f32 %v611
  %vm778 = vweird.f32 %v772
  %vm779 = vmor %vm777, %vm778
  %v780 = vsel %vm779, %v772, %v776
  %v781 = vand.u32 2147483647, %v611
  %vm782 = vcmp.eq.f32.partialorder %v781, 8.507059e+37
  %v783 = vand.u32 %v611, 2147483648
  %v784 = vor.u32 1.1754944e-38, %v783
  %v785 = vsel %vm782, %v784, %v780
  %v786 = vmul.f32 1.0, %v785
  %v787 = vrcp.pop %v612
  %v788 = vmul.f32 %v612, %v787
  %v789 = vsub.f32 1.0, %v788
  %v790 = vmul.f32 %v787, %v789
  %v791 = vadd.f32 %v787, %v790
  %vm792 = vweird.f32 %v612
  %vm793 = vweird.f32 %v787
  %vm794 = vmor %vm792, %vm793
  %v795 = vsel %vm794, %v787, %v791
  %v796 = vand.u32 2147483647, %v612
  %vm797 = vcmp.eq.f32.partialorder %v796, 8.507059e+37
  %v798 = vand.u32 %v612, 2147483648
  %v799 = vor.u32 1.1754944e-38, %v798
  %v800 = vsel %vm797, %v799, %v795
  %v801 = vmul.f32 1.0, %v800
  %v802 = vrcp.pop %v613
  %v803 = vmul.f32 %v613, %v802
  %v804 = vsub.f32 1.0, %v803
  %v805 = vmul.f32 %v802, %v804
  %v806 = vadd.f32 %v802, %v805
  %vm807 = vweird.f32 %v613
  %vm808 = vweird.f32 %v802
  %vm809 = vmor %vm807, %vm808
  %v810 = vsel %vm809, %v802, %v806
  %v811 = vand.u32 2147483647, %v613
  %vm812 = vcmp.eq.f32.partialorder %v811, 8.507059e+37
  %v813 = vand.u32 %v613, 2147483648
  %v814 = vor.u32 1.1754944e-38, %v813
  %v815 = vsel %vm812, %v814, %v810
  %v816 = vmul.f32 1.0, %v815
  %v817 = vrcp.pop %v614
  %v818 = vmul.f32 %v614, %v817
  %v819 = vsub.f32 1.0, %v818
  %v820 = vmul.f32 %v817, %v819
  %v821 = vadd.f32 %v817, %v820
  %vm822 = vweird.f32 %v614
  %vm823 = vweird.f32 %v817
  %vm824 = vmor %vm822, %vm823
  %v825 = vsel %vm824, %v817, %v821
  %v826 = vand.u32 2147483647, %v614
  %vm827 = vcmp.eq.f32.partialorder %v826, 8.507059e+37
  %v828 = vand.u32 %v614, 2147483648
  %v829 = vor.u32 1.1754944e-38, %v828
  %v830 = vsel %vm827, %v829, %v825
  %v831 = vmul.f32 1.0, %v830
  %v832 = vrcp.pop %v615
  %v833 = vmul.f32 %v615, %v832
  %v834 = vsub.f32 1.0, %v833
  %v835 = vmul.f32 %v832, %v834
  %v836 = vadd.f32 %v832, %v835
  %vm837 = vweird.f32 %v615
  %vm838 = vweird.f32 %v832
  %vm839 = vmor %vm837, %vm838
  %v840 = vsel %vm839, %v832, %v836
  %v841 = vand.u32 2147483647, %v615
  %vm842 = vcmp.eq.f32.partialorder %v841, 8.507059e+37
  %v843 = vand.u32 %v615, 2147483648
  %v844 = vor.u32 1.1754944e-38, %v843
  %v845 = vsel %vm842, %v844, %v840
  %v846 = vmul.f32 1.0, %v845
  %v847 = vrcp.pop %v616
  %v848 = vmul.f32 %v616, %v847
  %v849 = vsub.f32 1.0, %v848
  %v850 = vmul.f32 %v847, %v849
  %v851 = vadd.f32 %v847, %v850
  %vm852 = vweird.f32 %v616
  %vm853 = vweird.f32 %v847
  %vm854 = vmor %vm852, %vm853
  %v855 = vsel %vm854, %v847, %v851
  %v856 = vand.u32 2147483647, %v616
  %vm857 = vcmp.eq.f32.partialorder %v856, 8.507059e+37
  %v858 = vand.u32 %v616, 2147483648
  %v859 = vor.u32 1.1754944e-38, %v858
  %v860 = vsel %vm857, %v859, %v855
  %v861 = vmul.f32 1.0, %v860
  %v862 = vrcp.pop %v617
  %v863 = vmul.f32 %v617, %v862
  %v864 = vsub.f32 1.0, %v863
  %v865 = vmul.f32 %v862, %v864
  %v866 = vadd.f32 %v862, %v865
  %vm867 = vweird.f32 %v617
  %vm868 = vweird.f32 %v862
  %vm869 = vmor %vm867, %vm868
  %v870 = vsel %vm869, %v862, %v866
  %v871 = vand.u32 2147483647, %v617
  %vm872 = vcmp.eq.f32.partialorder %v871, 8.507059e+37
  %v873 = vand.u32 %v617, 2147483648
  %v874 = vor.u32 1.1754944e-38, %v873
  %v875 = vsel %vm872, %v874, %v870
  %v876 = vmul.f32 1.0, %v875
  %v877 = vrcp.pop %v618
  %v878 = vmul.f32 %v618, %v877
  %v879 = vsub.f32 1.0, %v878
  %v880 = vmul.f32 %v877, %v879
  %v881 = vadd.f32 %v877, %v880
  %vm882 = vweird.f32 %v618
  %vm883 = vweird.f32 %v877
  %vm884 = vmor %vm882, %vm883
  %v885 = vsel %vm884, %v877, %v881
  %v886 = vand.u32 2147483647, %v618
  %vm887 = vcmp.eq.f32.partialorder %v886, 8.507059e+37
  %v888 = vand.u32 %v618, 2147483648
  %v889 = vor.u32 1.1754944e-38, %v888
  %v890 = vsel %vm887, %v889, %v885
  %v891 = vmul.f32 1.0, %v890
  %v892 = vrcp.pop %v619
  %v893 = vmul.f32 %v619, %v892
  %v894 = vsub.f32 1.0, %v893
  %v895 = vmul.f32 %v892, %v894
  %v896 = vadd.f32 %v892, %v895
  %vm897 = vweird.f32 %v619
  %vm898 = vweird.f32 %v892
  %vm899 = vmor %vm897, %vm898
  %v900 = vsel %vm899, %v892, %v896
  %v901 = vand.u32 2147483647, %v619
  %vm902 = vcmp.eq.f32.partialorder %v901, 8.507059e+37
  %v903 = vand.u32 %v619, 2147483648
  %v904 = vor.u32 1.1754944e-38, %v903
  %v905 = vsel %vm902, %v904, %v900
  %v906 = vmul.f32 1.0, %v905
  %v907 = vrcp.pop %v620
  %v908 = vmul.f32 %v620, %v907
  %v909 = vsub.f32 1.0, %v908
  %v910 = vmul.f32 %v907, %v909
  %v911 = vadd.f32 %v907, %v910
  %vm912 = vweird.f32 %v620
  %vm913 = vweird.f32 %v907
  %vm914 = vmor %vm912, %vm913
  %v915 = vsel %vm914, %v907, %v911
  %v916 = vand.u32 2147483647, %v620
  %vm917 = vcmp.eq.f32.partialorder %v916, 8.507059e+37
  %v918 = vand.u32 %v620, 2147483648
  %v919 = vor.u32 1.1754944e-38, %v918
  %v920 = vsel %vm917, %v919, %v915
  %v921 = vmul.f32 1.0, %v920
  %v922 = vrcp.pop %v621
  %v923 = vmul.f32 %v621, %v922
  %v924 = vsub.f32 1.0, %v923
  %v925 = vmul.f32 %v922, %v924
  %v926 = vadd.f32 %v922, %v925
  %vm927 = vweird.f32 %v621
  %vm928 = vweird.f32 %v922
  %vm929 = vmor %vm927, %vm928
  %v930 = vsel %vm929, %v922, %v926
  %v931 = vand.u32 2147483647, %v621
  %vm932 = vcmp.eq.f32.partialorder %v931, 8.507059e+37
  %v933 = vand.u32 %v621, 2147483648
  %v934 = vor.u32 1.1754944e-38, %v933
  %v935 = vsel %vm932, %v934, %v930
  %v936 = vmul.f32 1.0, %v935
  %v937 = vrcp.pop %v622
  %v938 = vmul.f32 %v622, %v937
  %v939 = vsub.f32 1.0, %v938
  %v940 = vmul.f32 %v937, %v939
  %v941 = vadd.f32 %v937, %v940
  %vm942 = vweird.f32 %v622
  %vm943 = vweird.f32 %v937
  %vm944 = vmor %vm942, %vm943
  %v945 = vsel %vm944, %v937, %v941
  %v946 = vand.u32 2147483647, %v622
  %vm947 = vcmp.eq.f32.partialorder %v946, 8.507059e+37
  %v948 = vand.u32 %v622, 2147483648
  %v949 = vor.u32 1.1754944e-38, %v948
  %v950 = vsel %vm947, %v949, %v945
  %v951 = vmul.f32 1.0, %v950
  %v952 = vrcp.pop %v623
  %v953 = vmul.f32 %v623, %v952
  %v954 = vsub.f32 1.0, %v953
  %v955 = vmul.f32 %v952, %v954
  %v956 = vadd.f32 %v952, %v955
  %vm957 = vweird.f32 %v623
  %vm958 = vweird.f32 %v952
  %vm959 = vmor %vm957, %vm958
  %v960 = vsel %vm959, %v952, %v956
  %v961 = vand.u32 2147483647, %v623
  %vm962 = vcmp.eq.f32.partialorder %v961, 8.507059e+37
  %v963 = vand.u32 %v623, 2147483648
  %v964 = vor.u32 1.1754944e-38, %v963
  %v965 = vsel %vm962, %v964, %v960
  %v966 = vmul.f32 1.0, %v965
  %v967 = vrcp.pop %v624
  %v968 = vmul.f32 %v624, %v967
  %v969 = vsub.f32 1.0, %v968
  %v970 = vmul.f32 %v967, %v969
  %v971 = vadd.f32 %v967, %v970
  %vm972 = vweird.f32 %v624
  %vm973 = vweird.f32 %v967
  %vm974 = vmor %vm972, %vm973
  %v975 = vsel %vm974, %v967, %v971
  %v976 = vand.u32 2147483647, %v624
  %vm977 = vcmp.eq.f32.partialorder %v976, 8.507059e+37
  %v978 = vand.u32 %v624, 2147483648
  %v979 = vor.u32 1.1754944e-38, %v978
  %v980 = vsel %vm977, %v979, %v975
  %v981 = vmul.f32 1.0, %v980
  %v982 = vrcp.pop %v625
  %v983 = vmul.f32 %v625, %v982
  %v984 = vsub.f32 1.0, %v983
  %v985 = vmul.f32 %v982, %v984
  %v986 = vadd.f32 %v982, %v985
  %vm987 = vweird.f32 %v625
  %vm988 = vweird.f32 %v982
  %vm989 = vmor %vm987, %vm988
  %v990 = vsel %vm989, %v982, %v986
  %v991 = vand.u32 2147483647, %v625
  %vm992 = vcmp.eq.f32.partialorder %v991, 8.507059e+37
  %v993 = vand.u32 %v625, 2147483648
  %v994 = vor.u32 1.1754944e-38, %v993
  %v995 = vsel %vm992, %v994, %v990
  %v996 = vmul.f32 1.0, %v995
  %v997 = vrcp.pop %v626
  %v998 = vmul.f32 %v626, %v997
  %v999 = vsub.f32 1.0, %v998
  %v1000 = vmul.f32 %v997, %v999
  %v1001 = vadd.f32 %v997, %v1000
  %vm1002 = vweird.f32 %v626
  %vm1003 = vweird.f32 %v997
  %vm1004 = vmor %vm1002, %vm1003
  %v1005 = vsel %vm1004, %v997, %v1001
  %v1006 = vand.u32 2147483647, %v626
  %vm1007 = vcmp.eq.f32.partialorder %v1006, 8.507059e+37
  %v1008 = vand.u32 %v626, 2147483648
  %v1009 = vor.u32 1.1754944e-38, %v1008
  %v1010 = vsel %vm1007, %v1009, %v1005
  %v1011 = vmul.f32 1.0, %v1010
  %v1012 = vrcp.pop %v627
  %v1013 = vmul.f32 %v627, %v1012
  %v1014 = vsub.f32 1.0, %v1013
  %v1015 = vmul.f32 %v1012, %v1014
  %v1016 = vadd.f32 %v1012, %v1015
  %vm1017 = vweird.f32 %v627
  %vm1018 = vweird.f32 %v1012
  %vm1019 = vmor %vm1017, %vm1018
  %v1020 = vsel %vm1019, %v1012, %v1016
  %v1021 = vand.u32 2147483647, %v627
  %vm1022 = vcmp.eq.f32.partialorder %v1021, 8.507059e+37
  %v1023 = vand.u32 %v627, 2147483648
  %v1024 = vor.u32 1.1754944e-38, %v1023
  %v1025 = vsel %vm1022, %v1024, %v1020
  %v1026 = vmul.f32 1.0, %v1025
  %v1027 = vrcp.pop %v628
  %v1028 = vmul.f32 %v628, %v1027
  %v1029 = vsub.f32 1.0, %v1028
  %v1030 = vmul.f32 %v1027, %v1029
  %v1031 = vadd.f32 %v1027, %v1030
  %vm1032 = vweird.f32 %v628
  %vm1033 = vweird.f32 %v1027
  %vm1034 = vmor %vm1032, %vm1033
  %v1035 = vsel %vm1034, %v1027, %v1031
  %v1036 = vand.u32 2147483647, %v628
  %vm1037 = vcmp.eq.f32.partialorder %v1036, 8.507059e+37
  %v1038 = vand.u32 %v628, 2147483648
  %v1039 = vor.u32 1.1754944e-38, %v1038
  %v1040 = vsel %vm1037, %v1039, %v1035
  %v1041 = vmul.f32 1.0, %v1040
  %v1042 = vrcp.pop %v629
  %v1043 = vmul.f32 %v629, %v1042
  %v1044 = vsub.f32 1.0, %v1043
  %v1045 = vmul.f32 %v1042, %v1044
  %v1046 = vadd.f32 %v1042, %v1045
  %vm1047 = vweird.f32 %v629
  %vm1048 = vweird.f32 %v1042
  %vm1049 = vmor %vm1047, %vm1048
  %v1050 = vsel %vm1049, %v1042, %v1046
  %v1051 = vand.u32 2147483647, %v629
  %vm1052 = vcmp.eq.f32.partialorder %v1051, 8.507059e+37
  %v1053 = vand.u32 %v629, 2147483648
  %v1054 = vor.u32 1.1754944e-38, %v1053
  %v1055 = vsel %vm1052, %v1054, %v1050
  %v1056 = vmul.f32 1.0, %v1055
  %v1057 = vrcp.pop %v630
  %v1058 = vmul.f32 %v630, %v1057
  %v1059 = vsub.f32 1.0, %v1058
  %v1060 = vmul.f32 %v1057, %v1059
  %v1061 = vadd.f32 %v1057, %v1060
  %vm1062 = vweird.f32 %v630
  %vm1063 = vweird.f32 %v1057
  %vm1064 = vmor %vm1062, %vm1063
  %v1065 = vsel %vm1064, %v1057, %v1061
  %v1066 = vand.u32 2147483647, %v630
  %vm1067 = vcmp.eq.f32.partialorder %v1066, 8.507059e+37
  %v1068 = vand.u32 %v630, 2147483648
  %v1069 = vor.u32 1.1754944e-38, %v1068
  %v1070 = vsel %vm1067, %v1069, %v1065
  %v1071 = vmul.f32 1.0, %v1070
  %v1072 = vrcp.pop %v631
  %v1073 = vmul.f32 %v631, %v1072
  %v1074 = vsub.f32 1.0, %v1073
  %v1075 = vmul.f32 %v1072, %v1074
  %v1076 = vadd.f32 %v1072, %v1075
  %vm1077 = vweird.f32 %v631
  %vm1078 = vweird.f32 %v1072
  %vm1079 = vmor %vm1077, %vm1078
  %v1080 = vsel %vm1079, %v1072, %v1076
  %v1081 = vand.u32 2147483647, %v631
  %vm1082 = vcmp.eq.f32.partialorder %v1081, 8.507059e+37
  %v1083 = vand.u32 %v631, 2147483648
  %v1084 = vor.u32 1.1754944e-38, %v1083
  %v1085 = vsel %vm1082, %v1084, %v1080
  %v1086 = vmul.f32 1.0, %v1085
  %v1087 = vrcp.pop %v632
  %v1088 = vmul.f32 %v632, %v1087
  %v1089 = vsub.f32 1.0, %v1088
  %v1090 = vmul.f32 %v1087, %v1089
  %v1091 = vadd.f32 %v1087, %v1090
  %vm1092 = vweird.f32 %v632
  %vm1093 = vweird.f32 %v1087
  %vm1094 = vmor %vm1092, %vm1093
  %v1095 = vsel %vm1094, %v1087, %v1091
  %v1096 = vand.u32 2147483647, %v632
  %vm1097 = vcmp.eq.f32.partialorder %v1096, 8.507059e+37
  %v1098 = vand.u32 %v632, 2147483648
  %v1099 = vor.u32 1.1754944e-38, %v1098
  %v1100 = vsel %vm1097, %v1099, %v1095
  %v1101 = vmul.f32 1.0, %v1100
  %v1102 = vrcp.pop %v633
  %v1103 = vmul.f32 %v633, %v1102
  %v1104 = vsub.f32 1.0, %v1103
  %v1105 = vmul.f32 %v1102, %v1104
  %v1106 = vadd.f32 %v1102, %v1105
  %vm1107 = vweird.f32 %v633
  %vm1108 = vweird.f32 %v1102
  %vm1109 = vmor %vm1107, %vm1108
  %v1110 = vsel %vm1109, %v1102, %v1106
  %v1111 = vand.u32 2147483647, %v633
  %vm1112 = vcmp.eq.f32.partialorder %v1111, 8.507059e+37
  %v1113 = vand.u32 %v633, 2147483648
  %v1114 = vor.u32 1.1754944e-38, %v1113
  %v1115 = vsel %vm1112, %v1114, %v1110
  %v1116 = vmul.f32 1.0, %v1115
  %v1117 = vrcp.pop %v634
  %v1118 = vmul.f32 %v634, %v1117
  %v1119 = vsub.f32 1.0, %v1118
  %v1120 = vmul.f32 %v1117, %v1119
  %v1121 = vadd.f32 %v1117, %v1120
  %vm1122 = vweird.f32 %v634
  %vm1123 = vweird.f32 %v1117
  %vm1124 = vmor %vm1122, %vm1123
  %v1125 = vsel %vm1124, %v1117, %v1121
  %v1126 = vand.u32 2147483647, %v634
  %vm1127 = vcmp.eq.f32.partialorder %v1126, 8.507059e+37
  %v1128 = vand.u32 %v634, 2147483648
  %v1129 = vor.u32 1.1754944e-38, %v1128
  %v1130 = vsel %vm1127, %v1129, %v1125
  %v1131 = vmul.f32 1.0, %v1130
  %v1132 = vrcp.pop %v635
  %v1133 = vmul.f32 %v635, %v1132
  %v1134 = vsub.f32 1.0, %v1133
  %v1135 = vmul.f32 %v1132, %v1134
  %v1136 = vadd.f32 %v1132, %v1135
  %vm1137 = vweird.f32 %v635
  %vm1138 = vweird.f32 %v1132
  %vm1139 = vmor %vm1137, %vm1138
  %v1140 = vsel %vm1139, %v1132, %v1136
  %v1141 = vand.u32 2147483647, %v635
  %vm1142 = vcmp.eq.f32.partialorder %v1141, 8.507059e+37
  %v1143 = vand.u32 %v635, 2147483648
  %v1144 = vor.u32 1.1754944e-38, %v1143
  %v1145 = vsel %vm1142, %v1144, %v1140
  %v1146 = vmul.f32 1.0, %v1145
  %v1147 = vrcp.pop %v636
  %v1148 = vmul.f32 %v636, %v1147
  %v1149 = vsub.f32 1.0, %v1148
  %v1150 = vmul.f32 %v1147, %v1149
  %v1151 = vadd.f32 %v1147, %v1150
  %vm1152 = vweird.f32 %v636
  %vm1153 = vweird.f32 %v1147
  %vm1154 = vmor %vm1152, %vm1153
  %v1155 = vsel %vm1154, %v1147, %v1151
  %v1156 = vand.u32 2147483647, %v636
  %vm1157 = vcmp.eq.f32.partialorder %v1156, 8.507059e+37
  %v1158 = vand.u32 %v636, 2147483648
  %v1159 = vor.u32 1.1754944e-38, %v1158
  %v1160 = vsel %vm1157, %v1159, %v1155
  %v1161 = vmul.f32 1.0, %v1160
  %v1162 = vrcp.pop %v637
  %v1163 = vmul.f32 %v637, %v1162
  %v1164 = vsub.f32 1.0, %v1163
  %v1165 = vmul.f32 %v1162, %v1164
  %v1166 = vadd.f32 %v1162, %v1165
  %vm1167 = vweird.f32 %v637
  %vm1168 = vweird.f32 %v1162
  %vm1169 = vmor %vm1167, %vm1168
  %v1170 = vsel %vm1169, %v1162, %v1166
  %v1171 = vand.u32 2147483647, %v637
  %vm1172 = vcmp.eq.f32.partialorder %v1171, 8.507059e+37
  %v1173 = vand.u32 %v637, 2147483648
  %v1174 = vor.u32 1.1754944e-38, %v1173
  %v1175 = vsel %vm1172, %v1174, %v1170
  %v1176 = vmul.f32 1.0, %v1175
  %v1177 = vrcp.pop %v638
  %v1178 = vmul.f32 %v638, %v1177
  %v1179 = vsub.f32 1.0, %v1178
  %v1180 = vmul.f32 %v1177, %v1179
  %v1181 = vadd.f32 %v1177, %v1180
  %vm1182 = vweird.f32 %v638
  %vm1183 = vweird.f32 %v1177
  %vm1184 = vmor %vm1182, %vm1183
  %v1185 = vsel %vm1184, %v1177, %v1181
  %v1186 = vand.u32 2147483647, %v638
  %vm1187 = vcmp.eq.f32.partialorder %v1186, 8.507059e+37
  %v1188 = vand.u32 %v638, 2147483648
  %v1189 = vor.u32 1.1754944e-38, %v1188
  %v1190 = vsel %vm1187, %v1189, %v1185
  %v1191 = vmul.f32 1.0, %v1190
  %v1192 = vrcp.pop %v639
  %v1193 = vmul.f32 %v639, %v1192
  %v1194 = vsub.f32 1.0, %v1193
  %v1195 = vmul.f32 %v1192, %v1194
  %v1196 = vadd.f32 %v1192, %v1195
  %vm1197 = vweird.f32 %v639
  %vm1198 = vweird.f32 %v1192
  %vm1199 = vmor %vm1197, %vm1198
  %v1200 = vsel %vm1199, %v1192, %v1196
  %v1201 = vand.u32 2147483647, %v639
  %vm1202 = vcmp.eq.f32.partialorder %v1201, 8.507059e+37
  %v1203 = vand.u32 %v639, 2147483648
  %v1204 = vor.u32 1.1754944e-38, %v1203
  %v1205 = vsel %vm1202, %v1204, %v1200
  %v1206 = vmul.f32 1.0, %v1205
  %v1207 = vrcp.pop %v640
  %v1208 = vmul.f32 %v640, %v1207
  %v1209 = vsub.f32 1.0, %v1208
  %v1210 = vmul.f32 %v1207, %v1209
  %v1211 = vadd.f32 %v1207, %v1210
  %vm1212 = vweird.f32 %v640
  %vm1213 = vweird.f32 %v1207
  %vm1214 = vmor %vm1212, %vm1213
  %v1215 = vsel %vm1214, %v1207, %v1211
  %v1216 = vand.u32 2147483647, %v640
  %vm1217 = vcmp.eq.f32.partialorder %v1216, 8.507059e+37
  %v1218 = vand.u32 %v640, 2147483648
  %v1219 = vor.u32 1.1754944e-38, %v1218
  %v1220 = vsel %vm1217, %v1219, %v1215
  %v1221 = vmul.f32 1.0, %v1220
  %v1222 = vrcp.pop %v641
  %v1223 = vmul.f32 %v641, %v1222
  %v1224 = vsub.f32 1.0, %v1223
  %v1225 = vmul.f32 %v1222, %v1224
  %v1226 = vadd.f32 %v1222, %v1225
  %vm1227 = vweird.f32 %v641
  %vm1228 = vweird.f32 %v1222
  %vm1229 = vmor %vm1227, %vm1228
  %v1230 = vsel %vm1229, %v1222, %v1226
  %v1231 = vand.u32 2147483647, %v641
  %vm1232 = vcmp.eq.f32.partialorder %v1231, 8.507059e+37
  %v1233 = vand.u32 %v641, 2147483648
  %v1234 = vor.u32 1.1754944e-38, %v1233
  %v1235 = vsel %vm1232, %v1234, %v1230
  %v1236 = vmul.f32 1.0, %v1235
  %v1237 = vrcp.pop %v642
  %v1238 = vmul.f32 %v642, %v1237
  %v1239 = vsub.f32 1.0, %v1238
  %v1240 = vmul.f32 %v1237, %v1239
  %v1241 = vadd.f32 %v1237, %v1240
  %vm1242 = vweird.f32 %v642
  %vm1243 = vweird.f32 %v1237
  %vm1244 = vmor %vm1242, %vm1243
  %v1245 = vsel %vm1244, %v1237, %v1241
  %v1246 = vand.u32 2147483647, %v642
  %vm1247 = vcmp.eq.f32.partialorder %v1246, 8.507059e+37
  %v1248 = vand.u32 %v642, 2147483648
  %v1249 = vor.u32 1.1754944e-38, %v1248
  %v1250 = vsel %vm1247, %v1249, %v1245
  %v1251 = vmul.f32 1.0, %v1250
  %v1252 = vrcp.pop %v643
  %v1253 = vmul.f32 %v643, %v1252
  %v1254 = vsub.f32 1.0, %v1253
  %v1255 = vmul.f32 %v1252, %v1254
  %v1256 = vadd.f32 %v1252, %v1255
  %vm1257 = vweird.f32 %v643
  %vm1258 = vweird.f32 %v1252
  %vm1259 = vmor %vm1257, %vm1258
  %v1260 = vsel %vm1259, %v1252, %v1256
  %v1261 = vand.u32 2147483647, %v643
  %vm1262 = vcmp.eq.f32.partialorder %v1261, 8.507059e+37
  %v1263 = vand.u32 %v643, 2147483648
  %v1264 = vor.u32 1.1754944e-38, %v1263
  %v1265 = vsel %vm1262, %v1264, %v1260
  %v1266 = vmul.f32 1.0, %v1265
  %v1267 = vrcp.pop %v644
  %v1268 = vmul.f32 %v644, %v1267
  %v1269 = vsub.f32 1.0, %v1268
  %v1270 = vmul.f32 %v1267, %v1269
  %v1271 = vadd.f32 %v1267, %v1270
  %vm1272 = vweird.f32 %v644
  %vm1273 = vweird.f32 %v1267
  %vm1274 = vmor %vm1272, %vm1273
  %v1275 = vsel %vm1274, %v1267, %v1271
  %v1276 = vand.u32 2147483647, %v644
  %vm1277 = vcmp.eq.f32.partialorder %v1276, 8.507059e+37
  %v1278 = vand.u32 %v644, 2147483648
  %v1279 = vor.u32 1.1754944e-38, %v1278
  %v1280 = vsel %vm1277, %v1279, %v1275
  %v1281 = vmul.f32 1.0, %v1280
  %v1282 = vrcp.pop %v645
  %v1283 = vmul.f32 %v645, %v1282
  %v1284 = vsub.f32 1.0, %v1283
  %v1285 = vmul.f32 %v1282, %v1284
  %v1286 = vadd.f32 %v1282, %v1285
  %vm1287 = vweird.f32 %v645
  %vm1288 = vweird.f32 %v1282
  %vm1289 = vmor %vm1287, %vm1288
  %v1290 = vsel %vm1289, %v1282, %v1286
  %v1291 = vand.u32 2147483647, %v645
  %vm1292 = vcmp.eq.f32.partialorder %v1291, 8.507059e+37
  %v1293 = vand.u32 %v645, 2147483648
  %v1294 = vor.u32 1.1754944e-38, %v1293
  %v1295 = vsel %vm1292, %v1294, %v1290
  %v1296 = vmul.f32 1.0, %v1295
  %v1297 = vrcp.pop %v646
  %v1298 = vmul.f32 %v646, %v1297
  %v1299 = vsub.f32 1.0, %v1298
  %v1300 = vmul.f32 %v1297, %v1299
  %v1301 = vadd.f32 %v1297, %v1300
  %vm1302 = vweird.f32 %v646
  %vm1303 = vweird.f32 %v1297
  %vm1304 = vmor %vm1302, %vm1303
  %v1305 = vsel %vm1304, %v1297, %v1301
  %v1306 = vand.u32 2147483647, %v646
  %vm1307 = vcmp.eq.f32.partialorder %v1306, 8.507059e+37
  %v1308 = vand.u32 %v646, 2147483648
  %v1309 = vor.u32 1.1754944e-38, %v1308
  %v1310 = vsel %vm1307, %v1309, %v1305
  %v1311 = vmul.f32 1.0, %v1310
  %v1312 = vrcp.pop %v647
  %v1313 = vmul.f32 %v647, %v1312
  %v1314 = vsub.f32 1.0, %v1313
  %v1315 = vmul.f32 %v1312, %v1314
  %v1316 = vadd.f32 %v1312, %v1315
  %vm1317 = vweird.f32 %v647
  %vm1318 = vweird.f32 %v1312
  %vm1319 = vmor %vm1317, %vm1318
  %v1320 = vsel %vm1319, %v1312, %v1316
  %v1321 = vand.u32 2147483647, %v647
  %vm1322 = vcmp.eq.f32.partialorder %v1321, 8.507059e+37
  %v1323 = vand.u32 %v647, 2147483648
  %v1324 = vor.u32 1.1754944e-38, %v1323
  %v1325 = vsel %vm1322, %v1324, %v1320
  %v1326 = vmul.f32 1.0, %v1325
  %v1327 = vrcp.pop %v648
  %v1328 = vmul.f32 %v648, %v1327
  %v1329 = vsub.f32 1.0, %v1328
  %v1330 = vmul.f32 %v1327, %v1329
  %v1331 = vadd.f32 %v1327, %v1330
  %vm1332 = vweird.f32 %v648
  %vm1333 = vweird.f32 %v1327
  %vm1334 = vmor %vm1332, %vm1333
  %v1335 = vsel %vm1334, %v1327, %v1331
  %v1336 = vand.u32 2147483647, %v648
  %vm1337 = vcmp.eq.f32.partialorder %v1336, 8.507059e+37
  %v1338 = vand.u32 %v648, 2147483648
  %v1339 = vor.u32 1.1754944e-38, %v1338
  %v1340 = vsel %vm1337, %v1339, %v1335
  %v1341 = vmul.f32 1.0, %v1340
  %v1342 = vrcp.pop %v649
  %v1343 = vmul.f32 %v649, %v1342
  %v1344 = vsub.f32 1.0, %v1343
  %v1345 = vmul.f32 %v1342, %v1344
  %v1346 = vadd.f32 %v1342, %v1345
  %vm1347 = vweird.f32 %v649
  %vm1348 = vweird.f32 %v1342
  %vm1349 = vmor %vm1347, %vm1348
  %v1350 = vsel %vm1349, %v1342, %v1346
  %v1351 = vand.u32 2147483647, %v649
  %vm1352 = vcmp.eq.f32.partialorder %v1351, 8.507059e+37
  %v1353 = vand.u32 %v649, 2147483648
  %v1354 = vor.u32 1.1754944e-38, %v1353
  %v1355 = vsel %vm1352, %v1354, %v1350
  %v1356 = vmul.f32 1.0, %v1355
  %v1357 = vrcp.pop %v650
  %v1358 = vmul.f32 %v650, %v1357
  %v1359 = vsub.f32 1.0, %v1358
  %v1360 = vmul.f32 %v1357, %v1359
  %v1361 = vadd.f32 %v1357, %v1360
  %vm1362 = vweird.f32 %v650
  %vm1363 = vweird.f32 %v1357
  %vm1364 = vmor %vm1362, %vm1363
  %v1365 = vsel %vm1364, %v1357, %v1361
  %v1366 = vand.u32 2147483647, %v650
  %vm1367 = vcmp.eq.f32.partialorder %v1366, 8.507059e+37
  %v1368 = vand.u32 %v650, 2147483648
  %v1369 = vor.u32 1.1754944e-38, %v1368
  %v1370 = vsel %vm1367, %v1369, %v1365
  %v1371 = vmul.f32 1.0, %v1370
  %v1372 = vrcp.pop %v651
  %v1373 = vmul.f32 %v651, %v1372
  %v1374 = vsub.f32 1.0, %v1373
  %v1375 = vmul.f32 %v1372, %v1374
  %v1376 = vadd.f32 %v1372, %v1375
  %vm1377 = vweird.f32 %v651
  %vm1378 = vweird.f32 %v1372
  %vm1379 = vmor %vm1377, %vm1378
  %v1380 = vsel %vm1379, %v1372, %v1376
  %v1381 = vand.u32 2147483647, %v651
  %vm1382 = vcmp.eq.f32.partialorder %v1381, 8.507059e+37
  %v1383 = vand.u32 %v651, 2147483648
  %v1384 = vor.u32 1.1754944e-38, %v1383
  %v1385 = vsel %vm1382, %v1384, %v1380
  %v1386 = vmul.f32 1.0, %v1385
  %1387 = vst [vmem:[%s3] sm:$0xff] %v666
  %1388 = vst [vmem:[%s3 + $0x8] sm:$0xff] %v681
  %1389 = vst [vmem:[%s3 + $0x10] sm:$0xff] %v696
  %1390 = vst [vmem:[%s3 + $0x18] sm:$0xff] %v711
  %1391 = vst [vmem:[%s3 + $0x20] sm:$0xff] %v726
  %1392 = vst [vmem:[%s3 + $0x28] sm:$0xff] %v741
  %1393 = vst [vmem:[%s3 + $0x30] sm:$0xff] %v756
  %1394 = vst [vmem:[%s3 + $0x38] sm:$0xff] %v771
  %1395 = vst [vmem:[%s3 + $0x40] sm:$0xff] %v786
  %1396 = vst [vmem:[%s3 + $0x48] sm:$0xff] %v801
  %1397 = vst [vmem:[%s3 + $0x50] sm:$0xff] %v816
  %1398 = vst [vmem:[%s3 + $0x58] sm:$0xff] %v831
  %1399 = vst [vmem:[%s3 + $0x60] sm:$0xff] %v846
  %1400 = vst [vmem:[%s3 + $0x68] sm:$0xff] %v861
  %1401 = vst [vmem:[%s3 + $0x70] sm:$0xff] %v876
  %1402 = vst [vmem:[%s3 + $0x78] sm:$0xff] %v891
  %1403 = vst [vmem:[%s3 + $0x80] sm:$0xff] %v906
  %1404 = vst [vmem:[%s3 + $0x88] sm:$0xff] %v921
  %1405 = vst [vmem:[%s3 + $0x90] sm:$0xff] %v936
  %1406 = vst [vmem:[%s3 + $0x98] sm:$0xff] %v951
  %1407 = vst [vmem:[%s3 + $0xa0] sm:$0xff] %v966
  %1408 = vst [vmem:[%s3 + $0xa8] sm:$0xff] %v981
  %1409 = vst [vmem:[%s3 + $0xb0] sm:$0xff] %v996
  %1410 = vst [vmem:[%s3 + $0xb8] sm:$0xff] %v1011
  %1411 = vst [vmem:[%s3 + $0xc0] sm:$0xff] %v1026
  %1412 = vst [vmem:[%s3 + $0xc8] sm:$0xff] %v1041
  %1413 = vst [vmem:[%s3 + $0xd0] sm:$0xff] %v1056
  %1414 = vst [vmem:[%s3 + $0xd8] sm:$0xff] %v1071
  %1415 = vst [vmem:[%s3 + $0xe0] sm:$0xff] %v1086
  %1416 = vst [vmem:[%s3 + $0xe8] sm:$0xff] %v1101
  %1417 = vst [vmem:[%s3 + $0xf0] sm:$0xff] %v1116
  %1418 = vst [vmem:[%s3 + $0xf8] sm:$0xff] %v1131
  %1419 = vst [vmem:[%s3 + $0x100] sm:$0xff] %v1146
  %1420 = vst [vmem:[%s3 + $0x108] sm:$0xff] %v1161
  %1421 = vst [vmem:[%s3 + $0x110] sm:$0xff] %v1176
  %1422 = vst [vmem:[%s3 + $0x118] sm:$0xff] %v1191
  %1423 = vst [vmem:[%s3 + $0x120] sm:$0xff] %v1206
  %1424 = vst [vmem:[%s3 + $0x128] sm:$0xff] %v1221
  %1425 = vst [vmem:[%s3 + $0x130] sm:$0xff] %v1236
  %1426 = vst [vmem:[%s3 + $0x138] sm:$0xff] %v1251
  %1427 = vst [vmem:[%s3 + $0x140] sm:$0xff] %v1266
  %1428 = vst [vmem:[%s3 + $0x148] sm:$0xff] %v1281
  %1429 = vst [vmem:[%s3 + $0x150] sm:$0xff] %v1296
  %1430 = vst [vmem:[%s3 + $0x158] sm:$0xff] %v1311
  %1431 = vst [vmem:[%s3 + $0x160] sm:$0xff] %v1326
  %1432 = vst [vmem:[%s3 + $0x168] sm:$0xff] %v1341
  %1433 = vst [vmem:[%s3 + $0x170] sm:$0xff] %v1356
  %1434 = vst [vmem:[%s3 + $0x178] sm:$0xff] %v1371
  %1435 = vst [vmem:[%s3 + $0x180] sm:$0xff] %v1386
  // Predicated region
  $region14: #{ae_cnn_mnist_forward.27} parent=0 // pred_check
    _
  $region15: #{ae_cnn_mnist_forward.27} parent=0 // pred_check_branch
    %1437 = sbr.rel (0) target = $region17
  $region16: #{ae_cnn_mnist_forward.27} parent=0 // pred_region
    _
  $region17: #{ae_cnn_mnist_forward.27} parent=0 // pred_fallthru
    _
  // Predicated region
  $region18: #{ae_cnn_mnist_forward.27} parent=0 // pred_check
    _
  $region19: #{ae_cnn_mnist_forward.27} parent=0 // pred_check_branch
    %1439 = sbr.rel (0) target = $region21
  $region20: #{ae_cnn_mnist_forward.27} parent=0 // pred_region
    _
  $region21: #{ae_cnn_mnist_forward.27} parent=0 // pred_fallthru
    _

</llo_original>
